<compile_context>
chip_gen: v6e
topology: v6e:2x2x1
jax: 0.10.0
libtpu: 0.0.40
codegen_flags: <defaults>
</compile_context>

<pallas_src>
import functools

import jax
import jax.numpy as jnp
from jax.experimental import pallas as pl
from jax.experimental.pallas import tpu as pltpu


_MXU_DTYPE = jnp.bfloat16
_ACT_DTYPE = jnp.bfloat16   # intermediate activation storage dtype
_TP_TARGET = 512            # MXU M-dim target per tile; multiple of 16 (bf16 sublanes)


def _round_up(x, m):
    return ((x + m - 1) // m) * m


def _choose_tp(P):
    if P >= _TP_TARGET:
        return _TP_TARGET
    return _round_up(P, 16)


# ----------------------------------------------------------------------------
# Pallas kernel: single fused matmul (taps folded into K) + bias + activation
# ----------------------------------------------------------------------------
def _conv_kernel(x_ref, w_ref, b_ref, o_ref, *, relu, final_tanh):
    # x_ref: (1, TP, K)    bf16 im2col patch tile
    # w_ref: (K, Cout)     bf16 (VMEM-resident across P tiles)
    # b_ref: (1, Cout)     f32
    # o_ref: (1, TP, Cout) bf16 (intermediate) or f32 (final layer)
    acc = jnp.dot(x_ref[0], w_ref[...], preferred_element_type=jnp.float32)
    acc = acc + b_ref[...]
    if relu:
        acc = jnp.maximum(acc, 0.0)
    if final_tanh:
        acc = (jnp.tanh(acc) + 1.0) * 0.5   # tanh -> EUP slot, essentially free
    o_ref[0] = acc.astype(o_ref.dtype)


# ----------------------------------------------------------------------------
# JAX glue: im2col over a (virtually concatenated) list of NHWC inputs.
# Produces cols of shape (N, Ho*Wo, k*k*Cin_total); K ordering = tap-major then
# channel (matching w.reshape(k*k*Cin_total, Cout)); the channel order within a
# tap is the order of the input list, i.e. the torch.cat order.
# ----------------------------------------------------------------------------
def _im2col(xs, k, stride, dtype):
    N, H, W, _ = xs[0].shape
    pad = (k - 1) // 2
    Ho = (H + 2 * pad - k) // stride + 1
    Wo = (W + 2 * pad - k) // stride + 1
    if k == 1 and stride == 1:
        pieces = [x.astype(dtype).reshape(N, H * W, x.shape[-1]) for x in xs]
        cols = pieces[0] if len(pieces) == 1 else jnp.concatenate(pieces, axis=-1)
        return cols, Ho, Wo
    xps = [jnp.pad(x.astype(dtype), ((0, 0), (pad, pad), (pad, pad), (0, 0)))
           for x in xs]
    pieces = []
    for ky in range(k):
        for kx in range(k):
            for xp in xps:
                cin = xp.shape[-1]
                patch = jax.lax.slice(
                    xp,
                    (0, ky, kx, 0),
                    (N, ky + (Ho - 1) * stride + 1, kx + (Wo - 1) * stride + 1, cin),
                    (1, stride, stride, 1),
                )
                pieces.append(patch.reshape(N, Ho * Wo, cin))
    return jnp.concatenate(pieces, axis=-1), Ho, Wo


def conv2d_pallas(xs, w, b, *, stride=1, relu=True, final_tanh=False):
    # xs: NHWC array or list of NHWC arrays (un-materialized channel concat)
    # w: (k, k, Cin_total, Cout), b: (Cout,)
    if not isinstance(xs, (list, tuple)):
        xs = [xs]
    N = xs[0].shape[0]
    k = w.shape[0]
    Cin_total = w.shape[2]
    Cout = w.shape[3]
    Kdim = k * k * Cin_total

    cols, Ho, Wo = _im2col(xs, k, stride, _MXU_DTYPE)
    P = Ho * Wo
    TP = _choose_tp(P)
    Pp = _round_up(P, TP)
    if Pp != P:
        cols = jnp.pad(cols, ((0, 0), (0, Pp - P), (0, 0)))

    w2 = w.reshape(Kdim, Cout).astype(_MXU_DTYPE)
    b2 = b.reshape(1, Cout).astype(jnp.float32)

    out_dtype = jnp.float32 if final_tanh else _ACT_DTYPE
    out_bytes = 4 if final_tanh else 2

    flops = 2 * N * Pp * Kdim * Cout
    transcendentals = N * Pp * Cout if final_tanh else 0
    bytes_accessed = (N * Pp * Kdim + Kdim * Cout) * 2 + Cout * 4 + N * Pp * Cout * out_bytes

    out = pl.pallas_call(
        functools.partial(_conv_kernel, relu=relu, final_tanh=final_tanh),
        out_shape=jax.ShapeDtypeStruct((N, Pp, Cout), out_dtype),
        grid=(N, Pp // TP),
        in_specs=[
            pl.BlockSpec((1, TP, Kdim), lambda n, p: (n, p, 0)),
            pl.BlockSpec((Kdim, Cout), lambda n, p: (0, 0)),   # weights resident
            pl.BlockSpec((1, Cout), lambda n, p: (0, 0)),
        ],
        out_specs=pl.BlockSpec((1, TP, Cout), lambda n, p: (n, p, 0)),
        compiler_params=pltpu.CompilerParams(
            dimension_semantics=("parallel", "parallel"),
            vmem_limit_bytes=48 * 1024 * 1024,  # fits under v7x 64 MiB physical VMEM
        ),
        cost_estimate=pl.CostEstimate(
            flops=flops,
            transcendentals=transcendentals,
            bytes_accessed=bytes_accessed,
        ),
    )(cols, w2, b2)

    return out[:, :P, :].reshape(N, Ho, Wo, Cout)


# ----------------------------------------------------------------------------
# Reference conv (pure JAX / XLA). matmul_dtype=bf16 reproduces the Pallas
# operand rounding for a tight numerical check; f32 gives the exact module math.
# ----------------------------------------------------------------------------
def conv2d_ref(xs, w, b, *, stride=1, relu=True, final_tanh=False,
               matmul_dtype=jnp.float32):
    if not isinstance(xs, (list, tuple)):
        xs = [xs]
    xs = [x.astype(jnp.float32) for x in xs]
    x = xs[0] if len(xs) == 1 else jnp.concatenate(xs, axis=-1)
    pad = (w.shape[0] - 1) // 2
    y = jax.lax.conv_general_dilated(
        x.astype(matmul_dtype), w.astype(matmul_dtype),
        (stride, stride), [(pad, pad), (pad, pad)],
        dimension_numbers=("NHWC", "HWIO", "NHWC"),
        preferred_element_type=jnp.float32,
    )
    y = y + b
    if relu:
        y = jnp.maximum(y, 0.0)
    if final_tanh:
        y = (jnp.tanh(y) + 1.0) * 0.5
    return y


# ----------------------------------------------------------------------------
# Autoencoder forward (shared structure; conv_fn = pallas or reference)
# ----------------------------------------------------------------------------
def _upsample2(x):  # nearest-neighbor 2x, NHWC
    return jnp.repeat(jnp.repeat(x, 2, axis=1), 2, axis=2)


def _forward(image_nchw, params, conv_fn):
    p = params
    x = jnp.transpose(image_nchw, (0, 2, 3, 1)).astype(jnp.float32)  # NCHW -> NHWC
    x = x - 0.5
    c1 = conv_fn(x, *p["conv1"])
    c2 = conv_fn(c1, *p["conv2"], stride=2)
    c3 = conv_fn(c2, *p["conv3"], stride=2)
    c4 = conv_fn(c3, *p["conv4"], stride=2)
    c5 = conv_fn(c4, *p["conv5"], stride=2)
    u6 = conv_fn(_upsample2(c5), *p["up6"])
    c6 = conv_fn([c4, u6], *p["conv6"])          # concat folded into im2col K-order
    u7 = conv_fn(_upsample2(c6), *p["up7"])
    c7 = conv_fn([c3, u7], *p["conv7"])
    u8 = conv_fn(_upsample2(c7), *p["up8"])
    c8 = conv_fn([c2, u8], *p["conv8"])
    u9 = conv_fn(_upsample2(c8), *p["up9"])
    c9 = conv_fn([c1, u9, x], *p["conv9"])
    residual = conv_fn(c9, *p["residual"], relu=False, final_tanh=True)
    return jnp.transpose(residual, (0, 3, 1, 2))  # NHWC -> NCHW


@jax.jit
def autoencoder_pallas(image_nchw, params):
    return _forward(image_nchw, params, conv2d_pallas)


def autoencoder_reference(image_nchw, params, matmul_dtype=jnp.float32):
    conv = functools.partial(conv2d_ref, matmul_dtype=matmul_dtype)
    return _forward(image_nchw, params, conv)


# ----------------------------------------------------------------------------
# Deterministic parameter init (shapes from Autoencoder.__init__)
# ----------------------------------------------------------------------------
_LAYER_SPECS = [
    ("conv1", 3, 3, 32), ("conv2", 3, 32, 32), ("conv3", 3, 32, 64),
    ("conv4", 3, 64, 128), ("conv5", 3, 128, 256),
    ("up6", 3, 256, 128), ("conv6", 3, 256, 128),
    ("up7", 3, 128, 64), ("conv7", 3, 128, 64),
    ("up8", 3, 64, 32), ("conv8", 3, 64, 32),
    ("up9", 3, 32, 32), ("conv9", 3, 67, 32),
    ("residual", 1, 32, 3),
]


def init_params(key):
    params = {}
    for name, k, cin, cout in _LAYER_SPECS:
        key, kw, kb = jax.random.split(key, 3)
        fan_in = k * k * cin
        w = jax.random.normal(kw, (k, k, cin, cout), jnp.float32) / jnp.sqrt(fan_in)
        b = jax.random.normal(kb, (cout,), jnp.float32) * 0.01
        params[name] = (w, b)
    return params


# ----------------------------------------------------------------------------
if __name__ == "__main__":
    key = jax.random.PRNGKey(0)
    k_img, k_par = jax.random.split(key)
    # PyTorch-style NCHW input image in [0, 1]; conv1 requires 3 input channels.
    image = jax.random.uniform(k_img, (2, 3, 16, 16), jnp.float32)
    params = init_params(k_par)

    out = jax.block_until_ready(autoencoder_pallas(image, params))
    assert out.shape == (2, 3, 16, 16)
    assert bool(jnp.all(jnp.isfinite(out)))

    # Tight check vs a reference using identical bf16 operand rounding (f32 accum).
    ref_matched = jax.block_until_ready(
        jax.jit(functools.partial(autoencoder_reference,
                                  matmul_dtype=jnp.bfloat16))(image, params))
    err_matched = float(jnp.max(jnp.abs(out - ref_matched)))
    assert err_matched < 1e-2, f"mismatch vs bf16-matched reference: {err_matched}"

    # Loose check vs the exact f32 module math (allows bf16 MXU operand rounding).
    ref_f32 = jax.block_until_ready(
        jax.jit(functools.partial(autoencoder_reference,
                                  matmul_dtype=jnp.float32))(image, params))
    err_f32 = float(jnp.max(jnp.abs(out - ref_f32)))
    assert err_f32 < 5e-2, f"mismatch vs f32 reference: {err_f32}"

    print("KERNEL_OK")
</pallas_src>

<mosaic_0001>
module attributes {stable_mosaic.version = 11 : i64} {
  func.func @_conv_kernel(%arg0: i32, %arg1: i32, %arg2: memref<1x256x27xbf16, #tpu.memory_space<vmem>>, %arg3: memref<27x32xbf16, #tpu.memory_space<vmem>>, %arg4: memref<1x32xf32, #tpu.memory_space<vmem>>, %arg5: memref<1x256x32xbf16, #tpu.memory_space<vmem>>) attributes {dimension_semantics = [#tpu.dimension_semantics<parallel>, #tpu.dimension_semantics<parallel>], iteration_bounds = array<i64: 2, 1>, scalar_prefetch = 0 : i64, scratch_operands = 0 : i64, tpu.core_type = #tpu.core_type<tc>, window_params = [{transform_indices = @transform_0, window_bounds = array<i64: 1, 256, 27>}, {pipeline_mode = #tpu.pipeline_mode<synchronous>, transform_indices = @transform_1, window_bounds = array<i64: 27, 32>}, {pipeline_mode = #tpu.pipeline_mode<synchronous>, transform_indices = @transform_2, window_bounds = array<i64: 1, 32>}, {transform_indices = @transform_3, window_bounds = array<i64: 1, 256, 32>}]} {
    %c0 = arith.constant 0 : index
    %c0_0 = arith.constant 0 : index
    %c0_1 = arith.constant 0 : index
    %0 = vector.load %arg2[%c0, %c0_0, %c0_1] : memref<1x256x27xbf16, #tpu.memory_space<vmem>>, vector<1x256x27xbf16>
    %1 = vector.shape_cast %0 : vector<1x256x27xbf16> to vector<256x27xbf16>
    %c0_2 = arith.constant 0 : index
    %c0_3 = arith.constant 0 : index
    %2 = vector.load %arg3[%c0_2, %c0_3] : memref<27x32xbf16, #tpu.memory_space<vmem>>, vector<27x32xbf16>
    %cst = arith.constant dense<0.000000e+00> : vector<256x32xf32>
    %3 = tpu.matmul %1, %2, %cst {dimension_numbers = #tpu.dot_dimension_numbers<[1], [0], [0], [1], [0, 0, 1, 1], [], []>} : vector<256x27xbf16>, vector<27x32xbf16>, vector<256x32xf32> -> vector<256x32xf32>
    %c0_4 = arith.constant 0 : index
    %c0_5 = arith.constant 0 : index
    %4 = vector.load %arg4[%c0_4, %c0_5] : memref<1x32xf32, #tpu.memory_space<vmem>>, vector<1x32xf32>
    %5 = vector.broadcast %4 : vector<1x32xf32> to vector<256x32xf32>
    %6 = arith.addf %3, %5 : vector<256x32xf32>
    %cst_6 = arith.constant 0.000000e+00 : f32
    %7 = vector.broadcast %cst_6 : f32 to vector<256x32xf32>
    %8 = arith.maximumf %6, %7 : vector<256x32xf32>
    %9 = arith.truncf %8 : vector<256x32xf32> to vector<256x32xbf16>
    %c0_7 = arith.constant 0 : index
    %c0_8 = arith.constant 0 : index
    %c0_9 = arith.constant 0 : index
    %10 = vector.load %arg5[%c0_7, %c0_8, %c0_9] : memref<1x256x32xbf16, #tpu.memory_space<vmem>>, vector<1x256x32xbf16>
    %11 = vector.shape_cast %10 : vector<1x256x32xbf16> to vector<256x32xbf16>
    %12 = vector.shape_cast %9 : vector<256x32xbf16> to vector<1x256x32xbf16>
    tpu.vector_store %arg5[%c0_7, %c0_8, %c0_9], %12 {strides = array<i32>} : memref<1x256x32xbf16, #tpu.memory_space<vmem>>, vector<1x256x32xbf16>,
    return
  }
  func.func @transform_0(%arg0: i32, %arg1: i32) -> (i32, i32, i32) {
    %c0_i32 = arith.constant 0 : i32
    %c0_i32_0 = arith.constant 0 : i32
    return %arg0, %arg1, %c0_i32 : i32, i32, i32
  }
  func.func @transform_1(%arg0: i32, %arg1: i32) -> (i32, i32) {
    %c0_i32 = arith.constant 0 : i32
    %c0_i32_0 = arith.constant 0 : i32
    %c0_i32_1 = arith.constant 0 : i32
    return %c0_i32, %c0_i32_0 : i32, i32
  }
  func.func @transform_2(%arg0: i32, %arg1: i32) -> (i32, i32) {
    %c0_i32 = arith.constant 0 : i32
    %c0_i32_0 = arith.constant 0 : i32
    %c0_i32_1 = arith.constant 0 : i32
    return %c0_i32, %c0_i32_0 : i32, i32
  }
  func.func @transform_3(%arg0: i32, %arg1: i32) -> (i32, i32, i32) {
    %c0_i32 = arith.constant 0 : i32
    %c0_i32_0 = arith.constant 0 : i32
    return %arg0, %arg1, %c0_i32 : i32, i32, i32
  }
}

module attributes {stable_mosaic.version = 11 : i64} {
  func.func @_conv_kernel(%arg0: i32, %arg1: i32, %arg2: memref<1x64x288xbf16, #tpu.memory_space<vmem>>, %arg3: memref<288x32xbf16, #tpu.memory_space<vmem>>, %arg4: memref<1x32xf32, #tpu.memory_space<vmem>>, %arg5: memref<1x64x32xbf16, #tpu.memory_space<vmem>>) attributes {dimension_semantics = [#tpu.dimension_semantics<parallel>, #tpu.dimension_semantics<parallel>], iteration_bounds = array<i64: 2, 1>, scalar_prefetch = 0 : i64, scratch_operands = 0 : i64, tpu.core_type = #tpu.core_type<tc>, window_params = [{transform_indices = @transform_0, window_bounds = array<i64: 1, 64, 288>}, {pipeline_mode = #tpu.pipeline_mode<synchronous>, transform_indices = @transform_1, window_bounds = array<i64: 288, 32>}, {pipeline_mode = #tpu.pipeline_mode<synchronous>, transform_indices = @transform_2, window_bounds = array<i64: 1, 32>}, {transform_indices = @transform_3, window_bounds = array<i64: 1, 64, 32>}]} {
    %c0 = arith.constant 0 : index
    %c0_0 = arith.constant 0 : index
    %c0_1 = arith.constant 0 : index
    %0 = vector.load %arg2[%c0, %c0_0, %c0_1] : memref<1x64x288xbf16, #tpu.memory_space<vmem>>, vector<1x64x288xbf16>
    %1 = vector.shape_cast %0 : vector<1x64x288xbf16> to vector<64x288xbf16>
    %c0_2 = arith.constant 0 : index
    %c0_3 = arith.constant 0 : index
    %2 = vector.load %arg3[%c0_2, %c0_3] : memref<288x32xbf16, #tpu.memory_space<vmem>>, vector<288x32xbf16>
    %cst = arith.constant dense<0.000000e+00> : vector<64x32xf32>
    %3 = tpu.matmul %1, %2, %cst {dimension_numbers = #tpu.dot_dimension_numbers<[1], [0], [0], [1], [0, 0, 1, 1], [], []>} : vector<64x288xbf16>, vector<288x32xbf16>, vector<64x32xf32> -> vector<64x32xf32>
    %c0_4 = arith.constant 0 : index
    %c0_5 = arith.constant 0 : index
    %4 = vector.load %arg4[%c0_4, %c0_5] : memref<1x32xf32, #tpu.memory_space<vmem>>, vector<1x32xf32>
    %5 = vector.broadcast %4 : vector<1x32xf32> to vector<64x32xf32>
    %6 = arith.addf %3, %5 : vector<64x32xf32>
    %cst_6 = arith.constant 0.000000e+00 : f32
    %7 = vector.broadcast %cst_6 : f32 to vector<64x32xf32>
    %8 = arith.maximumf %6, %7 : vector<64x32xf32>
    %9 = arith.truncf %8 : vector<64x32xf32> to vector<64x32xbf16>
    %c0_7 = arith.constant 0 : index
    %c0_8 = arith.constant 0 : index
    %c0_9 = arith.constant 0 : index
    %10 = vector.load %arg5[%c0_7, %c0_8, %c0_9] : memref<1x64x32xbf16, #tpu.memory_space<vmem>>, vector<1x64x32xbf16>
    %11 = vector.shape_cast %10 : vector<1x64x32xbf16> to vector<64x32xbf16>
    %12 = vector.shape_cast %9 : vector<64x32xbf16> to vector<1x64x32xbf16>
    tpu.vector_store %arg5[%c0_7, %c0_8, %c0_9], %12 {strides = array<i32>} : memref<1x64x32xbf16, #tpu.memory_space<vmem>>, vector<1x64x32xbf16>,
    return
  }
  func.func @transform_0(%arg0: i32, %arg1: i32) -> (i32, i32, i32) {
    %c0_i32 = arith.constant 0 : i32
    %c0_i32_0 = arith.constant 0 : i32
    return %arg0, %arg1, %c0_i32 : i32, i32, i32
  }
  func.func @transform_1(%arg0: i32, %arg1: i32) -> (i32, i32) {
    %c0_i32 = arith.constant 0 : i32
    %c0_i32_0 = arith.constant 0 : i32
    %c0_i32_1 = arith.constant 0 : i32
    return %c0_i32, %c0_i32_0 : i32, i32
  }
  func.func @transform_2(%arg0: i32, %arg1: i32) -> (i32, i32) {
    %c0_i32 = arith.constant 0 : i32
    %c0_i32_0 = arith.constant 0 : i32
    %c0_i32_1 = arith.constant 0 : i32
    return %c0_i32, %c0_i32_0 : i32, i32
  }
  func.func @transform_3(%arg0: i32, %arg1: i32) -> (i32, i32, i32) {
    %c0_i32 = arith.constant 0 : i32
    %c0_i32_0 = arith.constant 0 : i32
    return %arg0, %arg1, %c0_i32 : i32, i32, i32
  }
}

module attributes {stable_mosaic.version = 11 : i64} {
  func.func @_conv_kernel(%arg0: i32, %arg1: i32, %arg2: memref<1x16x288xbf16, #tpu.memory_space<vmem>>, %arg3: memref<288x64xbf16, #tpu.memory_space<vmem>>, %arg4: memref<1x64xf32, #tpu.memory_space<vmem>>, %arg5: memref<1x16x64xbf16, #tpu.memory_space<vmem>>) attributes {dimension_semantics = [#tpu.dimension_semantics<parallel>, #tpu.dimension_semantics<parallel>], iteration_bounds = array<i64: 2, 1>, scalar_prefetch = 0 : i64, scratch_operands = 0 : i64, tpu.core_type = #tpu.core_type<tc>, window_params = [{transform_indices = @transform_0, window_bounds = array<i64: 1, 16, 288>}, {pipeline_mode = #tpu.pipeline_mode<synchronous>, transform_indices = @transform_1, window_bounds = array<i64: 288, 64>}, {pipeline_mode = #tpu.pipeline_mode<synchronous>, transform_indices = @transform_2, window_bounds = array<i64: 1, 64>}, {transform_indices = @transform_3, window_bounds = array<i64: 1, 16, 64>}]} {
    %c0 = arith.constant 0 : index
    %c0_0 = arith.constant 0 : index
    %c0_1 = arith.constant 0 : index
    %0 = vector.load %arg2[%c0, %c0_0, %c0_1] : memref<1x16x288xbf16, #tpu.memory_space<vmem>>, vector<1x16x288xbf16>
    %1 = vector.shape_cast %0 : vector<1x16x288xbf16> to vector<16x288xbf16>
    %c0_2 = arith.constant 0 : index
    %c0_3 = arith.constant 0 : index
    %2 = vector.load %arg3[%c0_2, %c0_3] : memref<288x64xbf16, #tpu.memory_space<vmem>>, vector<288x64xbf16>
    %cst = arith.constant dense<0.000000e+00> : vector<16x64xf32>
    %3 = tpu.matmul %1, %2, %cst {dimension_numbers = #tpu.dot_dimension_numbers<[1], [0], [0], [1], [0, 0, 1, 1], [], []>} : vector<16x288xbf16>, vector<288x64xbf16>, vector<16x64xf32> -> vector<16x64xf32>
    %c0_4 = arith.constant 0 : index
    %c0_5 = arith.constant 0 : index
    %4 = vector.load %arg4[%c0_4, %c0_5] : memref<1x64xf32, #tpu.memory_space<vmem>>, vector<1x64xf32>
    %5 = vector.broadcast %4 : vector<1x64xf32> to vector<16x64xf32>
    %6 = arith.addf %3, %5 : vector<16x64xf32>
    %cst_6 = arith.constant 0.000000e+00 : f32
    %7 = vector.broadcast %cst_6 : f32 to vector<16x64xf32>
    %8 = arith.maximumf %6, %7 : vector<16x64xf32>
    %9 = arith.truncf %8 : vector<16x64xf32> to vector<16x64xbf16>
    %c0_7 = arith.constant 0 : index
    %c0_8 = arith.constant 0 : index
    %c0_9 = arith.constant 0 : index
    %10 = vector.load %arg5[%c0_7, %c0_8, %c0_9] : memref<1x16x64xbf16, #tpu.memory_space<vmem>>, vector<1x16x64xbf16>
    %11 = vector.shape_cast %10 : vector<1x16x64xbf16> to vector<16x64xbf16>
    %12 = vector.shape_cast %9 : vector<16x64xbf16> to vector<1x16x64xbf16>
    tpu.vector_store %arg5[%c0_7, %c0_8, %c0_9], %12 {strides = array<i32>} : memref<1x16x64xbf16, #tpu.memory_space<vmem>>, vector<1x16x64xbf16>,
    return
  }
  func.func @transform_0(%arg0: i32, %arg1: i32) -> (i32, i32, i32) {
    %c0_i32 = arith.constant 0 : i32
    %c0_i32_0 = arith.constant 0 : i32
    return %arg0, %arg1, %c0_i32 : i32, i32, i32
  }
  func.func @transform_1(%arg0: i32, %arg1: i32) -> (i32, i32) {
    %c0_i32 = arith.constant 0 : i32
    %c0_i32_0 = arith.constant 0 : i32
    %c0_i32_1 = arith.constant 0 : i32
    return %c0_i32, %c0_i32_0 : i32, i32
  }
  func.func @transform_2(%arg0: i32, %arg1: i32) -> (i32, i32) {
    %c0_i32 = arith.constant 0 : i32
    %c0_i32_0 = arith.constant 0 : i32
    %c0_i32_1 = arith.constant 0 : i32
    return %c0_i32, %c0_i32_0 : i32, i32
  }
  func.func @transform_3(%arg0: i32, %arg1: i32) -> (i32, i32, i32) {
    %c0_i32 = arith.constant 0 : i32
    %c0_i32_0 = arith.constant 0 : i32
    return %arg0, %arg1, %c0_i32 : i32, i32, i32
  }
}

module attributes {stable_mosaic.version = 11 : i64} {
  func.func @_conv_kernel(%arg0: i32, %arg1: i32, %arg2: memref<1x16x576xbf16, #tpu.memory_space<vmem>>, %arg3: memref<576x128xbf16, #tpu.memory_space<vmem>>, %arg4: memref<1x128xf32, #tpu.memory_space<vmem>>, %arg5: memref<1x16x128xbf16, #tpu.memory_space<vmem>>) attributes {dimension_semantics = [#tpu.dimension_semantics<parallel>, #tpu.dimension_semantics<parallel>], iteration_bounds = array<i64: 2, 1>, scalar_prefetch = 0 : i64, scratch_operands = 0 : i64, tpu.core_type = #tpu.core_type<tc>, window_params = [{transform_indices = @transform_0, window_bounds = array<i64: 1, 16, 576>}, {pipeline_mode = #tpu.pipeline_mode<synchronous>, transform_indices = @transform_1, window_bounds = array<i64: 576, 128>}, {pipeline_mode = #tpu.pipeline_mode<synchronous>, transform_indices = @transform_2, window_bounds = array<i64: 1, 128>}, {transform_indices = @transform_3, window_bounds = array<i64: 1, 16, 128>}]} {
    %c0 = arith.constant 0 : index
    %c0_0 = arith.constant 0 : index
    %c0_1 = arith.constant 0 : index
    %0 = vector.load %arg2[%c0, %c0_0, %c0_1] : memref<1x16x576xbf16, #tpu.memory_space<vmem>>, vector<1x16x576xbf16>
    %1 = vector.shape_cast %0 : vector<1x16x576xbf16> to vector<16x576xbf16>
    %c0_2 = arith.constant 0 : index
    %c0_3 = arith.constant 0 : index
    %2 = vector.load %arg3[%c0_2, %c0_3] : memref<576x128xbf16, #tpu.memory_space<vmem>>, vector<576x128xbf16>
    %cst = arith.constant dense<0.000000e+00> : vector<16x128xf32>
    %3 = tpu.matmul %1, %2, %cst {dimension_numbers = #tpu.dot_dimension_numbers<[1], [0], [0], [1], [0, 0, 1, 1], [], []>} : vector<16x576xbf16>, vector<576x128xbf16>, vector<16x128xf32> -> vector<16x128xf32>
    %c0_4 = arith.constant 0 : index
    %c0_5 = arith.constant 0 : index
    %4 = vector.load %arg4[%c0_4, %c0_5] : memref<1x128xf32, #tpu.memory_space<vmem>>, vector<1x128xf32>
    %5 = vector.broadcast %4 : vector<1x128xf32> to vector<16x128xf32>
    %6 = arith.addf %3, %5 : vector<16x128xf32>
    %cst_6 = arith.constant 0.000000e+00 : f32
    %7 = vector.broadcast %cst_6 : f32 to vector<16x128xf32>
    %8 = arith.maximumf %6, %7 : vector<16x128xf32>
    %9 = arith.truncf %8 : vector<16x128xf32> to vector<16x128xbf16>
    %c0_7 = arith.constant 0 : index
    %c0_8 = arith.constant 0 : index
    %c0_9 = arith.constant 0 : index
    %10 = vector.load %arg5[%c0_7, %c0_8, %c0_9] : memref<1x16x128xbf16, #tpu.memory_space<vmem>>, vector<1x16x128xbf16>
    %11 = vector.shape_cast %10 : vector<1x16x128xbf16> to vector<16x128xbf16>
    %12 = vector.shape_cast %9 : vector<16x128xbf16> to vector<1x16x128xbf16>
    tpu.vector_store %arg5[%c0_7, %c0_8, %c0_9], %12 {strides = array<i32>} : memref<1x16x128xbf16, #tpu.memory_space<vmem>>, vector<1x16x128xbf16>,
    return
  }
  func.func @transform_0(%arg0: i32, %arg1: i32) -> (i32, i32, i32) {
    %c0_i32 = arith.constant 0 : i32
    %c0_i32_0 = arith.constant 0 : i32
    return %arg0, %arg1, %c0_i32 : i32, i32, i32
  }
  func.func @transform_1(%arg0: i32, %arg1: i32) -> (i32, i32) {
    %c0_i32 = arith.constant 0 : i32
    %c0_i32_0 = arith.constant 0 : i32
    %c0_i32_1 = arith.constant 0 : i32
    return %c0_i32, %c0_i32_0 : i32, i32
  }
  func.func @transform_2(%arg0: i32, %arg1: i32) -> (i32, i32) {
    %c0_i32 = arith.constant 0 : i32
    %c0_i32_0 = arith.constant 0 : i32
    %c0_i32_1 = arith.constant 0 : i32
    return %c0_i32, %c0_i32_0 : i32, i32
  }
  func.func @transform_3(%arg0: i32, %arg1: i32) -> (i32, i32, i32) {
    %c0_i32 = arith.constant 0 : i32
    %c0_i32_0 = arith.constant 0 : i32
    return %arg0, %arg1, %c0_i32 : i32, i32, i32
  }
}

module attributes {stable_mosaic.version = 11 : i64} {
  func.func @_conv_kernel(%arg0: i32, %arg1: i32, %arg2: memref<1x16x1152xbf16, #tpu.memory_space<vmem>>, %arg3: memref<1152x256xbf16, #tpu.memory_space<vmem>>, %arg4: memref<1x256xf32, #tpu.memory_space<vmem>>, %arg5: memref<1x16x256xbf16, #tpu.memory_space<vmem>>) attributes {dimension_semantics = [#tpu.dimension_semantics<parallel>, #tpu.dimension_semantics<parallel>], iteration_bounds = array<i64: 2, 1>, scalar_prefetch = 0 : i64, scratch_operands = 0 : i64, tpu.core_type = #tpu.core_type<tc>, window_params = [{transform_indices = @transform_0, window_bounds = array<i64: 1, 16, 1152>}, {pipeline_mode = #tpu.pipeline_mode<synchronous>, transform_indices = @transform_1, window_bounds = array<i64: 1152, 256>}, {pipeline_mode = #tpu.pipeline_mode<synchronous>, transform_indices = @transform_2, window_bounds = array<i64: 1, 256>}, {transform_indices = @transform_3, window_bounds = array<i64: 1, 16, 256>}]} {
    %c0 = arith.constant 0 : index
    %c0_0 = arith.constant 0 : index
    %c0_1 = arith.constant 0 : index
    %0 = vector.load %arg2[%c0, %c0_0, %c0_1] : memref<1x16x1152xbf16, #tpu.memory_space<vmem>>, vector<1x16x1152xbf16>
    %1 = vector.shape_cast %0 : vector<1x16x1152xbf16> to vector<16x1152xbf16>
    %c0_2 = arith.constant 0 : index
    %c0_3 = arith.constant 0 : index
    %2 = vector.load %arg3[%c0_2, %c0_3] : memref<1152x256xbf16, #tpu.memory_space<vmem>>, vector<1152x256xbf16>
    %cst = arith.constant dense<0.000000e+00> : vector<16x256xf32>
    %3 = tpu.matmul %1, %2, %cst {dimension_numbers = #tpu.dot_dimension_numbers<[1], [0], [0], [1], [0, 0, 1, 1], [], []>} : vector<16x1152xbf16>, vector<1152x256xbf16>, vector<16x256xf32> -> vector<16x256xf32>
    %c0_4 = arith.constant 0 : index
    %c0_5 = arith.constant 0 : index
    %4 = vector.load %arg4[%c0_4, %c0_5] : memref<1x256xf32, #tpu.memory_space<vmem>>, vector<1x256xf32>
    %5 = vector.broadcast %4 : vector<1x256xf32> to vector<16x256xf32>
    %6 = arith.addf %3, %5 : vector<16x256xf32>
    %cst_6 = arith.constant 0.000000e+00 : f32
    %7 = vector.broadcast %cst_6 : f32 to vector<16x256xf32>
    %8 = arith.maximumf %6, %7 : vector<16x256xf32>
    %9 = arith.truncf %8 : vector<16x256xf32> to vector<16x256xbf16>
    %c0_7 = arith.constant 0 : index
    %c0_8 = arith.constant 0 : index
    %c0_9 = arith.constant 0 : index
    %10 = vector.load %arg5[%c0_7, %c0_8, %c0_9] : memref<1x16x256xbf16, #tpu.memory_space<vmem>>, vector<1x16x256xbf16>
    %11 = vector.shape_cast %10 : vector<1x16x256xbf16> to vector<16x256xbf16>
    %12 = vector.shape_cast %9 : vector<16x256xbf16> to vector<1x16x256xbf16>
    tpu.vector_store %arg5[%c0_7, %c0_8, %c0_9], %12 {strides = array<i32>} : memref<1x16x256xbf16, #tpu.memory_space<vmem>>, vector<1x16x256xbf16>,
    return
  }
  func.func @transform_0(%arg0: i32, %arg1: i32) -> (i32, i32, i32) {
    %c0_i32 = arith.constant 0 : i32
    %c0_i32_0 = arith.constant 0 : i32
    return %arg0, %arg1, %c0_i32 : i32, i32, i32
  }
  func.func @transform_1(%arg0: i32, %arg1: i32) -> (i32, i32) {
    %c0_i32 = arith.constant 0 : i32
    %c0_i32_0 = arith.constant 0 : i32
    %c0_i32_1 = arith.constant 0 : i32
    return %c0_i32, %c0_i32_0 : i32, i32
  }
  func.func @transform_2(%arg0: i32, %arg1: i32) -> (i32, i32) {
    %c0_i32 = arith.constant 0 : i32
    %c0_i32_0 = arith.constant 0 : i32
    %c0_i32_1 = arith.constant 0 : i32
    return %c0_i32, %c0_i32_0 : i32, i32
  }
  func.func @transform_3(%arg0: i32, %arg1: i32) -> (i32, i32, i32) {
    %c0_i32 = arith.constant 0 : i32
    %c0_i32_0 = arith.constant 0 : i32
    return %arg0, %arg1, %c0_i32 : i32, i32, i32
  }
}

module attributes {stable_mosaic.version = 11 : i64} {
  func.func @_conv_kernel(%arg0: i32, %arg1: i32, %arg2: memref<1x16x2304xbf16, #tpu.memory_space<vmem>>, %arg3: memref<2304x128xbf16, #tpu.memory_space<vmem>>, %arg4: memref<1x128xf32, #tpu.memory_space<vmem>>, %arg5: memref<1x16x128xbf16, #tpu.memory_space<vmem>>) attributes {dimension_semantics = [#tpu.dimension_semantics<parallel>, #tpu.dimension_semantics<parallel>], iteration_bounds = array<i64: 2, 1>, scalar_prefetch = 0 : i64, scratch_operands = 0 : i64, tpu.core_type = #tpu.core_type<tc>, window_params = [{transform_indices = @transform_0, window_bounds = array<i64: 1, 16, 2304>}, {pipeline_mode = #tpu.pipeline_mode<synchronous>, transform_indices = @transform_1, window_bounds = array<i64: 2304, 128>}, {pipeline_mode = #tpu.pipeline_mode<synchronous>, transform_indices = @transform_2, window_bounds = array<i64: 1, 128>}, {transform_indices = @transform_3, window_bounds = array<i64: 1, 16, 128>}]} {
    %c0 = arith.constant 0 : index
    %c0_0 = arith.constant 0 : index
    %c0_1 = arith.constant 0 : index
    %0 = vector.load %arg2[%c0, %c0_0, %c0_1] : memref<1x16x2304xbf16, #tpu.memory_space<vmem>>, vector<1x16x2304xbf16>
    %1 = vector.shape_cast %0 : vector<1x16x2304xbf16> to vector<16x2304xbf16>
    %c0_2 = arith.constant 0 : index
    %c0_3 = arith.constant 0 : index
    %2 = vector.load %arg3[%c0_2, %c0_3] : memref<2304x128xbf16, #tpu.memory_space<vmem>>, vector<2304x128xbf16>
    %cst = arith.constant dense<0.000000e+00> : vector<16x128xf32>
    %3 = tpu.matmul %1, %2, %cst {dimension_numbers = #tpu.dot_dimension_numbers<[1], [0], [0], [1], [0, 0, 1, 1], [], []>} : vector<16x2304xbf16>, vector<2304x128xbf16>, vector<16x128xf32> -> vector<16x128xf32>
    %c0_4 = arith.constant 0 : index
    %c0_5 = arith.constant 0 : index
    %4 = vector.load %arg4[%c0_4, %c0_5] : memref<1x128xf32, #tpu.memory_space<vmem>>, vector<1x128xf32>
    %5 = vector.broadcast %4 : vector<1x128xf32> to vector<16x128xf32>
    %6 = arith.addf %3, %5 : vector<16x128xf32>
    %cst_6 = arith.constant 0.000000e+00 : f32
    %7 = vector.broadcast %cst_6 : f32 to vector<16x128xf32>
    %8 = arith.maximumf %6, %7 : vector<16x128xf32>
    %9 = arith.truncf %8 : vector<16x128xf32> to vector<16x128xbf16>
    %c0_7 = arith.constant 0 : index
    %c0_8 = arith.constant 0 : index
    %c0_9 = arith.constant 0 : index
    %10 = vector.load %arg5[%c0_7, %c0_8, %c0_9] : memref<1x16x128xbf16, #tpu.memory_space<vmem>>, vector<1x16x128xbf16>
    %11 = vector.shape_cast %10 : vector<1x16x128xbf16> to vector<16x128xbf16>
    %12 = vector.shape_cast %9 : vector<16x128xbf16> to vector<1x16x128xbf16>
    tpu.vector_store %arg5[%c0_7, %c0_8, %c0_9], %12 {strides = array<i32>} : memref<1x16x128xbf16, #tpu.memory_space<vmem>>, vector<1x16x128xbf16>,
    return
  }
  func.func @transform_0(%arg0: i32, %arg1: i32) -> (i32, i32, i32) {
    %c0_i32 = arith.constant 0 : i32
    %c0_i32_0 = arith.constant 0 : i32
    return %arg0, %arg1, %c0_i32 : i32, i32, i32
  }
  func.func @transform_1(%arg0: i32, %arg1: i32) -> (i32, i32) {
    %c0_i32 = arith.constant 0 : i32
    %c0_i32_0 = arith.constant 0 : i32
    %c0_i32_1 = arith.constant 0 : i32
    return %c0_i32, %c0_i32_0 : i32, i32
  }
  func.func @transform_2(%arg0: i32, %arg1: i32) -> (i32, i32) {
    %c0_i32 = arith.constant 0 : i32
    %c0_i32_0 = arith.constant 0 : i32
    %c0_i32_1 = arith.constant 0 : i32
    return %c0_i32, %c0_i32_0 : i32, i32
  }
  func.func @transform_3(%arg0: i32, %arg1: i32) -> (i32, i32, i32) {
    %c0_i32 = arith.constant 0 : i32
    %c0_i32_0 = arith.constant 0 : i32
    return %arg0, %arg1, %c0_i32 : i32, i32, i32
  }
}

module attributes {stable_mosaic.version = 11 : i64} {
  func.func @_conv_kernel(%arg0: i32, %arg1: i32, %arg2: memref<1x16x1152xbf16, #tpu.memory_space<vmem>>, %arg3: memref<1152x64xbf16, #tpu.memory_space<vmem>>, %arg4: memref<1x64xf32, #tpu.memory_space<vmem>>, %arg5: memref<1x16x64xbf16, #tpu.memory_space<vmem>>) attributes {dimension_semantics = [#tpu.dimension_semantics<parallel>, #tpu.dimension_semantics<parallel>], iteration_bounds = array<i64: 2, 1>, scalar_prefetch = 0 : i64, scratch_operands = 0 : i64, tpu.core_type = #tpu.core_type<tc>, window_params = [{transform_indices = @transform_0, window_bounds = array<i64: 1, 16, 1152>}, {pipeline_mode = #tpu.pipeline_mode<synchronous>, transform_indices = @transform_1, window_bounds = array<i64: 1152, 64>}, {pipeline_mode = #tpu.pipeline_mode<synchronous>, transform_indices = @transform_2, window_bounds = array<i64: 1, 64>}, {transform_indices = @transform_3, window_bounds = array<i64: 1, 16, 64>}]} {
    %c0 = arith.constant 0 : index
    %c0_0 = arith.constant 0 : index
    %c0_1 = arith.constant 0 : index
    %0 = vector.load %arg2[%c0, %c0_0, %c0_1] : memref<1x16x1152xbf16, #tpu.memory_space<vmem>>, vector<1x16x1152xbf16>
    %1 = vector.shape_cast %0 : vector<1x16x1152xbf16> to vector<16x1152xbf16>
    %c0_2 = arith.constant 0 : index
    %c0_3 = arith.constant 0 : index
    %2 = vector.load %arg3[%c0_2, %c0_3] : memref<1152x64xbf16, #tpu.memory_space<vmem>>, vector<1152x64xbf16>
    %cst = arith.constant dense<0.000000e+00> : vector<16x64xf32>
    %3 = tpu.matmul %1, %2, %cst {dimension_numbers = #tpu.dot_dimension_numbers<[1], [0], [0], [1], [0, 0, 1, 1], [], []>} : vector<16x1152xbf16>, vector<1152x64xbf16>, vector<16x64xf32> -> vector<16x64xf32>
    %c0_4 = arith.constant 0 : index
    %c0_5 = arith.constant 0 : index
    %4 = vector.load %arg4[%c0_4, %c0_5] : memref<1x64xf32, #tpu.memory_space<vmem>>, vector<1x64xf32>
    %5 = vector.broadcast %4 : vector<1x64xf32> to vector<16x64xf32>
    %6 = arith.addf %3, %5 : vector<16x64xf32>
    %cst_6 = arith.constant 0.000000e+00 : f32
    %7 = vector.broadcast %cst_6 : f32 to vector<16x64xf32>
    %8 = arith.maximumf %6, %7 : vector<16x64xf32>
    %9 = arith.truncf %8 : vector<16x64xf32> to vector<16x64xbf16>
    %c0_7 = arith.constant 0 : index
    %c0_8 = arith.constant 0 : index
    %c0_9 = arith.constant 0 : index
    %10 = vector.load %arg5[%c0_7, %c0_8, %c0_9] : memref<1x16x64xbf16, #tpu.memory_space<vmem>>, vector<1x16x64xbf16>
    %11 = vector.shape_cast %10 : vector<1x16x64xbf16> to vector<16x64xbf16>
    %12 = vector.shape_cast %9 : vector<16x64xbf16> to vector<1x16x64xbf16>
    tpu.vector_store %arg5[%c0_7, %c0_8, %c0_9], %12 {strides = array<i32>} : memref<1x16x64xbf16, #tpu.memory_space<vmem>>, vector<1x16x64xbf16>,
    return
  }
  func.func @transform_0(%arg0: i32, %arg1: i32) -> (i32, i32, i32) {
    %c0_i32 = arith.constant 0 : i32
    %c0_i32_0 = arith.constant 0 : i32
    return %arg0, %arg1, %c0_i32 : i32, i32, i32
  }
  func.func @transform_1(%arg0: i32, %arg1: i32) -> (i32, i32) {
    %c0_i32 = arith.constant 0 : i32
    %c0_i32_0 = arith.constant 0 : i32
    %c0_i32_1 = arith.constant 0 : i32
    return %c0_i32, %c0_i32_0 : i32, i32
  }
  func.func @transform_2(%arg0: i32, %arg1: i32) -> (i32, i32) {
    %c0_i32 = arith.constant 0 : i32
    %c0_i32_0 = arith.constant 0 : i32
    %c0_i32_1 = arith.constant 0 : i32
    return %c0_i32, %c0_i32_0 : i32, i32
  }
  func.func @transform_3(%arg0: i32, %arg1: i32) -> (i32, i32, i32) {
    %c0_i32 = arith.constant 0 : i32
    %c0_i32_0 = arith.constant 0 : i32
    return %arg0, %arg1, %c0_i32 : i32, i32, i32
  }
}

module attributes {stable_mosaic.version = 11 : i64} {
  func.func @_conv_kernel(%arg0: i32, %arg1: i32, %arg2: memref<1x64x576xbf16, #tpu.memory_space<vmem>>, %arg3: memref<576x32xbf16, #tpu.memory_space<vmem>>, %arg4: memref<1x32xf32, #tpu.memory_space<vmem>>, %arg5: memref<1x64x32xbf16, #tpu.memory_space<vmem>>) attributes {dimension_semantics = [#tpu.dimension_semantics<parallel>, #tpu.dimension_semantics<parallel>], iteration_bounds = array<i64: 2, 1>, scalar_prefetch = 0 : i64, scratch_operands = 0 : i64, tpu.core_type = #tpu.core_type<tc>, window_params = [{transform_indices = @transform_0, window_bounds = array<i64: 1, 64, 576>}, {pipeline_mode = #tpu.pipeline_mode<synchronous>, transform_indices = @transform_1, window_bounds = array<i64: 576, 32>}, {pipeline_mode = #tpu.pipeline_mode<synchronous>, transform_indices = @transform_2, window_bounds = array<i64: 1, 32>}, {transform_indices = @transform_3, window_bounds = array<i64: 1, 64, 32>}]} {
    %c0 = arith.constant 0 : index
    %c0_0 = arith.constant 0 : index
    %c0_1 = arith.constant 0 : index
    %0 = vector.load %arg2[%c0, %c0_0, %c0_1] : memref<1x64x576xbf16, #tpu.memory_space<vmem>>, vector<1x64x576xbf16>
    %1 = vector.shape_cast %0 : vector<1x64x576xbf16> to vector<64x576xbf16>
    %c0_2 = arith.constant 0 : index
    %c0_3 = arith.constant 0 : index
    %2 = vector.load %arg3[%c0_2, %c0_3] : memref<576x32xbf16, #tpu.memory_space<vmem>>, vector<576x32xbf16>
    %cst = arith.constant dense<0.000000e+00> : vector<64x32xf32>
    %3 = tpu.matmul %1, %2, %cst {dimension_numbers = #tpu.dot_dimension_numbers<[1], [0], [0], [1], [0, 0, 1, 1], [], []>} : vector<64x576xbf16>, vector<576x32xbf16>, vector<64x32xf32> -> vector<64x32xf32>
    %c0_4 = arith.constant 0 : index
    %c0_5 = arith.constant 0 : index
    %4 = vector.load %arg4[%c0_4, %c0_5] : memref<1x32xf32, #tpu.memory_space<vmem>>, vector<1x32xf32>
    %5 = vector.broadcast %4 : vector<1x32xf32> to vector<64x32xf32>
    %6 = arith.addf %3, %5 : vector<64x32xf32>
    %cst_6 = arith.constant 0.000000e+00 : f32
    %7 = vector.broadcast %cst_6 : f32 to vector<64x32xf32>
    %8 = arith.maximumf %6, %7 : vector<64x32xf32>
    %9 = arith.truncf %8 : vector<64x32xf32> to vector<64x32xbf16>
    %c0_7 = arith.constant 0 : index
    %c0_8 = arith.constant 0 : index
    %c0_9 = arith.constant 0 : index
    %10 = vector.load %arg5[%c0_7, %c0_8, %c0_9] : memref<1x64x32xbf16, #tpu.memory_space<vmem>>, vector<1x64x32xbf16>
    %11 = vector.shape_cast %10 : vector<1x64x32xbf16> to vector<64x32xbf16>
    %12 = vector.shape_cast %9 : vector<64x32xbf16> to vector<1x64x32xbf16>
    tpu.vector_store %arg5[%c0_7, %c0_8, %c0_9], %12 {strides = array<i32>} : memref<1x64x32xbf16, #tpu.memory_space<vmem>>, vector<1x64x32xbf16>,
    return
  }
  func.func @transform_0(%arg0: i32, %arg1: i32) -> (i32, i32, i32) {
    %c0_i32 = arith.constant 0 : i32
    %c0_i32_0 = arith.constant 0 : i32
    return %arg0, %arg1, %c0_i32 : i32, i32, i32
  }
  func.func @transform_1(%arg0: i32, %arg1: i32) -> (i32, i32) {
    %c0_i32 = arith.constant 0 : i32
    %c0_i32_0 = arith.constant 0 : i32
    %c0_i32_1 = arith.constant 0 : i32
    return %c0_i32, %c0_i32_0 : i32, i32
  }
  func.func @transform_2(%arg0: i32, %arg1: i32) -> (i32, i32) {
    %c0_i32 = arith.constant 0 : i32
    %c0_i32_0 = arith.constant 0 : i32
    %c0_i32_1 = arith.constant 0 : i32
    return %c0_i32, %c0_i32_0 : i32, i32
  }
  func.func @transform_3(%arg0: i32, %arg1: i32) -> (i32, i32, i32) {
    %c0_i32 = arith.constant 0 : i32
    %c0_i32_0 = arith.constant 0 : i32
    return %arg0, %arg1, %c0_i32 : i32, i32, i32
  }
}

module attributes {stable_mosaic.version = 11 : i64} {
  func.func @_conv_kernel(%arg0: i32, %arg1: i32, %arg2: memref<1x256x288xbf16, #tpu.memory_space<vmem>>, %arg3: memref<288x32xbf16, #tpu.memory_space<vmem>>, %arg4: memref<1x32xf32, #tpu.memory_space<vmem>>, %arg5: memref<1x256x32xbf16, #tpu.memory_space<vmem>>) attributes {dimension_semantics = [#tpu.dimension_semantics<parallel>, #tpu.dimension_semantics<parallel>], iteration_bounds = array<i64: 2, 1>, scalar_prefetch = 0 : i64, scratch_operands = 0 : i64, tpu.core_type = #tpu.core_type<tc>, window_params = [{transform_indices = @transform_0, window_bounds = array<i64: 1, 256, 288>}, {pipeline_mode = #tpu.pipeline_mode<synchronous>, transform_indices = @transform_1, window_bounds = array<i64: 288, 32>}, {pipeline_mode = #tpu.pipeline_mode<synchronous>, transform_indices = @transform_2, window_bounds = array<i64: 1, 32>}, {transform_indices = @transform_3, window_bounds = array<i64: 1, 256, 32>}]} {
    %c0 = arith.constant 0 : index
    %c0_0 = arith.constant 0 : index
    %c0_1 = arith.constant 0 : index
    %0 = vector.load %arg2[%c0, %c0_0, %c0_1] : memref<1x256x288xbf16, #tpu.memory_space<vmem>>, vector<1x256x288xbf16>
    %1 = vector.shape_cast %0 : vector<1x256x288xbf16> to vector<256x288xbf16>
    %c0_2 = arith.constant 0 : index
    %c0_3 = arith.constant 0 : index
    %2 = vector.load %arg3[%c0_2, %c0_3] : memref<288x32xbf16, #tpu.memory_space<vmem>>, vector<288x32xbf16>
    %cst = arith.constant dense<0.000000e+00> : vector<256x32xf32>
    %3 = tpu.matmul %1, %2, %cst {dimension_numbers = #tpu.dot_dimension_numbers<[1], [0], [0], [1], [0, 0, 1, 1], [], []>} : vector<256x288xbf16>, vector<288x32xbf16>, vector<256x32xf32> -> vector<256x32xf32>
    %c0_4 = arith.constant 0 : index
    %c0_5 = arith.constant 0 : index
    %4 = vector.load %arg4[%c0_4, %c0_5] : memref<1x32xf32, #tpu.memory_space<vmem>>, vector<1x32xf32>
    %5 = vector.broadcast %4 : vector<1x32xf32> to vector<256x32xf32>
    %6 = arith.addf %3, %5 : vector<256x32xf32>
    %cst_6 = arith.constant 0.000000e+00 : f32
    %7 = vector.broadcast %cst_6 : f32 to vector<256x32xf32>
    %8 = arith.maximumf %6, %7 : vector<256x32xf32>
    %9 = arith.truncf %8 : vector<256x32xf32> to vector<256x32xbf16>
    %c0_7 = arith.constant 0 : index
    %c0_8 = arith.constant 0 : index
    %c0_9 = arith.constant 0 : index
    %10 = vector.load %arg5[%c0_7, %c0_8, %c0_9] : memref<1x256x32xbf16, #tpu.memory_space<vmem>>, vector<1x256x32xbf16>
    %11 = vector.shape_cast %10 : vector<1x256x32xbf16> to vector<256x32xbf16>
    %12 = vector.shape_cast %9 : vector<256x32xbf16> to vector<1x256x32xbf16>
    tpu.vector_store %arg5[%c0_7, %c0_8, %c0_9], %12 {strides = array<i32>} : memref<1x256x32xbf16, #tpu.memory_space<vmem>>, vector<1x256x32xbf16>,
    return
  }
  func.func @transform_0(%arg0: i32, %arg1: i32) -> (i32, i32, i32) {
    %c0_i32 = arith.constant 0 : i32
    %c0_i32_0 = arith.constant 0 : i32
    return %arg0, %arg1, %c0_i32 : i32, i32, i32
  }
  func.func @transform_1(%arg0: i32, %arg1: i32) -> (i32, i32) {
    %c0_i32 = arith.constant 0 : i32
    %c0_i32_0 = arith.constant 0 : i32
    %c0_i32_1 = arith.constant 0 : i32
    return %c0_i32, %c0_i32_0 : i32, i32
  }
  func.func @transform_2(%arg0: i32, %arg1: i32) -> (i32, i32) {
    %c0_i32 = arith.constant 0 : i32
    %c0_i32_0 = arith.constant 0 : i32
    %c0_i32_1 = arith.constant 0 : i32
    return %c0_i32, %c0_i32_0 : i32, i32
  }
  func.func @transform_3(%arg0: i32, %arg1: i32) -> (i32, i32, i32) {
    %c0_i32 = arith.constant 0 : i32
    %c0_i32_0 = arith.constant 0 : i32
    return %arg0, %arg1, %c0_i32 : i32, i32, i32
  }
}

module attributes {stable_mosaic.version = 11 : i64} {
  func.func @_conv_kernel(%arg0: i32, %arg1: i32, %arg2: memref<1x256x603xbf16, #tpu.memory_space<vmem>>, %arg3: memref<603x32xbf16, #tpu.memory_space<vmem>>, %arg4: memref<1x32xf32, #tpu.memory_space<vmem>>, %arg5: memref<1x256x32xbf16, #tpu.memory_space<vmem>>) attributes {dimension_semantics = [#tpu.dimension_semantics<parallel>, #tpu.dimension_semantics<parallel>], iteration_bounds = array<i64: 2, 1>, scalar_prefetch = 0 : i64, scratch_operands = 0 : i64, tpu.core_type = #tpu.core_type<tc>, window_params = [{transform_indices = @transform_0, window_bounds = array<i64: 1, 256, 603>}, {pipeline_mode = #tpu.pipeline_mode<synchronous>, transform_indices = @transform_1, window_bounds = array<i64: 603, 32>}, {pipeline_mode = #tpu.pipeline_mode<synchronous>, transform_indices = @transform_2, window_bounds = array<i64: 1, 32>}, {transform_indices = @transform_3, window_bounds = array<i64: 1, 256, 32>}]} {
    %c0 = arith.constant 0 : index
    %c0_0 = arith.constant 0 : index
    %c0_1 = arith.constant 0 : index
    %0 = vector.load %arg2[%c0, %c0_0, %c0_1] : memref<1x256x603xbf16, #tpu.memory_space<vmem>>, vector<1x256x603xbf16>
    %1 = vector.shape_cast %0 : vector<1x256x603xbf16> to vector<256x603xbf16>
    %c0_2 = arith.constant 0 : index
    %c0_3 = arith.constant 0 : index
    %2 = vector.load %arg3[%c0_2, %c0_3] : memref<603x32xbf16, #tpu.memory_space<vmem>>, vector<603x32xbf16>
    %cst = arith.constant dense<0.000000e+00> : vector<256x32xf32>
    %3 = tpu.matmul %1, %2, %cst {dimension_numbers = #tpu.dot_dimension_numbers<[1], [0], [0], [1], [0, 0, 1, 1], [], []>} : vector<256x603xbf16>, vector<603x32xbf16>, vector<256x32xf32> -> vector<256x32xf32>
    %c0_4 = arith.constant 0 : index
    %c0_5 = arith.constant 0 : index
    %4 = vector.load %arg4[%c0_4, %c0_5] : memref<1x32xf32, #tpu.memory_space<vmem>>, vector<1x32xf32>
    %5 = vector.broadcast %4 : vector<1x32xf32> to vector<256x32xf32>
    %6 = arith.addf %3, %5 : vector<256x32xf32>
    %cst_6 = arith.constant 0.000000e+00 : f32
    %7 = vector.broadcast %cst_6 : f32 to vector<256x32xf32>
    %8 = arith.maximumf %6, %7 : vector<256x32xf32>
    %9 = arith.truncf %8 : vector<256x32xf32> to vector<256x32xbf16>
    %c0_7 = arith.constant 0 : index
    %c0_8 = arith.constant 0 : index
    %c0_9 = arith.constant 0 : index
    %10 = vector.load %arg5[%c0_7, %c0_8, %c0_9] : memref<1x256x32xbf16, #tpu.memory_space<vmem>>, vector<1x256x32xbf16>
    %11 = vector.shape_cast %10 : vector<1x256x32xbf16> to vector<256x32xbf16>
    %12 = vector.shape_cast %9 : vector<256x32xbf16> to vector<1x256x32xbf16>
    tpu.vector_store %arg5[%c0_7, %c0_8, %c0_9], %12 {strides = array<i32>} : memref<1x256x32xbf16, #tpu.memory_space<vmem>>, vector<1x256x32xbf16>,
    return
  }
  func.func @transform_0(%arg0: i32, %arg1: i32) -> (i32, i32, i32) {
    %c0_i32 = arith.constant 0 : i32
    %c0_i32_0 = arith.constant 0 : i32
    return %arg0, %arg1, %c0_i32 : i32, i32, i32
  }
  func.func @transform_1(%arg0: i32, %arg1: i32) -> (i32, i32) {
    %c0_i32 = arith.constant 0 : i32
    %c0_i32_0 = arith.constant 0 : i32
    %c0_i32_1 = arith.constant 0 : i32
    return %c0_i32, %c0_i32_0 : i32, i32
  }
  func.func @transform_2(%arg0: i32, %arg1: i32) -> (i32, i32) {
    %c0_i32 = arith.constant 0 : i32
    %c0_i32_0 = arith.constant 0 : i32
    %c0_i32_1 = arith.constant 0 : i32
    return %c0_i32, %c0_i32_0 : i32, i32
  }
  func.func @transform_3(%arg0: i32, %arg1: i32) -> (i32, i32, i32) {
    %c0_i32 = arith.constant 0 : i32
    %c0_i32_0 = arith.constant 0 : i32
    return %arg0, %arg1, %c0_i32 : i32, i32, i32
  }
}

module attributes {stable_mosaic.version = 11 : i64} {
  func.func @_conv_kernel(%arg0: i32, %arg1: i32, %arg2: memref<1x256x32xbf16, #tpu.memory_space<vmem>>, %arg3: memref<32x3xbf16, #tpu.memory_space<vmem>>, %arg4: memref<1x3xf32, #tpu.memory_space<vmem>>, %arg5: memref<1x256x3xf32, #tpu.memory_space<vmem>>) attributes {dimension_semantics = [#tpu.dimension_semantics<parallel>, #tpu.dimension_semantics<parallel>], iteration_bounds = array<i64: 2, 1>, scalar_prefetch = 0 : i64, scratch_operands = 0 : i64, tpu.core_type = #tpu.core_type<tc>, window_params = [{transform_indices = @transform_0, window_bounds = array<i64: 1, 256, 32>}, {pipeline_mode = #tpu.pipeline_mode<synchronous>, transform_indices = @transform_1, window_bounds = array<i64: 32, 3>}, {pipeline_mode = #tpu.pipeline_mode<synchronous>, transform_indices = @transform_2, window_bounds = array<i64: 1, 3>}, {transform_indices = @transform_3, window_bounds = array<i64: 1, 256, 3>}]} {
    %c0 = arith.constant 0 : index
    %c0_0 = arith.constant 0 : index
    %c0_1 = arith.constant 0 : index
    %0 = vector.load %arg2[%c0, %c0_0, %c0_1] : memref<1x256x32xbf16, #tpu.memory_space<vmem>>, vector<1x256x32xbf16>
    %1 = vector.shape_cast %0 : vector<1x256x32xbf16> to vector<256x32xbf16>
    %c0_2 = arith.constant 0 : index
    %c0_3 = arith.constant 0 : index
    %2 = vector.load %arg3[%c0_2, %c0_3] : memref<32x3xbf16, #tpu.memory_space<vmem>>, vector<32x3xbf16>
    %cst = arith.constant dense<0.000000e+00> : vector<256x3xf32>
    %3 = tpu.matmul %1, %2, %cst {dimension_numbers = #tpu.dot_dimension_numbers<[1], [0], [0], [1], [0, 0, 1, 1], [], []>} : vector<256x32xbf16>, vector<32x3xbf16>, vector<256x3xf32> -> vector<256x3xf32>
    %c0_4 = arith.constant 0 : index
    %c0_5 = arith.constant 0 : index
    %4 = vector.load %arg4[%c0_4, %c0_5] : memref<1x3xf32, #tpu.memory_space<vmem>>, vector<1x3xf32>
    %5 = vector.broadcast %4 : vector<1x3xf32> to vector<256x3xf32>
    %6 = arith.addf %3, %5 : vector<256x3xf32>
    %7 = math.tanh %6 : vector<256x3xf32>
    %cst_6 = arith.constant 1.000000e+00 : f32
    %8 = vector.broadcast %cst_6 : f32 to vector<256x3xf32>
    %9 = arith.addf %7, %8 : vector<256x3xf32>
    %cst_7 = arith.constant 5.000000e-01 : f32
    %10 = vector.broadcast %cst_7 : f32 to vector<256x3xf32>
    %11 = arith.mulf %9, %10 : vector<256x3xf32>
    %c0_8 = arith.constant 0 : index
    %c0_9 = arith.constant 0 : index
    %c0_10 = arith.constant 0 : index
    %12 = vector.load %arg5[%c0_8, %c0_9, %c0_10] : memref<1x256x3xf32, #tpu.memory_space<vmem>>, vector<1x256x3xf32>
    %13 = vector.shape_cast %12 : vector<1x256x3xf32> to vector<256x3xf32>
    %14 = vector.shape_cast %11 : vector<256x3xf32> to vector<1x256x3xf32>
    tpu.vector_store %arg5[%c0_8, %c0_9, %c0_10], %14 {strides = array<i32>} : memref<1x256x3xf32, #tpu.memory_space<vmem>>, vector<1x256x3xf32>,
    return
  }
  func.func @transform_0(%arg0: i32, %arg1: i32) -> (i32, i32, i32) {
    %c0_i32 = arith.constant 0 : i32
    %c0_i32_0 = arith.constant 0 : i32
    return %arg0, %arg1, %c0_i32 : i32, i32, i32
  }
  func.func @transform_1(%arg0: i32, %arg1: i32) -> (i32, i32) {
    %c0_i32 = arith.constant 0 : i32
    %c0_i32_0 = arith.constant 0 : i32
    %c0_i32_1 = arith.constant 0 : i32
    return %c0_i32, %c0_i32_0 : i32, i32
  }
  func.func @transform_2(%arg0: i32, %arg1: i32) -> (i32, i32) {
    %c0_i32 = arith.constant 0 : i32
    %c0_i32_0 = arith.constant 0 : i32
    %c0_i32_1 = arith.constant 0 : i32
    return %c0_i32, %c0_i32_0 : i32, i32
  }
  func.func @transform_3(%arg0: i32, %arg1: i32) -> (i32, i32, i32) {
    %c0_i32 = arith.constant 0 : i32
    %c0_i32_0 = arith.constant 0 : i32
    return %arg0, %arg1, %c0_i32 : i32, i32, i32
  }
}

</mosaic_0001>

<llo_original>
// kernel: autoencoder_pallas.15
$region0: #{autoencoder_pallas.15}
  #allocation0 [shape = 'u32[]', space=smem, size = 0x4, offset = 0x4, fixed_abs, tag = 'smem constant byte address 0x4 - core index']
  #allocation1 [shape = 'u32[144,128]{1,0:T(1,128)}', space=vmem, size = 0x12000, scoped, tag = 'internal scratch']
  %s0 = inlined_call_operand.vmem [shape: bf16[2,64,288], index: 0, kind: input, shape index: {}]
  %s1 = inlined_call_operand.vmem [shape: bf16[288,32], index: 1, kind: input, shape index: {}]
  %s2 = inlined_call_operand.vmem [shape: f32[1,32], index: 2, kind: input, shape index: {}]
  %s3 = inlined_call_operand.vmem [shape: bf16[2,64,32], index: 3, kind: output, shape index: {}]
  %s4 = sld [smem:[#allocation0]]
  $region45: #{autoencoder_pallas.15} parent=0
    _
  %s6 = ssub.s32 1, %s4
  %s7 = scalar_select 0, %s6, %s4
  loop: start=0, step=1, limit=4
  $region2: #{autoencoder_pallas.15} parent=0 // loop_pre_header
    _
  $region3: #{autoencoder_pallas.15} parent=0 // loop_header
    %s9 = sphi 0, %s13
    %p10 = scmp.ge.s32.totalorder %s9, 4
    %s16 = sphi 0, %s28
    %s17 = sphi 0, %s24
    %s18 = sphi 0, %s16
    %s19 = sphi 0, %s17
    %s20 = sphi 0, %s18
    %s21 = sphi 0, %s19
    %s33 = sphi 0, %s35
    %s36 = sphi 0, %s33
    %s37 = sphi 0, %s36
    %s53 = sphi 0, %s37
    %s57 = sphi 0, %s57
    %s59 = sphi 0, %s57
    %s60 = sphi 0, %s59
    %s74 = sphi 0, %s60
    %s78 = sphi 0, %s78
    %s80 = sphi 0, %s78
    %s81 = sphi 0, %s80
    %s95 = sphi 0, %s81
    %s103 = sphi 0, %s105
    %s106 = sphi 0, %s103
    %s107 = sphi 0, %s106
    %s123 = sphi 0, %s107
  $region4: #{autoencoder_pallas.15} parent=0 // loop_header_branch
    %12 = sbr.rel (%p10) target = $region8
  $region5: #{autoencoder_pallas.15} parent=0 // loop_body
    %s14 = ssub.s32 %s9, 1
    %s15 = ssub.s32 %s9, 2
    %s22 = sadd.s32 1, %s17
    %p23 = scmp.ge.s32.totalorder %s22, 1
    %s24 = scalar_select %p23, 0, %s22
    %s25 = sadd.s32 1, %s16
    %s26 = scalar_select %p23, %s25, %s16
    %p27 = scmp.ge.s32.totalorder %s26, 2
    %s28 = scalar_select %p27, 0, %s26
    %s29 = ssub.s32 %s16, %s28
    %s30 = ssub.s32 %s17, %s24
    %s31 = sor.u32 %s29, %s30
    %p32 = scmp.eq.s32.totalorder %s31, 0
    %s34 = sadd.s32 %s33, 1
    %s35 = scalar_select %p32, %s33, %s34
    %p38 = pneg %p32
    %p39 = scmp.eq.s32.totalorder %s9, 1
    %p40 = por %p38, %p39
    %p41 = scmp.ne.s32.totalorder %s33, %s36
    %p42 = scmp.eq.s32.totalorder %s9, 0
    %p43 = por %p41, %p42
    %p44 = scmp.ne.s32.totalorder %s33, %s36
    %p45 = scmp.eq.s32.totalorder %s14, 1
    %p46 = por %p44, %p45
    %p47 = scmp.ne.s32.totalorder %s36, %s37
    %p48 = scmp.eq.s32.totalorder %s14, 0
    %p49 = por %p47, %p48
    %p50 = scmp.ne.s32.totalorder %s36, %s37
    %p51 = scmp.eq.s32.totalorder %s15, 1
    %p52 = por %p50, %p51
    %p54 = scmp.ne.s32.totalorder %s37, %s53
    %p55 = scmp.eq.s32.totalorder %s15, 0
    %p56 = por %p54, %p55
    %s58 = sadd.s32 %s57, 1
    %p61 = scmp.eq.s32.totalorder %s9, 1
    %p62 = scmp.ne.s32.totalorder %s57, %s59
    %p63 = scmp.eq.s32.totalorder %s9, 0
    %p64 = por %p62, %p63
    %p65 = scmp.ne.s32.totalorder %s57, %s59
    %p66 = scmp.eq.s32.totalorder %s14, 1
    %p67 = por %p65, %p66
    %p68 = scmp.ne.s32.totalorder %s59, %s60
    %p69 = scmp.eq.s32.totalorder %s14, 0
    %p70 = por %p68, %p69
    %p71 = scmp.ne.s32.totalorder %s59, %s60
    %p72 = scmp.eq.s32.totalorder %s15, 1
    %p73 = por %p71, %p72
    %p75 = scmp.ne.s32.totalorder %s60, %s74
    %p76 = scmp.eq.s32.totalorder %s15, 0
    %p77 = por %p75, %p76
    %s79 = sadd.s32 %s78, 1
    %p82 = scmp.eq.s32.totalorder %s9, 1
    %p83 = scmp.ne.s32.totalorder %s78, %s80
    %p84 = scmp.eq.s32.totalorder %s9, 0
    %p85 = por %p83, %p84
    %p86 = scmp.ne.s32.totalorder %s78, %s80
    %p87 = scmp.eq.s32.totalorder %s14, 1
    %p88 = por %p86, %p87
    %p89 = scmp.ne.s32.totalorder %s80, %s81
    %p90 = scmp.eq.s32.totalorder %s14, 0
    %p91 = por %p89, %p90
    %p92 = scmp.ne.s32.totalorder %s80, %s81
    %p93 = scmp.eq.s32.totalorder %s15, 1
    %p94 = por %p92, %p93
    %p96 = scmp.ne.s32.totalorder %s81, %s95
    %p97 = scmp.eq.s32.totalorder %s15, 0
    %p98 = por %p96, %p97
    %s99 = ssub.s32 %s16, %s28
    %s100 = ssub.s32 %s17, %s24
    %s101 = sor.u32 %s99, %s100
    %p102 = scmp.eq.s32.totalorder %s101, 0
    %s104 = sadd.s32 %s103, 1
    %s105 = scalar_select %p102, %s103, %s104
    %p108 = pneg %p102
    %p109 = scmp.eq.s32.totalorder %s9, 1
    %p110 = por %p108, %p109
    %p111 = scmp.ne.s32.totalorder %s103, %s106
    %p112 = scmp.eq.s32.totalorder %s9, 0
    %p113 = por %p111, %p112
    %p114 = scmp.ne.s32.totalorder %s103, %s106
    %p115 = scmp.eq.s32.totalorder %s14, 1
    %p116 = por %p114, %p115
    %p117 = scmp.ne.s32.totalorder %s106, %s107
    %p118 = scmp.eq.s32.totalorder %s14, 0
    %p119 = por %p117, %p118
    %p120 = scmp.ne.s32.totalorder %s106, %s107
    %p121 = scmp.eq.s32.totalorder %s15, 1
    %p122 = por %p120, %p121
    %p124 = scmp.ne.s32.totalorder %s107, %s123
    %p125 = scmp.eq.s32.totalorder %s15, 0
    %p126 = por %p124, %p125
    %p127 = scmp.le.s32.totalorder 1, %s9
    %p128 = scmp.lt.s32.totalorder %s9, 3
    %p129 = pnand %p127, %p128
    %p130 = pneg %p129
    // Predicated region
    $region9: #{autoencoder_pallas.15} parent=5 // pred_check
      _
    $region10: #{autoencoder_pallas.15} parent=5 // pred_check_branch
      %132 = sbr.rel (%p129) target = $region12
    $region11: #{autoencoder_pallas.15} parent=5 // pred_region
      %s133 = ssub.s32 %s9, 1
      // Predicated region
      $region13: #{autoencoder_pallas.15} parent=11 // pred_check
        %p134 = pneg %p70
      $region14: #{autoencoder_pallas.15} parent=11 // pred_check_branch
        %136 = sbr.rel (%p134) target = $region16
      $region15: #{autoencoder_pallas.15} parent=11 // pred_region
        _
      $region16: #{autoencoder_pallas.15} parent=11 // pred_fallthru
        _
      // Predicated region
      $region17: #{autoencoder_pallas.15} parent=11 // pred_check
        %p137 = pneg %p91
      $region18: #{autoencoder_pallas.15} parent=11 // pred_check_branch
        %139 = sbr.rel (%p137) target = $region20
      $region19: #{autoencoder_pallas.15} parent=11 // pred_region
        _
      $region20: #{autoencoder_pallas.15} parent=11 // pred_fallthru
        _
    $region12: #{autoencoder_pallas.15} parent=5 // pred_fallthru
      _
    %p140 = scmp.lt.s32.totalorder %s9, 2
    // Predicated region
    $region21: #{autoencoder_pallas.15} parent=5 // pred_check
      %p141 = pneg %p140
    $region22: #{autoencoder_pallas.15} parent=5 // pred_check_branch
      %143 = sbr.rel (%p141) target = $region24
    $region23: #{autoencoder_pallas.15} parent=5 // pred_region
      // Predicated region
      $region25: #{autoencoder_pallas.15} parent=23 // pred_check
        %p144 = pneg %p43
      $region26: #{autoencoder_pallas.15} parent=23 // pred_check_branch
        %146 = sbr.rel (%p144) target = $region28
      $region27: #{autoencoder_pallas.15} parent=23 // pred_region
        %s147 = smul.u32 8, %s17
        %p148 = scmp.lt.s32.totalorder %s16, 1
        %s149 = scalar_select %p148, %s16, 1
        %p150 = scmp.lt.s32.totalorder %s147, 7
        %s151 = scalar_select %p150, %s147, 7
        %s152 = smul.addr %s151, 3
        %s153 = smul.addr %s149, 24
        %s154 = sadd.s32 %s152, %s153
        %s155 = smul.addr %s154, 4
        %s156 = scalar_lea.vmem %s0, %s155
        %s157 = smul.u32 8, %s17
      $region28: #{autoencoder_pallas.15} parent=23 // pred_fallthru
        _
    $region24: #{autoencoder_pallas.15} parent=5 // pred_fallthru
      _
    %p158 = scmp.le.s32.totalorder 1, %s9
    %p159 = scmp.lt.s32.totalorder %s9, 3
    %p160 = pnand %p158, %p159
    %p161 = pneg %p160
    // Predicated region
    $region29: #{autoencoder_pallas.15} parent=5 // pred_check
      _
    $region30: #{autoencoder_pallas.15} parent=5 // pred_check_branch
      %163 = sbr.rel (%p160) target = $region32
    $region31: #{autoencoder_pallas.15} parent=5 // pred_region
      %s164 = ssub.s32 %s9, 1
      %s165 = smul.u32 8, %s19
      %p166 = scmp.lt.s32.totalorder %s18, 1
      %s167 = scalar_select %p166, %s18, 1
      %p168 = scmp.lt.s32.totalorder %s165, 7
      %s169 = scalar_select %p168, %s165, 7
      %s170 = smul.addr %s169, 3
      %s171 = smul.addr %s167, 24
      %s172 = sadd.s32 %s170, %s171
      %s173 = smul.addr %s172, 4
      %s174 = scalar_lea.vmem %s0, %s173
      %p175 = pneg %p49
      %p176 = pneg %p46
      %p177 = pneg %p70
      %p178 = pneg %p67
      %p179 = pneg %p91
      %p180 = pneg %p88
      %p181 = pneg %p119
      %p182 = pneg %p116
      %s183 = smul.u32 8, %s19
      %p184 = scmp.lt.s32.totalorder %s18, 1
      %s185 = scalar_select %p184, %s18, 1
      %p186 = scmp.lt.s32.totalorder %s183, 7
      %s187 = scalar_select %p186, %s183, 7
      %s188 = smul.addr %s185, 8
      %s189 = sadd.s32 %s187, %s188
      %s190 = smul.addr %s189, 4
      %s191 = scalar_lea.vmem %s3, %s190
      %s192 = smul.u32 8, %s19
      %p193 = scmp.lt.s32.totalorder %s18, 1
      %s194 = scalar_select %p193, %s18, 1
      %p195 = scmp.lt.s32.totalorder %s192, 7
      %s196 = scalar_select %p195, %s192, 7
      %s197 = smul.addr %s196, 3
      %s198 = smul.addr %s194, 24
      %s199 = sadd.s32 %s197, %s198
      %s200 = smul.addr %s199, 4
      %s201 = scalar_lea.vmem %s0, %s200
      %s202 = smul.u32 8, %s19
      %s203 = smul.u32 8, %s19
      %p204 = scmp.lt.s32.totalorder %s18, 1
      %s205 = scalar_select %p204, %s18, 1
      %p206 = scmp.lt.s32.totalorder %s203, 7
      %s207 = scalar_select %p206, %s203, 7
      %s208 = smul.addr %s205, 8
      %s209 = sadd.s32 %s207, %s208
      %s210 = smul.addr %s209, 4
      %s211 = scalar_lea.vmem %s3, %s210
      %s212 = smul.u32 8, %s19
      %v214 = vld [vmem:[%s201] sm:$0xff]
      %v215 = vld [vmem:[%s201 + $0x8] sm:$0xf]
      %v216 = vld [vmem:[%s201 + $0xc] sm:$0xff]
      %v217 = vld [vmem:[%s201 + $0x14] sm:$0xf]
      %v218 = vld [vmem:[%s201 + $0x18] sm:$0xff]
      %v219 = vld [vmem:[%s201 + $0x20] sm:$0xf]
      %v220 = vld [vmem:[%s201 + $0x24] sm:$0xff]
      %v221 = vld [vmem:[%s201 + $0x2c] sm:$0xf]
      %v222 = vld [vmem:[%s201 + $0x30] sm:$0xff]
      %v223 = vld [vmem:[%s201 + $0x38] sm:$0xf]
      %v224 = vld [vmem:[%s201 + $0x3c] sm:$0xff]
      %v225 = vld [vmem:[%s201 + $0x44] sm:$0xf]
      %v226 = vld [vmem:[%s201 + $0x48] sm:$0xff]
      %v227 = vld [vmem:[%s201 + $0x50] sm:$0xf]
      %v228 = vld [vmem:[%s201 + $0x54] sm:$0xff]
      %v229 = vld [vmem:[%s201 + $0x5c] sm:$0xf]
      %v230 = vld [vmem:[%s1] sm:$0xf]
      %v231 = vld [vmem:[%s1 + $0x4] sm:$0xf]
      %v232 = vld [vmem:[%s1 + $0x8] sm:$0xf]
      %v233 = vld [vmem:[%s1 + $0xc] sm:$0xf]
      %v234 = vld [vmem:[%s1 + $0x10] sm:$0xf]
      %v235 = vld [vmem:[%s1 + $0x14] sm:$0xf]
      %v236 = vld [vmem:[%s1 + $0x18] sm:$0xf]
      %v237 = vld [vmem:[%s1 + $0x1c] sm:$0xf]
      %v238 = vld [vmem:[%s1 + $0x20] sm:$0xf]
      %v239 = vld [vmem:[%s1 + $0x24] sm:$0xf]
      %v240 = vld [vmem:[%s1 + $0x28] sm:$0xf]
      %v241 = vld [vmem:[%s1 + $0x2c] sm:$0xf]
      %v242 = vld [vmem:[%s1 + $0x30] sm:$0xf]
      %v243 = vld [vmem:[%s1 + $0x34] sm:$0xf]
      %v244 = vld [vmem:[%s1 + $0x38] sm:$0xf]
      %v245 = vld [vmem:[%s1 + $0x3c] sm:$0xf]
      %v246 = vld [vmem:[%s1 + $0x40] sm:$0xf]
      %v247 = vld [vmem:[%s1 + $0x44] sm:$0xf]
      %v248 = vld [vmem:[%s1 + $0x48] sm:$0xf]
      %v249 = vld [vmem:[%s1 + $0x4c] sm:$0xf]
      %v250 = vld [vmem:[%s1 + $0x50] sm:$0xf]
      %v251 = vld [vmem:[%s1 + $0x54] sm:$0xf]
      %v252 = vld [vmem:[%s1 + $0x58] sm:$0xf]
      %v253 = vld [vmem:[%s1 + $0x5c] sm:$0xf]
      %v254 = vld [vmem:[%s1 + $0x60] sm:$0xf]
      %v255 = vld [vmem:[%s1 + $0x64] sm:$0xf]
      %v256 = vld [vmem:[%s1 + $0x68] sm:$0xf]
      %v257 = vld [vmem:[%s1 + $0x6c] sm:$0xf]
      %v258 = vld [vmem:[%s1 + $0x70] sm:$0xf]
      %v259 = vld [vmem:[%s1 + $0x74] sm:$0xf]
      %v260 = vld [vmem:[%s1 + $0x78] sm:$0xf]
      %v261 = vld [vmem:[%s1 + $0x7c] sm:$0xf]
      %v262 = vld [vmem:[%s1 + $0x80] sm:$0xf]
      %v263 = vld [vmem:[%s1 + $0x84] sm:$0xf]
      %v264 = vld [vmem:[%s1 + $0x88] sm:$0xf]
      %v265 = vld [vmem:[%s1 + $0x8c] sm:$0xf]
      %v266 = vld [vmem:[%s2] sm:$0x1]
      %v268 = vlaneseq
      %v269 = vshrl.u32 %v268, 7
      %v270 = vsub.s32 0, %v269
      %v271 = vrot.slane %v266, %v270
      %v289 = vunpack.c.l.b16 %v214
      %v290 = vunpack.c.h.b16 %v214
      %v291 = vunpack.c.l.b16 %v215
      %v292 = vunpack.c.l.b16 %v216
      %v293 = vunpack.c.h.b16 %v216
      %v294 = vunpack.c.l.b16 %v217
      %v295 = vunpack.c.l.b16 %v218
      %v296 = vunpack.c.h.b16 %v218
      %v297 = vunpack.c.l.b16 %v219
      %v298 = vunpack.c.l.b16 %v220
      %v299 = vunpack.c.h.b16 %v220
      %v300 = vunpack.c.l.b16 %v221
      %v301 = vunpack.c.l.b16 %v222
      %v302 = vunpack.c.h.b16 %v222
      %v303 = vunpack.c.l.b16 %v223
      %v304 = vunpack.c.l.b16 %v224
      %v305 = vunpack.c.h.b16 %v224
      %v306 = vunpack.c.l.b16 %v225
      %v307 = vunpack.c.l.b16 %v226
      %v308 = vunpack.c.h.b16 %v226
      %v309 = vunpack.c.l.b16 %v227
      %v310 = vunpack.c.l.b16 %v228
      %v311 = vunpack.c.h.b16 %v228
      %v312 = vunpack.c.l.b16 %v229
      %v313 = vpack.c.b16 %v292, %v289
      %v314 = vpack.c.b16 %v293, %v290
      %v315 = vpack.c.b16 %v294, %v291
      %v316 = vpack.c.b16 %v298, %v295
      %v317 = vpack.c.b16 %v299, %v296
      %v318 = vpack.c.b16 %v300, %v297
      %v319 = vpack.c.b16 %v304, %v301
      %v320 = vpack.c.b16 %v305, %v302
      %v321 = vpack.c.b16 %v306, %v303
      %v322 = vpack.c.b16 %v310, %v307
      %v323 = vpack.c.b16 %v311, %v308
      %v324 = vpack.c.b16 %v312, %v309
      %v369 = vunpack.c.l.b16 %v230
      %v370 = vunpack.c.l.b16 %v231
      %v371 = vunpack.c.l.b16 %v232
      %v372 = vunpack.c.l.b16 %v233
      %v373 = vunpack.c.l.b16 %v234
      %v374 = vunpack.c.l.b16 %v235
      %v375 = vunpack.c.l.b16 %v236
      %v376 = vunpack.c.l.b16 %v237
      %v377 = vunpack.c.l.b16 %v238
      %v378 = vunpack.c.l.b16 %v239
      %v379 = vunpack.c.l.b16 %v240
      %v380 = vunpack.c.l.b16 %v241
      %v381 = vunpack.c.l.b16 %v242
      %v382 = vunpack.c.l.b16 %v243
      %v383 = vunpack.c.l.b16 %v244
      %v384 = vunpack.c.l.b16 %v245
      %v385 = vunpack.c.l.b16 %v246
      %v386 = vunpack.c.l.b16 %v247
      %v387 = vunpack.c.l.b16 %v248
      %v388 = vunpack.c.l.b16 %v249
      %v389 = vunpack.c.l.b16 %v250
      %v390 = vunpack.c.l.b16 %v251
      %v391 = vunpack.c.l.b16 %v252
      %v392 = vunpack.c.l.b16 %v253
      %v393 = vunpack.c.l.b16 %v254
      %v394 = vunpack.c.l.b16 %v255
      %v395 = vunpack.c.l.b16 %v256
      %v396 = vunpack.c.l.b16 %v257
      %v397 = vunpack.c.l.b16 %v258
      %v398 = vunpack.c.l.b16 %v259
      %v399 = vunpack.c.l.b16 %v260
      %v400 = vunpack.c.l.b16 %v261
      %v401 = vunpack.c.l.b16 %v262
      %v402 = vunpack.c.l.b16 %v263
      %v403 = vunpack.c.l.b16 %v264
      %v404 = vunpack.c.l.b16 %v265
      %v405 = vpack.c.b16 %v370, %v369
      %v406 = vpack.c.b16 %v372, %v371
      %v407 = vpack.c.b16 %v374, %v373
      %v408 = vpack.c.b16 %v376, %v375
      %v409 = vpack.c.b16 %v378, %v377
      %v410 = vpack.c.b16 %v380, %v379
      %v411 = vpack.c.b16 %v382, %v381
      %v412 = vpack.c.b16 %v384, %v383
      %v413 = vpack.c.b16 %v386, %v385
      %v414 = vpack.c.b16 %v388, %v387
      %v415 = vpack.c.b16 %v390, %v389
      %v416 = vpack.c.b16 %v392, %v391
      %v417 = vpack.c.b16 %v394, %v393
      %v418 = vpack.c.b16 %v396, %v395
      %v419 = vpack.c.b16 %v398, %v397
      %v420 = vpack.c.b16 %v400, %v399
      %v421 = vpack.c.b16 %v402, %v401
      %v422 = vpack.c.b16 %v404, %v403
      %vm441 = vcmask 261120
      %v443 = vsel %vm441, %v315, 0
      %v446 = vsel %vm441, %v318, 0
      %v449 = vsel %vm441, %v321, 0
      %v452 = vsel %vm441, %v324, 0
      %454 = vmatprep.subr.bf16.mxu0 0
      %455 = vmatpush1.bf16.msra.mxu0 %v412
      %456 = vmatprep.subr.bf16.mxu0 0
      %457 = vmatpush1.bf16.msra.mxu0 %v411
      %458 = vmatprep.subr.bf16.mxu0 0
      %459 = vmatpush1.bf16.msra.mxu0 %v410
      %460 = vmatprep.subr.bf16.mxu0 0
      %461 = vmatpush1.bf16.msra.mxu0 %v409
      %462 = vmatprep.subr.bf16.mxu0 0
      %463 = vmatpush1.bf16.msra.mxu0 %v408
      %464 = vmatprep.subr.bf16.mxu0 0
      %465 = vmatpush1.bf16.msra.mxu0 %v407
      %466 = vmatprep.subr.bf16.mxu0 0
      %467 = vmatpush1.bf16.msra.mxu0 %v406
      %468 = vmatprep.subr.bf16.mxu0 0
      %469 = vmatpush1.bf16.msra.mxu0 %v405
      %470 = vmatprep.subr.bf16.mxu0 0
      %471 = vmatpush2.bf16.msra.mxu0 %v420
      %472 = vmatprep.subr.bf16.mxu0 0
      %473 = vmatpush2.bf16.msra.mxu0 %v419
      %474 = vmatprep.subr.bf16.mxu0 0
      %475 = vmatpush2.bf16.msra.mxu0 %v418
      %476 = vmatprep.subr.bf16.mxu0 0
      %477 = vmatpush2.bf16.msra.mxu0 %v417
      %478 = vmatprep.subr.bf16.mxu0 0
      %479 = vmatpush2.bf16.msra.mxu0 %v416
      %480 = vmatprep.subr.bf16.mxu0 0
      %481 = vmatpush2.bf16.msra.mxu0 %v415
      %482 = vmatprep.subr.bf16.mxu0 0
      %483 = vmatpush2.bf16.msra.mxu0 %v414
      %484 = vmatprep.subr.bf16.mxu0 0
      %485 = vmatpush2.bf16.msra.mxu0 %v413
      %486 = vmatprep.mubr.bf16.mxu0 %v314
      %487 = vmatmul.mubr.bf16.gmra.mxu0 %v313
      %v488 = vpop.f32.mrf.mxu0
      %v489 = vadd.f32 %v271, %v488
      %v490 = vpop.f32.mrf.mxu0
      %v491 = vpop.f32.mrf.mxu0
      %v492 = vadd.f32 %v271, %v491
      %v493 = vpop.f32.mrf.mxu0
      %494 = vmatprep.mubr.bf16.mxu0 %v317
      %495 = vmatmul.mubr.bf16.gmra.mxu0 %v316
      %v496 = vpop.f32.mrf.mxu0
      %v497 = vadd.f32 %v271, %v496
      %v498 = vpop.f32.mrf.mxu0
      %v499 = vpop.f32.mrf.mxu0
      %v500 = vadd.f32 %v271, %v499
      %v501 = vpop.f32.mrf.mxu0
      %502 = vmatprep.mubr.bf16.mxu0 %v320
      %503 = vmatmul.mubr.bf16.gmra.mxu0 %v319
      %v504 = vpop.f32.mrf.mxu0
      %v505 = vadd.f32 %v271, %v504
      %v506 = vpop.f32.mrf.mxu0
      %v507 = vpop.f32.mrf.mxu0
      %v508 = vadd.f32 %v271, %v507
      %v509 = vpop.f32.mrf.mxu0
      %510 = vmatprep.mubr.bf16.mxu0 %v323
      %511 = vmatmul.mubr.bf16.gmra.mxu0 %v322
      %v512 = vpop.f32.mrf.mxu0
      %v513 = vadd.f32 %v271, %v512
      %v514 = vpop.f32.mrf.mxu0
      %v515 = vpop.f32.mrf.mxu0
      %v516 = vadd.f32 %v271, %v515
      %v517 = vpop.f32.mrf.mxu0
      %518 = vdwg.mxu0
      %519 = vmatprep.subr.bf16.mxu0 0
      %520 = vmatpush1.bf16.msra.mxu0 0
      %521 = vmatprep.subr.bf16.mxu0 0
      %522 = vmatpush1.bf16.msra.mxu0 0
      %523 = vmatprep.subr.bf16.mxu0 0
      %524 = vmatpush1.bf16.msra.mxu0 0
      %525 = vmatprep.subr.bf16.mxu0 0
      %526 = vmatpush1.bf16.msra.mxu0 0
      %527 = vmatprep.subr.bf16.mxu0 0
      %528 = vmatpush1.bf16.msra.mxu0 0
      %529 = vmatprep.subr.bf16.mxu0 0
      %530 = vmatpush1.bf16.msra.mxu0 0
      %531 = vmatprep.subr.bf16.mxu0 0
      %532 = vmatpush1.bf16.msra.mxu0 %v422
      %533 = vmatprep.subr.bf16.mxu0 0
      %534 = vmatpush1.bf16.msra.mxu0 %v421
      %535 = vmatprep.subr.bf16.mxu0 0
      %536 = vmatpush2.bf16.msra.mxu0 0
      %537 = vmatprep.subr.bf16.mxu0 0
      %538 = vmatpush2.bf16.msra.mxu0 0
      %539 = vmatprep.subr.bf16.mxu0 0
      %540 = vmatpush2.bf16.msra.mxu0 0
      %541 = vmatprep.subr.bf16.mxu0 0
      %542 = vmatpush2.bf16.msra.mxu0 0
      %543 = vmatprep.subr.bf16.mxu0 0
      %544 = vmatpush2.bf16.msra.mxu0 0
      %545 = vmatprep.subr.bf16.mxu0 0
      %546 = vmatpush2.bf16.msra.mxu0 0
      %547 = vmatprep.subr.bf16.mxu0 0
      %548 = vmatpush2.bf16.msra.mxu0 0
      %549 = vmatprep.subr.bf16.mxu0 0
      %550 = vmatpush2.bf16.msra.mxu0 0
      %551 = vmatprep.mubr.bf16.mxu0 0
      %552 = vmatmul.mubr.bf16.gmra.mxu0 %v443
      %v553 = vpop.f32.mrf.mxu0
      %v554 = vadd.f32 %v489, %v553
      %v555 = vpop.f32.mrf.mxu0
      %v556 = vpop.f32.mrf.mxu0
      %v557 = vadd.f32 %v492, %v556
      %v558 = vpop.f32.mrf.mxu0
      %559 = vmatprep.mubr.bf16.mxu0 0
      %560 = vmatmul.mubr.bf16.gmra.mxu0 %v446
      %v561 = vpop.f32.mrf.mxu0
      %v562 = vadd.f32 %v497, %v561
      %v563 = vpop.f32.mrf.mxu0
      %v564 = vpop.f32.mrf.mxu0
      %v565 = vadd.f32 %v500, %v564
      %v566 = vpop.f32.mrf.mxu0
      %567 = vmatprep.mubr.bf16.mxu0 0
      %568 = vmatmul.mubr.bf16.gmra.mxu0 %v449
      %v569 = vpop.f32.mrf.mxu0
      %v570 = vadd.f32 %v505, %v569
      %v571 = vpop.f32.mrf.mxu0
      %v572 = vpop.f32.mrf.mxu0
      %v573 = vadd.f32 %v508, %v572
      %v574 = vpop.f32.mrf.mxu0
      %575 = vmatprep.mubr.bf16.mxu0 0
      %576 = vmatmul.mubr.bf16.gmra.mxu0 %v452
      %v577 = vpop.f32.mrf.mxu0
      %v578 = vadd.f32 %v513, %v577
      %v579 = vpop.f32.mrf.mxu0
      %v580 = vpop.f32.mrf.mxu0
      %v581 = vadd.f32 %v516, %v580
      %v582 = vpop.f32.mrf.mxu0
      %583 = vdwg.mxu0
      %v584 = vmax.f32 %v554, 0.0
      %v585 = vmax.f32 %v557, 0.0
      %v586 = vmax.f32 %v562, 0.0
      %v587 = vmax.f32 %v565, 0.0
      %v588 = vmax.f32 %v570, 0.0
      %v589 = vmax.f32 %v573, 0.0
      %v590 = vmax.f32 %v578, 0.0
      %v591 = vmax.f32 %v581, 0.0
      %v592 = vpack.c.bf16 %v585, %v584
      %v593 = vpack.c.bf16 %v587, %v586
      %v594 = vpack.c.bf16 %v589, %v588
      %v595 = vpack.c.bf16 %v591, %v590
      %v600 = vunpack.c.l.b16 %v592
      %v601 = vunpack.c.h.b16 %v592
      %v602 = vunpack.c.l.b16 %v593
      %v603 = vunpack.c.h.b16 %v593
      %v604 = vunpack.c.l.b16 %v594
      %v605 = vunpack.c.h.b16 %v594
      %v606 = vunpack.c.l.b16 %v595
      %v607 = vunpack.c.h.b16 %v595
      %v608 = vpack.c.b16 %v600, %v600
      %v609 = vpack.c.b16 %v601, %v601
      %v610 = vpack.c.b16 %v602, %v602
      %v611 = vpack.c.b16 %v603, %v603
      %v612 = vpack.c.b16 %v604, %v604
      %v613 = vpack.c.b16 %v605, %v605
      %v614 = vpack.c.b16 %v606, %v606
      %v615 = vpack.c.b16 %v607, %v607
      %vm624 = vcmask 257024
      %625 = vst.msk [vmem:[%s211] sm:$0xf] %vm624, %v608
      %626 = vst.msk [vmem:[%s211 + $0x4] sm:$0xf] %vm624, %v609
      %627 = vst.msk [vmem:[%s211 + $0x8] sm:$0xf] %vm624, %v610
      %628 = vst.msk [vmem:[%s211 + $0xc] sm:$0xf] %vm624, %v611
      %629 = vst.msk [vmem:[%s211 + $0x10] sm:$0xf] %vm624, %v612
      %630 = vst.msk [vmem:[%s211 + $0x14] sm:$0xf] %vm624, %v613
      %631 = vst.msk [vmem:[%s211 + $0x18] sm:$0xf] %vm624, %v614
      %632 = vst.msk [vmem:[%s211 + $0x1c] sm:$0xf] %vm624, %v615
      %s633 = smul.u32 8, %s19
      %p634 = scmp.lt.s32.totalorder %s18, 1
      %s635 = scalar_select %p634, %s18, 1
      %p636 = scmp.lt.s32.totalorder %s633, 7
      %s637 = scalar_select %p636, %s633, 7
      %s638 = smul.addr %s635, 8
      %s639 = sadd.s32 %s637, %s638
      %s640 = smul.addr %s639, 4
      %s641 = scalar_lea.vmem %s3, %s640
      // Predicated region
      $region33: #{autoencoder_pallas.15} parent=31 // pred_check
        %p642 = pneg %p116
      $region34: #{autoencoder_pallas.15} parent=31 // pred_check_branch
        %644 = sbr.rel (%p642) target = $region36
      $region35: #{autoencoder_pallas.15} parent=31 // pred_region
        %s645 = smul.u32 8, %s19
      $region36: #{autoencoder_pallas.15} parent=31 // pred_fallthru
        _
    $region32: #{autoencoder_pallas.15} parent=5 // pred_fallthru
      _
    %p646 = scmp.le.s32.totalorder 2, %s9
    // Predicated region
    $region37: #{autoencoder_pallas.15} parent=5 // pred_check
      %p647 = pneg %p646
    $region38: #{autoencoder_pallas.15} parent=5 // pred_check_branch
      %649 = sbr.rel (%p647) target = $region40
    $region39: #{autoencoder_pallas.15} parent=5 // pred_region
      %s650 = ssub.s32 %s9, 2
      // Predicated region
      $region41: #{autoencoder_pallas.15} parent=39 // pred_check
        %p651 = pneg %p122
      $region42: #{autoencoder_pallas.15} parent=39 // pred_check_branch
        %653 = sbr.rel (%p651) target = $region44
      $region43: #{autoencoder_pallas.15} parent=39 // pred_region
        %s654 = smul.u32 8, %s21
        %p655 = scmp.lt.s32.totalorder %s20, 1
        %s656 = scalar_select %p655, %s20, 1
        %p657 = scmp.lt.s32.totalorder %s654, 7
        %s658 = scalar_select %p657, %s654, 7
        %s659 = smul.addr %s656, 8
        %s660 = sadd.s32 %s658, %s659
        %s661 = smul.addr %s660, 4
        %s662 = scalar_lea.vmem %s3, %s661
      $region44: #{autoencoder_pallas.15} parent=39 // pred_fallthru
        _
    $region40: #{autoencoder_pallas.15} parent=5 // pred_fallthru
      _
  $region6: #{autoencoder_pallas.15} parent=0 // loop_footer
    %s13 = sadd.s32 1, %s9
  $region7: #{autoencoder_pallas.15} parent=0 // loop_footer_branch
    %8 = sbr.rel target = $region3
  $region8: #{autoencoder_pallas.15} parent=0 // loop_exit
    _

// kernel: autoencoder_pallas.14
$region0: #{autoencoder_pallas.14}
  #allocation0 [shape = 'u32[]', space=smem, size = 0x4, offset = 0x4, fixed_abs, tag = 'smem constant byte address 0x4 - core index']
  #allocation1 [shape = 'u32[144,128]{1,0:T(1,128)}', space=vmem, size = 0x12000, scoped, tag = 'internal scratch']
  %s0 = inlined_call_operand.vmem [shape: bf16[2,256,27], index: 0, kind: input, shape index: {}]
  %s1 = inlined_call_operand.vmem [shape: bf16[27,32], index: 1, kind: input, shape index: {}]
  %s2 = inlined_call_operand.vmem [shape: f32[1,32], index: 2, kind: input, shape index: {}]
  %s3 = inlined_call_operand.vmem [shape: bf16[2,256,32], index: 3, kind: output, shape index: {}]
  %s4 = sld [smem:[#allocation0]]
  $region45: #{autoencoder_pallas.14} parent=0
    _
  %s6 = ssub.s32 1, %s4
  %s7 = scalar_select 0, %s6, %s4
  loop: start=0, step=1, limit=4
  $region2: #{autoencoder_pallas.14} parent=0 // loop_pre_header
    _
  $region3: #{autoencoder_pallas.14} parent=0 // loop_header
    %s9 = sphi 0, %s13
    %p10 = scmp.ge.s32.totalorder %s9, 4
    %s16 = sphi 0, %s28
    %s17 = sphi 0, %s24
    %s18 = sphi 0, %s16
    %s19 = sphi 0, %s17
    %s20 = sphi 0, %s18
    %s21 = sphi 0, %s19
    %s33 = sphi 0, %s35
    %s36 = sphi 0, %s33
    %s37 = sphi 0, %s36
    %s53 = sphi 0, %s37
    %s57 = sphi 0, %s57
    %s59 = sphi 0, %s57
    %s60 = sphi 0, %s59
    %s74 = sphi 0, %s60
    %s78 = sphi 0, %s78
    %s80 = sphi 0, %s78
    %s81 = sphi 0, %s80
    %s95 = sphi 0, %s81
    %s103 = sphi 0, %s105
    %s106 = sphi 0, %s103
    %s107 = sphi 0, %s106
    %s123 = sphi 0, %s107
  $region4: #{autoencoder_pallas.14} parent=0 // loop_header_branch
    %12 = sbr.rel (%p10) target = $region8
  $region5: #{autoencoder_pallas.14} parent=0 // loop_body
    %s14 = ssub.s32 %s9, 1
    %s15 = ssub.s32 %s9, 2
    %s22 = sadd.s32 1, %s17
    %p23 = scmp.ge.s32.totalorder %s22, 1
    %s24 = scalar_select %p23, 0, %s22
    %s25 = sadd.s32 1, %s16
    %s26 = scalar_select %p23, %s25, %s16
    %p27 = scmp.ge.s32.totalorder %s26, 2
    %s28 = scalar_select %p27, 0, %s26
    %s29 = ssub.s32 %s16, %s28
    %s30 = ssub.s32 %s17, %s24
    %s31 = sor.u32 %s29, %s30
    %p32 = scmp.eq.s32.totalorder %s31, 0
    %s34 = sadd.s32 %s33, 1
    %s35 = scalar_select %p32, %s33, %s34
    %p38 = pneg %p32
    %p39 = scmp.eq.s32.totalorder %s9, 1
    %p40 = por %p38, %p39
    %p41 = scmp.ne.s32.totalorder %s33, %s36
    %p42 = scmp.eq.s32.totalorder %s9, 0
    %p43 = por %p41, %p42
    %p44 = scmp.ne.s32.totalorder %s33, %s36
    %p45 = scmp.eq.s32.totalorder %s14, 1
    %p46 = por %p44, %p45
    %p47 = scmp.ne.s32.totalorder %s36, %s37
    %p48 = scmp.eq.s32.totalorder %s14, 0
    %p49 = por %p47, %p48
    %p50 = scmp.ne.s32.totalorder %s36, %s37
    %p51 = scmp.eq.s32.totalorder %s15, 1
    %p52 = por %p50, %p51
    %p54 = scmp.ne.s32.totalorder %s37, %s53
    %p55 = scmp.eq.s32.totalorder %s15, 0
    %p56 = por %p54, %p55
    %s58 = sadd.s32 %s57, 1
    %p61 = scmp.eq.s32.totalorder %s9, 1
    %p62 = scmp.ne.s32.totalorder %s57, %s59
    %p63 = scmp.eq.s32.totalorder %s9, 0
    %p64 = por %p62, %p63
    %p65 = scmp.ne.s32.totalorder %s57, %s59
    %p66 = scmp.eq.s32.totalorder %s14, 1
    %p67 = por %p65, %p66
    %p68 = scmp.ne.s32.totalorder %s59, %s60
    %p69 = scmp.eq.s32.totalorder %s14, 0
    %p70 = por %p68, %p69
    %p71 = scmp.ne.s32.totalorder %s59, %s60
    %p72 = scmp.eq.s32.totalorder %s15, 1
    %p73 = por %p71, %p72
    %p75 = scmp.ne.s32.totalorder %s60, %s74
    %p76 = scmp.eq.s32.totalorder %s15, 0
    %p77 = por %p75, %p76
    %s79 = sadd.s32 %s78, 1
    %p82 = scmp.eq.s32.totalorder %s9, 1
    %p83 = scmp.ne.s32.totalorder %s78, %s80
    %p84 = scmp.eq.s32.totalorder %s9, 0
    %p85 = por %p83, %p84
    %p86 = scmp.ne.s32.totalorder %s78, %s80
    %p87 = scmp.eq.s32.totalorder %s14, 1
    %p88 = por %p86, %p87
    %p89 = scmp.ne.s32.totalorder %s80, %s81
    %p90 = scmp.eq.s32.totalorder %s14, 0
    %p91 = por %p89, %p90
    %p92 = scmp.ne.s32.totalorder %s80, %s81
    %p93 = scmp.eq.s32.totalorder %s15, 1
    %p94 = por %p92, %p93
    %p96 = scmp.ne.s32.totalorder %s81, %s95
    %p97 = scmp.eq.s32.totalorder %s15, 0
    %p98 = por %p96, %p97
    %s99 = ssub.s32 %s16, %s28
    %s100 = ssub.s32 %s17, %s24
    %s101 = sor.u32 %s99, %s100
    %p102 = scmp.eq.s32.totalorder %s101, 0
    %s104 = sadd.s32 %s103, 1
    %s105 = scalar_select %p102, %s103, %s104
    %p108 = pneg %p102
    %p109 = scmp.eq.s32.totalorder %s9, 1
    %p110 = por %p108, %p109
    %p111 = scmp.ne.s32.totalorder %s103, %s106
    %p112 = scmp.eq.s32.totalorder %s9, 0
    %p113 = por %p111, %p112
    %p114 = scmp.ne.s32.totalorder %s103, %s106
    %p115 = scmp.eq.s32.totalorder %s14, 1
    %p116 = por %p114, %p115
    %p117 = scmp.ne.s32.totalorder %s106, %s107
    %p118 = scmp.eq.s32.totalorder %s14, 0
    %p119 = por %p117, %p118
    %p120 = scmp.ne.s32.totalorder %s106, %s107
    %p121 = scmp.eq.s32.totalorder %s15, 1
    %p122 = por %p120, %p121
    %p124 = scmp.ne.s32.totalorder %s107, %s123
    %p125 = scmp.eq.s32.totalorder %s15, 0
    %p126 = por %p124, %p125
    %p127 = scmp.le.s32.totalorder 1, %s9
    %p128 = scmp.lt.s32.totalorder %s9, 3
    %p129 = pnand %p127, %p128
    %p130 = pneg %p129
    // Predicated region
    $region9: #{autoencoder_pallas.14} parent=5 // pred_check
      _
    $region10: #{autoencoder_pallas.14} parent=5 // pred_check_branch
      %132 = sbr.rel (%p129) target = $region12
    $region11: #{autoencoder_pallas.14} parent=5 // pred_region
      %s133 = ssub.s32 %s9, 1
      // Predicated region
      $region13: #{autoencoder_pallas.14} parent=11 // pred_check
        %p134 = pneg %p70
      $region14: #{autoencoder_pallas.14} parent=11 // pred_check_branch
        %136 = sbr.rel (%p134) target = $region16
      $region15: #{autoencoder_pallas.14} parent=11 // pred_region
        _
      $region16: #{autoencoder_pallas.14} parent=11 // pred_fallthru
        _
      // Predicated region
      $region17: #{autoencoder_pallas.14} parent=11 // pred_check
        %p137 = pneg %p91
      $region18: #{autoencoder_pallas.14} parent=11 // pred_check_branch
        %139 = sbr.rel (%p137) target = $region20
      $region19: #{autoencoder_pallas.14} parent=11 // pred_region
        _
      $region20: #{autoencoder_pallas.14} parent=11 // pred_fallthru
        _
    $region12: #{autoencoder_pallas.14} parent=5 // pred_fallthru
      _
    %p140 = scmp.lt.s32.totalorder %s9, 2
    // Predicated region
    $region21: #{autoencoder_pallas.14} parent=5 // pred_check
      %p141 = pneg %p140
    $region22: #{autoencoder_pallas.14} parent=5 // pred_check_branch
      %143 = sbr.rel (%p141) target = $region24
    $region23: #{autoencoder_pallas.14} parent=5 // pred_region
      // Predicated region
      $region25: #{autoencoder_pallas.14} parent=23 // pred_check
        %p144 = pneg %p43
      $region26: #{autoencoder_pallas.14} parent=23 // pred_check_branch
        %146 = sbr.rel (%p144) target = $region28
      $region27: #{autoencoder_pallas.14} parent=23 // pred_region
        %s147 = smul.u32 32, %s17
        %p148 = scmp.lt.s32.totalorder %s16, 1
        %s149 = scalar_select %p148, %s16, 1
        %p150 = scmp.lt.s32.totalorder %s147, 31
        %s151 = scalar_select %p150, %s147, 31
        %s152 = smul.addr %s149, 32
        %s153 = sadd.s32 %s151, %s152
        %s154 = smul.addr %s153, 4
        %s155 = scalar_lea.vmem %s0, %s154
        %s156 = smul.u32 32, %s17
      $region28: #{autoencoder_pallas.14} parent=23 // pred_fallthru
        _
    $region24: #{autoencoder_pallas.14} parent=5 // pred_fallthru
      _
    %p157 = scmp.le.s32.totalorder 1, %s9
    %p158 = scmp.lt.s32.totalorder %s9, 3
    %p159 = pnand %p157, %p158
    %p160 = pneg %p159
    // Predicated region
    $region29: #{autoencoder_pallas.14} parent=5 // pred_check
      _
    $region30: #{autoencoder_pallas.14} parent=5 // pred_check_branch
      %162 = sbr.rel (%p159) target = $region32
    $region31: #{autoencoder_pallas.14} parent=5 // pred_region
      %s163 = ssub.s32 %s9, 1
      %s164 = smul.u32 32, %s19
      %p165 = scmp.lt.s32.totalorder %s18, 1
      %s166 = scalar_select %p165, %s18, 1
      %p167 = scmp.lt.s32.totalorder %s164, 31
      %s168 = scalar_select %p167, %s164, 31
      %s169 = smul.addr %s166, 32
      %s170 = sadd.s32 %s168, %s169
      %s171 = smul.addr %s170, 4
      %s172 = scalar_lea.vmem %s0, %s171
      %p173 = pneg %p49
      %p174 = pneg %p46
      %p175 = pneg %p70
      %p176 = pneg %p67
      %p177 = pneg %p91
      %p178 = pneg %p88
      %p179 = pneg %p119
      %p180 = pneg %p116
      %s181 = smul.u32 32, %s19
      %p182 = scmp.lt.s32.totalorder %s18, 1
      %s183 = scalar_select %p182, %s18, 1
      %p184 = scmp.lt.s32.totalorder %s181, 31
      %s185 = scalar_select %p184, %s181, 31
      %s186 = smul.addr %s183, 32
      %s187 = sadd.s32 %s185, %s186
      %s188 = smul.addr %s187, 4
      %s189 = scalar_lea.vmem %s3, %s188
      %s190 = smul.u32 32, %s19
      %p191 = scmp.lt.s32.totalorder %s18, 1
      %s192 = scalar_select %p191, %s18, 1
      %p193 = scmp.lt.s32.totalorder %s190, 31
      %s194 = scalar_select %p193, %s190, 31
      %s195 = smul.addr %s192, 32
      %s196 = sadd.s32 %s194, %s195
      %s197 = smul.addr %s196, 4
      %s198 = scalar_lea.vmem %s0, %s197
      %s199 = smul.u32 32, %s19
      %s200 = smul.u32 32, %s19
      %p201 = scmp.lt.s32.totalorder %s18, 1
      %s202 = scalar_select %p201, %s18, 1
      %p203 = scmp.lt.s32.totalorder %s200, 31
      %s204 = scalar_select %p203, %s200, 31
      %s205 = smul.addr %s202, 32
      %s206 = sadd.s32 %s204, %s205
      %s207 = smul.addr %s206, 4
      %s208 = scalar_lea.vmem %s3, %s207
      %s209 = smul.u32 32, %s19
      %v211 = vld [vmem:[%s198] sm:$0xf]
      %v212 = vld [vmem:[%s198 + $0x4] sm:$0xf]
      %v213 = vld [vmem:[%s198 + $0x8] sm:$0xf]
      %v214 = vld [vmem:[%s198 + $0xc] sm:$0xf]
      %v215 = vld [vmem:[%s198 + $0x10] sm:$0xf]
      %v216 = vld [vmem:[%s198 + $0x14] sm:$0xf]
      %v217 = vld [vmem:[%s198 + $0x18] sm:$0xf]
      %v218 = vld [vmem:[%s198 + $0x1c] sm:$0xf]
      %v219 = vld [vmem:[%s198 + $0x20] sm:$0xf]
      %v220 = vld [vmem:[%s198 + $0x24] sm:$0xf]
      %v221 = vld [vmem:[%s198 + $0x28] sm:$0xf]
      %v222 = vld [vmem:[%s198 + $0x2c] sm:$0xf]
      %v223 = vld [vmem:[%s198 + $0x30] sm:$0xf]
      %v224 = vld [vmem:[%s198 + $0x34] sm:$0xf]
      %v225 = vld [vmem:[%s198 + $0x38] sm:$0xf]
      %v226 = vld [vmem:[%s198 + $0x3c] sm:$0xf]
      %v227 = vld [vmem:[%s198 + $0x40] sm:$0xf]
      %v228 = vld [vmem:[%s198 + $0x44] sm:$0xf]
      %v229 = vld [vmem:[%s198 + $0x48] sm:$0xf]
      %v230 = vld [vmem:[%s198 + $0x4c] sm:$0xf]
      %v231 = vld [vmem:[%s198 + $0x50] sm:$0xf]
      %v232 = vld [vmem:[%s198 + $0x54] sm:$0xf]
      %v233 = vld [vmem:[%s198 + $0x58] sm:$0xf]
      %v234 = vld [vmem:[%s198 + $0x5c] sm:$0xf]
      %v235 = vld [vmem:[%s198 + $0x60] sm:$0xf]
      %v236 = vld [vmem:[%s198 + $0x64] sm:$0xf]
      %v237 = vld [vmem:[%s198 + $0x68] sm:$0xf]
      %v238 = vld [vmem:[%s198 + $0x6c] sm:$0xf]
      %v239 = vld [vmem:[%s198 + $0x70] sm:$0xf]
      %v240 = vld [vmem:[%s198 + $0x74] sm:$0xf]
      %v241 = vld [vmem:[%s198 + $0x78] sm:$0xf]
      %v242 = vld [vmem:[%s198 + $0x7c] sm:$0xf]
      %v243 = vld [vmem:[%s1] sm:$0xf]
      %v244 = vld [vmem:[%s1 + $0x4] sm:$0xf]
      %v245 = vld [vmem:[%s1 + $0x8] sm:$0xf]
      %v246 = vld [vmem:[%s1 + $0xc] sm:$0x3]
      %v247 = vld [vmem:[%s2] sm:$0x1]
      %v249 = vlaneseq
      %v250 = vshrl.u32 %v249, 7
      %v251 = vsub.s32 0, %v250
      %v252 = vrot.slane %v247, %v251
      %v286 = vunpack.c.l.b16 %v211
      %v287 = vunpack.c.l.b16 %v212
      %v288 = vunpack.c.l.b16 %v213
      %v289 = vunpack.c.l.b16 %v214
      %v290 = vunpack.c.l.b16 %v215
      %v291 = vunpack.c.l.b16 %v216
      %v292 = vunpack.c.l.b16 %v217
      %v293 = vunpack.c.l.b16 %v218
      %v294 = vunpack.c.l.b16 %v219
      %v295 = vunpack.c.l.b16 %v220
      %v296 = vunpack.c.l.b16 %v221
      %v297 = vunpack.c.l.b16 %v222
      %v298 = vunpack.c.l.b16 %v223
      %v299 = vunpack.c.l.b16 %v224
      %v300 = vunpack.c.l.b16 %v225
      %v301 = vunpack.c.l.b16 %v226
      %v302 = vunpack.c.l.b16 %v227
      %v303 = vunpack.c.l.b16 %v228
      %v304 = vunpack.c.l.b16 %v229
      %v305 = vunpack.c.l.b16 %v230
      %v306 = vunpack.c.l.b16 %v231
      %v307 = vunpack.c.l.b16 %v232
      %v308 = vunpack.c.l.b16 %v233
      %v309 = vunpack.c.l.b16 %v234
      %v310 = vunpack.c.l.b16 %v235
      %v311 = vunpack.c.l.b16 %v236
      %v312 = vunpack.c.l.b16 %v237
      %v313 = vunpack.c.l.b16 %v238
      %v314 = vunpack.c.l.b16 %v239
      %v315 = vunpack.c.l.b16 %v240
      %v316 = vunpack.c.l.b16 %v241
      %v317 = vunpack.c.l.b16 %v242
      %v318 = vpack.c.b16 %v287, %v286
      %v319 = vpack.c.b16 %v289, %v288
      %v320 = vpack.c.b16 %v291, %v290
      %v321 = vpack.c.b16 %v293, %v292
      %v322 = vpack.c.b16 %v295, %v294
      %v323 = vpack.c.b16 %v297, %v296
      %v324 = vpack.c.b16 %v299, %v298
      %v325 = vpack.c.b16 %v301, %v300
      %v326 = vpack.c.b16 %v303, %v302
      %v327 = vpack.c.b16 %v305, %v304
      %v328 = vpack.c.b16 %v307, %v306
      %v329 = vpack.c.b16 %v309, %v308
      %v330 = vpack.c.b16 %v311, %v310
      %v331 = vpack.c.b16 %v313, %v312
      %v332 = vpack.c.b16 %v315, %v314
      %v333 = vpack.c.b16 %v317, %v316
      %v338 = vunpack.c.l.b16 %v243
      %v339 = vunpack.c.l.b16 %v244
      %v340 = vunpack.c.l.b16 %v245
      %v341 = vunpack.c.l.b16 %v246
      %v342 = vpack.c.b16 %v339, %v338
      %v343 = vpack.c.b16 %v341, %v340
      %vm345 = vcmask 220160
      %v347 = vsel %vm345, %v318, 0
      %v350 = vsel %vm345, %v319, 0
      %v353 = vsel %vm345, %v320, 0
      %v356 = vsel %vm345, %v321, 0
      %v359 = vsel %vm345, %v322, 0
      %v362 = vsel %vm345, %v323, 0
      %v365 = vsel %vm345, %v324, 0
      %v368 = vsel %vm345, %v325, 0
      %v371 = vsel %vm345, %v326, 0
      %v374 = vsel %vm345, %v327, 0
      %v377 = vsel %vm345, %v328, 0
      %v380 = vsel %vm345, %v329, 0
      %v383 = vsel %vm345, %v330, 0
      %v386 = vsel %vm345, %v331, 0
      %v389 = vsel %vm345, %v332, 0
      %v392 = vsel %vm345, %v333, 0
      %vm394 = vcmask 1044480
      %vm395 = vcmask 1045504
      %v396 = vsel %vm394, 4294967295, 65535
      %v397 = vsel %vm395, %v396, 0
      %v399 = vand.u32 %v343, %v397
      %401 = vmatprep.subr.bf16.mxu0 0
      %402 = vmatpush1.bf16.msra.mxu0 0
      %403 = vmatprep.subr.bf16.mxu0 0
      %404 = vmatpush1.bf16.msra.mxu0 0
      %405 = vmatprep.subr.bf16.mxu0 0
      %406 = vmatpush1.bf16.msra.mxu0 0
      %407 = vmatprep.subr.bf16.mxu0 0
      %408 = vmatpush1.bf16.msra.mxu0 0
      %409 = vmatprep.subr.bf16.mxu0 0
      %410 = vmatpush1.bf16.msra.mxu0 0
      %411 = vmatprep.subr.bf16.mxu0 0
      %412 = vmatpush1.bf16.msra.mxu0 0
      %413 = vmatprep.subr.bf16.mxu0 0
      %414 = vmatpush1.bf16.msra.mxu0 %v399
      %415 = vmatprep.subr.bf16.mxu0 0
      %416 = vmatpush1.bf16.msra.mxu0 %v342
      %417 = vmatprep.subr.bf16.mxu0 0
      %418 = vmatpush2.bf16.msra.mxu0 0
      %419 = vmatprep.subr.bf16.mxu0 0
      %420 = vmatpush2.bf16.msra.mxu0 0
      %421 = vmatprep.subr.bf16.mxu0 0
      %422 = vmatpush2.bf16.msra.mxu0 0
      %423 = vmatprep.subr.bf16.mxu0 0
      %424 = vmatpush2.bf16.msra.mxu0 0
      %425 = vmatprep.subr.bf16.mxu0 0
      %426 = vmatpush2.bf16.msra.mxu0 0
      %427 = vmatprep.subr.bf16.mxu0 0
      %428 = vmatpush2.bf16.msra.mxu0 0
      %429 = vmatprep.subr.bf16.mxu0 0
      %430 = vmatpush2.bf16.msra.mxu0 0
      %431 = vmatprep.subr.bf16.mxu0 0
      %432 = vmatpush2.bf16.msra.mxu0 0
      %433 = vmatprep.mubr.bf16.mxu0 0
      %434 = vmatmul.mubr.bf16.gmra.mxu0 %v347
      %v435 = vpop.f32.mrf.mxu0
      %v436 = vadd.f32 %v252, %v435
      %v437 = vpop.f32.mrf.mxu0
      %v438 = vpop.f32.mrf.mxu0
      %v439 = vadd.f32 %v252, %v438
      %v440 = vpop.f32.mrf.mxu0
      %441 = vmatprep.mubr.bf16.mxu0 0
      %442 = vmatmul.mubr.bf16.gmra.mxu0 %v350
      %v443 = vpop.f32.mrf.mxu0
      %v444 = vadd.f32 %v252, %v443
      %v445 = vpop.f32.mrf.mxu0
      %v446 = vpop.f32.mrf.mxu0
      %v447 = vadd.f32 %v252, %v446
      %v448 = vpop.f32.mrf.mxu0
      %449 = vmatprep.mubr.bf16.mxu0 0
      %450 = vmatmul.mubr.bf16.gmra.mxu0 %v353
      %v451 = vpop.f32.mrf.mxu0
      %v452 = vadd.f32 %v252, %v451
      %v453 = vpop.f32.mrf.mxu0
      %v454 = vpop.f32.mrf.mxu0
      %v455 = vadd.f32 %v252, %v454
      %v456 = vpop.f32.mrf.mxu0
      %457 = vmatprep.mubr.bf16.mxu0 0
      %458 = vmatmul.mubr.bf16.gmra.mxu0 %v356
      %v459 = vpop.f32.mrf.mxu0
      %v460 = vadd.f32 %v252, %v459
      %v461 = vpop.f32.mrf.mxu0
      %v462 = vpop.f32.mrf.mxu0
      %v463 = vadd.f32 %v252, %v462
      %v464 = vpop.f32.mrf.mxu0
      %465 = vmatprep.mubr.bf16.mxu0 0
      %466 = vmatmul.mubr.bf16.gmra.mxu0 %v359
      %v467 = vpop.f32.mrf.mxu0
      %v468 = vadd.f32 %v252, %v467
      %v469 = vpop.f32.mrf.mxu0
      %v470 = vpop.f32.mrf.mxu0
      %v471 = vadd.f32 %v252, %v470
      %v472 = vpop.f32.mrf.mxu0
      %473 = vmatprep.mubr.bf16.mxu0 0
      %474 = vmatmul.mubr.bf16.gmra.mxu0 %v362
      %v475 = vpop.f32.mrf.mxu0
      %v476 = vadd.f32 %v252, %v475
      %v477 = vpop.f32.mrf.mxu0
      %v478 = vpop.f32.mrf.mxu0
      %v479 = vadd.f32 %v252, %v478
      %v480 = vpop.f32.mrf.mxu0
      %481 = vmatprep.mubr.bf16.mxu0 0
      %482 = vmatmul.mubr.bf16.gmra.mxu0 %v365
      %v483 = vpop.f32.mrf.mxu0
      %v484 = vadd.f32 %v252, %v483
      %v485 = vpop.f32.mrf.mxu0
      %v486 = vpop.f32.mrf.mxu0
      %v487 = vadd.f32 %v252, %v486
      %v488 = vpop.f32.mrf.mxu0
      %489 = vmatprep.mubr.bf16.mxu0 0
      %490 = vmatmul.mubr.bf16.gmra.mxu0 %v368
      %v491 = vpop.f32.mrf.mxu0
      %v492 = vadd.f32 %v252, %v491
      %v493 = vpop.f32.mrf.mxu0
      %v494 = vpop.f32.mrf.mxu0
      %v495 = vadd.f32 %v252, %v494
      %v496 = vpop.f32.mrf.mxu0
      %497 = vmatprep.mubr.bf16.mxu0 0
      %498 = vmatmul.mubr.bf16.gmra.mxu0 %v371
      %v499 = vpop.f32.mrf.mxu0
      %v500 = vadd.f32 %v252, %v499
      %v501 = vpop.f32.mrf.mxu0
      %v502 = vpop.f32.mrf.mxu0
      %v503 = vadd.f32 %v252, %v502
      %v504 = vpop.f32.mrf.mxu0
      %505 = vmatprep.mubr.bf16.mxu0 0
      %506 = vmatmul.mubr.bf16.gmra.mxu0 %v374
      %v507 = vpop.f32.mrf.mxu0
      %v508 = vadd.f32 %v252, %v507
      %v509 = vpop.f32.mrf.mxu0
      %v510 = vpop.f32.mrf.mxu0
      %v511 = vadd.f32 %v252, %v510
      %v512 = vpop.f32.mrf.mxu0
      %513 = vmatprep.mubr.bf16.mxu0 0
      %514 = vmatmul.mubr.bf16.gmra.mxu0 %v377
      %v515 = vpop.f32.mrf.mxu0
      %v516 = vadd.f32 %v252, %v515
      %v517 = vpop.f32.mrf.mxu0
      %v518 = vpop.f32.mrf.mxu0
      %v519 = vadd.f32 %v252, %v518
      %v520 = vpop.f32.mrf.mxu0
      %521 = vmatprep.mubr.bf16.mxu0 0
      %522 = vmatmul.mubr.bf16.gmra.mxu0 %v380
      %v523 = vpop.f32.mrf.mxu0
      %v524 = vadd.f32 %v252, %v523
      %v525 = vpop.f32.mrf.mxu0
      %v526 = vpop.f32.mrf.mxu0
      %v527 = vadd.f32 %v252, %v526
      %v528 = vpop.f32.mrf.mxu0
      %529 = vmatprep.mubr.bf16.mxu0 0
      %530 = vmatmul.mubr.bf16.gmra.mxu0 %v383
      %v531 = vpop.f32.mrf.mxu0
      %v532 = vadd.f32 %v252, %v531
      %v533 = vpop.f32.mrf.mxu0
      %v534 = vpop.f32.mrf.mxu0
      %v535 = vadd.f32 %v252, %v534
      %v536 = vpop.f32.mrf.mxu0
      %537 = vmatprep.mubr.bf16.mxu0 0
      %538 = vmatmul.mubr.bf16.gmra.mxu0 %v386
      %v539 = vpop.f32.mrf.mxu0
      %v540 = vadd.f32 %v252, %v539
      %v541 = vpop.f32.mrf.mxu0
      %v542 = vpop.f32.mrf.mxu0
      %v543 = vadd.f32 %v252, %v542
      %v544 = vpop.f32.mrf.mxu0
      %545 = vmatprep.mubr.bf16.mxu0 0
      %546 = vmatmul.mubr.bf16.gmra.mxu0 %v389
      %v547 = vpop.f32.mrf.mxu0
      %v548 = vadd.f32 %v252, %v547
      %v549 = vpop.f32.mrf.mxu0
      %v550 = vpop.f32.mrf.mxu0
      %v551 = vadd.f32 %v252, %v550
      %v552 = vpop.f32.mrf.mxu0
      %553 = vmatprep.mubr.bf16.mxu0 0
      %554 = vmatmul.mubr.bf16.gmra.mxu0 %v392
      %v555 = vpop.f32.mrf.mxu0
      %v556 = vadd.f32 %v252, %v555
      %v557 = vpop.f32.mrf.mxu0
      %v558 = vpop.f32.mrf.mxu0
      %v559 = vadd.f32 %v252, %v558
      %v560 = vpop.f32.mrf.mxu0
      %561 = vdwg.mxu0
      %v562 = vmax.f32 %v436, 0.0
      %v563 = vmax.f32 %v439, 0.0
      %v564 = vmax.f32 %v444, 0.0
      %v565 = vmax.f32 %v447, 0.0
      %v566 = vmax.f32 %v452, 0.0
      %v567 = vmax.f32 %v455, 0.0
      %v568 = vmax.f32 %v460, 0.0
      %v569 = vmax.f32 %v463, 0.0
      %v570 = vmax.f32 %v468, 0.0
      %v571 = vmax.f32 %v471, 0.0
      %v572 = vmax.f32 %v476, 0.0
      %v573 = vmax.f32 %v479, 0.0
      %v574 = vmax.f32 %v484, 0.0
      %v575 = vmax.f32 %v487, 0.0
      %v576 = vmax.f32 %v492, 0.0
      %v577 = vmax.f32 %v495, 0.0
      %v578 = vmax.f32 %v500, 0.0
      %v579 = vmax.f32 %v503, 0.0
      %v580 = vmax.f32 %v508, 0.0
      %v581 = vmax.f32 %v511, 0.0
      %v582 = vmax.f32 %v516, 0.0
      %v583 = vmax.f32 %v519, 0.0
      %v584 = vmax.f32 %v524, 0.0
      %v585 = vmax.f32 %v527, 0.0
      %v586 = vmax.f32 %v532, 0.0
      %v587 = vmax.f32 %v535, 0.0
      %v588 = vmax.f32 %v540, 0.0
      %v589 = vmax.f32 %v543, 0.0
      %v590 = vmax.f32 %v548, 0.0
      %v591 = vmax.f32 %v551, 0.0
      %v592 = vmax.f32 %v556, 0.0
      %v593 = vmax.f32 %v559, 0.0
      %v594 = vpack.c.bf16 %v563, %v562
      %v595 = vpack.c.bf16 %v565, %v564
      %v596 = vpack.c.bf16 %v567, %v566
      %v597 = vpack.c.bf16 %v569, %v568
      %v598 = vpack.c.bf16 %v571, %v570
      %v599 = vpack.c.bf16 %v573, %v572
      %v600 = vpack.c.bf16 %v575, %v574
      %v601 = vpack.c.bf16 %v577, %v576
      %v602 = vpack.c.bf16 %v579, %v578
      %v603 = vpack.c.bf16 %v581, %v580
      %v604 = vpack.c.bf16 %v583, %v582
      %v605 = vpack.c.bf16 %v585, %v584
      %v606 = vpack.c.bf16 %v587, %v586
      %v607 = vpack.c.bf16 %v589, %v588
      %v608 = vpack.c.bf16 %v591, %v590
      %v609 = vpack.c.bf16 %v593, %v592
      %v626 = vunpack.c.l.b16 %v594
      %v627 = vunpack.c.h.b16 %v594
      %v628 = vunpack.c.l.b16 %v595
      %v629 = vunpack.c.h.b16 %v595
      %v630 = vunpack.c.l.b16 %v596
      %v631 = vunpack.c.h.b16 %v596
      %v632 = vunpack.c.l.b16 %v597
      %v633 = vunpack.c.h.b16 %v597
      %v634 = vunpack.c.l.b16 %v598
      %v635 = vunpack.c.h.b16 %v598
      %v636 = vunpack.c.l.b16 %v599
      %v637 = vunpack.c.h.b16 %v599
      %v638 = vunpack.c.l.b16 %v600
      %v639 = vunpack.c.h.b16 %v600
      %v640 = vunpack.c.l.b16 %v601
      %v641 = vunpack.c.h.b16 %v601
      %v642 = vunpack.c.l.b16 %v602
      %v643 = vunpack.c.h.b16 %v602
      %v644 = vunpack.c.l.b16 %v603
      %v645 = vunpack.c.h.b16 %v603
      %v646 = vunpack.c.l.b16 %v604
      %v647 = vunpack.c.h.b16 %v604
      %v648 = vunpack.c.l.b16 %v605
      %v649 = vunpack.c.h.b16 %v605
      %v650 = vunpack.c.l.b16 %v606
      %v651 = vunpack.c.h.b16 %v606
      %v652 = vunpack.c.l.b16 %v607
      %v653 = vunpack.c.h.b16 %v607
      %v654 = vunpack.c.l.b16 %v608
      %v655 = vunpack.c.h.b16 %v608
      %v656 = vunpack.c.l.b16 %v609
      %v657 = vunpack.c.h.b16 %v609
      %v658 = vpack.c.b16 %v626, %v626
      %v659 = vpack.c.b16 %v627, %v627
      %v660 = vpack.c.b16 %v628, %v628
      %v661 = vpack.c.b16 %v629, %v629
      %v662 = vpack.c.b16 %v630, %v630
      %v663 = vpack.c.b16 %v631, %v631
      %v664 = vpack.c.b16 %v632, %v632
      %v665 = vpack.c.b16 %v633, %v633
      %v666 = vpack.c.b16 %v634, %v634
      %v667 = vpack.c.b16 %v635, %v635
      %v668 = vpack.c.b16 %v636, %v636
      %v669 = vpack.c.b16 %v637, %v637
      %v670 = vpack.c.b16 %v638, %v638
      %v671 = vpack.c.b16 %v639, %v639
      %v672 = vpack.c.b16 %v640, %v640
      %v673 = vpack.c.b16 %v641, %v641
      %v674 = vpack.c.b16 %v642, %v642
      %v675 = vpack.c.b16 %v643, %v643
      %v676 = vpack.c.b16 %v644, %v644
      %v677 = vpack.c.b16 %v645, %v645
      %v678 = vpack.c.b16 %v646, %v646
      %v679 = vpack.c.b16 %v647, %v647
      %v680 = vpack.c.b16 %v648, %v648
      %v681 = vpack.c.b16 %v649, %v649
      %v682 = vpack.c.b16 %v650, %v650
      %v683 = vpack.c.b16 %v651, %v651
      %v684 = vpack.c.b16 %v652, %v652
      %v685 = vpack.c.b16 %v653, %v653
      %v686 = vpack.c.b16 %v654, %v654
      %v687 = vpack.c.b16 %v655, %v655
      %v688 = vpack.c.b16 %v656, %v656
      %v689 = vpack.c.b16 %v657, %v657
      %vm722 = vcmask 257024
      %723 = vst.msk [vmem:[%s208] sm:$0xf] %vm722, %v658
      %724 = vst.msk [vmem:[%s208 + $0x4] sm:$0xf] %vm722, %v659
      %725 = vst.msk [vmem:[%s208 + $0x8] sm:$0xf] %vm722, %v660
      %726 = vst.msk [vmem:[%s208 + $0xc] sm:$0xf] %vm722, %v661
      %727 = vst.msk [vmem:[%s208 + $0x10] sm:$0xf] %vm722, %v662
      %728 = vst.msk [vmem:[%s208 + $0x14] sm:$0xf] %vm722, %v663
      %729 = vst.msk [vmem:[%s208 + $0x18] sm:$0xf] %vm722, %v664
      %730 = vst.msk [vmem:[%s208 + $0x1c] sm:$0xf] %vm722, %v665
      %731 = vst.msk [vmem:[%s208 + $0x20] sm:$0xf] %vm722, %v666
      %732 = vst.msk [vmem:[%s208 + $0x24] sm:$0xf] %vm722, %v667
      %733 = vst.msk [vmem:[%s208 + $0x28] sm:$0xf] %vm722, %v668
      %734 = vst.msk [vmem:[%s208 + $0x2c] sm:$0xf] %vm722, %v669
      %735 = vst.msk [vmem:[%s208 + $0x30] sm:$0xf] %vm722, %v670
      %736 = vst.msk [vmem:[%s208 + $0x34] sm:$0xf] %vm722, %v671
      %737 = vst.msk [vmem:[%s208 + $0x38] sm:$0xf] %vm722, %v672
      %738 = vst.msk [vmem:[%s208 + $0x3c] sm:$0xf] %vm722, %v673
      %739 = vst.msk [vmem:[%s208 + $0x40] sm:$0xf] %vm722, %v674
      %740 = vst.msk [vmem:[%s208 + $0x44] sm:$0xf] %vm722, %v675
      %741 = vst.msk [vmem:[%s208 + $0x48] sm:$0xf] %vm722, %v676
      %742 = vst.msk [vmem:[%s208 + $0x4c] sm:$0xf] %vm722, %v677
      %743 = vst.msk [vmem:[%s208 + $0x50] sm:$0xf] %vm722, %v678
      %744 = vst.msk [vmem:[%s208 + $0x54] sm:$0xf] %vm722, %v679
      %745 = vst.msk [vmem:[%s208 + $0x58] sm:$0xf] %vm722, %v680
      %746 = vst.msk [vmem:[%s208 + $0x5c] sm:$0xf] %vm722, %v681
      %747 = vst.msk [vmem:[%s208 + $0x60] sm:$0xf] %vm722, %v682
      %748 = vst.msk [vmem:[%s208 + $0x64] sm:$0xf] %vm722, %v683
      %749 = vst.msk [vmem:[%s208 + $0x68] sm:$0xf] %vm722, %v684
      %750 = vst.msk [vmem:[%s208 + $0x6c] sm:$0xf] %vm722, %v685
      %751 = vst.msk [vmem:[%s208 + $0x70] sm:$0xf] %vm722, %v686
      %752 = vst.msk [vmem:[%s208 + $0x74] sm:$0xf] %vm722, %v687
      %753 = vst.msk [vmem:[%s208 + $0x78] sm:$0xf] %vm722, %v688
      %754 = vst.msk [vmem:[%s208 + $0x7c] sm:$0xf] %vm722, %v689
      %s755 = smul.u32 32, %s19
      %p756 = scmp.lt.s32.totalorder %s18, 1
      %s757 = scalar_select %p756, %s18, 1
      %p758 = scmp.lt.s32.totalorder %s755, 31
      %s759 = scalar_select %p758, %s755, 31
      %s760 = smul.addr %s757, 32
      %s761 = sadd.s32 %s759, %s760
      %s762 = smul.addr %s761, 4
      %s763 = scalar_lea.vmem %s3, %s762
      // Predicated region
      $region33: #{autoencoder_pallas.14} parent=31 // pred_check
        %p764 = pneg %p116
      $region34: #{autoencoder_pallas.14} parent=31 // pred_check_branch
        %766 = sbr.rel (%p764) target = $region36
      $region35: #{autoencoder_pallas.14} parent=31 // pred_region
        %s767 = smul.u32 32, %s19
      $region36: #{autoencoder_pallas.14} parent=31 // pred_fallthru
        _
    $region32: #{autoencoder_pallas.14} parent=5 // pred_fallthru
      _
    %p768 = scmp.le.s32.totalorder 2, %s9
    // Predicated region
    $region37: #{autoencoder_pallas.14} parent=5 // pred_check
      %p769 = pneg %p768
    $region38: #{autoencoder_pallas.14} parent=5 // pred_check_branch
      %771 = sbr.rel (%p769) target = $region40
    $region39: #{autoencoder_pallas.14} parent=5 // pred_region
      %s772 = ssub.s32 %s9, 2
      // Predicated region
      $region41: #{autoencoder_pallas.14} parent=39 // pred_check
        %p773 = pneg %p122
      $region42: #{autoencoder_pallas.14} parent=39 // pred_check_branch
        %775 = sbr.rel (%p773) target = $region44
      $region43: #{autoencoder_pallas.14} parent=39 // pred_region
        %s776 = smul.u32 32, %s21
        %p777 = scmp.lt.s32.totalorder %s20, 1
        %s778 = scalar_select %p777, %s20, 1
        %p779 = scmp.lt.s32.totalorder %s776, 31
        %s780 = scalar_select %p779, %s776, 31
        %s781 = smul.addr %s778, 32
        %s782 = sadd.s32 %s780, %s781
        %s783 = smul.addr %s782, 4
        %s784 = scalar_lea.vmem %s3, %s783
      $region44: #{autoencoder_pallas.14} parent=39 // pred_fallthru
        _
    $region40: #{autoencoder_pallas.14} parent=5 // pred_fallthru
      _
  $region6: #{autoencoder_pallas.14} parent=0 // loop_footer
    %s13 = sadd.s32 1, %s9
  $region7: #{autoencoder_pallas.14} parent=0 // loop_footer_branch
    %8 = sbr.rel target = $region3
  $region8: #{autoencoder_pallas.14} parent=0 // loop_exit
    _

// kernel: autoencoder_pallas.16
$region0: #{autoencoder_pallas.16}
  #allocation0 [shape = 'u32[]', space=smem, size = 0x4, offset = 0x4, fixed_abs, tag = 'smem constant byte address 0x4 - core index']
  #allocation1 [shape = 'u32[144,128]{1,0:T(1,128)}', space=vmem, size = 0x12000, scoped, tag = 'internal scratch']
  %s0 = inlined_call_operand.vmem [shape: bf16[2,16,288], index: 0, kind: input, shape index: {}]
  %s1 = inlined_call_operand.vmem [shape: bf16[288,64], index: 1, kind: input, shape index: {}]
  %s2 = inlined_call_operand.vmem [shape: f32[1,64], index: 2, kind: input, shape index: {}]
  %s3 = inlined_call_operand.vmem [shape: bf16[2,16,64], index: 3, kind: output, shape index: {}]
  %s4 = sld [smem:[#allocation0]]
  $region45: #{autoencoder_pallas.16} parent=0
    _
  %s6 = ssub.s32 1, %s4
  %s7 = scalar_select 0, %s6, %s4
  loop: start=0, step=1, limit=4
  $region2: #{autoencoder_pallas.16} parent=0 // loop_pre_header
    _
  $region3: #{autoencoder_pallas.16} parent=0 // loop_header
    %s9 = sphi 0, %s13
    %p10 = scmp.ge.s32.totalorder %s9, 4
    %s16 = sphi 0, %s28
    %s17 = sphi 0, %s24
    %s18 = sphi 0, %s16
    %s19 = sphi 0, %s17
    %s20 = sphi 0, %s18
    %s21 = sphi 0, %s19
    %s33 = sphi 0, %s35
    %s36 = sphi 0, %s33
    %s37 = sphi 0, %s36
    %s53 = sphi 0, %s37
    %s57 = sphi 0, %s57
    %s59 = sphi 0, %s57
    %s60 = sphi 0, %s59
    %s74 = sphi 0, %s60
    %s78 = sphi 0, %s78
    %s80 = sphi 0, %s78
    %s81 = sphi 0, %s80
    %s95 = sphi 0, %s81
    %s103 = sphi 0, %s105
    %s106 = sphi 0, %s103
    %s107 = sphi 0, %s106
    %s123 = sphi 0, %s107
  $region4: #{autoencoder_pallas.16} parent=0 // loop_header_branch
    %12 = sbr.rel (%p10) target = $region8
  $region5: #{autoencoder_pallas.16} parent=0 // loop_body
    %s14 = ssub.s32 %s9, 1
    %s15 = ssub.s32 %s9, 2
    %s22 = sadd.s32 1, %s17
    %p23 = scmp.ge.s32.totalorder %s22, 1
    %s24 = scalar_select %p23, 0, %s22
    %s25 = sadd.s32 1, %s16
    %s26 = scalar_select %p23, %s25, %s16
    %p27 = scmp.ge.s32.totalorder %s26, 2
    %s28 = scalar_select %p27, 0, %s26
    %s29 = ssub.s32 %s16, %s28
    %s30 = ssub.s32 %s17, %s24
    %s31 = sor.u32 %s29, %s30
    %p32 = scmp.eq.s32.totalorder %s31, 0
    %s34 = sadd.s32 %s33, 1
    %s35 = scalar_select %p32, %s33, %s34
    %p38 = pneg %p32
    %p39 = scmp.eq.s32.totalorder %s9, 1
    %p40 = por %p38, %p39
    %p41 = scmp.ne.s32.totalorder %s33, %s36
    %p42 = scmp.eq.s32.totalorder %s9, 0
    %p43 = por %p41, %p42
    %p44 = scmp.ne.s32.totalorder %s33, %s36
    %p45 = scmp.eq.s32.totalorder %s14, 1
    %p46 = por %p44, %p45
    %p47 = scmp.ne.s32.totalorder %s36, %s37
    %p48 = scmp.eq.s32.totalorder %s14, 0
    %p49 = por %p47, %p48
    %p50 = scmp.ne.s32.totalorder %s36, %s37
    %p51 = scmp.eq.s32.totalorder %s15, 1
    %p52 = por %p50, %p51
    %p54 = scmp.ne.s32.totalorder %s37, %s53
    %p55 = scmp.eq.s32.totalorder %s15, 0
    %p56 = por %p54, %p55
    %s58 = sadd.s32 %s57, 1
    %p61 = scmp.eq.s32.totalorder %s9, 1
    %p62 = scmp.ne.s32.totalorder %s57, %s59
    %p63 = scmp.eq.s32.totalorder %s9, 0
    %p64 = por %p62, %p63
    %p65 = scmp.ne.s32.totalorder %s57, %s59
    %p66 = scmp.eq.s32.totalorder %s14, 1
    %p67 = por %p65, %p66
    %p68 = scmp.ne.s32.totalorder %s59, %s60
    %p69 = scmp.eq.s32.totalorder %s14, 0
    %p70 = por %p68, %p69
    %p71 = scmp.ne.s32.totalorder %s59, %s60
    %p72 = scmp.eq.s32.totalorder %s15, 1
    %p73 = por %p71, %p72
    %p75 = scmp.ne.s32.totalorder %s60, %s74
    %p76 = scmp.eq.s32.totalorder %s15, 0
    %p77 = por %p75, %p76
    %s79 = sadd.s32 %s78, 1
    %p82 = scmp.eq.s32.totalorder %s9, 1
    %p83 = scmp.ne.s32.totalorder %s78, %s80
    %p84 = scmp.eq.s32.totalorder %s9, 0
    %p85 = por %p83, %p84
    %p86 = scmp.ne.s32.totalorder %s78, %s80
    %p87 = scmp.eq.s32.totalorder %s14, 1
    %p88 = por %p86, %p87
    %p89 = scmp.ne.s32.totalorder %s80, %s81
    %p90 = scmp.eq.s32.totalorder %s14, 0
    %p91 = por %p89, %p90
    %p92 = scmp.ne.s32.totalorder %s80, %s81
    %p93 = scmp.eq.s32.totalorder %s15, 1
    %p94 = por %p92, %p93
    %p96 = scmp.ne.s32.totalorder %s81, %s95
    %p97 = scmp.eq.s32.totalorder %s15, 0
    %p98 = por %p96, %p97
    %s99 = ssub.s32 %s16, %s28
    %s100 = ssub.s32 %s17, %s24
    %s101 = sor.u32 %s99, %s100
    %p102 = scmp.eq.s32.totalorder %s101, 0
    %s104 = sadd.s32 %s103, 1
    %s105 = scalar_select %p102, %s103, %s104
    %p108 = pneg %p102
    %p109 = scmp.eq.s32.totalorder %s9, 1
    %p110 = por %p108, %p109
    %p111 = scmp.ne.s32.totalorder %s103, %s106
    %p112 = scmp.eq.s32.totalorder %s9, 0
    %p113 = por %p111, %p112
    %p114 = scmp.ne.s32.totalorder %s103, %s106
    %p115 = scmp.eq.s32.totalorder %s14, 1
    %p116 = por %p114, %p115
    %p117 = scmp.ne.s32.totalorder %s106, %s107
    %p118 = scmp.eq.s32.totalorder %s14, 0
    %p119 = por %p117, %p118
    %p120 = scmp.ne.s32.totalorder %s106, %s107
    %p121 = scmp.eq.s32.totalorder %s15, 1
    %p122 = por %p120, %p121
    %p124 = scmp.ne.s32.totalorder %s107, %s123
    %p125 = scmp.eq.s32.totalorder %s15, 0
    %p126 = por %p124, %p125
    %p127 = scmp.le.s32.totalorder 1, %s9
    %p128 = scmp.lt.s32.totalorder %s9, 3
    %p129 = pnand %p127, %p128
    %p130 = pneg %p129
    // Predicated region
    $region9: #{autoencoder_pallas.16} parent=5 // pred_check
      _
    $region10: #{autoencoder_pallas.16} parent=5 // pred_check_branch
      %132 = sbr.rel (%p129) target = $region12
    $region11: #{autoencoder_pallas.16} parent=5 // pred_region
      %s133 = ssub.s32 %s9, 1
      // Predicated region
      $region13: #{autoencoder_pallas.16} parent=11 // pred_check
        %p134 = pneg %p70
      $region14: #{autoencoder_pallas.16} parent=11 // pred_check_branch
        %136 = sbr.rel (%p134) target = $region16
      $region15: #{autoencoder_pallas.16} parent=11 // pred_region
        _
      $region16: #{autoencoder_pallas.16} parent=11 // pred_fallthru
        _
      // Predicated region
      $region17: #{autoencoder_pallas.16} parent=11 // pred_check
        %p137 = pneg %p91
      $region18: #{autoencoder_pallas.16} parent=11 // pred_check_branch
        %139 = sbr.rel (%p137) target = $region20
      $region19: #{autoencoder_pallas.16} parent=11 // pred_region
        _
      $region20: #{autoencoder_pallas.16} parent=11 // pred_fallthru
        _
    $region12: #{autoencoder_pallas.16} parent=5 // pred_fallthru
      _
    %p140 = scmp.lt.s32.totalorder %s9, 2
    // Predicated region
    $region21: #{autoencoder_pallas.16} parent=5 // pred_check
      %p141 = pneg %p140
    $region22: #{autoencoder_pallas.16} parent=5 // pred_check_branch
      %143 = sbr.rel (%p141) target = $region24
    $region23: #{autoencoder_pallas.16} parent=5 // pred_region
      // Predicated region
      $region25: #{autoencoder_pallas.16} parent=23 // pred_check
        %p144 = pneg %p43
      $region26: #{autoencoder_pallas.16} parent=23 // pred_check_branch
        %146 = sbr.rel (%p144) target = $region28
      $region27: #{autoencoder_pallas.16} parent=23 // pred_region
        %s147 = smul.u32 2, %s17
        %p148 = scmp.lt.s32.totalorder %s16, 1
        %s149 = scalar_select %p148, %s16, 1
        %p150 = scmp.lt.s32.totalorder %s147, 1
        %s151 = scalar_select %p150, %s147, 1
        %s152 = smul.addr %s151, 3
        %s153 = smul.addr %s149, 6
        %s154 = sadd.s32 %s152, %s153
        %s155 = smul.addr %s154, 4
        %s156 = scalar_lea.vmem %s0, %s155
        %s157 = smul.u32 2, %s17
      $region28: #{autoencoder_pallas.16} parent=23 // pred_fallthru
        _
    $region24: #{autoencoder_pallas.16} parent=5 // pred_fallthru
      _
    %p158 = scmp.le.s32.totalorder 1, %s9
    %p159 = scmp.lt.s32.totalorder %s9, 3
    %p160 = pnand %p158, %p159
    %p161 = pneg %p160
    // Predicated region
    $region29: #{autoencoder_pallas.16} parent=5 // pred_check
      _
    $region30: #{autoencoder_pallas.16} parent=5 // pred_check_branch
      %163 = sbr.rel (%p160) target = $region32
    $region31: #{autoencoder_pallas.16} parent=5 // pred_region
      %s164 = ssub.s32 %s9, 1
      %s165 = smul.u32 2, %s19
      %p166 = scmp.lt.s32.totalorder %s18, 1
      %s167 = scalar_select %p166, %s18, 1
      %p168 = scmp.lt.s32.totalorder %s165, 1
      %s169 = scalar_select %p168, %s165, 1
      %s170 = smul.addr %s169, 3
      %s171 = smul.addr %s167, 6
      %s172 = sadd.s32 %s170, %s171
      %s173 = smul.addr %s172, 4
      %s174 = scalar_lea.vmem %s0, %s173
      %p175 = pneg %p49
      %p176 = pneg %p46
      %p177 = pneg %p70
      %p178 = pneg %p67
      %p179 = pneg %p91
      %p180 = pneg %p88
      %p181 = pneg %p119
      %p182 = pneg %p116
      %s183 = smul.u32 2, %s19
      %p184 = scmp.lt.s32.totalorder %s18, 1
      %s185 = scalar_select %p184, %s18, 1
      %p186 = scmp.lt.s32.totalorder %s183, 1
      %s187 = scalar_select %p186, %s183, 1
      %s188 = smul.addr %s185, 2
      %s189 = sadd.s32 %s187, %s188
      %s190 = smul.addr %s189, 4
      %s191 = scalar_lea.vmem %s3, %s190
      %s192 = smul.u32 2, %s19
      %p193 = scmp.lt.s32.totalorder %s18, 1
      %s194 = scalar_select %p193, %s18, 1
      %p195 = scmp.lt.s32.totalorder %s192, 1
      %s196 = scalar_select %p195, %s192, 1
      %s197 = smul.addr %s196, 3
      %s198 = smul.addr %s194, 6
      %s199 = sadd.s32 %s197, %s198
      %s200 = smul.addr %s199, 4
      %s201 = scalar_lea.vmem %s0, %s200
      %s202 = smul.u32 2, %s19
      %s203 = smul.u32 2, %s19
      %p204 = scmp.lt.s32.totalorder %s18, 1
      %s205 = scalar_select %p204, %s18, 1
      %p206 = scmp.lt.s32.totalorder %s203, 1
      %s207 = scalar_select %p206, %s203, 1
      %s208 = smul.addr %s205, 2
      %s209 = sadd.s32 %s207, %s208
      %s210 = smul.addr %s209, 4
      %s211 = scalar_lea.vmem %s3, %s210
      %s212 = smul.u32 2, %s19
      %v214 = vld [vmem:[%s201] sm:$0xff]
      %v215 = vld [vmem:[%s201 + $0x8] sm:$0xf]
      %v216 = vld [vmem:[%s201 + $0xc] sm:$0xff]
      %v217 = vld [vmem:[%s201 + $0x14] sm:$0xf]
      %v218 = vld [vmem:[%s1] sm:$0xf]
      %v219 = vld [vmem:[%s1 + $0x4] sm:$0xf]
      %v220 = vld [vmem:[%s1 + $0x8] sm:$0xf]
      %v221 = vld [vmem:[%s1 + $0xc] sm:$0xf]
      %v222 = vld [vmem:[%s1 + $0x10] sm:$0xf]
      %v223 = vld [vmem:[%s1 + $0x14] sm:$0xf]
      %v224 = vld [vmem:[%s1 + $0x18] sm:$0xf]
      %v225 = vld [vmem:[%s1 + $0x1c] sm:$0xf]
      %v226 = vld [vmem:[%s1 + $0x20] sm:$0xf]
      %v227 = vld [vmem:[%s1 + $0x24] sm:$0xf]
      %v228 = vld [vmem:[%s1 + $0x28] sm:$0xf]
      %v229 = vld [vmem:[%s1 + $0x2c] sm:$0xf]
      %v230 = vld [vmem:[%s1 + $0x30] sm:$0xf]
      %v231 = vld [vmem:[%s1 + $0x34] sm:$0xf]
      %v232 = vld [vmem:[%s1 + $0x38] sm:$0xf]
      %v233 = vld [vmem:[%s1 + $0x3c] sm:$0xf]
      %v234 = vld [vmem:[%s1 + $0x40] sm:$0xf]
      %v235 = vld [vmem:[%s1 + $0x44] sm:$0xf]
      %v236 = vld [vmem:[%s1 + $0x48] sm:$0xf]
      %v237 = vld [vmem:[%s1 + $0x4c] sm:$0xf]
      %v238 = vld [vmem:[%s1 + $0x50] sm:$0xf]
      %v239 = vld [vmem:[%s1 + $0x54] sm:$0xf]
      %v240 = vld [vmem:[%s1 + $0x58] sm:$0xf]
      %v241 = vld [vmem:[%s1 + $0x5c] sm:$0xf]
      %v242 = vld [vmem:[%s1 + $0x60] sm:$0xf]
      %v243 = vld [vmem:[%s1 + $0x64] sm:$0xf]
      %v244 = vld [vmem:[%s1 + $0x68] sm:$0xf]
      %v245 = vld [vmem:[%s1 + $0x6c] sm:$0xf]
      %v246 = vld [vmem:[%s1 + $0x70] sm:$0xf]
      %v247 = vld [vmem:[%s1 + $0x74] sm:$0xf]
      %v248 = vld [vmem:[%s1 + $0x78] sm:$0xf]
      %v249 = vld [vmem:[%s1 + $0x7c] sm:$0xf]
      %v250 = vld [vmem:[%s1 + $0x80] sm:$0xf]
      %v251 = vld [vmem:[%s1 + $0x84] sm:$0xf]
      %v252 = vld [vmem:[%s1 + $0x88] sm:$0xf]
      %v253 = vld [vmem:[%s1 + $0x8c] sm:$0xf]
      %v254 = vld [vmem:[%s2] sm:$0x1]
      %v256 = vlaneseq
      %v257 = vshrl.u32 %v256, 7
      %v258 = vsub.s32 0, %v257
      %v259 = vrot.slane %v254, %v258
      %v265 = vunpack.c.l.b16 %v214
      %v266 = vunpack.c.h.b16 %v214
      %v267 = vunpack.c.l.b16 %v215
      %v268 = vunpack.c.l.b16 %v216
      %v269 = vunpack.c.h.b16 %v216
      %v270 = vunpack.c.l.b16 %v217
      %v271 = vpack.c.b16 %v268, %v265
      %v272 = vpack.c.b16 %v269, %v266
      %v273 = vpack.c.b16 %v270, %v267
      %v312 = vunpack.c.l.b16 %v218
      %v313 = vunpack.c.l.b16 %v219
      %v314 = vunpack.c.l.b16 %v220
      %v315 = vunpack.c.l.b16 %v221
      %v316 = vunpack.c.l.b16 %v222
      %v317 = vunpack.c.l.b16 %v223
      %v318 = vunpack.c.l.b16 %v224
      %v319 = vunpack.c.l.b16 %v225
      %v320 = vunpack.c.l.b16 %v226
      %v321 = vunpack.c.l.b16 %v227
      %v322 = vunpack.c.l.b16 %v228
      %v323 = vunpack.c.l.b16 %v229
      %v324 = vunpack.c.l.b16 %v230
      %v325 = vunpack.c.l.b16 %v231
      %v326 = vunpack.c.l.b16 %v232
      %v327 = vunpack.c.l.b16 %v233
      %v328 = vunpack.c.l.b16 %v234
      %v329 = vunpack.c.l.b16 %v235
      %v330 = vunpack.c.l.b16 %v236
      %v331 = vunpack.c.l.b16 %v237
      %v332 = vunpack.c.l.b16 %v238
      %v333 = vunpack.c.l.b16 %v239
      %v334 = vunpack.c.l.b16 %v240
      %v335 = vunpack.c.l.b16 %v241
      %v336 = vunpack.c.l.b16 %v242
      %v337 = vunpack.c.l.b16 %v243
      %v338 = vunpack.c.l.b16 %v244
      %v339 = vunpack.c.l.b16 %v245
      %v340 = vunpack.c.l.b16 %v246
      %v341 = vunpack.c.l.b16 %v247
      %v342 = vunpack.c.l.b16 %v248
      %v343 = vunpack.c.l.b16 %v249
      %v344 = vunpack.c.l.b16 %v250
      %v345 = vunpack.c.l.b16 %v251
      %v346 = vunpack.c.l.b16 %v252
      %v347 = vunpack.c.l.b16 %v253
      %v348 = vpack.c.b16 %v313, %v312
      %v349 = vpack.c.b16 %v315, %v314
      %v350 = vpack.c.b16 %v317, %v316
      %v351 = vpack.c.b16 %v319, %v318
      %v352 = vpack.c.b16 %v321, %v320
      %v353 = vpack.c.b16 %v323, %v322
      %v354 = vpack.c.b16 %v325, %v324
      %v355 = vpack.c.b16 %v327, %v326
      %v356 = vpack.c.b16 %v329, %v328
      %v357 = vpack.c.b16 %v331, %v330
      %v358 = vpack.c.b16 %v333, %v332
      %v359 = vpack.c.b16 %v335, %v334
      %v360 = vpack.c.b16 %v337, %v336
      %v361 = vpack.c.b16 %v339, %v338
      %v362 = vpack.c.b16 %v341, %v340
      %v363 = vpack.c.b16 %v343, %v342
      %v364 = vpack.c.b16 %v345, %v344
      %v365 = vpack.c.b16 %v347, %v346
      %vm384 = vcmask 261120
      %v386 = vsel %vm384, %v273, 0
      %388 = vmatprep.subr.bf16.mxu0 0
      %389 = vmatpush1.bf16.msra.mxu0 %v355
      %390 = vmatprep.subr.bf16.mxu0 0
      %391 = vmatpush1.bf16.msra.mxu0 %v354
      %392 = vmatprep.subr.bf16.mxu0 0
      %393 = vmatpush1.bf16.msra.mxu0 %v353
      %394 = vmatprep.subr.bf16.mxu0 0
      %395 = vmatpush1.bf16.msra.mxu0 %v352
      %396 = vmatprep.subr.bf16.mxu0 0
      %397 = vmatpush1.bf16.msra.mxu0 %v351
      %398 = vmatprep.subr.bf16.mxu0 0
      %399 = vmatpush1.bf16.msra.mxu0 %v350
      %400 = vmatprep.subr.bf16.mxu0 0
      %401 = vmatpush1.bf16.msra.mxu0 %v349
      %402 = vmatprep.subr.bf16.mxu0 0
      %403 = vmatpush1.bf16.msra.mxu0 %v348
      %404 = vmatprep.subr.bf16.mxu0 0
      %405 = vmatpush2.bf16.msra.mxu0 %v363
      %406 = vmatprep.subr.bf16.mxu0 0
      %407 = vmatpush2.bf16.msra.mxu0 %v362
      %408 = vmatprep.subr.bf16.mxu0 0
      %409 = vmatpush2.bf16.msra.mxu0 %v361
      %410 = vmatprep.subr.bf16.mxu0 0
      %411 = vmatpush2.bf16.msra.mxu0 %v360
      %412 = vmatprep.subr.bf16.mxu0 0
      %413 = vmatpush2.bf16.msra.mxu0 %v359
      %414 = vmatprep.subr.bf16.mxu0 0
      %415 = vmatpush2.bf16.msra.mxu0 %v358
      %416 = vmatprep.subr.bf16.mxu0 0
      %417 = vmatpush2.bf16.msra.mxu0 %v357
      %418 = vmatprep.subr.bf16.mxu0 0
      %419 = vmatpush2.bf16.msra.mxu0 %v356
      %420 = vmatprep.mubr.bf16.mxu0 %v272
      %421 = vmatmul.mubr.bf16.gmra.mxu0 %v271
      %v422 = vpop.f32.mrf.mxu0
      %v423 = vadd.f32 %v259, %v422
      %v424 = vpop.f32.mrf.mxu0
      %v425 = vpop.f32.mrf.mxu0
      %v426 = vadd.f32 %v259, %v425
      %v427 = vpop.f32.mrf.mxu0
      %428 = vdwg.mxu0
      %429 = vmatprep.subr.bf16.mxu0 0
      %430 = vmatpush1.bf16.msra.mxu0 0
      %431 = vmatprep.subr.bf16.mxu0 0
      %432 = vmatpush1.bf16.msra.mxu0 0
      %433 = vmatprep.subr.bf16.mxu0 0
      %434 = vmatpush1.bf16.msra.mxu0 0
      %435 = vmatprep.subr.bf16.mxu0 0
      %436 = vmatpush1.bf16.msra.mxu0 0
      %437 = vmatprep.subr.bf16.mxu0 0
      %438 = vmatpush1.bf16.msra.mxu0 0
      %439 = vmatprep.subr.bf16.mxu0 0
      %440 = vmatpush1.bf16.msra.mxu0 0
      %441 = vmatprep.subr.bf16.mxu0 0
      %442 = vmatpush1.bf16.msra.mxu0 %v365
      %443 = vmatprep.subr.bf16.mxu0 0
      %444 = vmatpush1.bf16.msra.mxu0 %v364
      %445 = vmatprep.subr.bf16.mxu0 0
      %446 = vmatpush2.bf16.msra.mxu0 0
      %447 = vmatprep.subr.bf16.mxu0 0
      %448 = vmatpush2.bf16.msra.mxu0 0
      %449 = vmatprep.subr.bf16.mxu0 0
      %450 = vmatpush2.bf16.msra.mxu0 0
      %451 = vmatprep.subr.bf16.mxu0 0
      %452 = vmatpush2.bf16.msra.mxu0 0
      %453 = vmatprep.subr.bf16.mxu0 0
      %454 = vmatpush2.bf16.msra.mxu0 0
      %455 = vmatprep.subr.bf16.mxu0 0
      %456 = vmatpush2.bf16.msra.mxu0 0
      %457 = vmatprep.subr.bf16.mxu0 0
      %458 = vmatpush2.bf16.msra.mxu0 0
      %459 = vmatprep.subr.bf16.mxu0 0
      %460 = vmatpush2.bf16.msra.mxu0 0
      %461 = vmatprep.mubr.bf16.mxu0 0
      %462 = vmatmul.mubr.bf16.gmra.mxu0 %v386
      %v463 = vpop.f32.mrf.mxu0
      %v464 = vadd.f32 %v423, %v463
      %v465 = vpop.f32.mrf.mxu0
      %v466 = vpop.f32.mrf.mxu0
      %v467 = vadd.f32 %v426, %v466
      %v468 = vpop.f32.mrf.mxu0
      %469 = vdwg.mxu0
      %v470 = vmax.f32 %v464, 0.0
      %v471 = vmax.f32 %v467, 0.0
      %v472 = vpack.c.bf16 %v471, %v470
      %v474 = vunpack.c.l.b16 %v472
      %v475 = vunpack.c.h.b16 %v472
      %v476 = vpack.c.b16 %v474, %v474
      %v477 = vpack.c.b16 %v475, %v475
      %vm480 = vcmask 519168
      %481 = vst.msk [vmem:[%s211] sm:$0xf] %vm480, %v476
      %482 = vst.msk [vmem:[%s211 + $0x4] sm:$0xf] %vm480, %v477
      %s483 = smul.u32 2, %s19
      %p484 = scmp.lt.s32.totalorder %s18, 1
      %s485 = scalar_select %p484, %s18, 1
      %p486 = scmp.lt.s32.totalorder %s483, 1
      %s487 = scalar_select %p486, %s483, 1
      %s488 = smul.addr %s485, 2
      %s489 = sadd.s32 %s487, %s488
      %s490 = smul.addr %s489, 4
      %s491 = scalar_lea.vmem %s3, %s490
      // Predicated region
      $region33: #{autoencoder_pallas.16} parent=31 // pred_check
        %p492 = pneg %p116
      $region34: #{autoencoder_pallas.16} parent=31 // pred_check_branch
        %494 = sbr.rel (%p492) target = $region36
      $region35: #{autoencoder_pallas.16} parent=31 // pred_region
        %s495 = smul.u32 2, %s19
      $region36: #{autoencoder_pallas.16} parent=31 // pred_fallthru
        _
    $region32: #{autoencoder_pallas.16} parent=5 // pred_fallthru
      _
    %p496 = scmp.le.s32.totalorder 2, %s9
    // Predicated region
    $region37: #{autoencoder_pallas.16} parent=5 // pred_check
      %p497 = pneg %p496
    $region38: #{autoencoder_pallas.16} parent=5 // pred_check_branch
      %499 = sbr.rel (%p497) target = $region40
    $region39: #{autoencoder_pallas.16} parent=5 // pred_region
      %s500 = ssub.s32 %s9, 2
      // Predicated region
      $region41: #{autoencoder_pallas.16} parent=39 // pred_check
        %p501 = pneg %p122
      $region42: #{autoencoder_pallas.16} parent=39 // pred_check_branch
        %503 = sbr.rel (%p501) target = $region44
      $region43: #{autoencoder_pallas.16} parent=39 // pred_region
        %s504 = smul.u32 2, %s21
        %p505 = scmp.lt.s32.totalorder %s20, 1
        %s506 = scalar_select %p505, %s20, 1
        %p507 = scmp.lt.s32.totalorder %s504, 1
        %s508 = scalar_select %p507, %s504, 1
        %s509 = smul.addr %s506, 2
        %s510 = sadd.s32 %s508, %s509
        %s511 = smul.addr %s510, 4
        %s512 = scalar_lea.vmem %s3, %s511
      $region44: #{autoencoder_pallas.16} parent=39 // pred_fallthru
        _
    $region40: #{autoencoder_pallas.16} parent=5 // pred_fallthru
      _
  $region6: #{autoencoder_pallas.16} parent=0 // loop_footer
    %s13 = sadd.s32 1, %s9
  $region7: #{autoencoder_pallas.16} parent=0 // loop_footer_branch
    %8 = sbr.rel target = $region3
  $region8: #{autoencoder_pallas.16} parent=0 // loop_exit
    _

// kernel: autoencoder_pallas.17
$region0: #{autoencoder_pallas.17}
  #allocation0 [shape = 'u32[]', space=smem, size = 0x4, offset = 0x4, fixed_abs, tag = 'smem constant byte address 0x4 - core index']
  #allocation1 [shape = 'u32[144,128]{1,0:T(1,128)}', space=vmem, size = 0x12000, scoped, tag = 'internal scratch']
  %s0 = inlined_call_operand.vmem [shape: bf16[2,16,576], index: 0, kind: input, shape index: {}]
  %s1 = inlined_call_operand.vmem [shape: bf16[576,128], index: 1, kind: input, shape index: {}]
  %s2 = inlined_call_operand.vmem [shape: f32[1,128], index: 2, kind: input, shape index: {}]
  %s3 = inlined_call_operand.vmem [shape: bf16[2,16,128], index: 3, kind: output, shape index: {}]
  %s4 = sld [smem:[#allocation0]]
  $region45: #{autoencoder_pallas.17} parent=0
    _
  %s6 = ssub.s32 1, %s4
  %s7 = scalar_select 0, %s6, %s4
  loop: start=0, step=1, limit=4
  $region2: #{autoencoder_pallas.17} parent=0 // loop_pre_header
    _
  $region3: #{autoencoder_pallas.17} parent=0 // loop_header
    %s9 = sphi 0, %s13
    %p10 = scmp.ge.s32.totalorder %s9, 4
    %s16 = sphi 0, %s28
    %s17 = sphi 0, %s24
    %s18 = sphi 0, %s16
    %s19 = sphi 0, %s17
    %s20 = sphi 0, %s18
    %s21 = sphi 0, %s19
    %s33 = sphi 0, %s35
    %s36 = sphi 0, %s33
    %s37 = sphi 0, %s36
    %s53 = sphi 0, %s37
    %s57 = sphi 0, %s57
    %s59 = sphi 0, %s57
    %s60 = sphi 0, %s59
    %s74 = sphi 0, %s60
    %s78 = sphi 0, %s78
    %s80 = sphi 0, %s78
    %s81 = sphi 0, %s80
    %s95 = sphi 0, %s81
    %s103 = sphi 0, %s105
    %s106 = sphi 0, %s103
    %s107 = sphi 0, %s106
    %s123 = sphi 0, %s107
  $region4: #{autoencoder_pallas.17} parent=0 // loop_header_branch
    %12 = sbr.rel (%p10) target = $region8
  $region5: #{autoencoder_pallas.17} parent=0 // loop_body
    %s14 = ssub.s32 %s9, 1
    %s15 = ssub.s32 %s9, 2
    %s22 = sadd.s32 1, %s17
    %p23 = scmp.ge.s32.totalorder %s22, 1
    %s24 = scalar_select %p23, 0, %s22
    %s25 = sadd.s32 1, %s16
    %s26 = scalar_select %p23, %s25, %s16
    %p27 = scmp.ge.s32.totalorder %s26, 2
    %s28 = scalar_select %p27, 0, %s26
    %s29 = ssub.s32 %s16, %s28
    %s30 = ssub.s32 %s17, %s24
    %s31 = sor.u32 %s29, %s30
    %p32 = scmp.eq.s32.totalorder %s31, 0
    %s34 = sadd.s32 %s33, 1
    %s35 = scalar_select %p32, %s33, %s34
    %p38 = pneg %p32
    %p39 = scmp.eq.s32.totalorder %s9, 1
    %p40 = por %p38, %p39
    %p41 = scmp.ne.s32.totalorder %s33, %s36
    %p42 = scmp.eq.s32.totalorder %s9, 0
    %p43 = por %p41, %p42
    %p44 = scmp.ne.s32.totalorder %s33, %s36
    %p45 = scmp.eq.s32.totalorder %s14, 1
    %p46 = por %p44, %p45
    %p47 = scmp.ne.s32.totalorder %s36, %s37
    %p48 = scmp.eq.s32.totalorder %s14, 0
    %p49 = por %p47, %p48
    %p50 = scmp.ne.s32.totalorder %s36, %s37
    %p51 = scmp.eq.s32.totalorder %s15, 1
    %p52 = por %p50, %p51
    %p54 = scmp.ne.s32.totalorder %s37, %s53
    %p55 = scmp.eq.s32.totalorder %s15, 0
    %p56 = por %p54, %p55
    %s58 = sadd.s32 %s57, 1
    %p61 = scmp.eq.s32.totalorder %s9, 1
    %p62 = scmp.ne.s32.totalorder %s57, %s59
    %p63 = scmp.eq.s32.totalorder %s9, 0
    %p64 = por %p62, %p63
    %p65 = scmp.ne.s32.totalorder %s57, %s59
    %p66 = scmp.eq.s32.totalorder %s14, 1
    %p67 = por %p65, %p66
    %p68 = scmp.ne.s32.totalorder %s59, %s60
    %p69 = scmp.eq.s32.totalorder %s14, 0
    %p70 = por %p68, %p69
    %p71 = scmp.ne.s32.totalorder %s59, %s60
    %p72 = scmp.eq.s32.totalorder %s15, 1
    %p73 = por %p71, %p72
    %p75 = scmp.ne.s32.totalorder %s60, %s74
    %p76 = scmp.eq.s32.totalorder %s15, 0
    %p77 = por %p75, %p76
    %s79 = sadd.s32 %s78, 1
    %p82 = scmp.eq.s32.totalorder %s9, 1
    %p83 = scmp.ne.s32.totalorder %s78, %s80
    %p84 = scmp.eq.s32.totalorder %s9, 0
    %p85 = por %p83, %p84
    %p86 = scmp.ne.s32.totalorder %s78, %s80
    %p87 = scmp.eq.s32.totalorder %s14, 1
    %p88 = por %p86, %p87
    %p89 = scmp.ne.s32.totalorder %s80, %s81
    %p90 = scmp.eq.s32.totalorder %s14, 0
    %p91 = por %p89, %p90
    %p92 = scmp.ne.s32.totalorder %s80, %s81
    %p93 = scmp.eq.s32.totalorder %s15, 1
    %p94 = por %p92, %p93
    %p96 = scmp.ne.s32.totalorder %s81, %s95
    %p97 = scmp.eq.s32.totalorder %s15, 0
    %p98 = por %p96, %p97
    %s99 = ssub.s32 %s16, %s28
    %s100 = ssub.s32 %s17, %s24
    %s101 = sor.u32 %s99, %s100
    %p102 = scmp.eq.s32.totalorder %s101, 0
    %s104 = sadd.s32 %s103, 1
    %s105 = scalar_select %p102, %s103, %s104
    %p108 = pneg %p102
    %p109 = scmp.eq.s32.totalorder %s9, 1
    %p110 = por %p108, %p109
    %p111 = scmp.ne.s32.totalorder %s103, %s106
    %p112 = scmp.eq.s32.totalorder %s9, 0
    %p113 = por %p111, %p112
    %p114 = scmp.ne.s32.totalorder %s103, %s106
    %p115 = scmp.eq.s32.totalorder %s14, 1
    %p116 = por %p114, %p115
    %p117 = scmp.ne.s32.totalorder %s106, %s107
    %p118 = scmp.eq.s32.totalorder %s14, 0
    %p119 = por %p117, %p118
    %p120 = scmp.ne.s32.totalorder %s106, %s107
    %p121 = scmp.eq.s32.totalorder %s15, 1
    %p122 = por %p120, %p121
    %p124 = scmp.ne.s32.totalorder %s107, %s123
    %p125 = scmp.eq.s32.totalorder %s15, 0
    %p126 = por %p124, %p125
    %p127 = scmp.le.s32.totalorder 1, %s9
    %p128 = scmp.lt.s32.totalorder %s9, 3
    %p129 = pnand %p127, %p128
    %p130 = pneg %p129
    // Predicated region
    $region9: #{autoencoder_pallas.17} parent=5 // pred_check
      _
    $region10: #{autoencoder_pallas.17} parent=5 // pred_check_branch
      %132 = sbr.rel (%p129) target = $region12
    $region11: #{autoencoder_pallas.17} parent=5 // pred_region
      %s133 = ssub.s32 %s9, 1
      // Predicated region
      $region13: #{autoencoder_pallas.17} parent=11 // pred_check
        %p134 = pneg %p70
      $region14: #{autoencoder_pallas.17} parent=11 // pred_check_branch
        %136 = sbr.rel (%p134) target = $region16
      $region15: #{autoencoder_pallas.17} parent=11 // pred_region
        _
      $region16: #{autoencoder_pallas.17} parent=11 // pred_fallthru
        _
      // Predicated region
      $region17: #{autoencoder_pallas.17} parent=11 // pred_check
        %p137 = pneg %p91
      $region18: #{autoencoder_pallas.17} parent=11 // pred_check_branch
        %139 = sbr.rel (%p137) target = $region20
      $region19: #{autoencoder_pallas.17} parent=11 // pred_region
        _
      $region20: #{autoencoder_pallas.17} parent=11 // pred_fallthru
        _
    $region12: #{autoencoder_pallas.17} parent=5 // pred_fallthru
      _
    %p140 = scmp.lt.s32.totalorder %s9, 2
    // Predicated region
    $region21: #{autoencoder_pallas.17} parent=5 // pred_check
      %p141 = pneg %p140
    $region22: #{autoencoder_pallas.17} parent=5 // pred_check_branch
      %143 = sbr.rel (%p141) target = $region24
    $region23: #{autoencoder_pallas.17} parent=5 // pred_region
      // Predicated region
      $region25: #{autoencoder_pallas.17} parent=23 // pred_check
        %p144 = pneg %p43
      $region26: #{autoencoder_pallas.17} parent=23 // pred_check_branch
        %146 = sbr.rel (%p144) target = $region28
      $region27: #{autoencoder_pallas.17} parent=23 // pred_region
        %s147 = smul.u32 2, %s17
        %p148 = scmp.lt.s32.totalorder %s16, 1
        %s149 = scalar_select %p148, %s16, 1
        %p150 = scmp.lt.s32.totalorder %s147, 1
        %s151 = scalar_select %p150, %s147, 1
        %s152 = smul.addr %s151, 5
        %s153 = smul.addr %s149, 10
        %s154 = sadd.s32 %s152, %s153
        %s155 = smul.addr %s154, 4
        %s156 = scalar_lea.vmem %s0, %s155
        %s157 = smul.u32 2, %s17
      $region28: #{autoencoder_pallas.17} parent=23 // pred_fallthru
        _
    $region24: #{autoencoder_pallas.17} parent=5 // pred_fallthru
      _
    %p158 = scmp.le.s32.totalorder 1, %s9
    %p159 = scmp.lt.s32.totalorder %s9, 3
    %p160 = pnand %p158, %p159
    %p161 = pneg %p160
    // Predicated region
    $region29: #{autoencoder_pallas.17} parent=5 // pred_check
      _
    $region30: #{autoencoder_pallas.17} parent=5 // pred_check_branch
      %163 = sbr.rel (%p160) target = $region32
    $region31: #{autoencoder_pallas.17} parent=5 // pred_region
      %s164 = ssub.s32 %s9, 1
      %s165 = smul.u32 2, %s19
      %p166 = scmp.lt.s32.totalorder %s18, 1
      %s167 = scalar_select %p166, %s18, 1
      %p168 = scmp.lt.s32.totalorder %s165, 1
      %s169 = scalar_select %p168, %s165, 1
      %s170 = smul.addr %s169, 5
      %s171 = smul.addr %s167, 10
      %s172 = sadd.s32 %s170, %s171
      %s173 = smul.addr %s172, 4
      %s174 = scalar_lea.vmem %s0, %s173
      %p175 = pneg %p49
      %p176 = pneg %p46
      %p177 = pneg %p70
      %p178 = pneg %p67
      %p179 = pneg %p91
      %p180 = pneg %p88
      %p181 = pneg %p119
      %p182 = pneg %p116
      %s183 = smul.u32 2, %s19
      %p184 = scmp.lt.s32.totalorder %s18, 1
      %s185 = scalar_select %p184, %s18, 1
      %p186 = scmp.lt.s32.totalorder %s183, 1
      %s187 = scalar_select %p186, %s183, 1
      %s188 = smul.addr %s185, 2
      %s189 = sadd.s32 %s187, %s188
      %s190 = smul.addr %s189, 4
      %s191 = scalar_lea.vmem %s3, %s190
      %s192 = smul.u32 2, %s19
      %p193 = scmp.lt.s32.totalorder %s18, 1
      %s194 = scalar_select %p193, %s18, 1
      %p195 = scmp.lt.s32.totalorder %s192, 1
      %s196 = scalar_select %p195, %s192, 1
      %s197 = smul.addr %s196, 5
      %s198 = smul.addr %s194, 10
      %s199 = sadd.s32 %s197, %s198
      %s200 = smul.addr %s199, 4
      %s201 = scalar_lea.vmem %s0, %s200
      %s202 = smul.u32 2, %s19
      %s203 = smul.u32 2, %s19
      %p204 = scmp.lt.s32.totalorder %s18, 1
      %s205 = scalar_select %p204, %s18, 1
      %p206 = scmp.lt.s32.totalorder %s203, 1
      %s207 = scalar_select %p206, %s203, 1
      %s208 = smul.addr %s205, 2
      %s209 = sadd.s32 %s207, %s208
      %s210 = smul.addr %s209, 4
      %s211 = scalar_lea.vmem %s3, %s210
      %s212 = smul.u32 2, %s19
      %v214 = vld [vmem:[%s201] sm:$0xff]
      %v215 = vld [vmem:[%s201 + $0x8] sm:$0xff]
      %v216 = vld [vmem:[%s201 + $0x10] sm:$0xf]
      %v217 = vld [vmem:[%s201 + $0x14] sm:$0xff]
      %v218 = vld [vmem:[%s201 + $0x1c] sm:$0xff]
      %v219 = vld [vmem:[%s201 + $0x24] sm:$0xf]
      %v220 = vld [vmem:[%s1] sm:$0xf]
      %v221 = vld [vmem:[%s1 + $0x4] sm:$0xf]
      %v222 = vld [vmem:[%s1 + $0x8] sm:$0xf]
      %v223 = vld [vmem:[%s1 + $0xc] sm:$0xf]
      %v224 = vld [vmem:[%s1 + $0x10] sm:$0xf]
      %v225 = vld [vmem:[%s1 + $0x14] sm:$0xf]
      %v226 = vld [vmem:[%s1 + $0x18] sm:$0xf]
      %v227 = vld [vmem:[%s1 + $0x1c] sm:$0xf]
      %v228 = vld [vmem:[%s1 + $0x20] sm:$0xf]
      %v229 = vld [vmem:[%s1 + $0x24] sm:$0xf]
      %v230 = vld [vmem:[%s1 + $0x28] sm:$0xf]
      %v231 = vld [vmem:[%s1 + $0x2c] sm:$0xf]
      %v232 = vld [vmem:[%s1 + $0x30] sm:$0xf]
      %v233 = vld [vmem:[%s1 + $0x34] sm:$0xf]
      %v234 = vld [vmem:[%s1 + $0x38] sm:$0xf]
      %v235 = vld [vmem:[%s1 + $0x3c] sm:$0xf]
      %v236 = vld [vmem:[%s1 + $0x40] sm:$0xf]
      %v237 = vld [vmem:[%s1 + $0x44] sm:$0xf]
      %v238 = vld [vmem:[%s1 + $0x48] sm:$0xf]
      %v239 = vld [vmem:[%s1 + $0x4c] sm:$0xf]
      %v240 = vld [vmem:[%s1 + $0x50] sm:$0xf]
      %v241 = vld [vmem:[%s1 + $0x54] sm:$0xf]
      %v242 = vld [vmem:[%s1 + $0x58] sm:$0xf]
      %v243 = vld [vmem:[%s1 + $0x5c] sm:$0xf]
      %v244 = vld [vmem:[%s1 + $0x60] sm:$0xf]
      %v245 = vld [vmem:[%s1 + $0x64] sm:$0xf]
      %v246 = vld [vmem:[%s1 + $0x68] sm:$0xf]
      %v247 = vld [vmem:[%s1 + $0x6c] sm:$0xf]
      %v248 = vld [vmem:[%s1 + $0x70] sm:$0xf]
      %v249 = vld [vmem:[%s1 + $0x74] sm:$0xf]
      %v250 = vld [vmem:[%s1 + $0x78] sm:$0xf]
      %v251 = vld [vmem:[%s1 + $0x7c] sm:$0xf]
      %v252 = vld [vmem:[%s1 + $0x80] sm:$0xf]
      %v253 = vld [vmem:[%s1 + $0x84] sm:$0xf]
      %v254 = vld [vmem:[%s1 + $0x88] sm:$0xf]
      %v255 = vld [vmem:[%s1 + $0x8c] sm:$0xf]
      %v256 = vld [vmem:[%s1 + $0x90] sm:$0xf]
      %v257 = vld [vmem:[%s1 + $0x94] sm:$0xf]
      %v258 = vld [vmem:[%s1 + $0x98] sm:$0xf]
      %v259 = vld [vmem:[%s1 + $0x9c] sm:$0xf]
      %v260 = vld [vmem:[%s1 + $0xa0] sm:$0xf]
      %v261 = vld [vmem:[%s1 + $0xa4] sm:$0xf]
      %v262 = vld [vmem:[%s1 + $0xa8] sm:$0xf]
      %v263 = vld [vmem:[%s1 + $0xac] sm:$0xf]
      %v264 = vld [vmem:[%s1 + $0xb0] sm:$0xf]
      %v265 = vld [vmem:[%s1 + $0xb4] sm:$0xf]
      %v266 = vld [vmem:[%s1 + $0xb8] sm:$0xf]
      %v267 = vld [vmem:[%s1 + $0xbc] sm:$0xf]
      %v268 = vld [vmem:[%s1 + $0xc0] sm:$0xf]
      %v269 = vld [vmem:[%s1 + $0xc4] sm:$0xf]
      %v270 = vld [vmem:[%s1 + $0xc8] sm:$0xf]
      %v271 = vld [vmem:[%s1 + $0xcc] sm:$0xf]
      %v272 = vld [vmem:[%s1 + $0xd0] sm:$0xf]
      %v273 = vld [vmem:[%s1 + $0xd4] sm:$0xf]
      %v274 = vld [vmem:[%s1 + $0xd8] sm:$0xf]
      %v275 = vld [vmem:[%s1 + $0xdc] sm:$0xf]
      %v276 = vld [vmem:[%s1 + $0xe0] sm:$0xf]
      %v277 = vld [vmem:[%s1 + $0xe4] sm:$0xf]
      %v278 = vld [vmem:[%s1 + $0xe8] sm:$0xf]
      %v279 = vld [vmem:[%s1 + $0xec] sm:$0xf]
      %v280 = vld [vmem:[%s1 + $0xf0] sm:$0xf]
      %v281 = vld [vmem:[%s1 + $0xf4] sm:$0xf]
      %v282 = vld [vmem:[%s1 + $0xf8] sm:$0xf]
      %v283 = vld [vmem:[%s1 + $0xfc] sm:$0xf]
      %v284 = vld [vmem:[%s1 + $0x100] sm:$0xf]
      %v285 = vld [vmem:[%s1 + $0x104] sm:$0xf]
      %v286 = vld [vmem:[%s1 + $0x108] sm:$0xf]
      %v287 = vld [vmem:[%s1 + $0x10c] sm:$0xf]
      %v288 = vld [vmem:[%s1 + $0x110] sm:$0xf]
      %v289 = vld [vmem:[%s1 + $0x114] sm:$0xf]
      %v290 = vld [vmem:[%s1 + $0x118] sm:$0xf]
      %v291 = vld [vmem:[%s1 + $0x11c] sm:$0xf]
      %v292 = vld [vmem:[%s2] sm:$0x1]
      %v294 = vlaneseq
      %v295 = vshrl.u32 %v294, 7
      %v296 = vsub.s32 0, %v295
      %v297 = vrot.slane %v292, %v296
      %v305 = vunpack.c.l.b16 %v214
      %v306 = vunpack.c.h.b16 %v214
      %v307 = vunpack.c.l.b16 %v215
      %v308 = vunpack.c.h.b16 %v215
      %v309 = vunpack.c.l.b16 %v216
      %v310 = vunpack.c.l.b16 %v217
      %v311 = vunpack.c.h.b16 %v217
      %v312 = vunpack.c.l.b16 %v218
      %v313 = vunpack.c.h.b16 %v218
      %v314 = vunpack.c.l.b16 %v219
      %v315 = vpack.c.b16 %v310, %v305
      %v316 = vpack.c.b16 %v311, %v306
      %v317 = vpack.c.b16 %v312, %v307
      %v318 = vpack.c.b16 %v313, %v308
      %v319 = vpack.c.b16 %v314, %v309
      %v396 = vunpack.c.l.b16 %v220
      %v397 = vunpack.c.l.b16 %v221
      %v398 = vunpack.c.l.b16 %v222
      %v399 = vunpack.c.l.b16 %v223
      %v400 = vunpack.c.l.b16 %v224
      %v401 = vunpack.c.l.b16 %v225
      %v402 = vunpack.c.l.b16 %v226
      %v403 = vunpack.c.l.b16 %v227
      %v404 = vunpack.c.l.b16 %v228
      %v405 = vunpack.c.l.b16 %v229
      %v406 = vunpack.c.l.b16 %v230
      %v407 = vunpack.c.l.b16 %v231
      %v408 = vunpack.c.l.b16 %v232
      %v409 = vunpack.c.l.b16 %v233
      %v410 = vunpack.c.l.b16 %v234
      %v411 = vunpack.c.l.b16 %v235
      %v412 = vunpack.c.l.b16 %v236
      %v413 = vunpack.c.l.b16 %v237
      %v414 = vunpack.c.l.b16 %v238
      %v415 = vunpack.c.l.b16 %v239
      %v416 = vunpack.c.l.b16 %v240
      %v417 = vunpack.c.l.b16 %v241
      %v418 = vunpack.c.l.b16 %v242
      %v419 = vunpack.c.l.b16 %v243
      %v420 = vunpack.c.l.b16 %v244
      %v421 = vunpack.c.l.b16 %v245
      %v422 = vunpack.c.l.b16 %v246
      %v423 = vunpack.c.l.b16 %v247
      %v424 = vunpack.c.l.b16 %v248
      %v425 = vunpack.c.l.b16 %v249
      %v426 = vunpack.c.l.b16 %v250
      %v427 = vunpack.c.l.b16 %v251
      %v428 = vunpack.c.l.b16 %v252
      %v429 = vunpack.c.l.b16 %v253
      %v430 = vunpack.c.l.b16 %v254
      %v431 = vunpack.c.l.b16 %v255
      %v432 = vunpack.c.l.b16 %v256
      %v433 = vunpack.c.l.b16 %v257
      %v434 = vunpack.c.l.b16 %v258
      %v435 = vunpack.c.l.b16 %v259
      %v436 = vunpack.c.l.b16 %v260
      %v437 = vunpack.c.l.b16 %v261
      %v438 = vunpack.c.l.b16 %v262
      %v439 = vunpack.c.l.b16 %v263
      %v440 = vunpack.c.l.b16 %v264
      %v441 = vunpack.c.l.b16 %v265
      %v442 = vunpack.c.l.b16 %v266
      %v443 = vunpack.c.l.b16 %v267
      %v444 = vunpack.c.l.b16 %v268
      %v445 = vunpack.c.l.b16 %v269
      %v446 = vunpack.c.l.b16 %v270
      %v447 = vunpack.c.l.b16 %v271
      %v448 = vunpack.c.l.b16 %v272
      %v449 = vunpack.c.l.b16 %v273
      %v450 = vunpack.c.l.b16 %v274
      %v451 = vunpack.c.l.b16 %v275
      %v452 = vunpack.c.l.b16 %v276
      %v453 = vunpack.c.l.b16 %v277
      %v454 = vunpack.c.l.b16 %v278
      %v455 = vunpack.c.l.b16 %v279
      %v456 = vunpack.c.l.b16 %v280
      %v457 = vunpack.c.l.b16 %v281
      %v458 = vunpack.c.l.b16 %v282
      %v459 = vunpack.c.l.b16 %v283
      %v460 = vunpack.c.l.b16 %v284
      %v461 = vunpack.c.l.b16 %v285
      %v462 = vunpack.c.l.b16 %v286
      %v463 = vunpack.c.l.b16 %v287
      %v464 = vunpack.c.l.b16 %v288
      %v465 = vunpack.c.l.b16 %v289
      %v466 = vunpack.c.l.b16 %v290
      %v467 = vunpack.c.l.b16 %v291
      %v468 = vpack.c.b16 %v397, %v396
      %v469 = vpack.c.b16 %v399, %v398
      %v470 = vpack.c.b16 %v401, %v400
      %v471 = vpack.c.b16 %v403, %v402
      %v472 = vpack.c.b16 %v405, %v404
      %v473 = vpack.c.b16 %v407, %v406
      %v474 = vpack.c.b16 %v409, %v408
      %v475 = vpack.c.b16 %v411, %v410
      %v476 = vpack.c.b16 %v413, %v412
      %v477 = vpack.c.b16 %v415, %v414
      %v478 = vpack.c.b16 %v417, %v416
      %v479 = vpack.c.b16 %v419, %v418
      %v480 = vpack.c.b16 %v421, %v420
      %v481 = vpack.c.b16 %v423, %v422
      %v482 = vpack.c.b16 %v425, %v424
      %v483 = vpack.c.b16 %v427, %v426
      %v484 = vpack.c.b16 %v429, %v428
      %v485 = vpack.c.b16 %v431, %v430
      %v486 = vpack.c.b16 %v433, %v432
      %v487 = vpack.c.b16 %v435, %v434
      %v488 = vpack.c.b16 %v437, %v436
      %v489 = vpack.c.b16 %v439, %v438
      %v490 = vpack.c.b16 %v441, %v440
      %v491 = vpack.c.b16 %v443, %v442
      %v492 = vpack.c.b16 %v445, %v444
      %v493 = vpack.c.b16 %v447, %v446
      %v494 = vpack.c.b16 %v449, %v448
      %v495 = vpack.c.b16 %v451, %v450
      %v496 = vpack.c.b16 %v453, %v452
      %v497 = vpack.c.b16 %v455, %v454
      %v498 = vpack.c.b16 %v457, %v456
      %v499 = vpack.c.b16 %v459, %v458
      %v500 = vpack.c.b16 %v461, %v460
      %v501 = vpack.c.b16 %v463, %v462
      %v502 = vpack.c.b16 %v465, %v464
      %v503 = vpack.c.b16 %v467, %v466
      %vm540 = vcmask 523264
      %v542 = vsel %vm540, %v319, 0
      %544 = vmatprep.subr.bf16.mxu0 0
      %545 = vmatpush1.bf16.msra.mxu0 %v475
      %546 = vmatprep.subr.bf16.mxu0 0
      %547 = vmatpush1.bf16.msra.mxu0 %v474
      %548 = vmatprep.subr.bf16.mxu0 0
      %549 = vmatpush1.bf16.msra.mxu0 %v473
      %550 = vmatprep.subr.bf16.mxu0 0
      %551 = vmatpush1.bf16.msra.mxu0 %v472
      %552 = vmatprep.subr.bf16.mxu0 0
      %553 = vmatpush1.bf16.msra.mxu0 %v471
      %554 = vmatprep.subr.bf16.mxu0 0
      %555 = vmatpush1.bf16.msra.mxu0 %v470
      %556 = vmatprep.subr.bf16.mxu0 0
      %557 = vmatpush1.bf16.msra.mxu0 %v469
      %558 = vmatprep.subr.bf16.mxu0 0
      %559 = vmatpush1.bf16.msra.mxu0 %v468
      %560 = vmatprep.subr.bf16.mxu0 0
      %561 = vmatpush2.bf16.msra.mxu0 %v483
      %562 = vmatprep.subr.bf16.mxu0 0
      %563 = vmatpush2.bf16.msra.mxu0 %v482
      %564 = vmatprep.subr.bf16.mxu0 0
      %565 = vmatpush2.bf16.msra.mxu0 %v481
      %566 = vmatprep.subr.bf16.mxu0 0
      %567 = vmatpush2.bf16.msra.mxu0 %v480
      %568 = vmatprep.subr.bf16.mxu0 0
      %569 = vmatpush2.bf16.msra.mxu0 %v479
      %570 = vmatprep.subr.bf16.mxu0 0
      %571 = vmatpush2.bf16.msra.mxu0 %v478
      %572 = vmatprep.subr.bf16.mxu0 0
      %573 = vmatpush2.bf16.msra.mxu0 %v477
      %574 = vmatprep.subr.bf16.mxu0 0
      %575 = vmatpush2.bf16.msra.mxu0 %v476
      %576 = vmatprep.mubr.bf16.mxu0 %v316
      %577 = vmatmul.mubr.bf16.gmra.mxu0 %v315
      %v578 = vpop.f32.mrf.mxu0
      %v579 = vadd.f32 %v297, %v578
      %v580 = vpop.f32.mrf.mxu0
      %v581 = vpop.f32.mrf.mxu0
      %v582 = vadd.f32 %v297, %v581
      %v583 = vpop.f32.mrf.mxu0
      %584 = vdwg.mxu0
      %585 = vmatprep.subr.bf16.mxu0 0
      %586 = vmatpush1.bf16.msra.mxu0 %v491
      %587 = vmatprep.subr.bf16.mxu0 0
      %588 = vmatpush1.bf16.msra.mxu0 %v490
      %589 = vmatprep.subr.bf16.mxu0 0
      %590 = vmatpush1.bf16.msra.mxu0 %v489
      %591 = vmatprep.subr.bf16.mxu0 0
      %592 = vmatpush1.bf16.msra.mxu0 %v488
      %593 = vmatprep.subr.bf16.mxu0 0
      %594 = vmatpush1.bf16.msra.mxu0 %v487
      %595 = vmatprep.subr.bf16.mxu0 0
      %596 = vmatpush1.bf16.msra.mxu0 %v486
      %597 = vmatprep.subr.bf16.mxu0 0
      %598 = vmatpush1.bf16.msra.mxu0 %v485
      %599 = vmatprep.subr.bf16.mxu0 0
      %600 = vmatpush1.bf16.msra.mxu0 %v484
      %601 = vmatprep.subr.bf16.mxu0 0
      %602 = vmatpush2.bf16.msra.mxu0 %v499
      %603 = vmatprep.subr.bf16.mxu0 0
      %604 = vmatpush2.bf16.msra.mxu0 %v498
      %605 = vmatprep.subr.bf16.mxu0 0
      %606 = vmatpush2.bf16.msra.mxu0 %v497
      %607 = vmatprep.subr.bf16.mxu0 0
      %608 = vmatpush2.bf16.msra.mxu0 %v496
      %609 = vmatprep.subr.bf16.mxu0 0
      %610 = vmatpush2.bf16.msra.mxu0 %v495
      %611 = vmatprep.subr.bf16.mxu0 0
      %612 = vmatpush2.bf16.msra.mxu0 %v494
      %613 = vmatprep.subr.bf16.mxu0 0
      %614 = vmatpush2.bf16.msra.mxu0 %v493
      %615 = vmatprep.subr.bf16.mxu0 0
      %616 = vmatpush2.bf16.msra.mxu0 %v492
      %617 = vmatprep.mubr.bf16.mxu0 %v318
      %618 = vmatmul.mubr.bf16.gmra.mxu0 %v317
      %v619 = vpop.f32.mrf.mxu0
      %v620 = vadd.f32 %v579, %v619
      %v621 = vpop.f32.mrf.mxu0
      %v622 = vpop.f32.mrf.mxu0
      %v623 = vadd.f32 %v582, %v622
      %v624 = vpop.f32.mrf.mxu0
      %625 = vdwg.mxu0
      %626 = vmatprep.subr.bf16.mxu0 0
      %627 = vmatpush1.bf16.msra.mxu0 0
      %628 = vmatprep.subr.bf16.mxu0 0
      %629 = vmatpush1.bf16.msra.mxu0 0
      %630 = vmatprep.subr.bf16.mxu0 0
      %631 = vmatpush1.bf16.msra.mxu0 0
      %632 = vmatprep.subr.bf16.mxu0 0
      %633 = vmatpush1.bf16.msra.mxu0 0
      %634 = vmatprep.subr.bf16.mxu0 0
      %635 = vmatpush1.bf16.msra.mxu0 %v503
      %636 = vmatprep.subr.bf16.mxu0 0
      %637 = vmatpush1.bf16.msra.mxu0 %v502
      %638 = vmatprep.subr.bf16.mxu0 0
      %639 = vmatpush1.bf16.msra.mxu0 %v501
      %640 = vmatprep.subr.bf16.mxu0 0
      %641 = vmatpush1.bf16.msra.mxu0 %v500
      %642 = vmatprep.subr.bf16.mxu0 0
      %643 = vmatpush2.bf16.msra.mxu0 0
      %644 = vmatprep.subr.bf16.mxu0 0
      %645 = vmatpush2.bf16.msra.mxu0 0
      %646 = vmatprep.subr.bf16.mxu0 0
      %647 = vmatpush2.bf16.msra.mxu0 0
      %648 = vmatprep.subr.bf16.mxu0 0
      %649 = vmatpush2.bf16.msra.mxu0 0
      %650 = vmatprep.subr.bf16.mxu0 0
      %651 = vmatpush2.bf16.msra.mxu0 0
      %652 = vmatprep.subr.bf16.mxu0 0
      %653 = vmatpush2.bf16.msra.mxu0 0
      %654 = vmatprep.subr.bf16.mxu0 0
      %655 = vmatpush2.bf16.msra.mxu0 0
      %656 = vmatprep.subr.bf16.mxu0 0
      %657 = vmatpush2.bf16.msra.mxu0 0
      %658 = vmatprep.mubr.bf16.mxu0 0
      %659 = vmatmul.mubr.bf16.gmra.mxu0 %v542
      %v660 = vpop.f32.mrf.mxu0
      %v661 = vadd.f32 %v620, %v660
      %v662 = vpop.f32.mrf.mxu0
      %v663 = vpop.f32.mrf.mxu0
      %v664 = vadd.f32 %v623, %v663
      %v665 = vpop.f32.mrf.mxu0
      %666 = vdwg.mxu0
      %v667 = vmax.f32 %v661, 0.0
      %v668 = vmax.f32 %v664, 0.0
      %v669 = vpack.c.bf16 %v668, %v667
      %v671 = vunpack.c.l.b16 %v669
      %v672 = vunpack.c.h.b16 %v669
      %v673 = vpack.c.b16 %v671, %v671
      %v674 = vpack.c.b16 %v672, %v672
      %677 = vst [vmem:[%s211] sm:$0xf] %v673
      %678 = vst [vmem:[%s211 + $0x4] sm:$0xf] %v674
      %s679 = smul.u32 2, %s19
      %p680 = scmp.lt.s32.totalorder %s18, 1
      %s681 = scalar_select %p680, %s18, 1
      %p682 = scmp.lt.s32.totalorder %s679, 1
      %s683 = scalar_select %p682, %s679, 1
      %s684 = smul.addr %s681, 2
      %s685 = sadd.s32 %s683, %s684
      %s686 = smul.addr %s685, 4
      %s687 = scalar_lea.vmem %s3, %s686
      // Predicated region
      $region33: #{autoencoder_pallas.17} parent=31 // pred_check
        %p688 = pneg %p116
      $region34: #{autoencoder_pallas.17} parent=31 // pred_check_branch
        %690 = sbr.rel (%p688) target = $region36
      $region35: #{autoencoder_pallas.17} parent=31 // pred_region
        %s691 = smul.u32 2, %s19
      $region36: #{autoencoder_pallas.17} parent=31 // pred_fallthru
        _
    $region32: #{autoencoder_pallas.17} parent=5 // pred_fallthru
      _
    %p692 = scmp.le.s32.totalorder 2, %s9
    // Predicated region
    $region37: #{autoencoder_pallas.17} parent=5 // pred_check
      %p693 = pneg %p692
    $region38: #{autoencoder_pallas.17} parent=5 // pred_check_branch
      %695 = sbr.rel (%p693) target = $region40
    $region39: #{autoencoder_pallas.17} parent=5 // pred_region
      %s696 = ssub.s32 %s9, 2
      // Predicated region
      $region41: #{autoencoder_pallas.17} parent=39 // pred_check
        %p697 = pneg %p122
      $region42: #{autoencoder_pallas.17} parent=39 // pred_check_branch
        %699 = sbr.rel (%p697) target = $region44
      $region43: #{autoencoder_pallas.17} parent=39 // pred_region
        %s700 = smul.u32 2, %s21
        %p701 = scmp.lt.s32.totalorder %s20, 1
        %s702 = scalar_select %p701, %s20, 1
        %p703 = scmp.lt.s32.totalorder %s700, 1
        %s704 = scalar_select %p703, %s700, 1
        %s705 = smul.addr %s702, 2
        %s706 = sadd.s32 %s704, %s705
        %s707 = smul.addr %s706, 4
        %s708 = scalar_lea.vmem %s3, %s707
      $region44: #{autoencoder_pallas.17} parent=39 // pred_fallthru
        _
    $region40: #{autoencoder_pallas.17} parent=5 // pred_fallthru
      _
  $region6: #{autoencoder_pallas.17} parent=0 // loop_footer
    %s13 = sadd.s32 1, %s9
  $region7: #{autoencoder_pallas.17} parent=0 // loop_footer_branch
    %8 = sbr.rel target = $region3
  $region8: #{autoencoder_pallas.17} parent=0 // loop_exit
    _

// kernel: autoencoder_pallas.18
$region0: #{autoencoder_pallas.18}
  #allocation0 [shape = 'u32[]', space=smem, size = 0x4, offset = 0x4, fixed_abs, tag = 'smem constant byte address 0x4 - core index']
  #allocation1 [shape = 'u32[144,128]{1,0:T(1,128)}', space=vmem, size = 0x12000, scoped, tag = 'internal scratch']
  %s0 = inlined_call_operand.vmem [shape: bf16[2,16,1152], index: 0, kind: input, shape index: {}]
  %s1 = inlined_call_operand.vmem [shape: bf16[1152,256], index: 1, kind: input, shape index: {}]
  %s2 = inlined_call_operand.vmem [shape: f32[1,256], index: 2, kind: input, shape index: {}]
  %s3 = inlined_call_operand.vmem [shape: bf16[2,16,256], index: 3, kind: output, shape index: {}]
  %s4 = sld [smem:[#allocation0]]
  $region45: #{autoencoder_pallas.18} parent=0
    _
  %s6 = ssub.s32 1, %s4
  %s7 = scalar_select 0, %s6, %s4
  loop: start=0, step=1, limit=4
  $region2: #{autoencoder_pallas.18} parent=0 // loop_pre_header
    _
  $region3: #{autoencoder_pallas.18} parent=0 // loop_header
    %s9 = sphi 0, %s13
    %p10 = scmp.ge.s32.totalorder %s9, 4
    %s16 = sphi 0, %s28
    %s17 = sphi 0, %s24
    %s18 = sphi 0, %s16
    %s19 = sphi 0, %s17
    %s20 = sphi 0, %s18
    %s21 = sphi 0, %s19
    %s33 = sphi 0, %s35
    %s36 = sphi 0, %s33
    %s37 = sphi 0, %s36
    %s53 = sphi 0, %s37
    %s57 = sphi 0, %s57
    %s59 = sphi 0, %s57
    %s60 = sphi 0, %s59
    %s74 = sphi 0, %s60
    %s78 = sphi 0, %s78
    %s80 = sphi 0, %s78
    %s81 = sphi 0, %s80
    %s95 = sphi 0, %s81
    %s103 = sphi 0, %s105
    %s106 = sphi 0, %s103
    %s107 = sphi 0, %s106
    %s123 = sphi 0, %s107
  $region4: #{autoencoder_pallas.18} parent=0 // loop_header_branch
    %12 = sbr.rel (%p10) target = $region8
  $region5: #{autoencoder_pallas.18} parent=0 // loop_body
    %s14 = ssub.s32 %s9, 1
    %s15 = ssub.s32 %s9, 2
    %s22 = sadd.s32 1, %s17
    %p23 = scmp.ge.s32.totalorder %s22, 1
    %s24 = scalar_select %p23, 0, %s22
    %s25 = sadd.s32 1, %s16
    %s26 = scalar_select %p23, %s25, %s16
    %p27 = scmp.ge.s32.totalorder %s26, 2
    %s28 = scalar_select %p27, 0, %s26
    %s29 = ssub.s32 %s16, %s28
    %s30 = ssub.s32 %s17, %s24
    %s31 = sor.u32 %s29, %s30
    %p32 = scmp.eq.s32.totalorder %s31, 0
    %s34 = sadd.s32 %s33, 1
    %s35 = scalar_select %p32, %s33, %s34
    %p38 = pneg %p32
    %p39 = scmp.eq.s32.totalorder %s9, 1
    %p40 = por %p38, %p39
    %p41 = scmp.ne.s32.totalorder %s33, %s36
    %p42 = scmp.eq.s32.totalorder %s9, 0
    %p43 = por %p41, %p42
    %p44 = scmp.ne.s32.totalorder %s33, %s36
    %p45 = scmp.eq.s32.totalorder %s14, 1
    %p46 = por %p44, %p45
    %p47 = scmp.ne.s32.totalorder %s36, %s37
    %p48 = scmp.eq.s32.totalorder %s14, 0
    %p49 = por %p47, %p48
    %p50 = scmp.ne.s32.totalorder %s36, %s37
    %p51 = scmp.eq.s32.totalorder %s15, 1
    %p52 = por %p50, %p51
    %p54 = scmp.ne.s32.totalorder %s37, %s53
    %p55 = scmp.eq.s32.totalorder %s15, 0
    %p56 = por %p54, %p55
    %s58 = sadd.s32 %s57, 1
    %p61 = scmp.eq.s32.totalorder %s9, 1
    %p62 = scmp.ne.s32.totalorder %s57, %s59
    %p63 = scmp.eq.s32.totalorder %s9, 0
    %p64 = por %p62, %p63
    %p65 = scmp.ne.s32.totalorder %s57, %s59
    %p66 = scmp.eq.s32.totalorder %s14, 1
    %p67 = por %p65, %p66
    %p68 = scmp.ne.s32.totalorder %s59, %s60
    %p69 = scmp.eq.s32.totalorder %s14, 0
    %p70 = por %p68, %p69
    %p71 = scmp.ne.s32.totalorder %s59, %s60
    %p72 = scmp.eq.s32.totalorder %s15, 1
    %p73 = por %p71, %p72
    %p75 = scmp.ne.s32.totalorder %s60, %s74
    %p76 = scmp.eq.s32.totalorder %s15, 0
    %p77 = por %p75, %p76
    %s79 = sadd.s32 %s78, 1
    %p82 = scmp.eq.s32.totalorder %s9, 1
    %p83 = scmp.ne.s32.totalorder %s78, %s80
    %p84 = scmp.eq.s32.totalorder %s9, 0
    %p85 = por %p83, %p84
    %p86 = scmp.ne.s32.totalorder %s78, %s80
    %p87 = scmp.eq.s32.totalorder %s14, 1
    %p88 = por %p86, %p87
    %p89 = scmp.ne.s32.totalorder %s80, %s81
    %p90 = scmp.eq.s32.totalorder %s14, 0
    %p91 = por %p89, %p90
    %p92 = scmp.ne.s32.totalorder %s80, %s81
    %p93 = scmp.eq.s32.totalorder %s15, 1
    %p94 = por %p92, %p93
    %p96 = scmp.ne.s32.totalorder %s81, %s95
    %p97 = scmp.eq.s32.totalorder %s15, 0
    %p98 = por %p96, %p97
    %s99 = ssub.s32 %s16, %s28
    %s100 = ssub.s32 %s17, %s24
    %s101 = sor.u32 %s99, %s100
    %p102 = scmp.eq.s32.totalorder %s101, 0
    %s104 = sadd.s32 %s103, 1
    %s105 = scalar_select %p102, %s103, %s104
    %p108 = pneg %p102
    %p109 = scmp.eq.s32.totalorder %s9, 1
    %p110 = por %p108, %p109
    %p111 = scmp.ne.s32.totalorder %s103, %s106
    %p112 = scmp.eq.s32.totalorder %s9, 0
    %p113 = por %p111, %p112
    %p114 = scmp.ne.s32.totalorder %s103, %s106
    %p115 = scmp.eq.s32.totalorder %s14, 1
    %p116 = por %p114, %p115
    %p117 = scmp.ne.s32.totalorder %s106, %s107
    %p118 = scmp.eq.s32.totalorder %s14, 0
    %p119 = por %p117, %p118
    %p120 = scmp.ne.s32.totalorder %s106, %s107
    %p121 = scmp.eq.s32.totalorder %s15, 1
    %p122 = por %p120, %p121
    %p124 = scmp.ne.s32.totalorder %s107, %s123
    %p125 = scmp.eq.s32.totalorder %s15, 0
    %p126 = por %p124, %p125
    %p127 = scmp.le.s32.totalorder 1, %s9
    %p128 = scmp.lt.s32.totalorder %s9, 3
    %p129 = pnand %p127, %p128
    %p130 = pneg %p129
    // Predicated region
    $region9: #{autoencoder_pallas.18} parent=5 // pred_check
      _
    $region10: #{autoencoder_pallas.18} parent=5 // pred_check_branch
      %132 = sbr.rel (%p129) target = $region12
    $region11: #{autoencoder_pallas.18} parent=5 // pred_region
      %s133 = ssub.s32 %s9, 1
      // Predicated region
      $region13: #{autoencoder_pallas.18} parent=11 // pred_check
        %p134 = pneg %p70
      $region14: #{autoencoder_pallas.18} parent=11 // pred_check_branch
        %136 = sbr.rel (%p134) target = $region16
      $region15: #{autoencoder_pallas.18} parent=11 // pred_region
        _
      $region16: #{autoencoder_pallas.18} parent=11 // pred_fallthru
        _
      // Predicated region
      $region17: #{autoencoder_pallas.18} parent=11 // pred_check
        %p137 = pneg %p91
      $region18: #{autoencoder_pallas.18} parent=11 // pred_check_branch
        %139 = sbr.rel (%p137) target = $region20
      $region19: #{autoencoder_pallas.18} parent=11 // pred_region
        _
      $region20: #{autoencoder_pallas.18} parent=11 // pred_fallthru
        _
    $region12: #{autoencoder_pallas.18} parent=5 // pred_fallthru
      _
    %p140 = scmp.lt.s32.totalorder %s9, 2
    // Predicated region
    $region21: #{autoencoder_pallas.18} parent=5 // pred_check
      %p141 = pneg %p140
    $region22: #{autoencoder_pallas.18} parent=5 // pred_check_branch
      %143 = sbr.rel (%p141) target = $region24
    $region23: #{autoencoder_pallas.18} parent=5 // pred_region
      // Predicated region
      $region25: #{autoencoder_pallas.18} parent=23 // pred_check
        %p144 = pneg %p43
      $region26: #{autoencoder_pallas.18} parent=23 // pred_check_branch
        %146 = sbr.rel (%p144) target = $region28
      $region27: #{autoencoder_pallas.18} parent=23 // pred_region
        %s147 = smul.u32 2, %s17
        %p148 = scmp.lt.s32.totalorder %s16, 1
        %s149 = scalar_select %p148, %s16, 1
        %p150 = scmp.lt.s32.totalorder %s147, 1
        %s151 = scalar_select %p150, %s147, 1
        %s152 = smul.addr %s151, 9
        %s153 = smul.addr %s149, 18
        %s154 = sadd.s32 %s152, %s153
        %s155 = smul.addr %s154, 4
        %s156 = scalar_lea.vmem %s0, %s155
        %s157 = smul.u32 2, %s17
      $region28: #{autoencoder_pallas.18} parent=23 // pred_fallthru
        _
    $region24: #{autoencoder_pallas.18} parent=5 // pred_fallthru
      _
    %p158 = scmp.le.s32.totalorder 1, %s9
    %p159 = scmp.lt.s32.totalorder %s9, 3
    %p160 = pnand %p158, %p159
    %p161 = pneg %p160
    // Predicated region
    $region29: #{autoencoder_pallas.18} parent=5 // pred_check
      _
    $region30: #{autoencoder_pallas.18} parent=5 // pred_check_branch
      %163 = sbr.rel (%p160) target = $region32
    $region31: #{autoencoder_pallas.18} parent=5 // pred_region
      %s164 = ssub.s32 %s9, 1
      %s165 = smul.u32 2, %s19
      %p166 = scmp.lt.s32.totalorder %s18, 1
      %s167 = scalar_select %p166, %s18, 1
      %p168 = scmp.lt.s32.totalorder %s165, 1
      %s169 = scalar_select %p168, %s165, 1
      %s170 = smul.addr %s169, 9
      %s171 = smul.addr %s167, 18
      %s172 = sadd.s32 %s170, %s171
      %s173 = smul.addr %s172, 4
      %s174 = scalar_lea.vmem %s0, %s173
      %p175 = pneg %p49
      %p176 = pneg %p46
      %p177 = pneg %p70
      %p178 = pneg %p67
      %p179 = pneg %p91
      %p180 = pneg %p88
      %p181 = pneg %p119
      %p182 = pneg %p116
      %s183 = smul.u32 2, %s19
      %p184 = scmp.lt.s32.totalorder %s18, 1
      %s185 = scalar_select %p184, %s18, 1
      %p186 = scmp.lt.s32.totalorder %s183, 1
      %s187 = scalar_select %p186, %s183, 1
      %s188 = smul.addr %s187, 2
      %s189 = smul.addr %s185, 4
      %s190 = sadd.s32 %s188, %s189
      %s191 = smul.addr %s190, 4
      %s192 = scalar_lea.vmem %s3, %s191
      %s193 = smul.u32 2, %s19
      %p194 = scmp.lt.s32.totalorder %s18, 1
      %s195 = scalar_select %p194, %s18, 1
      %p196 = scmp.lt.s32.totalorder %s193, 1
      %s197 = scalar_select %p196, %s193, 1
      %s198 = smul.addr %s197, 9
      %s199 = smul.addr %s195, 18
      %s200 = sadd.s32 %s198, %s199
      %s201 = smul.addr %s200, 4
      %s202 = scalar_lea.vmem %s0, %s201
      %s203 = smul.u32 2, %s19
      %s204 = smul.u32 2, %s19
      %p205 = scmp.lt.s32.totalorder %s18, 1
      %s206 = scalar_select %p205, %s18, 1
      %p207 = scmp.lt.s32.totalorder %s204, 1
      %s208 = scalar_select %p207, %s204, 1
      %s209 = smul.addr %s208, 2
      %s210 = smul.addr %s206, 4
      %s211 = sadd.s32 %s209, %s210
      %s212 = smul.addr %s211, 4
      %s213 = scalar_lea.vmem %s3, %s212
      %s214 = smul.u32 2, %s19
      %v216 = vld [vmem:[%s202] sm:$0xff]
      %v217 = vld [vmem:[%s202 + $0x8] sm:$0xff]
      %v218 = vld [vmem:[%s202 + $0x10] sm:$0xff]
      %v219 = vld [vmem:[%s202 + $0x18] sm:$0xff]
      %v220 = vld [vmem:[%s202 + $0x20] sm:$0xf]
      %v221 = vld [vmem:[%s202 + $0x24] sm:$0xff]
      %v222 = vld [vmem:[%s202 + $0x2c] sm:$0xff]
      %v223 = vld [vmem:[%s202 + $0x34] sm:$0xff]
      %v224 = vld [vmem:[%s202 + $0x3c] sm:$0xff]
      %v225 = vld [vmem:[%s202 + $0x44] sm:$0xf]
      %v226 = vld [vmem:[%s1] sm:$0xff]
      %v227 = vld [vmem:[%s1 + $0x8] sm:$0xff]
      %v228 = vld [vmem:[%s1 + $0x10] sm:$0xff]
      %v229 = vld [vmem:[%s1 + $0x18] sm:$0xff]
      %v230 = vld [vmem:[%s1 + $0x20] sm:$0xff]
      %v231 = vld [vmem:[%s1 + $0x28] sm:$0xff]
      %v232 = vld [vmem:[%s1 + $0x30] sm:$0xff]
      %v233 = vld [vmem:[%s1 + $0x38] sm:$0xff]
      %v234 = vld [vmem:[%s1 + $0x40] sm:$0xff]
      %v235 = vld [vmem:[%s1 + $0x48] sm:$0xff]
      %v236 = vld [vmem:[%s1 + $0x50] sm:$0xff]
      %v237 = vld [vmem:[%s1 + $0x58] sm:$0xff]
      %v238 = vld [vmem:[%s1 + $0x60] sm:$0xff]
      %v239 = vld [vmem:[%s1 + $0x68] sm:$0xff]
      %v240 = vld [vmem:[%s1 + $0x70] sm:$0xff]
      %v241 = vld [vmem:[%s1 + $0x78] sm:$0xff]
      %v242 = vld [vmem:[%s1 + $0x80] sm:$0xff]
      %v243 = vld [vmem:[%s1 + $0x88] sm:$0xff]
      %v244 = vld [vmem:[%s1 + $0x90] sm:$0xff]
      %v245 = vld [vmem:[%s1 + $0x98] sm:$0xff]
      %v246 = vld [vmem:[%s1 + $0xa0] sm:$0xff]
      %v247 = vld [vmem:[%s1 + $0xa8] sm:$0xff]
      %v248 = vld [vmem:[%s1 + $0xb0] sm:$0xff]
      %v249 = vld [vmem:[%s1 + $0xb8] sm:$0xff]
      %v250 = vld [vmem:[%s1 + $0xc0] sm:$0xff]
      %v251 = vld [vmem:[%s1 + $0xc8] sm:$0xff]
      %v252 = vld [vmem:[%s1 + $0xd0] sm:$0xff]
      %v253 = vld [vmem:[%s1 + $0xd8] sm:$0xff]
      %v254 = vld [vmem:[%s1 + $0xe0] sm:$0xff]
      %v255 = vld [vmem:[%s1 + $0xe8] sm:$0xff]
      %v256 = vld [vmem:[%s1 + $0xf0] sm:$0xff]
      %v257 = vld [vmem:[%s1 + $0xf8] sm:$0xff]
      %v258 = vld [vmem:[%s1 + $0x100] sm:$0xff]
      %v259 = vld [vmem:[%s1 + $0x108] sm:$0xff]
      %v260 = vld [vmem:[%s1 + $0x110] sm:$0xff]
      %v261 = vld [vmem:[%s1 + $0x118] sm:$0xff]
      %v262 = vld [vmem:[%s1 + $0x120] sm:$0xff]
      %v263 = vld [vmem:[%s1 + $0x128] sm:$0xff]
      %v264 = vld [vmem:[%s1 + $0x130] sm:$0xff]
      %v265 = vld [vmem:[%s1 + $0x138] sm:$0xff]
      %v266 = vld [vmem:[%s1 + $0x140] sm:$0xff]
      %v267 = vld [vmem:[%s1 + $0x148] sm:$0xff]
      %v268 = vld [vmem:[%s1 + $0x150] sm:$0xff]
      %v269 = vld [vmem:[%s1 + $0x158] sm:$0xff]
      %v270 = vld [vmem:[%s1 + $0x160] sm:$0xff]
      %v271 = vld [vmem:[%s1 + $0x168] sm:$0xff]
      %v272 = vld [vmem:[%s1 + $0x170] sm:$0xff]
      %v273 = vld [vmem:[%s1 + $0x178] sm:$0xff]
      %v274 = vld [vmem:[%s1 + $0x180] sm:$0xff]
      %v275 = vld [vmem:[%s1 + $0x188] sm:$0xff]
      %v276 = vld [vmem:[%s1 + $0x190] sm:$0xff]
      %v277 = vld [vmem:[%s1 + $0x198] sm:$0xff]
      %v278 = vld [vmem:[%s1 + $0x1a0] sm:$0xff]
      %v279 = vld [vmem:[%s1 + $0x1a8] sm:$0xff]
      %v280 = vld [vmem:[%s1 + $0x1b0] sm:$0xff]
      %v281 = vld [vmem:[%s1 + $0x1b8] sm:$0xff]
      %v282 = vld [vmem:[%s1 + $0x1c0] sm:$0xff]
      %v283 = vld [vmem:[%s1 + $0x1c8] sm:$0xff]
      %v284 = vld [vmem:[%s1 + $0x1d0] sm:$0xff]
      %v285 = vld [vmem:[%s1 + $0x1d8] sm:$0xff]
      %v286 = vld [vmem:[%s1 + $0x1e0] sm:$0xff]
      %v287 = vld [vmem:[%s1 + $0x1e8] sm:$0xff]
      %v288 = vld [vmem:[%s1 + $0x1f0] sm:$0xff]
      %v289 = vld [vmem:[%s1 + $0x1f8] sm:$0xff]
      %v290 = vld [vmem:[%s1 + $0x200] sm:$0xff]
      %v291 = vld [vmem:[%s1 + $0x208] sm:$0xff]
      %v292 = vld [vmem:[%s1 + $0x210] sm:$0xff]
      %v293 = vld [vmem:[%s1 + $0x218] sm:$0xff]
      %v294 = vld [vmem:[%s1 + $0x220] sm:$0xff]
      %v295 = vld [vmem:[%s1 + $0x228] sm:$0xff]
      %v296 = vld [vmem:[%s1 + $0x230] sm:$0xff]
      %v297 = vld [vmem:[%s1 + $0x238] sm:$0xff]
      %v298 = vld [vmem:[%s1 + $0x240] sm:$0xff]
      %v299 = vld [vmem:[%s1 + $0x248] sm:$0xff]
      %v300 = vld [vmem:[%s1 + $0x250] sm:$0xff]
      %v301 = vld [vmem:[%s1 + $0x258] sm:$0xff]
      %v302 = vld [vmem:[%s1 + $0x260] sm:$0xff]
      %v303 = vld [vmem:[%s1 + $0x268] sm:$0xff]
      %v304 = vld [vmem:[%s1 + $0x270] sm:$0xff]
      %v305 = vld [vmem:[%s1 + $0x278] sm:$0xff]
      %v306 = vld [vmem:[%s1 + $0x280] sm:$0xff]
      %v307 = vld [vmem:[%s1 + $0x288] sm:$0xff]
      %v308 = vld [vmem:[%s1 + $0x290] sm:$0xff]
      %v309 = vld [vmem:[%s1 + $0x298] sm:$0xff]
      %v310 = vld [vmem:[%s1 + $0x2a0] sm:$0xff]
      %v311 = vld [vmem:[%s1 + $0x2a8] sm:$0xff]
      %v312 = vld [vmem:[%s1 + $0x2b0] sm:$0xff]
      %v313 = vld [vmem:[%s1 + $0x2b8] sm:$0xff]
      %v314 = vld [vmem:[%s1 + $0x2c0] sm:$0xff]
      %v315 = vld [vmem:[%s1 + $0x2c8] sm:$0xff]
      %v316 = vld [vmem:[%s1 + $0x2d0] sm:$0xff]
      %v317 = vld [vmem:[%s1 + $0x2d8] sm:$0xff]
      %v318 = vld [vmem:[%s1 + $0x2e0] sm:$0xff]
      %v319 = vld [vmem:[%s1 + $0x2e8] sm:$0xff]
      %v320 = vld [vmem:[%s1 + $0x2f0] sm:$0xff]
      %v321 = vld [vmem:[%s1 + $0x2f8] sm:$0xff]
      %v322 = vld [vmem:[%s1 + $0x300] sm:$0xff]
      %v323 = vld [vmem:[%s1 + $0x308] sm:$0xff]
      %v324 = vld [vmem:[%s1 + $0x310] sm:$0xff]
      %v325 = vld [vmem:[%s1 + $0x318] sm:$0xff]
      %v326 = vld [vmem:[%s1 + $0x320] sm:$0xff]
      %v327 = vld [vmem:[%s1 + $0x328] sm:$0xff]
      %v328 = vld [vmem:[%s1 + $0x330] sm:$0xff]
      %v329 = vld [vmem:[%s1 + $0x338] sm:$0xff]
      %v330 = vld [vmem:[%s1 + $0x340] sm:$0xff]
      %v331 = vld [vmem:[%s1 + $0x348] sm:$0xff]
      %v332 = vld [vmem:[%s1 + $0x350] sm:$0xff]
      %v333 = vld [vmem:[%s1 + $0x358] sm:$0xff]
      %v334 = vld [vmem:[%s1 + $0x360] sm:$0xff]
      %v335 = vld [vmem:[%s1 + $0x368] sm:$0xff]
      %v336 = vld [vmem:[%s1 + $0x370] sm:$0xff]
      %v337 = vld [vmem:[%s1 + $0x378] sm:$0xff]
      %v338 = vld [vmem:[%s1 + $0x380] sm:$0xff]
      %v339 = vld [vmem:[%s1 + $0x388] sm:$0xff]
      %v340 = vld [vmem:[%s1 + $0x390] sm:$0xff]
      %v341 = vld [vmem:[%s1 + $0x398] sm:$0xff]
      %v342 = vld [vmem:[%s1 + $0x3a0] sm:$0xff]
      %v343 = vld [vmem:[%s1 + $0x3a8] sm:$0xff]
      %v344 = vld [vmem:[%s1 + $0x3b0] sm:$0xff]
      %v345 = vld [vmem:[%s1 + $0x3b8] sm:$0xff]
      %v346 = vld [vmem:[%s1 + $0x3c0] sm:$0xff]
      %v347 = vld [vmem:[%s1 + $0x3c8] sm:$0xff]
      %v348 = vld [vmem:[%s1 + $0x3d0] sm:$0xff]
      %v349 = vld [vmem:[%s1 + $0x3d8] sm:$0xff]
      %v350 = vld [vmem:[%s1 + $0x3e0] sm:$0xff]
      %v351 = vld [vmem:[%s1 + $0x3e8] sm:$0xff]
      %v352 = vld [vmem:[%s1 + $0x3f0] sm:$0xff]
      %v353 = vld [vmem:[%s1 + $0x3f8] sm:$0xff]
      %v354 = vld [vmem:[%s1 + $0x400] sm:$0xff]
      %v355 = vld [vmem:[%s1 + $0x408] sm:$0xff]
      %v356 = vld [vmem:[%s1 + $0x410] sm:$0xff]
      %v357 = vld [vmem:[%s1 + $0x418] sm:$0xff]
      %v358 = vld [vmem:[%s1 + $0x420] sm:$0xff]
      %v359 = vld [vmem:[%s1 + $0x428] sm:$0xff]
      %v360 = vld [vmem:[%s1 + $0x430] sm:$0xff]
      %v361 = vld [vmem:[%s1 + $0x438] sm:$0xff]
      %v362 = vld [vmem:[%s1 + $0x440] sm:$0xff]
      %v363 = vld [vmem:[%s1 + $0x448] sm:$0xff]
      %v364 = vld [vmem:[%s1 + $0x450] sm:$0xff]
      %v365 = vld [vmem:[%s1 + $0x458] sm:$0xff]
      %v366 = vld [vmem:[%s1 + $0x460] sm:$0xff]
      %v367 = vld [vmem:[%s1 + $0x468] sm:$0xff]
      %v368 = vld [vmem:[%s1 + $0x470] sm:$0xff]
      %v369 = vld [vmem:[%s1 + $0x478] sm:$0xff]
      %v370 = vld [vmem:[%s2] sm:$0x3]
      %v372 = vlaneseq
      %v373 = vshrl.u32 %v372, 7
      %v374 = vsub.s32 0, %v373
      %v375 = vrot.slane %v370, %v374
      %v376 = vlaneseq
      %v377 = vshrl.u32 %v376, 7
      %v378 = vsub.s32 1, %v377
      %v379 = vrot.slane %v370, %v378
      %v392 = vunpack.c.l.b16 %v216
      %v393 = vunpack.c.h.b16 %v216
      %v394 = vunpack.c.l.b16 %v217
      %v395 = vunpack.c.h.b16 %v217
      %v396 = vunpack.c.l.b16 %v218
      %v397 = vunpack.c.h.b16 %v218
      %v398 = vunpack.c.l.b16 %v219
      %v399 = vunpack.c.h.b16 %v219
      %v400 = vunpack.c.l.b16 %v220
      %v401 = vunpack.c.l.b16 %v221
      %v402 = vunpack.c.h.b16 %v221
      %v403 = vunpack.c.l.b16 %v222
      %v404 = vunpack.c.h.b16 %v222
      %v405 = vunpack.c.l.b16 %v223
      %v406 = vunpack.c.h.b16 %v223
      %v407 = vunpack.c.l.b16 %v224
      %v408 = vunpack.c.h.b16 %v224
      %v409 = vunpack.c.l.b16 %v225
      %v410 = vpack.c.b16 %v401, %v392
      %v411 = vpack.c.b16 %v402, %v393
      %v412 = vpack.c.b16 %v403, %v394
      %v413 = vpack.c.b16 %v404, %v395
      %v414 = vpack.c.b16 %v405, %v396
      %v415 = vpack.c.b16 %v406, %v397
      %v416 = vpack.c.b16 %v407, %v398
      %v417 = vpack.c.b16 %v408, %v399
      %v418 = vpack.c.b16 %v409, %v400
      %v572 = vunpack.c.l.b16 %v226
      %v573 = vunpack.c.h.b16 %v226
      %v574 = vunpack.c.l.b16 %v227
      %v575 = vunpack.c.h.b16 %v227
      %v576 = vunpack.c.l.b16 %v228
      %v577 = vunpack.c.h.b16 %v228
      %v578 = vunpack.c.l.b16 %v229
      %v579 = vunpack.c.h.b16 %v229
      %v580 = vunpack.c.l.b16 %v230
      %v581 = vunpack.c.h.b16 %v230
      %v582 = vunpack.c.l.b16 %v231
      %v583 = vunpack.c.h.b16 %v231
      %v584 = vunpack.c.l.b16 %v232
      %v585 = vunpack.c.h.b16 %v232
      %v586 = vunpack.c.l.b16 %v233
      %v587 = vunpack.c.h.b16 %v233
      %v588 = vunpack.c.l.b16 %v234
      %v589 = vunpack.c.h.b16 %v234
      %v590 = vunpack.c.l.b16 %v235
      %v591 = vunpack.c.h.b16 %v235
      %v592 = vunpack.c.l.b16 %v236
      %v593 = vunpack.c.h.b16 %v236
      %v594 = vunpack.c.l.b16 %v237
      %v595 = vunpack.c.h.b16 %v237
      %v596 = vunpack.c.l.b16 %v238
      %v597 = vunpack.c.h.b16 %v238
      %v598 = vunpack.c.l.b16 %v239
      %v599 = vunpack.c.h.b16 %v239
      %v600 = vunpack.c.l.b16 %v240
      %v601 = vunpack.c.h.b16 %v240
      %v602 = vunpack.c.l.b16 %v241
      %v603 = vunpack.c.h.b16 %v241
      %v604 = vunpack.c.l.b16 %v242
      %v605 = vunpack.c.h.b16 %v242
      %v606 = vunpack.c.l.b16 %v243
      %v607 = vunpack.c.h.b16 %v243
      %v608 = vunpack.c.l.b16 %v244
      %v609 = vunpack.c.h.b16 %v244
      %v610 = vunpack.c.l.b16 %v245
      %v611 = vunpack.c.h.b16 %v245
      %v612 = vunpack.c.l.b16 %v246
      %v613 = vunpack.c.h.b16 %v246
      %v614 = vunpack.c.l.b16 %v247
      %v615 = vunpack.c.h.b16 %v247
      %v616 = vunpack.c.l.b16 %v248
      %v617 = vunpack.c.h.b16 %v248
      %v618 = vunpack.c.l.b16 %v249
      %v619 = vunpack.c.h.b16 %v249
      %v620 = vunpack.c.l.b16 %v250
      %v621 = vunpack.c.h.b16 %v250
      %v622 = vunpack.c.l.b16 %v251
      %v623 = vunpack.c.h.b16 %v251
      %v624 = vunpack.c.l.b16 %v252
      %v625 = vunpack.c.h.b16 %v252
      %v626 = vunpack.c.l.b16 %v253
      %v627 = vunpack.c.h.b16 %v253
      %v628 = vunpack.c.l.b16 %v254
      %v629 = vunpack.c.h.b16 %v254
      %v630 = vunpack.c.l.b16 %v255
      %v631 = vunpack.c.h.b16 %v255
      %v632 = vunpack.c.l.b16 %v256
      %v633 = vunpack.c.h.b16 %v256
      %v634 = vunpack.c.l.b16 %v257
      %v635 = vunpack.c.h.b16 %v257
      %v636 = vunpack.c.l.b16 %v258
      %v637 = vunpack.c.h.b16 %v258
      %v638 = vunpack.c.l.b16 %v259
      %v639 = vunpack.c.h.b16 %v259
      %v640 = vunpack.c.l.b16 %v260
      %v641 = vunpack.c.h.b16 %v260
      %v642 = vunpack.c.l.b16 %v261
      %v643 = vunpack.c.h.b16 %v261
      %v644 = vunpack.c.l.b16 %v262
      %v645 = vunpack.c.h.b16 %v262
      %v646 = vunpack.c.l.b16 %v263
      %v647 = vunpack.c.h.b16 %v263
      %v648 = vunpack.c.l.b16 %v264
      %v649 = vunpack.c.h.b16 %v264
      %v650 = vunpack.c.l.b16 %v265
      %v651 = vunpack.c.h.b16 %v265
      %v652 = vunpack.c.l.b16 %v266
      %v653 = vunpack.c.h.b16 %v266
      %v654 = vunpack.c.l.b16 %v267
      %v655 = vunpack.c.h.b16 %v267
      %v656 = vunpack.c.l.b16 %v268
      %v657 = vunpack.c.h.b16 %v268
      %v658 = vunpack.c.l.b16 %v269
      %v659 = vunpack.c.h.b16 %v269
      %v660 = vunpack.c.l.b16 %v270
      %v661 = vunpack.c.h.b16 %v270
      %v662 = vunpack.c.l.b16 %v271
      %v663 = vunpack.c.h.b16 %v271
      %v664 = vunpack.c.l.b16 %v272
      %v665 = vunpack.c.h.b16 %v272
      %v666 = vunpack.c.l.b16 %v273
      %v667 = vunpack.c.h.b16 %v273
      %v668 = vunpack.c.l.b16 %v274
      %v669 = vunpack.c.h.b16 %v274
      %v670 = vunpack.c.l.b16 %v275
      %v671 = vunpack.c.h.b16 %v275
      %v672 = vunpack.c.l.b16 %v276
      %v673 = vunpack.c.h.b16 %v276
      %v674 = vunpack.c.l.b16 %v277
      %v675 = vunpack.c.h.b16 %v277
      %v676 = vunpack.c.l.b16 %v278
      %v677 = vunpack.c.h.b16 %v278
      %v678 = vunpack.c.l.b16 %v279
      %v679 = vunpack.c.h.b16 %v279
      %v680 = vunpack.c.l.b16 %v280
      %v681 = vunpack.c.h.b16 %v280
      %v682 = vunpack.c.l.b16 %v281
      %v683 = vunpack.c.h.b16 %v281
      %v684 = vunpack.c.l.b16 %v282
      %v685 = vunpack.c.h.b16 %v282
      %v686 = vunpack.c.l.b16 %v283
      %v687 = vunpack.c.h.b16 %v283
      %v688 = vunpack.c.l.b16 %v284
      %v689 = vunpack.c.h.b16 %v284
      %v690 = vunpack.c.l.b16 %v285
      %v691 = vunpack.c.h.b16 %v285
      %v692 = vunpack.c.l.b16 %v286
      %v693 = vunpack.c.h.b16 %v286
      %v694 = vunpack.c.l.b16 %v287
      %v695 = vunpack.c.h.b16 %v287
      %v696 = vunpack.c.l.b16 %v288
      %v697 = vunpack.c.h.b16 %v288
      %v698 = vunpack.c.l.b16 %v289
      %v699 = vunpack.c.h.b16 %v289
      %v700 = vunpack.c.l.b16 %v290
      %v701 = vunpack.c.h.b16 %v290
      %v702 = vunpack.c.l.b16 %v291
      %v703 = vunpack.c.h.b16 %v291
      %v704 = vunpack.c.l.b16 %v292
      %v705 = vunpack.c.h.b16 %v292
      %v706 = vunpack.c.l.b16 %v293
      %v707 = vunpack.c.h.b16 %v293
      %v708 = vunpack.c.l.b16 %v294
      %v709 = vunpack.c.h.b16 %v294
      %v710 = vunpack.c.l.b16 %v295
      %v711 = vunpack.c.h.b16 %v295
      %v712 = vunpack.c.l.b16 %v296
      %v713 = vunpack.c.h.b16 %v296
      %v714 = vunpack.c.l.b16 %v297
      %v715 = vunpack.c.h.b16 %v297
      %v716 = vunpack.c.l.b16 %v298
      %v717 = vunpack.c.h.b16 %v298
      %v718 = vunpack.c.l.b16 %v299
      %v719 = vunpack.c.h.b16 %v299
      %v720 = vunpack.c.l.b16 %v300
      %v721 = vunpack.c.h.b16 %v300
      %v722 = vunpack.c.l.b16 %v301
      %v723 = vunpack.c.h.b16 %v301
      %v724 = vunpack.c.l.b16 %v302
      %v725 = vunpack.c.h.b16 %v302
      %v726 = vunpack.c.l.b16 %v303
      %v727 = vunpack.c.h.b16 %v303
      %v728 = vunpack.c.l.b16 %v304
      %v729 = vunpack.c.h.b16 %v304
      %v730 = vunpack.c.l.b16 %v305
      %v731 = vunpack.c.h.b16 %v305
      %v732 = vunpack.c.l.b16 %v306
      %v733 = vunpack.c.h.b16 %v306
      %v734 = vunpack.c.l.b16 %v307
      %v735 = vunpack.c.h.b16 %v307
      %v736 = vunpack.c.l.b16 %v308
      %v737 = vunpack.c.h.b16 %v308
      %v738 = vunpack.c.l.b16 %v309
      %v739 = vunpack.c.h.b16 %v309
      %v740 = vunpack.c.l.b16 %v310
      %v741 = vunpack.c.h.b16 %v310
      %v742 = vunpack.c.l.b16 %v311
      %v743 = vunpack.c.h.b16 %v311
      %v744 = vunpack.c.l.b16 %v312
      %v745 = vunpack.c.h.b16 %v312
      %v746 = vunpack.c.l.b16 %v313
      %v747 = vunpack.c.h.b16 %v313
      %v748 = vunpack.c.l.b16 %v314
      %v749 = vunpack.c.h.b16 %v314
      %v750 = vunpack.c.l.b16 %v315
      %v751 = vunpack.c.h.b16 %v315
      %v752 = vunpack.c.l.b16 %v316
      %v753 = vunpack.c.h.b16 %v316
      %v754 = vunpack.c.l.b16 %v317
      %v755 = vunpack.c.h.b16 %v317
      %v756 = vunpack.c.l.b16 %v318
      %v757 = vunpack.c.h.b16 %v318
      %v758 = vunpack.c.l.b16 %v319
      %v759 = vunpack.c.h.b16 %v319
      %v760 = vunpack.c.l.b16 %v320
      %v761 = vunpack.c.h.b16 %v320
      %v762 = vunpack.c.l.b16 %v321
      %v763 = vunpack.c.h.b16 %v321
      %v764 = vunpack.c.l.b16 %v322
      %v765 = vunpack.c.h.b16 %v322
      %v766 = vunpack.c.l.b16 %v323
      %v767 = vunpack.c.h.b16 %v323
      %v768 = vunpack.c.l.b16 %v324
      %v769 = vunpack.c.h.b16 %v324
      %v770 = vunpack.c.l.b16 %v325
      %v771 = vunpack.c.h.b16 %v325
      %v772 = vunpack.c.l.b16 %v326
      %v773 = vunpack.c.h.b16 %v326
      %v774 = vunpack.c.l.b16 %v327
      %v775 = vunpack.c.h.b16 %v327
      %v776 = vunpack.c.l.b16 %v328
      %v777 = vunpack.c.h.b16 %v328
      %v778 = vunpack.c.l.b16 %v329
      %v779 = vunpack.c.h.b16 %v329
      %v780 = vunpack.c.l.b16 %v330
      %v781 = vunpack.c.h.b16 %v330
      %v782 = vunpack.c.l.b16 %v331
      %v783 = vunpack.c.h.b16 %v331
      %v784 = vunpack.c.l.b16 %v332
      %v785 = vunpack.c.h.b16 %v332
      %v786 = vunpack.c.l.b16 %v333
      %v787 = vunpack.c.h.b16 %v333
      %v788 = vunpack.c.l.b16 %v334
      %v789 = vunpack.c.h.b16 %v334
      %v790 = vunpack.c.l.b16 %v335
      %v791 = vunpack.c.h.b16 %v335
      %v792 = vunpack.c.l.b16 %v336
      %v793 = vunpack.c.h.b16 %v336
      %v794 = vunpack.c.l.b16 %v337
      %v795 = vunpack.c.h.b16 %v337
      %v796 = vunpack.c.l.b16 %v338
      %v797 = vunpack.c.h.b16 %v338
      %v798 = vunpack.c.l.b16 %v339
      %v799 = vunpack.c.h.b16 %v339
      %v800 = vunpack.c.l.b16 %v340
      %v801 = vunpack.c.h.b16 %v340
      %v802 = vunpack.c.l.b16 %v341
      %v803 = vunpack.c.h.b16 %v341
      %v804 = vunpack.c.l.b16 %v342
      %v805 = vunpack.c.h.b16 %v342
      %v806 = vunpack.c.l.b16 %v343
      %v807 = vunpack.c.h.b16 %v343
      %v808 = vunpack.c.l.b16 %v344
      %v809 = vunpack.c.h.b16 %v344
      %v810 = vunpack.c.l.b16 %v345
      %v811 = vunpack.c.h.b16 %v345
      %v812 = vunpack.c.l.b16 %v346
      %v813 = vunpack.c.h.b16 %v346
      %v814 = vunpack.c.l.b16 %v347
      %v815 = vunpack.c.h.b16 %v347
      %v816 = vunpack.c.l.b16 %v348
      %v817 = vunpack.c.h.b16 %v348
      %v818 = vunpack.c.l.b16 %v349
      %v819 = vunpack.c.h.b16 %v349
      %v820 = vunpack.c.l.b16 %v350
      %v821 = vunpack.c.h.b16 %v350
      %v822 = vunpack.c.l.b16 %v351
      %v823 = vunpack.c.h.b16 %v351
      %v824 = vunpack.c.l.b16 %v352
      %v825 = vunpack.c.h.b16 %v352
      %v826 = vunpack.c.l.b16 %v353
      %v827 = vunpack.c.h.b16 %v353
      %v828 = vunpack.c.l.b16 %v354
      %v829 = vunpack.c.h.b16 %v354
      %v830 = vunpack.c.l.b16 %v355
      %v831 = vunpack.c.h.b16 %v355
      %v832 = vunpack.c.l.b16 %v356
      %v833 = vunpack.c.h.b16 %v356
      %v834 = vunpack.c.l.b16 %v357
      %v835 = vunpack.c.h.b16 %v357
      %v836 = vunpack.c.l.b16 %v358
      %v837 = vunpack.c.h.b16 %v358
      %v838 = vunpack.c.l.b16 %v359
      %v839 = vunpack.c.h.b16 %v359
      %v840 = vunpack.c.l.b16 %v360
      %v841 = vunpack.c.h.b16 %v360
      %v842 = vunpack.c.l.b16 %v361
      %v843 = vunpack.c.h.b16 %v361
      %v844 = vunpack.c.l.b16 %v362
      %v845 = vunpack.c.h.b16 %v362
      %v846 = vunpack.c.l.b16 %v363
      %v847 = vunpack.c.h.b16 %v363
      %v848 = vunpack.c.l.b16 %v364
      %v849 = vunpack.c.h.b16 %v364
      %v850 = vunpack.c.l.b16 %v365
      %v851 = vunpack.c.h.b16 %v365
      %v852 = vunpack.c.l.b16 %v366
      %v853 = vunpack.c.h.b16 %v366
      %v854 = vunpack.c.l.b16 %v367
      %v855 = vunpack.c.h.b16 %v367
      %v856 = vunpack.c.l.b16 %v368
      %v857 = vunpack.c.h.b16 %v368
      %v858 = vunpack.c.l.b16 %v369
      %v859 = vunpack.c.h.b16 %v369
      %v860 = vpack.c.b16 %v574, %v572
      %v861 = vpack.c.b16 %v575, %v573
      %v862 = vpack.c.b16 %v578, %v576
      %v863 = vpack.c.b16 %v579, %v577
      %v864 = vpack.c.b16 %v582, %v580
      %v865 = vpack.c.b16 %v583, %v581
      %v866 = vpack.c.b16 %v586, %v584
      %v867 = vpack.c.b16 %v587, %v585
      %v868 = vpack.c.b16 %v590, %v588
      %v869 = vpack.c.b16 %v591, %v589
      %v870 = vpack.c.b16 %v594, %v592
      %v871 = vpack.c.b16 %v595, %v593
      %v872 = vpack.c.b16 %v598, %v596
      %v873 = vpack.c.b16 %v599, %v597
      %v874 = vpack.c.b16 %v602, %v600
      %v875 = vpack.c.b16 %v603, %v601
      %v876 = vpack.c.b16 %v606, %v604
      %v877 = vpack.c.b16 %v607, %v605
      %v878 = vpack.c.b16 %v610, %v608
      %v879 = vpack.c.b16 %v611, %v609
      %v880 = vpack.c.b16 %v614, %v612
      %v881 = vpack.c.b16 %v615, %v613
      %v882 = vpack.c.b16 %v618, %v616
      %v883 = vpack.c.b16 %v619, %v617
      %v884 = vpack.c.b16 %v622, %v620
      %v885 = vpack.c.b16 %v623, %v621
      %v886 = vpack.c.b16 %v626, %v624
      %v887 = vpack.c.b16 %v627, %v625
      %v888 = vpack.c.b16 %v630, %v628
      %v889 = vpack.c.b16 %v631, %v629
      %v890 = vpack.c.b16 %v634, %v632
      %v891 = vpack.c.b16 %v635, %v633
      %v892 = vpack.c.b16 %v638, %v636
      %v893 = vpack.c.b16 %v639, %v637
      %v894 = vpack.c.b16 %v642, %v640
      %v895 = vpack.c.b16 %v643, %v641
      %v896 = vpack.c.b16 %v646, %v644
      %v897 = vpack.c.b16 %v647, %v645
      %v898 = vpack.c.b16 %v650, %v648
      %v899 = vpack.c.b16 %v651, %v649
      %v900 = vpack.c.b16 %v654, %v652
      %v901 = vpack.c.b16 %v655, %v653
      %v902 = vpack.c.b16 %v658, %v656
      %v903 = vpack.c.b16 %v659, %v657
      %v904 = vpack.c.b16 %v662, %v660
      %v905 = vpack.c.b16 %v663, %v661
      %v906 = vpack.c.b16 %v666, %v664
      %v907 = vpack.c.b16 %v667, %v665
      %v908 = vpack.c.b16 %v670, %v668
      %v909 = vpack.c.b16 %v671, %v669
      %v910 = vpack.c.b16 %v674, %v672
      %v911 = vpack.c.b16 %v675, %v673
      %v912 = vpack.c.b16 %v678, %v676
      %v913 = vpack.c.b16 %v679, %v677
      %v914 = vpack.c.b16 %v682, %v680
      %v915 = vpack.c.b16 %v683, %v681
      %v916 = vpack.c.b16 %v686, %v684
      %v917 = vpack.c.b16 %v687, %v685
      %v918 = vpack.c.b16 %v690, %v688
      %v919 = vpack.c.b16 %v691, %v689
      %v920 = vpack.c.b16 %v694, %v692
      %v921 = vpack.c.b16 %v695, %v693
      %v922 = vpack.c.b16 %v698, %v696
      %v923 = vpack.c.b16 %v699, %v697
      %v924 = vpack.c.b16 %v702, %v700
      %v925 = vpack.c.b16 %v703, %v701
      %v926 = vpack.c.b16 %v706, %v704
      %v927 = vpack.c.b16 %v707, %v705
      %v928 = vpack.c.b16 %v710, %v708
      %v929 = vpack.c.b16 %v711, %v709
      %v930 = vpack.c.b16 %v714, %v712
      %v931 = vpack.c.b16 %v715, %v713
      %v932 = vpack.c.b16 %v718, %v716
      %v933 = vpack.c.b16 %v719, %v717
      %v934 = vpack.c.b16 %v722, %v720
      %v935 = vpack.c.b16 %v723, %v721
      %v936 = vpack.c.b16 %v726, %v724
      %v937 = vpack.c.b16 %v727, %v725
      %v938 = vpack.c.b16 %v730, %v728
      %v939 = vpack.c.b16 %v731, %v729
      %v940 = vpack.c.b16 %v734, %v732
      %v941 = vpack.c.b16 %v735, %v733
      %v942 = vpack.c.b16 %v738, %v736
      %v943 = vpack.c.b16 %v739, %v737
      %v944 = vpack.c.b16 %v742, %v740
      %v945 = vpack.c.b16 %v743, %v741
      %v946 = vpack.c.b16 %v746, %v744
      %v947 = vpack.c.b16 %v747, %v745
      %v948 = vpack.c.b16 %v750, %v748
      %v949 = vpack.c.b16 %v751, %v749
      %v950 = vpack.c.b16 %v754, %v752
      %v951 = vpack.c.b16 %v755, %v753
      %v952 = vpack.c.b16 %v758, %v756
      %v953 = vpack.c.b16 %v759, %v757
      %v954 = vpack.c.b16 %v762, %v760
      %v955 = vpack.c.b16 %v763, %v761
      %v956 = vpack.c.b16 %v766, %v764
      %v957 = vpack.c.b16 %v767, %v765
      %v958 = vpack.c.b16 %v770, %v768
      %v959 = vpack.c.b16 %v771, %v769
      %v960 = vpack.c.b16 %v774, %v772
      %v961 = vpack.c.b16 %v775, %v773
      %v962 = vpack.c.b16 %v778, %v776
      %v963 = vpack.c.b16 %v779, %v777
      %v964 = vpack.c.b16 %v782, %v780
      %v965 = vpack.c.b16 %v783, %v781
      %v966 = vpack.c.b16 %v786, %v784
      %v967 = vpack.c.b16 %v787, %v785
      %v968 = vpack.c.b16 %v790, %v788
      %v969 = vpack.c.b16 %v791, %v789
      %v970 = vpack.c.b16 %v794, %v792
      %v971 = vpack.c.b16 %v795, %v793
      %v972 = vpack.c.b16 %v798, %v796
      %v973 = vpack.c.b16 %v799, %v797
      %v974 = vpack.c.b16 %v802, %v800
      %v975 = vpack.c.b16 %v803, %v801
      %v976 = vpack.c.b16 %v806, %v804
      %v977 = vpack.c.b16 %v807, %v805
      %v978 = vpack.c.b16 %v810, %v808
      %v979 = vpack.c.b16 %v811, %v809
      %v980 = vpack.c.b16 %v814, %v812
      %v981 = vpack.c.b16 %v815, %v813
      %v982 = vpack.c.b16 %v818, %v816
      %v983 = vpack.c.b16 %v819, %v817
      %v984 = vpack.c.b16 %v822, %v820
      %v985 = vpack.c.b16 %v823, %v821
      %v986 = vpack.c.b16 %v826, %v824
      %v987 = vpack.c.b16 %v827, %v825
      %v988 = vpack.c.b16 %v830, %v828
      %v989 = vpack.c.b16 %v831, %v829
      %v990 = vpack.c.b16 %v834, %v832
      %v991 = vpack.c.b16 %v835, %v833
      %v992 = vpack.c.b16 %v838, %v836
      %v993 = vpack.c.b16 %v839, %v837
      %v994 = vpack.c.b16 %v842, %v840
      %v995 = vpack.c.b16 %v843, %v841
      %v996 = vpack.c.b16 %v846, %v844
      %v997 = vpack.c.b16 %v847, %v845
      %v998 = vpack.c.b16 %v850, %v848
      %v999 = vpack.c.b16 %v851, %v849
      %v1000 = vpack.c.b16 %v854, %v852
      %v1001 = vpack.c.b16 %v855, %v853
      %v1002 = vpack.c.b16 %v858, %v856
      %v1003 = vpack.c.b16 %v859, %v857
      %1148 = vmatprep.subr.bf16.mxu0 %v875
      %1149 = vmatpush1.bf16.msra.mxu0 %v874
      %1150 = vmatprep.subr.bf16.mxu0 %v873
      %1151 = vmatpush1.bf16.msra.mxu0 %v872
      %1152 = vmatprep.subr.bf16.mxu0 %v871
      %1153 = vmatpush1.bf16.msra.mxu0 %v870
      %1154 = vmatprep.subr.bf16.mxu0 %v869
      %1155 = vmatpush1.bf16.msra.mxu0 %v868
      %1156 = vmatprep.subr.bf16.mxu0 %v867
      %1157 = vmatpush1.bf16.msra.mxu0 %v866
      %1158 = vmatprep.subr.bf16.mxu0 %v865
      %1159 = vmatpush1.bf16.msra.mxu0 %v864
      %1160 = vmatprep.subr.bf16.mxu0 %v863
      %1161 = vmatpush1.bf16.msra.mxu0 %v862
      %1162 = vmatprep.subr.bf16.mxu0 %v861
      %1163 = vmatpush1.bf16.msra.mxu0 %v860
      %1164 = vmatprep.subr.bf16.mxu0 %v891
      %1165 = vmatpush2.bf16.msra.mxu0 %v890
      %1166 = vmatprep.subr.bf16.mxu0 %v889
      %1167 = vmatpush2.bf16.msra.mxu0 %v888
      %1168 = vmatprep.subr.bf16.mxu0 %v887
      %1169 = vmatpush2.bf16.msra.mxu0 %v886
      %1170 = vmatprep.subr.bf16.mxu0 %v885
      %1171 = vmatpush2.bf16.msra.mxu0 %v884
      %1172 = vmatprep.subr.bf16.mxu0 %v883
      %1173 = vmatpush2.bf16.msra.mxu0 %v882
      %1174 = vmatprep.subr.bf16.mxu0 %v881
      %1175 = vmatpush2.bf16.msra.mxu0 %v880
      %1176 = vmatprep.subr.bf16.mxu0 %v879
      %1177 = vmatpush2.bf16.msra.mxu0 %v878
      %1178 = vmatprep.subr.bf16.mxu0 %v877
      %1179 = vmatpush2.bf16.msra.mxu0 %v876
      %1180 = vmatprep.mubr.bf16.mxu0 %v411
      %1181 = vmatmul.mubr.bf16.gmra.mxu0 %v410
      %v1182 = vpop.f32.mrf.mxu0
      %v1183 = vadd.f32 %v375, %v1182
      %v1184 = vpop.f32.mrf.mxu0
      %v1185 = vadd.f32 %v379, %v1184
      %v1186 = vpop.f32.mrf.mxu0
      %v1187 = vadd.f32 %v375, %v1186
      %v1188 = vpop.f32.mrf.mxu0
      %v1189 = vadd.f32 %v379, %v1188
      %1190 = vdwg.mxu0
      %1191 = vmatprep.subr.bf16.mxu0 %v907
      %1192 = vmatpush1.bf16.msra.mxu0 %v906
      %1193 = vmatprep.subr.bf16.mxu0 %v905
      %1194 = vmatpush1.bf16.msra.mxu0 %v904
      %1195 = vmatprep.subr.bf16.mxu0 %v903
      %1196 = vmatpush1.bf16.msra.mxu0 %v902
      %1197 = vmatprep.subr.bf16.mxu0 %v901
      %1198 = vmatpush1.bf16.msra.mxu0 %v900
      %1199 = vmatprep.subr.bf16.mxu0 %v899
      %1200 = vmatpush1.bf16.msra.mxu0 %v898
      %1201 = vmatprep.subr.bf16.mxu0 %v897
      %1202 = vmatpush1.bf16.msra.mxu0 %v896
      %1203 = vmatprep.subr.bf16.mxu0 %v895
      %1204 = vmatpush1.bf16.msra.mxu0 %v894
      %1205 = vmatprep.subr.bf16.mxu0 %v893
      %1206 = vmatpush1.bf16.msra.mxu0 %v892
      %1207 = vmatprep.subr.bf16.mxu0 %v923
      %1208 = vmatpush2.bf16.msra.mxu0 %v922
      %1209 = vmatprep.subr.bf16.mxu0 %v921
      %1210 = vmatpush2.bf16.msra.mxu0 %v920
      %1211 = vmatprep.subr.bf16.mxu0 %v919
      %1212 = vmatpush2.bf16.msra.mxu0 %v918
      %1213 = vmatprep.subr.bf16.mxu0 %v917
      %1214 = vmatpush2.bf16.msra.mxu0 %v916
      %1215 = vmatprep.subr.bf16.mxu0 %v915
      %1216 = vmatpush2.bf16.msra.mxu0 %v914
      %1217 = vmatprep.subr.bf16.mxu0 %v913
      %1218 = vmatpush2.bf16.msra.mxu0 %v912
      %1219 = vmatprep.subr.bf16.mxu0 %v911
      %1220 = vmatpush2.bf16.msra.mxu0 %v910
      %1221 = vmatprep.subr.bf16.mxu0 %v909
      %1222 = vmatpush2.bf16.msra.mxu0 %v908
      %1223 = vmatprep.mubr.bf16.mxu0 %v413
      %1224 = vmatmul.mubr.bf16.gmra.mxu0 %v412
      %v1225 = vpop.f32.mrf.mxu0
      %v1226 = vadd.f32 %v1183, %v1225
      %v1227 = vpop.f32.mrf.mxu0
      %v1228 = vadd.f32 %v1185, %v1227
      %v1229 = vpop.f32.mrf.mxu0
      %v1230 = vadd.f32 %v1187, %v1229
      %v1231 = vpop.f32.mrf.mxu0
      %v1232 = vadd.f32 %v1189, %v1231
      %1233 = vdwg.mxu0
      %1234 = vmatprep.subr.bf16.mxu0 %v939
      %1235 = vmatpush1.bf16.msra.mxu0 %v938
      %1236 = vmatprep.subr.bf16.mxu0 %v937
      %1237 = vmatpush1.bf16.msra.mxu0 %v936
      %1238 = vmatprep.subr.bf16.mxu0 %v935
      %1239 = vmatpush1.bf16.msra.mxu0 %v934
      %1240 = vmatprep.subr.bf16.mxu0 %v933
      %1241 = vmatpush1.bf16.msra.mxu0 %v932
      %1242 = vmatprep.subr.bf16.mxu0 %v931
      %1243 = vmatpush1.bf16.msra.mxu0 %v930
      %1244 = vmatprep.subr.bf16.mxu0 %v929
      %1245 = vmatpush1.bf16.msra.mxu0 %v928
      %1246 = vmatprep.subr.bf16.mxu0 %v927
      %1247 = vmatpush1.bf16.msra.mxu0 %v926
      %1248 = vmatprep.subr.bf16.mxu0 %v925
      %1249 = vmatpush1.bf16.msra.mxu0 %v924
      %1250 = vmatprep.subr.bf16.mxu0 %v955
      %1251 = vmatpush2.bf16.msra.mxu0 %v954
      %1252 = vmatprep.subr.bf16.mxu0 %v953
      %1253 = vmatpush2.bf16.msra.mxu0 %v952
      %1254 = vmatprep.subr.bf16.mxu0 %v951
      %1255 = vmatpush2.bf16.msra.mxu0 %v950
      %1256 = vmatprep.subr.bf16.mxu0 %v949
      %1257 = vmatpush2.bf16.msra.mxu0 %v948
      %1258 = vmatprep.subr.bf16.mxu0 %v947
      %1259 = vmatpush2.bf16.msra.mxu0 %v946
      %1260 = vmatprep.subr.bf16.mxu0 %v945
      %1261 = vmatpush2.bf16.msra.mxu0 %v944
      %1262 = vmatprep.subr.bf16.mxu0 %v943
      %1263 = vmatpush2.bf16.msra.mxu0 %v942
      %1264 = vmatprep.subr.bf16.mxu0 %v941
      %1265 = vmatpush2.bf16.msra.mxu0 %v940
      %1266 = vmatprep.mubr.bf16.mxu0 %v415
      %1267 = vmatmul.mubr.bf16.gmra.mxu0 %v414
      %v1268 = vpop.f32.mrf.mxu0
      %v1269 = vadd.f32 %v1226, %v1268
      %v1270 = vpop.f32.mrf.mxu0
      %v1271 = vadd.f32 %v1228, %v1270
      %v1272 = vpop.f32.mrf.mxu0
      %v1273 = vadd.f32 %v1230, %v1272
      %v1274 = vpop.f32.mrf.mxu0
      %v1275 = vadd.f32 %v1232, %v1274
      %1276 = vdwg.mxu0
      %1277 = vmatprep.subr.bf16.mxu0 %v971
      %1278 = vmatpush1.bf16.msra.mxu0 %v970
      %1279 = vmatprep.subr.bf16.mxu0 %v969
      %1280 = vmatpush1.bf16.msra.mxu0 %v968
      %1281 = vmatprep.subr.bf16.mxu0 %v967
      %1282 = vmatpush1.bf16.msra.mxu0 %v966
      %1283 = vmatprep.subr.bf16.mxu0 %v965
      %1284 = vmatpush1.bf16.msra.mxu0 %v964
      %1285 = vmatprep.subr.bf16.mxu0 %v963
      %1286 = vmatpush1.bf16.msra.mxu0 %v962
      %1287 = vmatprep.subr.bf16.mxu0 %v961
      %1288 = vmatpush1.bf16.msra.mxu0 %v960
      %1289 = vmatprep.subr.bf16.mxu0 %v959
      %1290 = vmatpush1.bf16.msra.mxu0 %v958
      %1291 = vmatprep.subr.bf16.mxu0 %v957
      %1292 = vmatpush1.bf16.msra.mxu0 %v956
      %1293 = vmatprep.subr.bf16.mxu0 %v987
      %1294 = vmatpush2.bf16.msra.mxu0 %v986
      %1295 = vmatprep.subr.bf16.mxu0 %v985
      %1296 = vmatpush2.bf16.msra.mxu0 %v984
      %1297 = vmatprep.subr.bf16.mxu0 %v983
      %1298 = vmatpush2.bf16.msra.mxu0 %v982
      %1299 = vmatprep.subr.bf16.mxu0 %v981
      %1300 = vmatpush2.bf16.msra.mxu0 %v980
      %1301 = vmatprep.subr.bf16.mxu0 %v979
      %1302 = vmatpush2.bf16.msra.mxu0 %v978
      %1303 = vmatprep.subr.bf16.mxu0 %v977
      %1304 = vmatpush2.bf16.msra.mxu0 %v976
      %1305 = vmatprep.subr.bf16.mxu0 %v975
      %1306 = vmatpush2.bf16.msra.mxu0 %v974
      %1307 = vmatprep.subr.bf16.mxu0 %v973
      %1308 = vmatpush2.bf16.msra.mxu0 %v972
      %1309 = vmatprep.mubr.bf16.mxu0 %v417
      %1310 = vmatmul.mubr.bf16.gmra.mxu0 %v416
      %v1311 = vpop.f32.mrf.mxu0
      %v1312 = vadd.f32 %v1269, %v1311
      %v1313 = vpop.f32.mrf.mxu0
      %v1314 = vadd.f32 %v1271, %v1313
      %v1315 = vpop.f32.mrf.mxu0
      %v1316 = vadd.f32 %v1273, %v1315
      %v1317 = vpop.f32.mrf.mxu0
      %v1318 = vadd.f32 %v1275, %v1317
      %1319 = vdwg.mxu0
      %1320 = vmatprep.subr.bf16.mxu0 %v1003
      %1321 = vmatpush1.bf16.msra.mxu0 %v1002
      %1322 = vmatprep.subr.bf16.mxu0 %v1001
      %1323 = vmatpush1.bf16.msra.mxu0 %v1000
      %1324 = vmatprep.subr.bf16.mxu0 %v999
      %1325 = vmatpush1.bf16.msra.mxu0 %v998
      %1326 = vmatprep.subr.bf16.mxu0 %v997
      %1327 = vmatpush1.bf16.msra.mxu0 %v996
      %1328 = vmatprep.subr.bf16.mxu0 %v995
      %1329 = vmatpush1.bf16.msra.mxu0 %v994
      %1330 = vmatprep.subr.bf16.mxu0 %v993
      %1331 = vmatpush1.bf16.msra.mxu0 %v992
      %1332 = vmatprep.subr.bf16.mxu0 %v991
      %1333 = vmatpush1.bf16.msra.mxu0 %v990
      %1334 = vmatprep.subr.bf16.mxu0 %v989
      %1335 = vmatpush1.bf16.msra.mxu0 %v988
      %1336 = vmatprep.subr.bf16.mxu0 0
      %1337 = vmatpush2.bf16.msra.mxu0 0
      %1338 = vmatprep.subr.bf16.mxu0 0
      %1339 = vmatpush2.bf16.msra.mxu0 0
      %1340 = vmatprep.subr.bf16.mxu0 0
      %1341 = vmatpush2.bf16.msra.mxu0 0
      %1342 = vmatprep.subr.bf16.mxu0 0
      %1343 = vmatpush2.bf16.msra.mxu0 0
      %1344 = vmatprep.subr.bf16.mxu0 0
      %1345 = vmatpush2.bf16.msra.mxu0 0
      %1346 = vmatprep.subr.bf16.mxu0 0
      %1347 = vmatpush2.bf16.msra.mxu0 0
      %1348 = vmatprep.subr.bf16.mxu0 0
      %1349 = vmatpush2.bf16.msra.mxu0 0
      %1350 = vmatprep.subr.bf16.mxu0 0
      %1351 = vmatpush2.bf16.msra.mxu0 0
      %1352 = vmatprep.mubr.bf16.mxu0 0
      %1353 = vmatmul.mubr.bf16.gmra.mxu0 %v418
      %v1354 = vpop.f32.mrf.mxu0
      %v1355 = vadd.f32 %v1312, %v1354
      %v1356 = vpop.f32.mrf.mxu0
      %v1357 = vadd.f32 %v1314, %v1356
      %v1358 = vpop.f32.mrf.mxu0
      %v1359 = vadd.f32 %v1316, %v1358
      %v1360 = vpop.f32.mrf.mxu0
      %v1361 = vadd.f32 %v1318, %v1360
      %1362 = vdwg.mxu0
      %v1363 = vmax.f32 %v1355, 0.0
      %v1364 = vmax.f32 %v1357, 0.0
      %v1365 = vmax.f32 %v1359, 0.0
      %v1366 = vmax.f32 %v1361, 0.0
      %v1367 = vpack.c.bf16 %v1365, %v1363
      %v1368 = vpack.c.bf16 %v1366, %v1364
      %v1371 = vunpack.c.l.b16 %v1367
      %v1372 = vunpack.c.l.b16 %v1368
      %v1373 = vunpack.c.h.b16 %v1367
      %v1374 = vunpack.c.h.b16 %v1368
      %v1375 = vpack.c.b16 %v1372, %v1371
      %v1376 = vpack.c.b16 %v1374, %v1373
      %1379 = vst [vmem:[%s213] sm:$0xff] %v1375
      %1380 = vst [vmem:[%s213 + $0x8] sm:$0xff] %v1376
      %s1381 = smul.u32 2, %s19
      %p1382 = scmp.lt.s32.totalorder %s18, 1
      %s1383 = scalar_select %p1382, %s18, 1
      %p1384 = scmp.lt.s32.totalorder %s1381, 1
      %s1385 = scalar_select %p1384, %s1381, 1
      %s1386 = smul.addr %s1385, 2
      %s1387 = smul.addr %s1383, 4
      %s1388 = sadd.s32 %s1386, %s1387
      %s1389 = smul.addr %s1388, 4
      %s1390 = scalar_lea.vmem %s3, %s1389
      // Predicated region
      $region33: #{autoencoder_pallas.18} parent=31 // pred_check
        %p1391 = pneg %p116
      $region34: #{autoencoder_pallas.18} parent=31 // pred_check_branch
        %1393 = sbr.rel (%p1391) target = $region36
      $region35: #{autoencoder_pallas.18} parent=31 // pred_region
        %s1394 = smul.u32 2, %s19
      $region36: #{autoencoder_pallas.18} parent=31 // pred_fallthru
        _
    $region32: #{autoencoder_pallas.18} parent=5 // pred_fallthru
      _
    %p1395 = scmp.le.s32.totalorder 2, %s9
    // Predicated region
    $region37: #{autoencoder_pallas.18} parent=5 // pred_check
      %p1396 = pneg %p1395
    $region38: #{autoencoder_pallas.18} parent=5 // pred_check_branch
      %1398 = sbr.rel (%p1396) target = $region40
    $region39: #{autoencoder_pallas.18} parent=5 // pred_region
      %s1399 = ssub.s32 %s9, 2
      // Predicated region
      $region41: #{autoencoder_pallas.18} parent=39 // pred_check
        %p1400 = pneg %p122
      $region42: #{autoencoder_pallas.18} parent=39 // pred_check_branch
        %1402 = sbr.rel (%p1400) target = $region44
      $region43: #{autoencoder_pallas.18} parent=39 // pred_region
        %s1403 = smul.u32 2, %s21
        %p1404 = scmp.lt.s32.totalorder %s20, 1
        %s1405 = scalar_select %p1404, %s20, 1
        %p1406 = scmp.lt.s32.totalorder %s1403, 1
        %s1407 = scalar_select %p1406, %s1403, 1
        %s1408 = smul.addr %s1407, 2
        %s1409 = smul.addr %s1405, 4
        %s1410 = sadd.s32 %s1408, %s1409
        %s1411 = smul.addr %s1410, 4
        %s1412 = scalar_lea.vmem %s3, %s1411
      $region44: #{autoencoder_pallas.18} parent=39 // pred_fallthru
        _
    $region40: #{autoencoder_pallas.18} parent=5 // pred_fallthru
      _
  $region6: #{autoencoder_pallas.18} parent=0 // loop_footer
    %s13 = sadd.s32 1, %s9
  $region7: #{autoencoder_pallas.18} parent=0 // loop_footer_branch
    %8 = sbr.rel target = $region3
  $region8: #{autoencoder_pallas.18} parent=0 // loop_exit
    _

// kernel: autoencoder_pallas.19
$region0: #{autoencoder_pallas.19}
  #allocation0 [shape = 'u32[]', space=smem, size = 0x4, offset = 0x4, fixed_abs, tag = 'smem constant byte address 0x4 - core index']
  #allocation1 [shape = 'u32[144,128]{1,0:T(1,128)}', space=vmem, size = 0x12000, scoped, tag = 'internal scratch']
  %s0 = inlined_call_operand.vmem [shape: bf16[2,16,2304], index: 0, kind: input, shape index: {}]
  %s1 = inlined_call_operand.vmem [shape: bf16[2304,128], index: 1, kind: input, shape index: {}]
  %s2 = inlined_call_operand.vmem [shape: f32[1,128], index: 2, kind: input, shape index: {}]
  %s3 = inlined_call_operand.vmem [shape: bf16[2,16,128], index: 3, kind: output, shape index: {}]
  %s4 = sld [smem:[#allocation0]]
  $region45: #{autoencoder_pallas.19} parent=0
    _
  %s6 = ssub.s32 1, %s4
  %s7 = scalar_select 0, %s6, %s4
  loop: start=0, step=1, limit=4
  $region2: #{autoencoder_pallas.19} parent=0 // loop_pre_header
    _
  $region3: #{autoencoder_pallas.19} parent=0 // loop_header
    %s9 = sphi 0, %s13
    %p10 = scmp.ge.s32.totalorder %s9, 4
    %s16 = sphi 0, %s28
    %s17 = sphi 0, %s24
    %s18 = sphi 0, %s16
    %s19 = sphi 0, %s17
    %s20 = sphi 0, %s18
    %s21 = sphi 0, %s19
    %s33 = sphi 0, %s35
    %s36 = sphi 0, %s33
    %s37 = sphi 0, %s36
    %s53 = sphi 0, %s37
    %s57 = sphi 0, %s57
    %s59 = sphi 0, %s57
    %s60 = sphi 0, %s59
    %s74 = sphi 0, %s60
    %s78 = sphi 0, %s78
    %s80 = sphi 0, %s78
    %s81 = sphi 0, %s80
    %s95 = sphi 0, %s81
    %s103 = sphi 0, %s105
    %s106 = sphi 0, %s103
    %s107 = sphi 0, %s106
    %s123 = sphi 0, %s107
  $region4: #{autoencoder_pallas.19} parent=0 // loop_header_branch
    %12 = sbr.rel (%p10) target = $region8
  $region5: #{autoencoder_pallas.19} parent=0 // loop_body
    %s14 = ssub.s32 %s9, 1
    %s15 = ssub.s32 %s9, 2
    %s22 = sadd.s32 1, %s17
    %p23 = scmp.ge.s32.totalorder %s22, 1
    %s24 = scalar_select %p23, 0, %s22
    %s25 = sadd.s32 1, %s16
    %s26 = scalar_select %p23, %s25, %s16
    %p27 = scmp.ge.s32.totalorder %s26, 2
    %s28 = scalar_select %p27, 0, %s26
    %s29 = ssub.s32 %s16, %s28
    %s30 = ssub.s32 %s17, %s24
    %s31 = sor.u32 %s29, %s30
    %p32 = scmp.eq.s32.totalorder %s31, 0
    %s34 = sadd.s32 %s33, 1
    %s35 = scalar_select %p32, %s33, %s34
    %p38 = pneg %p32
    %p39 = scmp.eq.s32.totalorder %s9, 1
    %p40 = por %p38, %p39
    %p41 = scmp.ne.s32.totalorder %s33, %s36
    %p42 = scmp.eq.s32.totalorder %s9, 0
    %p43 = por %p41, %p42
    %p44 = scmp.ne.s32.totalorder %s33, %s36
    %p45 = scmp.eq.s32.totalorder %s14, 1
    %p46 = por %p44, %p45
    %p47 = scmp.ne.s32.totalorder %s36, %s37
    %p48 = scmp.eq.s32.totalorder %s14, 0
    %p49 = por %p47, %p48
    %p50 = scmp.ne.s32.totalorder %s36, %s37
    %p51 = scmp.eq.s32.totalorder %s15, 1
    %p52 = por %p50, %p51
    %p54 = scmp.ne.s32.totalorder %s37, %s53
    %p55 = scmp.eq.s32.totalorder %s15, 0
    %p56 = por %p54, %p55
    %s58 = sadd.s32 %s57, 1
    %p61 = scmp.eq.s32.totalorder %s9, 1
    %p62 = scmp.ne.s32.totalorder %s57, %s59
    %p63 = scmp.eq.s32.totalorder %s9, 0
    %p64 = por %p62, %p63
    %p65 = scmp.ne.s32.totalorder %s57, %s59
    %p66 = scmp.eq.s32.totalorder %s14, 1
    %p67 = por %p65, %p66
    %p68 = scmp.ne.s32.totalorder %s59, %s60
    %p69 = scmp.eq.s32.totalorder %s14, 0
    %p70 = por %p68, %p69
    %p71 = scmp.ne.s32.totalorder %s59, %s60
    %p72 = scmp.eq.s32.totalorder %s15, 1
    %p73 = por %p71, %p72
    %p75 = scmp.ne.s32.totalorder %s60, %s74
    %p76 = scmp.eq.s32.totalorder %s15, 0
    %p77 = por %p75, %p76
    %s79 = sadd.s32 %s78, 1
    %p82 = scmp.eq.s32.totalorder %s9, 1
    %p83 = scmp.ne.s32.totalorder %s78, %s80
    %p84 = scmp.eq.s32.totalorder %s9, 0
    %p85 = por %p83, %p84
    %p86 = scmp.ne.s32.totalorder %s78, %s80
    %p87 = scmp.eq.s32.totalorder %s14, 1
    %p88 = por %p86, %p87
    %p89 = scmp.ne.s32.totalorder %s80, %s81
    %p90 = scmp.eq.s32.totalorder %s14, 0
    %p91 = por %p89, %p90
    %p92 = scmp.ne.s32.totalorder %s80, %s81
    %p93 = scmp.eq.s32.totalorder %s15, 1
    %p94 = por %p92, %p93
    %p96 = scmp.ne.s32.totalorder %s81, %s95
    %p97 = scmp.eq.s32.totalorder %s15, 0
    %p98 = por %p96, %p97
    %s99 = ssub.s32 %s16, %s28
    %s100 = ssub.s32 %s17, %s24
    %s101 = sor.u32 %s99, %s100
    %p102 = scmp.eq.s32.totalorder %s101, 0
    %s104 = sadd.s32 %s103, 1
    %s105 = scalar_select %p102, %s103, %s104
    %p108 = pneg %p102
    %p109 = scmp.eq.s32.totalorder %s9, 1
    %p110 = por %p108, %p109
    %p111 = scmp.ne.s32.totalorder %s103, %s106
    %p112 = scmp.eq.s32.totalorder %s9, 0
    %p113 = por %p111, %p112
    %p114 = scmp.ne.s32.totalorder %s103, %s106
    %p115 = scmp.eq.s32.totalorder %s14, 1
    %p116 = por %p114, %p115
    %p117 = scmp.ne.s32.totalorder %s106, %s107
    %p118 = scmp.eq.s32.totalorder %s14, 0
    %p119 = por %p117, %p118
    %p120 = scmp.ne.s32.totalorder %s106, %s107
    %p121 = scmp.eq.s32.totalorder %s15, 1
    %p122 = por %p120, %p121
    %p124 = scmp.ne.s32.totalorder %s107, %s123
    %p125 = scmp.eq.s32.totalorder %s15, 0
    %p126 = por %p124, %p125
    %p127 = scmp.le.s32.totalorder 1, %s9
    %p128 = scmp.lt.s32.totalorder %s9, 3
    %p129 = pnand %p127, %p128
    %p130 = pneg %p129
    // Predicated region
    $region9: #{autoencoder_pallas.19} parent=5 // pred_check
      _
    $region10: #{autoencoder_pallas.19} parent=5 // pred_check_branch
      %132 = sbr.rel (%p129) target = $region12
    $region11: #{autoencoder_pallas.19} parent=5 // pred_region
      %s133 = ssub.s32 %s9, 1
      // Predicated region
      $region13: #{autoencoder_pallas.19} parent=11 // pred_check
        %p134 = pneg %p70
      $region14: #{autoencoder_pallas.19} parent=11 // pred_check_branch
        %136 = sbr.rel (%p134) target = $region16
      $region15: #{autoencoder_pallas.19} parent=11 // pred_region
        _
      $region16: #{autoencoder_pallas.19} parent=11 // pred_fallthru
        _
      // Predicated region
      $region17: #{autoencoder_pallas.19} parent=11 // pred_check
        %p137 = pneg %p91
      $region18: #{autoencoder_pallas.19} parent=11 // pred_check_branch
        %139 = sbr.rel (%p137) target = $region20
      $region19: #{autoencoder_pallas.19} parent=11 // pred_region
        _
      $region20: #{autoencoder_pallas.19} parent=11 // pred_fallthru
        _
    $region12: #{autoencoder_pallas.19} parent=5 // pred_fallthru
      _
    %p140 = scmp.lt.s32.totalorder %s9, 2
    // Predicated region
    $region21: #{autoencoder_pallas.19} parent=5 // pred_check
      %p141 = pneg %p140
    $region22: #{autoencoder_pallas.19} parent=5 // pred_check_branch
      %143 = sbr.rel (%p141) target = $region24
    $region23: #{autoencoder_pallas.19} parent=5 // pred_region
      // Predicated region
      $region25: #{autoencoder_pallas.19} parent=23 // pred_check
        %p144 = pneg %p43
      $region26: #{autoencoder_pallas.19} parent=23 // pred_check_branch
        %146 = sbr.rel (%p144) target = $region28
      $region27: #{autoencoder_pallas.19} parent=23 // pred_region
        %s147 = smul.u32 2, %s17
        %p148 = scmp.lt.s32.totalorder %s16, 1
        %s149 = scalar_select %p148, %s16, 1
        %p150 = scmp.lt.s32.totalorder %s147, 1
        %s151 = scalar_select %p150, %s147, 1
        %s152 = smul.addr %s151, 18
        %s153 = smul.addr %s149, 36
        %s154 = sadd.s32 %s152, %s153
        %s155 = smul.addr %s154, 4
        %s156 = scalar_lea.vmem %s0, %s155
        %s157 = smul.u32 2, %s17
      $region28: #{autoencoder_pallas.19} parent=23 // pred_fallthru
        _
    $region24: #{autoencoder_pallas.19} parent=5 // pred_fallthru
      _
    %p158 = scmp.le.s32.totalorder 1, %s9
    %p159 = scmp.lt.s32.totalorder %s9, 3
    %p160 = pnand %p158, %p159
    %p161 = pneg %p160
    // Predicated region
    $region29: #{autoencoder_pallas.19} parent=5 // pred_check
      _
    $region30: #{autoencoder_pallas.19} parent=5 // pred_check_branch
      %163 = sbr.rel (%p160) target = $region32
    $region31: #{autoencoder_pallas.19} parent=5 // pred_region
      %s164 = ssub.s32 %s9, 1
      %s165 = smul.u32 2, %s19
      %p166 = scmp.lt.s32.totalorder %s18, 1
      %s167 = scalar_select %p166, %s18, 1
      %p168 = scmp.lt.s32.totalorder %s165, 1
      %s169 = scalar_select %p168, %s165, 1
      %s170 = smul.addr %s169, 18
      %s171 = smul.addr %s167, 36
      %s172 = sadd.s32 %s170, %s171
      %s173 = smul.addr %s172, 4
      %s174 = scalar_lea.vmem %s0, %s173
      %p175 = pneg %p49
      %p176 = pneg %p46
      %p177 = pneg %p70
      %p178 = pneg %p67
      %p179 = pneg %p91
      %p180 = pneg %p88
      %p181 = pneg %p119
      %p182 = pneg %p116
      %s183 = smul.u32 2, %s19
      %p184 = scmp.lt.s32.totalorder %s18, 1
      %s185 = scalar_select %p184, %s18, 1
      %p186 = scmp.lt.s32.totalorder %s183, 1
      %s187 = scalar_select %p186, %s183, 1
      %s188 = smul.addr %s185, 2
      %s189 = sadd.s32 %s187, %s188
      %s190 = smul.addr %s189, 4
      %s191 = scalar_lea.vmem %s3, %s190
      %s192 = smul.u32 2, %s19
      %p193 = scmp.lt.s32.totalorder %s18, 1
      %s194 = scalar_select %p193, %s18, 1
      %p195 = scmp.lt.s32.totalorder %s192, 1
      %s196 = scalar_select %p195, %s192, 1
      %s197 = smul.addr %s196, 18
      %s198 = smul.addr %s194, 36
      %s199 = sadd.s32 %s197, %s198
      %s200 = smul.addr %s199, 4
      %s201 = scalar_lea.vmem %s0, %s200
      %s202 = smul.u32 2, %s19
      %s203 = smul.u32 2, %s19
      %p204 = scmp.lt.s32.totalorder %s18, 1
      %s205 = scalar_select %p204, %s18, 1
      %p206 = scmp.lt.s32.totalorder %s203, 1
      %s207 = scalar_select %p206, %s203, 1
      %s208 = smul.addr %s205, 2
      %s209 = sadd.s32 %s207, %s208
      %s210 = smul.addr %s209, 4
      %s211 = scalar_lea.vmem %s3, %s210
      %s212 = smul.u32 2, %s19
      %v214 = vld [vmem:[%s201] sm:$0xff]
      %v215 = vld [vmem:[%s201 + $0x8] sm:$0xff]
      %v216 = vld [vmem:[%s201 + $0x10] sm:$0xff]
      %v217 = vld [vmem:[%s201 + $0x18] sm:$0xff]
      %v218 = vld [vmem:[%s201 + $0x20] sm:$0xff]
      %v219 = vld [vmem:[%s201 + $0x28] sm:$0xff]
      %v220 = vld [vmem:[%s201 + $0x30] sm:$0xff]
      %v221 = vld [vmem:[%s201 + $0x38] sm:$0xff]
      %v222 = vld [vmem:[%s201 + $0x40] sm:$0xff]
      %v223 = vld [vmem:[%s201 + $0x48] sm:$0xff]
      %v224 = vld [vmem:[%s201 + $0x50] sm:$0xff]
      %v225 = vld [vmem:[%s201 + $0x58] sm:$0xff]
      %v226 = vld [vmem:[%s201 + $0x60] sm:$0xff]
      %v227 = vld [vmem:[%s201 + $0x68] sm:$0xff]
      %v228 = vld [vmem:[%s201 + $0x70] sm:$0xff]
      %v229 = vld [vmem:[%s201 + $0x78] sm:$0xff]
      %v230 = vld [vmem:[%s201 + $0x80] sm:$0xff]
      %v231 = vld [vmem:[%s201 + $0x88] sm:$0xff]
      %v232 = vld [vmem:[%s1] sm:$0xf]
      %v233 = vld [vmem:[%s1 + $0x4] sm:$0xf]
      %v234 = vld [vmem:[%s1 + $0x8] sm:$0xf]
      %v235 = vld [vmem:[%s1 + $0xc] sm:$0xf]
      %v236 = vld [vmem:[%s1 + $0x10] sm:$0xf]
      %v237 = vld [vmem:[%s1 + $0x14] sm:$0xf]
      %v238 = vld [vmem:[%s1 + $0x18] sm:$0xf]
      %v239 = vld [vmem:[%s1 + $0x1c] sm:$0xf]
      %v240 = vld [vmem:[%s1 + $0x20] sm:$0xf]
      %v241 = vld [vmem:[%s1 + $0x24] sm:$0xf]
      %v242 = vld [vmem:[%s1 + $0x28] sm:$0xf]
      %v243 = vld [vmem:[%s1 + $0x2c] sm:$0xf]
      %v244 = vld [vmem:[%s1 + $0x30] sm:$0xf]
      %v245 = vld [vmem:[%s1 + $0x34] sm:$0xf]
      %v246 = vld [vmem:[%s1 + $0x38] sm:$0xf]
      %v247 = vld [vmem:[%s1 + $0x3c] sm:$0xf]
      %v248 = vld [vmem:[%s1 + $0x40] sm:$0xf]
      %v249 = vld [vmem:[%s1 + $0x44] sm:$0xf]
      %v250 = vld [vmem:[%s1 + $0x48] sm:$0xf]
      %v251 = vld [vmem:[%s1 + $0x4c] sm:$0xf]
      %v252 = vld [vmem:[%s1 + $0x50] sm:$0xf]
      %v253 = vld [vmem:[%s1 + $0x54] sm:$0xf]
      %v254 = vld [vmem:[%s1 + $0x58] sm:$0xf]
      %v255 = vld [vmem:[%s1 + $0x5c] sm:$0xf]
      %v256 = vld [vmem:[%s1 + $0x60] sm:$0xf]
      %v257 = vld [vmem:[%s1 + $0x64] sm:$0xf]
      %v258 = vld [vmem:[%s1 + $0x68] sm:$0xf]
      %v259 = vld [vmem:[%s1 + $0x6c] sm:$0xf]
      %v260 = vld [vmem:[%s1 + $0x70] sm:$0xf]
      %v261 = vld [vmem:[%s1 + $0x74] sm:$0xf]
      %v262 = vld [vmem:[%s1 + $0x78] sm:$0xf]
      %v263 = vld [vmem:[%s1 + $0x7c] sm:$0xf]
      %v264 = vld [vmem:[%s1 + $0x80] sm:$0xf]
      %v265 = vld [vmem:[%s1 + $0x84] sm:$0xf]
      %v266 = vld [vmem:[%s1 + $0x88] sm:$0xf]
      %v267 = vld [vmem:[%s1 + $0x8c] sm:$0xf]
      %v268 = vld [vmem:[%s1 + $0x90] sm:$0xf]
      %v269 = vld [vmem:[%s1 + $0x94] sm:$0xf]
      %v270 = vld [vmem:[%s1 + $0x98] sm:$0xf]
      %v271 = vld [vmem:[%s1 + $0x9c] sm:$0xf]
      %v272 = vld [vmem:[%s1 + $0xa0] sm:$0xf]
      %v273 = vld [vmem:[%s1 + $0xa4] sm:$0xf]
      %v274 = vld [vmem:[%s1 + $0xa8] sm:$0xf]
      %v275 = vld [vmem:[%s1 + $0xac] sm:$0xf]
      %v276 = vld [vmem:[%s1 + $0xb0] sm:$0xf]
      %v277 = vld [vmem:[%s1 + $0xb4] sm:$0xf]
      %v278 = vld [vmem:[%s1 + $0xb8] sm:$0xf]
      %v279 = vld [vmem:[%s1 + $0xbc] sm:$0xf]
      %v280 = vld [vmem:[%s1 + $0xc0] sm:$0xf]
      %v281 = vld [vmem:[%s1 + $0xc4] sm:$0xf]
      %v282 = vld [vmem:[%s1 + $0xc8] sm:$0xf]
      %v283 = vld [vmem:[%s1 + $0xcc] sm:$0xf]
      %v284 = vld [vmem:[%s1 + $0xd0] sm:$0xf]
      %v285 = vld [vmem:[%s1 + $0xd4] sm:$0xf]
      %v286 = vld [vmem:[%s1 + $0xd8] sm:$0xf]
      %v287 = vld [vmem:[%s1 + $0xdc] sm:$0xf]
      %v288 = vld [vmem:[%s1 + $0xe0] sm:$0xf]
      %v289 = vld [vmem:[%s1 + $0xe4] sm:$0xf]
      %v290 = vld [vmem:[%s1 + $0xe8] sm:$0xf]
      %v291 = vld [vmem:[%s1 + $0xec] sm:$0xf]
      %v292 = vld [vmem:[%s1 + $0xf0] sm:$0xf]
      %v293 = vld [vmem:[%s1 + $0xf4] sm:$0xf]
      %v294 = vld [vmem:[%s1 + $0xf8] sm:$0xf]
      %v295 = vld [vmem:[%s1 + $0xfc] sm:$0xf]
      %v296 = vld [vmem:[%s1 + $0x100] sm:$0xf]
      %v297 = vld [vmem:[%s1 + $0x104] sm:$0xf]
      %v298 = vld [vmem:[%s1 + $0x108] sm:$0xf]
      %v299 = vld [vmem:[%s1 + $0x10c] sm:$0xf]
      %v300 = vld [vmem:[%s1 + $0x110] sm:$0xf]
      %v301 = vld [vmem:[%s1 + $0x114] sm:$0xf]
      %v302 = vld [vmem:[%s1 + $0x118] sm:$0xf]
      %v303 = vld [vmem:[%s1 + $0x11c] sm:$0xf]
      %v304 = vld [vmem:[%s1 + $0x120] sm:$0xf]
      %v305 = vld [vmem:[%s1 + $0x124] sm:$0xf]
      %v306 = vld [vmem:[%s1 + $0x128] sm:$0xf]
      %v307 = vld [vmem:[%s1 + $0x12c] sm:$0xf]
      %v308 = vld [vmem:[%s1 + $0x130] sm:$0xf]
      %v309 = vld [vmem:[%s1 + $0x134] sm:$0xf]
      %v310 = vld [vmem:[%s1 + $0x138] sm:$0xf]
      %v311 = vld [vmem:[%s1 + $0x13c] sm:$0xf]
      %v312 = vld [vmem:[%s1 + $0x140] sm:$0xf]
      %v313 = vld [vmem:[%s1 + $0x144] sm:$0xf]
      %v314 = vld [vmem:[%s1 + $0x148] sm:$0xf]
      %v315 = vld [vmem:[%s1 + $0x14c] sm:$0xf]
      %v316 = vld [vmem:[%s1 + $0x150] sm:$0xf]
      %v317 = vld [vmem:[%s1 + $0x154] sm:$0xf]
      %v318 = vld [vmem:[%s1 + $0x158] sm:$0xf]
      %v319 = vld [vmem:[%s1 + $0x15c] sm:$0xf]
      %v320 = vld [vmem:[%s1 + $0x160] sm:$0xf]
      %v321 = vld [vmem:[%s1 + $0x164] sm:$0xf]
      %v322 = vld [vmem:[%s1 + $0x168] sm:$0xf]
      %v323 = vld [vmem:[%s1 + $0x16c] sm:$0xf]
      %v324 = vld [vmem:[%s1 + $0x170] sm:$0xf]
      %v325 = vld [vmem:[%s1 + $0x174] sm:$0xf]
      %v326 = vld [vmem:[%s1 + $0x178] sm:$0xf]
      %v327 = vld [vmem:[%s1 + $0x17c] sm:$0xf]
      %v328 = vld [vmem:[%s1 + $0x180] sm:$0xf]
      %v329 = vld [vmem:[%s1 + $0x184] sm:$0xf]
      %v330 = vld [vmem:[%s1 + $0x188] sm:$0xf]
      %v331 = vld [vmem:[%s1 + $0x18c] sm:$0xf]
      %v332 = vld [vmem:[%s1 + $0x190] sm:$0xf]
      %v333 = vld [vmem:[%s1 + $0x194] sm:$0xf]
      %v334 = vld [vmem:[%s1 + $0x198] sm:$0xf]
      %v335 = vld [vmem:[%s1 + $0x19c] sm:$0xf]
      %v336 = vld [vmem:[%s1 + $0x1a0] sm:$0xf]
      %v337 = vld [vmem:[%s1 + $0x1a4] sm:$0xf]
      %v338 = vld [vmem:[%s1 + $0x1a8] sm:$0xf]
      %v339 = vld [vmem:[%s1 + $0x1ac] sm:$0xf]
      %v340 = vld [vmem:[%s1 + $0x1b0] sm:$0xf]
      %v341 = vld [vmem:[%s1 + $0x1b4] sm:$0xf]
      %v342 = vld [vmem:[%s1 + $0x1b8] sm:$0xf]
      %v343 = vld [vmem:[%s1 + $0x1bc] sm:$0xf]
      %v344 = vld [vmem:[%s1 + $0x1c0] sm:$0xf]
      %v345 = vld [vmem:[%s1 + $0x1c4] sm:$0xf]
      %v346 = vld [vmem:[%s1 + $0x1c8] sm:$0xf]
      %v347 = vld [vmem:[%s1 + $0x1cc] sm:$0xf]
      %v348 = vld [vmem:[%s1 + $0x1d0] sm:$0xf]
      %v349 = vld [vmem:[%s1 + $0x1d4] sm:$0xf]
      %v350 = vld [vmem:[%s1 + $0x1d8] sm:$0xf]
      %v351 = vld [vmem:[%s1 + $0x1dc] sm:$0xf]
      %v352 = vld [vmem:[%s1 + $0x1e0] sm:$0xf]
      %v353 = vld [vmem:[%s1 + $0x1e4] sm:$0xf]
      %v354 = vld [vmem:[%s1 + $0x1e8] sm:$0xf]
      %v355 = vld [vmem:[%s1 + $0x1ec] sm:$0xf]
      %v356 = vld [vmem:[%s1 + $0x1f0] sm:$0xf]
      %v357 = vld [vmem:[%s1 + $0x1f4] sm:$0xf]
      %v358 = vld [vmem:[%s1 + $0x1f8] sm:$0xf]
      %v359 = vld [vmem:[%s1 + $0x1fc] sm:$0xf]
      %v360 = vld [vmem:[%s1 + $0x200] sm:$0xf]
      %v361 = vld [vmem:[%s1 + $0x204] sm:$0xf]
      %v362 = vld [vmem:[%s1 + $0x208] sm:$0xf]
      %v363 = vld [vmem:[%s1 + $0x20c] sm:$0xf]
      %v364 = vld [vmem:[%s1 + $0x210] sm:$0xf]
      %v365 = vld [vmem:[%s1 + $0x214] sm:$0xf]
      %v366 = vld [vmem:[%s1 + $0x218] sm:$0xf]
      %v367 = vld [vmem:[%s1 + $0x21c] sm:$0xf]
      %v368 = vld [vmem:[%s1 + $0x220] sm:$0xf]
      %v369 = vld [vmem:[%s1 + $0x224] sm:$0xf]
      %v370 = vld [vmem:[%s1 + $0x228] sm:$0xf]
      %v371 = vld [vmem:[%s1 + $0x22c] sm:$0xf]
      %v372 = vld [vmem:[%s1 + $0x230] sm:$0xf]
      %v373 = vld [vmem:[%s1 + $0x234] sm:$0xf]
      %v374 = vld [vmem:[%s1 + $0x238] sm:$0xf]
      %v375 = vld [vmem:[%s1 + $0x23c] sm:$0xf]
      %v376 = vld [vmem:[%s1 + $0x240] sm:$0xf]
      %v377 = vld [vmem:[%s1 + $0x244] sm:$0xf]
      %v378 = vld [vmem:[%s1 + $0x248] sm:$0xf]
      %v379 = vld [vmem:[%s1 + $0x24c] sm:$0xf]
      %v380 = vld [vmem:[%s1 + $0x250] sm:$0xf]
      %v381 = vld [vmem:[%s1 + $0x254] sm:$0xf]
      %v382 = vld [vmem:[%s1 + $0x258] sm:$0xf]
      %v383 = vld [vmem:[%s1 + $0x25c] sm:$0xf]
      %v384 = vld [vmem:[%s1 + $0x260] sm:$0xf]
      %v385 = vld [vmem:[%s1 + $0x264] sm:$0xf]
      %v386 = vld [vmem:[%s1 + $0x268] sm:$0xf]
      %v387 = vld [vmem:[%s1 + $0x26c] sm:$0xf]
      %v388 = vld [vmem:[%s1 + $0x270] sm:$0xf]
      %v389 = vld [vmem:[%s1 + $0x274] sm:$0xf]
      %v390 = vld [vmem:[%s1 + $0x278] sm:$0xf]
      %v391 = vld [vmem:[%s1 + $0x27c] sm:$0xf]
      %v392 = vld [vmem:[%s1 + $0x280] sm:$0xf]
      %v393 = vld [vmem:[%s1 + $0x284] sm:$0xf]
      %v394 = vld [vmem:[%s1 + $0x288] sm:$0xf]
      %v395 = vld [vmem:[%s1 + $0x28c] sm:$0xf]
      %v396 = vld [vmem:[%s1 + $0x290] sm:$0xf]
      %v397 = vld [vmem:[%s1 + $0x294] sm:$0xf]
      %v398 = vld [vmem:[%s1 + $0x298] sm:$0xf]
      %v399 = vld [vmem:[%s1 + $0x29c] sm:$0xf]
      %v400 = vld [vmem:[%s1 + $0x2a0] sm:$0xf]
      %v401 = vld [vmem:[%s1 + $0x2a4] sm:$0xf]
      %v402 = vld [vmem:[%s1 + $0x2a8] sm:$0xf]
      %v403 = vld [vmem:[%s1 + $0x2ac] sm:$0xf]
      %v404 = vld [vmem:[%s1 + $0x2b0] sm:$0xf]
      %v405 = vld [vmem:[%s1 + $0x2b4] sm:$0xf]
      %v406 = vld [vmem:[%s1 + $0x2b8] sm:$0xf]
      %v407 = vld [vmem:[%s1 + $0x2bc] sm:$0xf]
      %v408 = vld [vmem:[%s1 + $0x2c0] sm:$0xf]
      %v409 = vld [vmem:[%s1 + $0x2c4] sm:$0xf]
      %v410 = vld [vmem:[%s1 + $0x2c8] sm:$0xf]
      %v411 = vld [vmem:[%s1 + $0x2cc] sm:$0xf]
      %v412 = vld [vmem:[%s1 + $0x2d0] sm:$0xf]
      %v413 = vld [vmem:[%s1 + $0x2d4] sm:$0xf]
      %v414 = vld [vmem:[%s1 + $0x2d8] sm:$0xf]
      %v415 = vld [vmem:[%s1 + $0x2dc] sm:$0xf]
      %v416 = vld [vmem:[%s1 + $0x2e0] sm:$0xf]
      %v417 = vld [vmem:[%s1 + $0x2e4] sm:$0xf]
      %v418 = vld [vmem:[%s1 + $0x2e8] sm:$0xf]
      %v419 = vld [vmem:[%s1 + $0x2ec] sm:$0xf]
      %v420 = vld [vmem:[%s1 + $0x2f0] sm:$0xf]
      %v421 = vld [vmem:[%s1 + $0x2f4] sm:$0xf]
      %v422 = vld [vmem:[%s1 + $0x2f8] sm:$0xf]
      %v423 = vld [vmem:[%s1 + $0x2fc] sm:$0xf]
      %v424 = vld [vmem:[%s1 + $0x300] sm:$0xf]
      %v425 = vld [vmem:[%s1 + $0x304] sm:$0xf]
      %v426 = vld [vmem:[%s1 + $0x308] sm:$0xf]
      %v427 = vld [vmem:[%s1 + $0x30c] sm:$0xf]
      %v428 = vld [vmem:[%s1 + $0x310] sm:$0xf]
      %v429 = vld [vmem:[%s1 + $0x314] sm:$0xf]
      %v430 = vld [vmem:[%s1 + $0x318] sm:$0xf]
      %v431 = vld [vmem:[%s1 + $0x31c] sm:$0xf]
      %v432 = vld [vmem:[%s1 + $0x320] sm:$0xf]
      %v433 = vld [vmem:[%s1 + $0x324] sm:$0xf]
      %v434 = vld [vmem:[%s1 + $0x328] sm:$0xf]
      %v435 = vld [vmem:[%s1 + $0x32c] sm:$0xf]
      %v436 = vld [vmem:[%s1 + $0x330] sm:$0xf]
      %v437 = vld [vmem:[%s1 + $0x334] sm:$0xf]
      %v438 = vld [vmem:[%s1 + $0x338] sm:$0xf]
      %v439 = vld [vmem:[%s1 + $0x33c] sm:$0xf]
      %v440 = vld [vmem:[%s1 + $0x340] sm:$0xf]
      %v441 = vld [vmem:[%s1 + $0x344] sm:$0xf]
      %v442 = vld [vmem:[%s1 + $0x348] sm:$0xf]
      %v443 = vld [vmem:[%s1 + $0x34c] sm:$0xf]
      %v444 = vld [vmem:[%s1 + $0x350] sm:$0xf]
      %v445 = vld [vmem:[%s1 + $0x354] sm:$0xf]
      %v446 = vld [vmem:[%s1 + $0x358] sm:$0xf]
      %v447 = vld [vmem:[%s1 + $0x35c] sm:$0xf]
      %v448 = vld [vmem:[%s1 + $0x360] sm:$0xf]
      %v449 = vld [vmem:[%s1 + $0x364] sm:$0xf]
      %v450 = vld [vmem:[%s1 + $0x368] sm:$0xf]
      %v451 = vld [vmem:[%s1 + $0x36c] sm:$0xf]
      %v452 = vld [vmem:[%s1 + $0x370] sm:$0xf]
      %v453 = vld [vmem:[%s1 + $0x374] sm:$0xf]
      %v454 = vld [vmem:[%s1 + $0x378] sm:$0xf]
      %v455 = vld [vmem:[%s1 + $0x37c] sm:$0xf]
      %v456 = vld [vmem:[%s1 + $0x380] sm:$0xf]
      %v457 = vld [vmem:[%s1 + $0x384] sm:$0xf]
      %v458 = vld [vmem:[%s1 + $0x388] sm:$0xf]
      %v459 = vld [vmem:[%s1 + $0x38c] sm:$0xf]
      %v460 = vld [vmem:[%s1 + $0x390] sm:$0xf]
      %v461 = vld [vmem:[%s1 + $0x394] sm:$0xf]
      %v462 = vld [vmem:[%s1 + $0x398] sm:$0xf]
      %v463 = vld [vmem:[%s1 + $0x39c] sm:$0xf]
      %v464 = vld [vmem:[%s1 + $0x3a0] sm:$0xf]
      %v465 = vld [vmem:[%s1 + $0x3a4] sm:$0xf]
      %v466 = vld [vmem:[%s1 + $0x3a8] sm:$0xf]
      %v467 = vld [vmem:[%s1 + $0x3ac] sm:$0xf]
      %v468 = vld [vmem:[%s1 + $0x3b0] sm:$0xf]
      %v469 = vld [vmem:[%s1 + $0x3b4] sm:$0xf]
      %v470 = vld [vmem:[%s1 + $0x3b8] sm:$0xf]
      %v471 = vld [vmem:[%s1 + $0x3bc] sm:$0xf]
      %v472 = vld [vmem:[%s1 + $0x3c0] sm:$0xf]
      %v473 = vld [vmem:[%s1 + $0x3c4] sm:$0xf]
      %v474 = vld [vmem:[%s1 + $0x3c8] sm:$0xf]
      %v475 = vld [vmem:[%s1 + $0x3cc] sm:$0xf]
      %v476 = vld [vmem:[%s1 + $0x3d0] sm:$0xf]
      %v477 = vld [vmem:[%s1 + $0x3d4] sm:$0xf]
      %v478 = vld [vmem:[%s1 + $0x3d8] sm:$0xf]
      %v479 = vld [vmem:[%s1 + $0x3dc] sm:$0xf]
      %v480 = vld [vmem:[%s1 + $0x3e0] sm:$0xf]
      %v481 = vld [vmem:[%s1 + $0x3e4] sm:$0xf]
      %v482 = vld [vmem:[%s1 + $0x3e8] sm:$0xf]
      %v483 = vld [vmem:[%s1 + $0x3ec] sm:$0xf]
      %v484 = vld [vmem:[%s1 + $0x3f0] sm:$0xf]
      %v485 = vld [vmem:[%s1 + $0x3f4] sm:$0xf]
      %v486 = vld [vmem:[%s1 + $0x3f8] sm:$0xf]
      %v487 = vld [vmem:[%s1 + $0x3fc] sm:$0xf]
      %v488 = vld [vmem:[%s1 + $0x400] sm:$0xf]
      %v489 = vld [vmem:[%s1 + $0x404] sm:$0xf]
      %v490 = vld [vmem:[%s1 + $0x408] sm:$0xf]
      %v491 = vld [vmem:[%s1 + $0x40c] sm:$0xf]
      %v492 = vld [vmem:[%s1 + $0x410] sm:$0xf]
      %v493 = vld [vmem:[%s1 + $0x414] sm:$0xf]
      %v494 = vld [vmem:[%s1 + $0x418] sm:$0xf]
      %v495 = vld [vmem:[%s1 + $0x41c] sm:$0xf]
      %v496 = vld [vmem:[%s1 + $0x420] sm:$0xf]
      %v497 = vld [vmem:[%s1 + $0x424] sm:$0xf]
      %v498 = vld [vmem:[%s1 + $0x428] sm:$0xf]
      %v499 = vld [vmem:[%s1 + $0x42c] sm:$0xf]
      %v500 = vld [vmem:[%s1 + $0x430] sm:$0xf]
      %v501 = vld [vmem:[%s1 + $0x434] sm:$0xf]
      %v502 = vld [vmem:[%s1 + $0x438] sm:$0xf]
      %v503 = vld [vmem:[%s1 + $0x43c] sm:$0xf]
      %v504 = vld [vmem:[%s1 + $0x440] sm:$0xf]
      %v505 = vld [vmem:[%s1 + $0x444] sm:$0xf]
      %v506 = vld [vmem:[%s1 + $0x448] sm:$0xf]
      %v507 = vld [vmem:[%s1 + $0x44c] sm:$0xf]
      %v508 = vld [vmem:[%s1 + $0x450] sm:$0xf]
      %v509 = vld [vmem:[%s1 + $0x454] sm:$0xf]
      %v510 = vld [vmem:[%s1 + $0x458] sm:$0xf]
      %v511 = vld [vmem:[%s1 + $0x45c] sm:$0xf]
      %v512 = vld [vmem:[%s1 + $0x460] sm:$0xf]
      %v513 = vld [vmem:[%s1 + $0x464] sm:$0xf]
      %v514 = vld [vmem:[%s1 + $0x468] sm:$0xf]
      %v515 = vld [vmem:[%s1 + $0x46c] sm:$0xf]
      %v516 = vld [vmem:[%s1 + $0x470] sm:$0xf]
      %v517 = vld [vmem:[%s1 + $0x474] sm:$0xf]
      %v518 = vld [vmem:[%s1 + $0x478] sm:$0xf]
      %v519 = vld [vmem:[%s1 + $0x47c] sm:$0xf]
      %v520 = vld [vmem:[%s2] sm:$0x1]
      %v522 = vlaneseq
      %v523 = vshrl.u32 %v522, 7
      %v524 = vsub.s32 0, %v523
      %v525 = vrot.slane %v520, %v524
      %v545 = vunpack.c.l.b16 %v214
      %v546 = vunpack.c.h.b16 %v214
      %v547 = vunpack.c.l.b16 %v215
      %v548 = vunpack.c.h.b16 %v215
      %v549 = vunpack.c.l.b16 %v216
      %v550 = vunpack.c.h.b16 %v216
      %v551 = vunpack.c.l.b16 %v217
      %v552 = vunpack.c.h.b16 %v217
      %v553 = vunpack.c.l.b16 %v218
      %v554 = vunpack.c.h.b16 %v218
      %v555 = vunpack.c.l.b16 %v219
      %v556 = vunpack.c.h.b16 %v219
      %v557 = vunpack.c.l.b16 %v220
      %v558 = vunpack.c.h.b16 %v220
      %v559 = vunpack.c.l.b16 %v221
      %v560 = vunpack.c.h.b16 %v221
      %v561 = vunpack.c.l.b16 %v222
      %v562 = vunpack.c.h.b16 %v222
      %v563 = vunpack.c.l.b16 %v223
      %v564 = vunpack.c.h.b16 %v223
      %v565 = vunpack.c.l.b16 %v224
      %v566 = vunpack.c.h.b16 %v224
      %v567 = vunpack.c.l.b16 %v225
      %v568 = vunpack.c.h.b16 %v225
      %v569 = vunpack.c.l.b16 %v226
      %v570 = vunpack.c.h.b16 %v226
      %v571 = vunpack.c.l.b16 %v227
      %v572 = vunpack.c.h.b16 %v227
      %v573 = vunpack.c.l.b16 %v228
      %v574 = vunpack.c.h.b16 %v228
      %v575 = vunpack.c.l.b16 %v229
      %v576 = vunpack.c.h.b16 %v229
      %v577 = vunpack.c.l.b16 %v230
      %v578 = vunpack.c.h.b16 %v230
      %v579 = vunpack.c.l.b16 %v231
      %v580 = vunpack.c.h.b16 %v231
      %v581 = vpack.c.b16 %v563, %v545
      %v582 = vpack.c.b16 %v564, %v546
      %v583 = vpack.c.b16 %v565, %v547
      %v584 = vpack.c.b16 %v566, %v548
      %v585 = vpack.c.b16 %v567, %v549
      %v586 = vpack.c.b16 %v568, %v550
      %v587 = vpack.c.b16 %v569, %v551
      %v588 = vpack.c.b16 %v570, %v552
      %v589 = vpack.c.b16 %v571, %v553
      %v590 = vpack.c.b16 %v572, %v554
      %v591 = vpack.c.b16 %v573, %v555
      %v592 = vpack.c.b16 %v574, %v556
      %v593 = vpack.c.b16 %v575, %v557
      %v594 = vpack.c.b16 %v576, %v558
      %v595 = vpack.c.b16 %v577, %v559
      %v596 = vpack.c.b16 %v578, %v560
      %v597 = vpack.c.b16 %v579, %v561
      %v598 = vpack.c.b16 %v580, %v562
      %v905 = vunpack.c.l.b16 %v232
      %v906 = vunpack.c.l.b16 %v233
      %v907 = vunpack.c.l.b16 %v234
      %v908 = vunpack.c.l.b16 %v235
      %v909 = vunpack.c.l.b16 %v236
      %v910 = vunpack.c.l.b16 %v237
      %v911 = vunpack.c.l.b16 %v238
      %v912 = vunpack.c.l.b16 %v239
      %v913 = vunpack.c.l.b16 %v240
      %v914 = vunpack.c.l.b16 %v241
      %v915 = vunpack.c.l.b16 %v242
      %v916 = vunpack.c.l.b16 %v243
      %v917 = vunpack.c.l.b16 %v244
      %v918 = vunpack.c.l.b16 %v245
      %v919 = vunpack.c.l.b16 %v246
      %v920 = vunpack.c.l.b16 %v247
      %v921 = vunpack.c.l.b16 %v248
      %v922 = vunpack.c.l.b16 %v249
      %v923 = vunpack.c.l.b16 %v250
      %v924 = vunpack.c.l.b16 %v251
      %v925 = vunpack.c.l.b16 %v252
      %v926 = vunpack.c.l.b16 %v253
      %v927 = vunpack.c.l.b16 %v254
      %v928 = vunpack.c.l.b16 %v255
      %v929 = vunpack.c.l.b16 %v256
      %v930 = vunpack.c.l.b16 %v257
      %v931 = vunpack.c.l.b16 %v258
      %v932 = vunpack.c.l.b16 %v259
      %v933 = vunpack.c.l.b16 %v260
      %v934 = vunpack.c.l.b16 %v261
      %v935 = vunpack.c.l.b16 %v262
      %v936 = vunpack.c.l.b16 %v263
      %v937 = vunpack.c.l.b16 %v264
      %v938 = vunpack.c.l.b16 %v265
      %v939 = vunpack.c.l.b16 %v266
      %v940 = vunpack.c.l.b16 %v267
      %v941 = vunpack.c.l.b16 %v268
      %v942 = vunpack.c.l.b16 %v269
      %v943 = vunpack.c.l.b16 %v270
      %v944 = vunpack.c.l.b16 %v271
      %v945 = vunpack.c.l.b16 %v272
      %v946 = vunpack.c.l.b16 %v273
      %v947 = vunpack.c.l.b16 %v274
      %v948 = vunpack.c.l.b16 %v275
      %v949 = vunpack.c.l.b16 %v276
      %v950 = vunpack.c.l.b16 %v277
      %v951 = vunpack.c.l.b16 %v278
      %v952 = vunpack.c.l.b16 %v279
      %v953 = vunpack.c.l.b16 %v280
      %v954 = vunpack.c.l.b16 %v281
      %v955 = vunpack.c.l.b16 %v282
      %v956 = vunpack.c.l.b16 %v283
      %v957 = vunpack.c.l.b16 %v284
      %v958 = vunpack.c.l.b16 %v285
      %v959 = vunpack.c.l.b16 %v286
      %v960 = vunpack.c.l.b16 %v287
      %v961 = vunpack.c.l.b16 %v288
      %v962 = vunpack.c.l.b16 %v289
      %v963 = vunpack.c.l.b16 %v290
      %v964 = vunpack.c.l.b16 %v291
      %v965 = vunpack.c.l.b16 %v292
      %v966 = vunpack.c.l.b16 %v293
      %v967 = vunpack.c.l.b16 %v294
      %v968 = vunpack.c.l.b16 %v295
      %v969 = vunpack.c.l.b16 %v296
      %v970 = vunpack.c.l.b16 %v297
      %v971 = vunpack.c.l.b16 %v298
      %v972 = vunpack.c.l.b16 %v299
      %v973 = vunpack.c.l.b16 %v300
      %v974 = vunpack.c.l.b16 %v301
      %v975 = vunpack.c.l.b16 %v302
      %v976 = vunpack.c.l.b16 %v303
      %v977 = vunpack.c.l.b16 %v304
      %v978 = vunpack.c.l.b16 %v305
      %v979 = vunpack.c.l.b16 %v306
      %v980 = vunpack.c.l.b16 %v307
      %v981 = vunpack.c.l.b16 %v308
      %v982 = vunpack.c.l.b16 %v309
      %v983 = vunpack.c.l.b16 %v310
      %v984 = vunpack.c.l.b16 %v311
      %v985 = vunpack.c.l.b16 %v312
      %v986 = vunpack.c.l.b16 %v313
      %v987 = vunpack.c.l.b16 %v314
      %v988 = vunpack.c.l.b16 %v315
      %v989 = vunpack.c.l.b16 %v316
      %v990 = vunpack.c.l.b16 %v317
      %v991 = vunpack.c.l.b16 %v318
      %v992 = vunpack.c.l.b16 %v319
      %v993 = vunpack.c.l.b16 %v320
      %v994 = vunpack.c.l.b16 %v321
      %v995 = vunpack.c.l.b16 %v322
      %v996 = vunpack.c.l.b16 %v323
      %v997 = vunpack.c.l.b16 %v324
      %v998 = vunpack.c.l.b16 %v325
      %v999 = vunpack.c.l.b16 %v326
      %v1000 = vunpack.c.l.b16 %v327
      %v1001 = vunpack.c.l.b16 %v328
      %v1002 = vunpack.c.l.b16 %v329
      %v1003 = vunpack.c.l.b16 %v330
      %v1004 = vunpack.c.l.b16 %v331
      %v1005 = vunpack.c.l.b16 %v332
      %v1006 = vunpack.c.l.b16 %v333
      %v1007 = vunpack.c.l.b16 %v334
      %v1008 = vunpack.c.l.b16 %v335
      %v1009 = vunpack.c.l.b16 %v336
      %v1010 = vunpack.c.l.b16 %v337
      %v1011 = vunpack.c.l.b16 %v338
      %v1012 = vunpack.c.l.b16 %v339
      %v1013 = vunpack.c.l.b16 %v340
      %v1014 = vunpack.c.l.b16 %v341
      %v1015 = vunpack.c.l.b16 %v342
      %v1016 = vunpack.c.l.b16 %v343
      %v1017 = vunpack.c.l.b16 %v344
      %v1018 = vunpack.c.l.b16 %v345
      %v1019 = vunpack.c.l.b16 %v346
      %v1020 = vunpack.c.l.b16 %v347
      %v1021 = vunpack.c.l.b16 %v348
      %v1022 = vunpack.c.l.b16 %v349
      %v1023 = vunpack.c.l.b16 %v350
      %v1024 = vunpack.c.l.b16 %v351
      %v1025 = vunpack.c.l.b16 %v352
      %v1026 = vunpack.c.l.b16 %v353
      %v1027 = vunpack.c.l.b16 %v354
      %v1028 = vunpack.c.l.b16 %v355
      %v1029 = vunpack.c.l.b16 %v356
      %v1030 = vunpack.c.l.b16 %v357
      %v1031 = vunpack.c.l.b16 %v358
      %v1032 = vunpack.c.l.b16 %v359
      %v1033 = vunpack.c.l.b16 %v360
      %v1034 = vunpack.c.l.b16 %v361
      %v1035 = vunpack.c.l.b16 %v362
      %v1036 = vunpack.c.l.b16 %v363
      %v1037 = vunpack.c.l.b16 %v364
      %v1038 = vunpack.c.l.b16 %v365
      %v1039 = vunpack.c.l.b16 %v366
      %v1040 = vunpack.c.l.b16 %v367
      %v1041 = vunpack.c.l.b16 %v368
      %v1042 = vunpack.c.l.b16 %v369
      %v1043 = vunpack.c.l.b16 %v370
      %v1044 = vunpack.c.l.b16 %v371
      %v1045 = vunpack.c.l.b16 %v372
      %v1046 = vunpack.c.l.b16 %v373
      %v1047 = vunpack.c.l.b16 %v374
      %v1048 = vunpack.c.l.b16 %v375
      %v1049 = vunpack.c.l.b16 %v376
      %v1050 = vunpack.c.l.b16 %v377
      %v1051 = vunpack.c.l.b16 %v378
      %v1052 = vunpack.c.l.b16 %v379
      %v1053 = vunpack.c.l.b16 %v380
      %v1054 = vunpack.c.l.b16 %v381
      %v1055 = vunpack.c.l.b16 %v382
      %v1056 = vunpack.c.l.b16 %v383
      %v1057 = vunpack.c.l.b16 %v384
      %v1058 = vunpack.c.l.b16 %v385
      %v1059 = vunpack.c.l.b16 %v386
      %v1060 = vunpack.c.l.b16 %v387
      %v1061 = vunpack.c.l.b16 %v388
      %v1062 = vunpack.c.l.b16 %v389
      %v1063 = vunpack.c.l.b16 %v390
      %v1064 = vunpack.c.l.b16 %v391
      %v1065 = vunpack.c.l.b16 %v392
      %v1066 = vunpack.c.l.b16 %v393
      %v1067 = vunpack.c.l.b16 %v394
      %v1068 = vunpack.c.l.b16 %v395
      %v1069 = vunpack.c.l.b16 %v396
      %v1070 = vunpack.c.l.b16 %v397
      %v1071 = vunpack.c.l.b16 %v398
      %v1072 = vunpack.c.l.b16 %v399
      %v1073 = vunpack.c.l.b16 %v400
      %v1074 = vunpack.c.l.b16 %v401
      %v1075 = vunpack.c.l.b16 %v402
      %v1076 = vunpack.c.l.b16 %v403
      %v1077 = vunpack.c.l.b16 %v404
      %v1078 = vunpack.c.l.b16 %v405
      %v1079 = vunpack.c.l.b16 %v406
      %v1080 = vunpack.c.l.b16 %v407
      %v1081 = vunpack.c.l.b16 %v408
      %v1082 = vunpack.c.l.b16 %v409
      %v1083 = vunpack.c.l.b16 %v410
      %v1084 = vunpack.c.l.b16 %v411
      %v1085 = vunpack.c.l.b16 %v412
      %v1086 = vunpack.c.l.b16 %v413
      %v1087 = vunpack.c.l.b16 %v414
      %v1088 = vunpack.c.l.b16 %v415
      %v1089 = vunpack.c.l.b16 %v416
      %v1090 = vunpack.c.l.b16 %v417
      %v1091 = vunpack.c.l.b16 %v418
      %v1092 = vunpack.c.l.b16 %v419
      %v1093 = vunpack.c.l.b16 %v420
      %v1094 = vunpack.c.l.b16 %v421
      %v1095 = vunpack.c.l.b16 %v422
      %v1096 = vunpack.c.l.b16 %v423
      %v1097 = vunpack.c.l.b16 %v424
      %v1098 = vunpack.c.l.b16 %v425
      %v1099 = vunpack.c.l.b16 %v426
      %v1100 = vunpack.c.l.b16 %v427
      %v1101 = vunpack.c.l.b16 %v428
      %v1102 = vunpack.c.l.b16 %v429
      %v1103 = vunpack.c.l.b16 %v430
      %v1104 = vunpack.c.l.b16 %v431
      %v1105 = vunpack.c.l.b16 %v432
      %v1106 = vunpack.c.l.b16 %v433
      %v1107 = vunpack.c.l.b16 %v434
      %v1108 = vunpack.c.l.b16 %v435
      %v1109 = vunpack.c.l.b16 %v436
      %v1110 = vunpack.c.l.b16 %v437
      %v1111 = vunpack.c.l.b16 %v438
      %v1112 = vunpack.c.l.b16 %v439
      %v1113 = vunpack.c.l.b16 %v440
      %v1114 = vunpack.c.l.b16 %v441
      %v1115 = vunpack.c.l.b16 %v442
      %v1116 = vunpack.c.l.b16 %v443
      %v1117 = vunpack.c.l.b16 %v444
      %v1118 = vunpack.c.l.b16 %v445
      %v1119 = vunpack.c.l.b16 %v446
      %v1120 = vunpack.c.l.b16 %v447
      %v1121 = vunpack.c.l.b16 %v448
      %v1122 = vunpack.c.l.b16 %v449
      %v1123 = vunpack.c.l.b16 %v450
      %v1124 = vunpack.c.l.b16 %v451
      %v1125 = vunpack.c.l.b16 %v452
      %v1126 = vunpack.c.l.b16 %v453
      %v1127 = vunpack.c.l.b16 %v454
      %v1128 = vunpack.c.l.b16 %v455
      %v1129 = vunpack.c.l.b16 %v456
      %v1130 = vunpack.c.l.b16 %v457
      %v1131 = vunpack.c.l.b16 %v458
      %v1132 = vunpack.c.l.b16 %v459
      %v1133 = vunpack.c.l.b16 %v460
      %v1134 = vunpack.c.l.b16 %v461
      %v1135 = vunpack.c.l.b16 %v462
      %v1136 = vunpack.c.l.b16 %v463
      %v1137 = vunpack.c.l.b16 %v464
      %v1138 = vunpack.c.l.b16 %v465
      %v1139 = vunpack.c.l.b16 %v466
      %v1140 = vunpack.c.l.b16 %v467
      %v1141 = vunpack.c.l.b16 %v468
      %v1142 = vunpack.c.l.b16 %v469
      %v1143 = vunpack.c.l.b16 %v470
      %v1144 = vunpack.c.l.b16 %v471
      %v1145 = vunpack.c.l.b16 %v472
      %v1146 = vunpack.c.l.b16 %v473
      %v1147 = vunpack.c.l.b16 %v474
      %v1148 = vunpack.c.l.b16 %v475
      %v1149 = vunpack.c.l.b16 %v476
      %v1150 = vunpack.c.l.b16 %v477
      %v1151 = vunpack.c.l.b16 %v478
      %v1152 = vunpack.c.l.b16 %v479
      %v1153 = vunpack.c.l.b16 %v480
      %v1154 = vunpack.c.l.b16 %v481
      %v1155 = vunpack.c.l.b16 %v482
      %v1156 = vunpack.c.l.b16 %v483
      %v1157 = vunpack.c.l.b16 %v484
      %v1158 = vunpack.c.l.b16 %v485
      %v1159 = vunpack.c.l.b16 %v486
      %v1160 = vunpack.c.l.b16 %v487
      %v1161 = vunpack.c.l.b16 %v488
      %v1162 = vunpack.c.l.b16 %v489
      %v1163 = vunpack.c.l.b16 %v490
      %v1164 = vunpack.c.l.b16 %v491
      %v1165 = vunpack.c.l.b16 %v492
      %v1166 = vunpack.c.l.b16 %v493
      %v1167 = vunpack.c.l.b16 %v494
      %v1168 = vunpack.c.l.b16 %v495
      %v1169 = vunpack.c.l.b16 %v496
      %v1170 = vunpack.c.l.b16 %v497
      %v1171 = vunpack.c.l.b16 %v498
      %v1172 = vunpack.c.l.b16 %v499
      %v1173 = vunpack.c.l.b16 %v500
      %v1174 = vunpack.c.l.b16 %v501
      %v1175 = vunpack.c.l.b16 %v502
      %v1176 = vunpack.c.l.b16 %v503
      %v1177 = vunpack.c.l.b16 %v504
      %v1178 = vunpack.c.l.b16 %v505
      %v1179 = vunpack.c.l.b16 %v506
      %v1180 = vunpack.c.l.b16 %v507
      %v1181 = vunpack.c.l.b16 %v508
      %v1182 = vunpack.c.l.b16 %v509
      %v1183 = vunpack.c.l.b16 %v510
      %v1184 = vunpack.c.l.b16 %v511
      %v1185 = vunpack.c.l.b16 %v512
      %v1186 = vunpack.c.l.b16 %v513
      %v1187 = vunpack.c.l.b16 %v514
      %v1188 = vunpack.c.l.b16 %v515
      %v1189 = vunpack.c.l.b16 %v516
      %v1190 = vunpack.c.l.b16 %v517
      %v1191 = vunpack.c.l.b16 %v518
      %v1192 = vunpack.c.l.b16 %v519
      %v1193 = vpack.c.b16 %v906, %v905
      %v1194 = vpack.c.b16 %v908, %v907
      %v1195 = vpack.c.b16 %v910, %v909
      %v1196 = vpack.c.b16 %v912, %v911
      %v1197 = vpack.c.b16 %v914, %v913
      %v1198 = vpack.c.b16 %v916, %v915
      %v1199 = vpack.c.b16 %v918, %v917
      %v1200 = vpack.c.b16 %v920, %v919
      %v1201 = vpack.c.b16 %v922, %v921
      %v1202 = vpack.c.b16 %v924, %v923
      %v1203 = vpack.c.b16 %v926, %v925
      %v1204 = vpack.c.b16 %v928, %v927
      %v1205 = vpack.c.b16 %v930, %v929
      %v1206 = vpack.c.b16 %v932, %v931
      %v1207 = vpack.c.b16 %v934, %v933
      %v1208 = vpack.c.b16 %v936, %v935
      %v1209 = vpack.c.b16 %v938, %v937
      %v1210 = vpack.c.b16 %v940, %v939
      %v1211 = vpack.c.b16 %v942, %v941
      %v1212 = vpack.c.b16 %v944, %v943
      %v1213 = vpack.c.b16 %v946, %v945
      %v1214 = vpack.c.b16 %v948, %v947
      %v1215 = vpack.c.b16 %v950, %v949
      %v1216 = vpack.c.b16 %v952, %v951
      %v1217 = vpack.c.b16 %v954, %v953
      %v1218 = vpack.c.b16 %v956, %v955
      %v1219 = vpack.c.b16 %v958, %v957
      %v1220 = vpack.c.b16 %v960, %v959
      %v1221 = vpack.c.b16 %v962, %v961
      %v1222 = vpack.c.b16 %v964, %v963
      %v1223 = vpack.c.b16 %v966, %v965
      %v1224 = vpack.c.b16 %v968, %v967
      %v1225 = vpack.c.b16 %v970, %v969
      %v1226 = vpack.c.b16 %v972, %v971
      %v1227 = vpack.c.b16 %v974, %v973
      %v1228 = vpack.c.b16 %v976, %v975
      %v1229 = vpack.c.b16 %v978, %v977
      %v1230 = vpack.c.b16 %v980, %v979
      %v1231 = vpack.c.b16 %v982, %v981
      %v1232 = vpack.c.b16 %v984, %v983
      %v1233 = vpack.c.b16 %v986, %v985
      %v1234 = vpack.c.b16 %v988, %v987
      %v1235 = vpack.c.b16 %v990, %v989
      %v1236 = vpack.c.b16 %v992, %v991
      %v1237 = vpack.c.b16 %v994, %v993
      %v1238 = vpack.c.b16 %v996, %v995
      %v1239 = vpack.c.b16 %v998, %v997
      %v1240 = vpack.c.b16 %v1000, %v999
      %v1241 = vpack.c.b16 %v1002, %v1001
      %v1242 = vpack.c.b16 %v1004, %v1003
      %v1243 = vpack.c.b16 %v1006, %v1005
      %v1244 = vpack.c.b16 %v1008, %v1007
      %v1245 = vpack.c.b16 %v1010, %v1009
      %v1246 = vpack.c.b16 %v1012, %v1011
      %v1247 = vpack.c.b16 %v1014, %v1013
      %v1248 = vpack.c.b16 %v1016, %v1015
      %v1249 = vpack.c.b16 %v1018, %v1017
      %v1250 = vpack.c.b16 %v1020, %v1019
      %v1251 = vpack.c.b16 %v1022, %v1021
      %v1252 = vpack.c.b16 %v1024, %v1023
      %v1253 = vpack.c.b16 %v1026, %v1025
      %v1254 = vpack.c.b16 %v1028, %v1027
      %v1255 = vpack.c.b16 %v1030, %v1029
      %v1256 = vpack.c.b16 %v1032, %v1031
      %v1257 = vpack.c.b16 %v1034, %v1033
      %v1258 = vpack.c.b16 %v1036, %v1035
      %v1259 = vpack.c.b16 %v1038, %v1037
      %v1260 = vpack.c.b16 %v1040, %v1039
      %v1261 = vpack.c.b16 %v1042, %v1041
      %v1262 = vpack.c.b16 %v1044, %v1043
      %v1263 = vpack.c.b16 %v1046, %v1045
      %v1264 = vpack.c.b16 %v1048, %v1047
      %v1265 = vpack.c.b16 %v1050, %v1049
      %v1266 = vpack.c.b16 %v1052, %v1051
      %v1267 = vpack.c.b16 %v1054, %v1053
      %v1268 = vpack.c.b16 %v1056, %v1055
      %v1269 = vpack.c.b16 %v1058, %v1057
      %v1270 = vpack.c.b16 %v1060, %v1059
      %v1271 = vpack.c.b16 %v1062, %v1061
      %v1272 = vpack.c.b16 %v1064, %v1063
      %v1273 = vpack.c.b16 %v1066, %v1065
      %v1274 = vpack.c.b16 %v1068, %v1067
      %v1275 = vpack.c.b16 %v1070, %v1069
      %v1276 = vpack.c.b16 %v1072, %v1071
      %v1277 = vpack.c.b16 %v1074, %v1073
      %v1278 = vpack.c.b16 %v1076, %v1075
      %v1279 = vpack.c.b16 %v1078, %v1077
      %v1280 = vpack.c.b16 %v1080, %v1079
      %v1281 = vpack.c.b16 %v1082, %v1081
      %v1282 = vpack.c.b16 %v1084, %v1083
      %v1283 = vpack.c.b16 %v1086, %v1085
      %v1284 = vpack.c.b16 %v1088, %v1087
      %v1285 = vpack.c.b16 %v1090, %v1089
      %v1286 = vpack.c.b16 %v1092, %v1091
      %v1287 = vpack.c.b16 %v1094, %v1093
      %v1288 = vpack.c.b16 %v1096, %v1095
      %v1289 = vpack.c.b16 %v1098, %v1097
      %v1290 = vpack.c.b16 %v1100, %v1099
      %v1291 = vpack.c.b16 %v1102, %v1101
      %v1292 = vpack.c.b16 %v1104, %v1103
      %v1293 = vpack.c.b16 %v1106, %v1105
      %v1294 = vpack.c.b16 %v1108, %v1107
      %v1295 = vpack.c.b16 %v1110, %v1109
      %v1296 = vpack.c.b16 %v1112, %v1111
      %v1297 = vpack.c.b16 %v1114, %v1113
      %v1298 = vpack.c.b16 %v1116, %v1115
      %v1299 = vpack.c.b16 %v1118, %v1117
      %v1300 = vpack.c.b16 %v1120, %v1119
      %v1301 = vpack.c.b16 %v1122, %v1121
      %v1302 = vpack.c.b16 %v1124, %v1123
      %v1303 = vpack.c.b16 %v1126, %v1125
      %v1304 = vpack.c.b16 %v1128, %v1127
      %v1305 = vpack.c.b16 %v1130, %v1129
      %v1306 = vpack.c.b16 %v1132, %v1131
      %v1307 = vpack.c.b16 %v1134, %v1133
      %v1308 = vpack.c.b16 %v1136, %v1135
      %v1309 = vpack.c.b16 %v1138, %v1137
      %v1310 = vpack.c.b16 %v1140, %v1139
      %v1311 = vpack.c.b16 %v1142, %v1141
      %v1312 = vpack.c.b16 %v1144, %v1143
      %v1313 = vpack.c.b16 %v1146, %v1145
      %v1314 = vpack.c.b16 %v1148, %v1147
      %v1315 = vpack.c.b16 %v1150, %v1149
      %v1316 = vpack.c.b16 %v1152, %v1151
      %v1317 = vpack.c.b16 %v1154, %v1153
      %v1318 = vpack.c.b16 %v1156, %v1155
      %v1319 = vpack.c.b16 %v1158, %v1157
      %v1320 = vpack.c.b16 %v1160, %v1159
      %v1321 = vpack.c.b16 %v1162, %v1161
      %v1322 = vpack.c.b16 %v1164, %v1163
      %v1323 = vpack.c.b16 %v1166, %v1165
      %v1324 = vpack.c.b16 %v1168, %v1167
      %v1325 = vpack.c.b16 %v1170, %v1169
      %v1326 = vpack.c.b16 %v1172, %v1171
      %v1327 = vpack.c.b16 %v1174, %v1173
      %v1328 = vpack.c.b16 %v1176, %v1175
      %v1329 = vpack.c.b16 %v1178, %v1177
      %v1330 = vpack.c.b16 %v1180, %v1179
      %v1331 = vpack.c.b16 %v1182, %v1181
      %v1332 = vpack.c.b16 %v1184, %v1183
      %v1333 = vpack.c.b16 %v1186, %v1185
      %v1334 = vpack.c.b16 %v1188, %v1187
      %v1335 = vpack.c.b16 %v1190, %v1189
      %v1336 = vpack.c.b16 %v1192, %v1191
      %1481 = vmatprep.subr.bf16.mxu0 0
      %1482 = vmatpush1.bf16.msra.mxu0 %v1200
      %1483 = vmatprep.subr.bf16.mxu0 0
      %1484 = vmatpush1.bf16.msra.mxu0 %v1199
      %1485 = vmatprep.subr.bf16.mxu0 0
      %1486 = vmatpush1.bf16.msra.mxu0 %v1198
      %1487 = vmatprep.subr.bf16.mxu0 0
      %1488 = vmatpush1.bf16.msra.mxu0 %v1197
      %1489 = vmatprep.subr.bf16.mxu0 0
      %1490 = vmatpush1.bf16.msra.mxu0 %v1196
      %1491 = vmatprep.subr.bf16.mxu0 0
      %1492 = vmatpush1.bf16.msra.mxu0 %v1195
      %1493 = vmatprep.subr.bf16.mxu0 0
      %1494 = vmatpush1.bf16.msra.mxu0 %v1194
      %1495 = vmatprep.subr.bf16.mxu0 0
      %1496 = vmatpush1.bf16.msra.mxu0 %v1193
      %1497 = vmatprep.subr.bf16.mxu0 0
      %1498 = vmatpush2.bf16.msra.mxu0 %v1208
      %1499 = vmatprep.subr.bf16.mxu0 0
      %1500 = vmatpush2.bf16.msra.mxu0 %v1207
      %1501 = vmatprep.subr.bf16.mxu0 0
      %1502 = vmatpush2.bf16.msra.mxu0 %v1206
      %1503 = vmatprep.subr.bf16.mxu0 0
      %1504 = vmatpush2.bf16.msra.mxu0 %v1205
      %1505 = vmatprep.subr.bf16.mxu0 0
      %1506 = vmatpush2.bf16.msra.mxu0 %v1204
      %1507 = vmatprep.subr.bf16.mxu0 0
      %1508 = vmatpush2.bf16.msra.mxu0 %v1203
      %1509 = vmatprep.subr.bf16.mxu0 0
      %1510 = vmatpush2.bf16.msra.mxu0 %v1202
      %1511 = vmatprep.subr.bf16.mxu0 0
      %1512 = vmatpush2.bf16.msra.mxu0 %v1201
      %1513 = vmatprep.mubr.bf16.mxu0 %v582
      %1514 = vmatmul.mubr.bf16.gmra.mxu0 %v581
      %v1515 = vpop.f32.mrf.mxu0
      %v1516 = vadd.f32 %v525, %v1515
      %v1517 = vpop.f32.mrf.mxu0
      %v1518 = vpop.f32.mrf.mxu0
      %v1519 = vadd.f32 %v525, %v1518
      %v1520 = vpop.f32.mrf.mxu0
      %1521 = vdwg.mxu0
      %1522 = vmatprep.subr.bf16.mxu0 0
      %1523 = vmatpush1.bf16.msra.mxu0 %v1216
      %1524 = vmatprep.subr.bf16.mxu0 0
      %1525 = vmatpush1.bf16.msra.mxu0 %v1215
      %1526 = vmatprep.subr.bf16.mxu0 0
      %1527 = vmatpush1.bf16.msra.mxu0 %v1214
      %1528 = vmatprep.subr.bf16.mxu0 0
      %1529 = vmatpush1.bf16.msra.mxu0 %v1213
      %1530 = vmatprep.subr.bf16.mxu0 0
      %1531 = vmatpush1.bf16.msra.mxu0 %v1212
      %1532 = vmatprep.subr.bf16.mxu0 0
      %1533 = vmatpush1.bf16.msra.mxu0 %v1211
      %1534 = vmatprep.subr.bf16.mxu0 0
      %1535 = vmatpush1.bf16.msra.mxu0 %v1210
      %1536 = vmatprep.subr.bf16.mxu0 0
      %1537 = vmatpush1.bf16.msra.mxu0 %v1209
      %1538 = vmatprep.subr.bf16.mxu0 0
      %1539 = vmatpush2.bf16.msra.mxu0 %v1224
      %1540 = vmatprep.subr.bf16.mxu0 0
      %1541 = vmatpush2.bf16.msra.mxu0 %v1223
      %1542 = vmatprep.subr.bf16.mxu0 0
      %1543 = vmatpush2.bf16.msra.mxu0 %v1222
      %1544 = vmatprep.subr.bf16.mxu0 0
      %1545 = vmatpush2.bf16.msra.mxu0 %v1221
      %1546 = vmatprep.subr.bf16.mxu0 0
      %1547 = vmatpush2.bf16.msra.mxu0 %v1220
      %1548 = vmatprep.subr.bf16.mxu0 0
      %1549 = vmatpush2.bf16.msra.mxu0 %v1219
      %1550 = vmatprep.subr.bf16.mxu0 0
      %1551 = vmatpush2.bf16.msra.mxu0 %v1218
      %1552 = vmatprep.subr.bf16.mxu0 0
      %1553 = vmatpush2.bf16.msra.mxu0 %v1217
      %1554 = vmatprep.mubr.bf16.mxu0 %v584
      %1555 = vmatmul.mubr.bf16.gmra.mxu0 %v583
      %v1556 = vpop.f32.mrf.mxu0
      %v1557 = vadd.f32 %v1516, %v1556
      %v1558 = vpop.f32.mrf.mxu0
      %v1559 = vpop.f32.mrf.mxu0
      %v1560 = vadd.f32 %v1519, %v1559
      %v1561 = vpop.f32.mrf.mxu0
      %1562 = vdwg.mxu0
      %1563 = vmatprep.subr.bf16.mxu0 0
      %1564 = vmatpush1.bf16.msra.mxu0 %v1232
      %1565 = vmatprep.subr.bf16.mxu0 0
      %1566 = vmatpush1.bf16.msra.mxu0 %v1231
      %1567 = vmatprep.subr.bf16.mxu0 0
      %1568 = vmatpush1.bf16.msra.mxu0 %v1230
      %1569 = vmatprep.subr.bf16.mxu0 0
      %1570 = vmatpush1.bf16.msra.mxu0 %v1229
      %1571 = vmatprep.subr.bf16.mxu0 0
      %1572 = vmatpush1.bf16.msra.mxu0 %v1228
      %1573 = vmatprep.subr.bf16.mxu0 0
      %1574 = vmatpush1.bf16.msra.mxu0 %v1227
      %1575 = vmatprep.subr.bf16.mxu0 0
      %1576 = vmatpush1.bf16.msra.mxu0 %v1226
      %1577 = vmatprep.subr.bf16.mxu0 0
      %1578 = vmatpush1.bf16.msra.mxu0 %v1225
      %1579 = vmatprep.subr.bf16.mxu0 0
      %1580 = vmatpush2.bf16.msra.mxu0 %v1240
      %1581 = vmatprep.subr.bf16.mxu0 0
      %1582 = vmatpush2.bf16.msra.mxu0 %v1239
      %1583 = vmatprep.subr.bf16.mxu0 0
      %1584 = vmatpush2.bf16.msra.mxu0 %v1238
      %1585 = vmatprep.subr.bf16.mxu0 0
      %1586 = vmatpush2.bf16.msra.mxu0 %v1237
      %1587 = vmatprep.subr.bf16.mxu0 0
      %1588 = vmatpush2.bf16.msra.mxu0 %v1236
      %1589 = vmatprep.subr.bf16.mxu0 0
      %1590 = vmatpush2.bf16.msra.mxu0 %v1235
      %1591 = vmatprep.subr.bf16.mxu0 0
      %1592 = vmatpush2.bf16.msra.mxu0 %v1234
      %1593 = vmatprep.subr.bf16.mxu0 0
      %1594 = vmatpush2.bf16.msra.mxu0 %v1233
      %1595 = vmatprep.mubr.bf16.mxu0 %v586
      %1596 = vmatmul.mubr.bf16.gmra.mxu0 %v585
      %v1597 = vpop.f32.mrf.mxu0
      %v1598 = vadd.f32 %v1557, %v1597
      %v1599 = vpop.f32.mrf.mxu0
      %v1600 = vpop.f32.mrf.mxu0
      %v1601 = vadd.f32 %v1560, %v1600
      %v1602 = vpop.f32.mrf.mxu0
      %1603 = vdwg.mxu0
      %1604 = vmatprep.subr.bf16.mxu0 0
      %1605 = vmatpush1.bf16.msra.mxu0 %v1248
      %1606 = vmatprep.subr.bf16.mxu0 0
      %1607 = vmatpush1.bf16.msra.mxu0 %v1247
      %1608 = vmatprep.subr.bf16.mxu0 0
      %1609 = vmatpush1.bf16.msra.mxu0 %v1246
      %1610 = vmatprep.subr.bf16.mxu0 0
      %1611 = vmatpush1.bf16.msra.mxu0 %v1245
      %1612 = vmatprep.subr.bf16.mxu0 0
      %1613 = vmatpush1.bf16.msra.mxu0 %v1244
      %1614 = vmatprep.subr.bf16.mxu0 0
      %1615 = vmatpush1.bf16.msra.mxu0 %v1243
      %1616 = vmatprep.subr.bf16.mxu0 0
      %1617 = vmatpush1.bf16.msra.mxu0 %v1242
      %1618 = vmatprep.subr.bf16.mxu0 0
      %1619 = vmatpush1.bf16.msra.mxu0 %v1241
      %1620 = vmatprep.subr.bf16.mxu0 0
      %1621 = vmatpush2.bf16.msra.mxu0 %v1256
      %1622 = vmatprep.subr.bf16.mxu0 0
      %1623 = vmatpush2.bf16.msra.mxu0 %v1255
      %1624 = vmatprep.subr.bf16.mxu0 0
      %1625 = vmatpush2.bf16.msra.mxu0 %v1254
      %1626 = vmatprep.subr.bf16.mxu0 0
      %1627 = vmatpush2.bf16.msra.mxu0 %v1253
      %1628 = vmatprep.subr.bf16.mxu0 0
      %1629 = vmatpush2.bf16.msra.mxu0 %v1252
      %1630 = vmatprep.subr.bf16.mxu0 0
      %1631 = vmatpush2.bf16.msra.mxu0 %v1251
      %1632 = vmatprep.subr.bf16.mxu0 0
      %1633 = vmatpush2.bf16.msra.mxu0 %v1250
      %1634 = vmatprep.subr.bf16.mxu0 0
      %1635 = vmatpush2.bf16.msra.mxu0 %v1249
      %1636 = vmatprep.mubr.bf16.mxu0 %v588
      %1637 = vmatmul.mubr.bf16.gmra.mxu0 %v587
      %v1638 = vpop.f32.mrf.mxu0
      %v1639 = vadd.f32 %v1598, %v1638
      %v1640 = vpop.f32.mrf.mxu0
      %v1641 = vpop.f32.mrf.mxu0
      %v1642 = vadd.f32 %v1601, %v1641
      %v1643 = vpop.f32.mrf.mxu0
      %1644 = vdwg.mxu0
      %1645 = vmatprep.subr.bf16.mxu0 0
      %1646 = vmatpush1.bf16.msra.mxu0 %v1264
      %1647 = vmatprep.subr.bf16.mxu0 0
      %1648 = vmatpush1.bf16.msra.mxu0 %v1263
      %1649 = vmatprep.subr.bf16.mxu0 0
      %1650 = vmatpush1.bf16.msra.mxu0 %v1262
      %1651 = vmatprep.subr.bf16.mxu0 0
      %1652 = vmatpush1.bf16.msra.mxu0 %v1261
      %1653 = vmatprep.subr.bf16.mxu0 0
      %1654 = vmatpush1.bf16.msra.mxu0 %v1260
      %1655 = vmatprep.subr.bf16.mxu0 0
      %1656 = vmatpush1.bf16.msra.mxu0 %v1259
      %1657 = vmatprep.subr.bf16.mxu0 0
      %1658 = vmatpush1.bf16.msra.mxu0 %v1258
      %1659 = vmatprep.subr.bf16.mxu0 0
      %1660 = vmatpush1.bf16.msra.mxu0 %v1257
      %1661 = vmatprep.subr.bf16.mxu0 0
      %1662 = vmatpush2.bf16.msra.mxu0 %v1272
      %1663 = vmatprep.subr.bf16.mxu0 0
      %1664 = vmatpush2.bf16.msra.mxu0 %v1271
      %1665 = vmatprep.subr.bf16.mxu0 0
      %1666 = vmatpush2.bf16.msra.mxu0 %v1270
      %1667 = vmatprep.subr.bf16.mxu0 0
      %1668 = vmatpush2.bf16.msra.mxu0 %v1269
      %1669 = vmatprep.subr.bf16.mxu0 0
      %1670 = vmatpush2.bf16.msra.mxu0 %v1268
      %1671 = vmatprep.subr.bf16.mxu0 0
      %1672 = vmatpush2.bf16.msra.mxu0 %v1267
      %1673 = vmatprep.subr.bf16.mxu0 0
      %1674 = vmatpush2.bf16.msra.mxu0 %v1266
      %1675 = vmatprep.subr.bf16.mxu0 0
      %1676 = vmatpush2.bf16.msra.mxu0 %v1265
      %1677 = vmatprep.mubr.bf16.mxu0 %v590
      %1678 = vmatmul.mubr.bf16.gmra.mxu0 %v589
      %v1679 = vpop.f32.mrf.mxu0
      %v1680 = vadd.f32 %v1639, %v1679
      %v1681 = vpop.f32.mrf.mxu0
      %v1682 = vpop.f32.mrf.mxu0
      %v1683 = vadd.f32 %v1642, %v1682
      %v1684 = vpop.f32.mrf.mxu0
      %1685 = vdwg.mxu0
      %1686 = vmatprep.subr.bf16.mxu0 0
      %1687 = vmatpush1.bf16.msra.mxu0 %v1280
      %1688 = vmatprep.subr.bf16.mxu0 0
      %1689 = vmatpush1.bf16.msra.mxu0 %v1279
      %1690 = vmatprep.subr.bf16.mxu0 0
      %1691 = vmatpush1.bf16.msra.mxu0 %v1278
      %1692 = vmatprep.subr.bf16.mxu0 0
      %1693 = vmatpush1.bf16.msra.mxu0 %v1277
      %1694 = vmatprep.subr.bf16.mxu0 0
      %1695 = vmatpush1.bf16.msra.mxu0 %v1276
      %1696 = vmatprep.subr.bf16.mxu0 0
      %1697 = vmatpush1.bf16.msra.mxu0 %v1275
      %1698 = vmatprep.subr.bf16.mxu0 0
      %1699 = vmatpush1.bf16.msra.mxu0 %v1274
      %1700 = vmatprep.subr.bf16.mxu0 0
      %1701 = vmatpush1.bf16.msra.mxu0 %v1273
      %1702 = vmatprep.subr.bf16.mxu0 0
      %1703 = vmatpush2.bf16.msra.mxu0 %v1288
      %1704 = vmatprep.subr.bf16.mxu0 0
      %1705 = vmatpush2.bf16.msra.mxu0 %v1287
      %1706 = vmatprep.subr.bf16.mxu0 0
      %1707 = vmatpush2.bf16.msra.mxu0 %v1286
      %1708 = vmatprep.subr.bf16.mxu0 0
      %1709 = vmatpush2.bf16.msra.mxu0 %v1285
      %1710 = vmatprep.subr.bf16.mxu0 0
      %1711 = vmatpush2.bf16.msra.mxu0 %v1284
      %1712 = vmatprep.subr.bf16.mxu0 0
      %1713 = vmatpush2.bf16.msra.mxu0 %v1283
      %1714 = vmatprep.subr.bf16.mxu0 0
      %1715 = vmatpush2.bf16.msra.mxu0 %v1282
      %1716 = vmatprep.subr.bf16.mxu0 0
      %1717 = vmatpush2.bf16.msra.mxu0 %v1281
      %1718 = vmatprep.mubr.bf16.mxu0 %v592
      %1719 = vmatmul.mubr.bf16.gmra.mxu0 %v591
      %v1720 = vpop.f32.mrf.mxu0
      %v1721 = vadd.f32 %v1680, %v1720
      %v1722 = vpop.f32.mrf.mxu0
      %v1723 = vpop.f32.mrf.mxu0
      %v1724 = vadd.f32 %v1683, %v1723
      %v1725 = vpop.f32.mrf.mxu0
      %1726 = vdwg.mxu0
      %1727 = vmatprep.subr.bf16.mxu0 0
      %1728 = vmatpush1.bf16.msra.mxu0 %v1296
      %1729 = vmatprep.subr.bf16.mxu0 0
      %1730 = vmatpush1.bf16.msra.mxu0 %v1295
      %1731 = vmatprep.subr.bf16.mxu0 0
      %1732 = vmatpush1.bf16.msra.mxu0 %v1294
      %1733 = vmatprep.subr.bf16.mxu0 0
      %1734 = vmatpush1.bf16.msra.mxu0 %v1293
      %1735 = vmatprep.subr.bf16.mxu0 0
      %1736 = vmatpush1.bf16.msra.mxu0 %v1292
      %1737 = vmatprep.subr.bf16.mxu0 0
      %1738 = vmatpush1.bf16.msra.mxu0 %v1291
      %1739 = vmatprep.subr.bf16.mxu0 0
      %1740 = vmatpush1.bf16.msra.mxu0 %v1290
      %1741 = vmatprep.subr.bf16.mxu0 0
      %1742 = vmatpush1.bf16.msra.mxu0 %v1289
      %1743 = vmatprep.subr.bf16.mxu0 0
      %1744 = vmatpush2.bf16.msra.mxu0 %v1304
      %1745 = vmatprep.subr.bf16.mxu0 0
      %1746 = vmatpush2.bf16.msra.mxu0 %v1303
      %1747 = vmatprep.subr.bf16.mxu0 0
      %1748 = vmatpush2.bf16.msra.mxu0 %v1302
      %1749 = vmatprep.subr.bf16.mxu0 0
      %1750 = vmatpush2.bf16.msra.mxu0 %v1301
      %1751 = vmatprep.subr.bf16.mxu0 0
      %1752 = vmatpush2.bf16.msra.mxu0 %v1300
      %1753 = vmatprep.subr.bf16.mxu0 0
      %1754 = vmatpush2.bf16.msra.mxu0 %v1299
      %1755 = vmatprep.subr.bf16.mxu0 0
      %1756 = vmatpush2.bf16.msra.mxu0 %v1298
      %1757 = vmatprep.subr.bf16.mxu0 0
      %1758 = vmatpush2.bf16.msra.mxu0 %v1297
      %1759 = vmatprep.mubr.bf16.mxu0 %v594
      %1760 = vmatmul.mubr.bf16.gmra.mxu0 %v593
      %v1761 = vpop.f32.mrf.mxu0
      %v1762 = vadd.f32 %v1721, %v1761
      %v1763 = vpop.f32.mrf.mxu0
      %v1764 = vpop.f32.mrf.mxu0
      %v1765 = vadd.f32 %v1724, %v1764
      %v1766 = vpop.f32.mrf.mxu0
      %1767 = vdwg.mxu0
      %1768 = vmatprep.subr.bf16.mxu0 0
      %1769 = vmatpush1.bf16.msra.mxu0 %v1312
      %1770 = vmatprep.subr.bf16.mxu0 0
      %1771 = vmatpush1.bf16.msra.mxu0 %v1311
      %1772 = vmatprep.subr.bf16.mxu0 0
      %1773 = vmatpush1.bf16.msra.mxu0 %v1310
      %1774 = vmatprep.subr.bf16.mxu0 0
      %1775 = vmatpush1.bf16.msra.mxu0 %v1309
      %1776 = vmatprep.subr.bf16.mxu0 0
      %1777 = vmatpush1.bf16.msra.mxu0 %v1308
      %1778 = vmatprep.subr.bf16.mxu0 0
      %1779 = vmatpush1.bf16.msra.mxu0 %v1307
      %1780 = vmatprep.subr.bf16.mxu0 0
      %1781 = vmatpush1.bf16.msra.mxu0 %v1306
      %1782 = vmatprep.subr.bf16.mxu0 0
      %1783 = vmatpush1.bf16.msra.mxu0 %v1305
      %1784 = vmatprep.subr.bf16.mxu0 0
      %1785 = vmatpush2.bf16.msra.mxu0 %v1320
      %1786 = vmatprep.subr.bf16.mxu0 0
      %1787 = vmatpush2.bf16.msra.mxu0 %v1319
      %1788 = vmatprep.subr.bf16.mxu0 0
      %1789 = vmatpush2.bf16.msra.mxu0 %v1318
      %1790 = vmatprep.subr.bf16.mxu0 0
      %1791 = vmatpush2.bf16.msra.mxu0 %v1317
      %1792 = vmatprep.subr.bf16.mxu0 0
      %1793 = vmatpush2.bf16.msra.mxu0 %v1316
      %1794 = vmatprep.subr.bf16.mxu0 0
      %1795 = vmatpush2.bf16.msra.mxu0 %v1315
      %1796 = vmatprep.subr.bf16.mxu0 0
      %1797 = vmatpush2.bf16.msra.mxu0 %v1314
      %1798 = vmatprep.subr.bf16.mxu0 0
      %1799 = vmatpush2.bf16.msra.mxu0 %v1313
      %1800 = vmatprep.mubr.bf16.mxu0 %v596
      %1801 = vmatmul.mubr.bf16.gmra.mxu0 %v595
      %v1802 = vpop.f32.mrf.mxu0
      %v1803 = vadd.f32 %v1762, %v1802
      %v1804 = vpop.f32.mrf.mxu0
      %v1805 = vpop.f32.mrf.mxu0
      %v1806 = vadd.f32 %v1765, %v1805
      %v1807 = vpop.f32.mrf.mxu0
      %1808 = vdwg.mxu0
      %1809 = vmatprep.subr.bf16.mxu0 0
      %1810 = vmatpush1.bf16.msra.mxu0 %v1328
      %1811 = vmatprep.subr.bf16.mxu0 0
      %1812 = vmatpush1.bf16.msra.mxu0 %v1327
      %1813 = vmatprep.subr.bf16.mxu0 0
      %1814 = vmatpush1.bf16.msra.mxu0 %v1326
      %1815 = vmatprep.subr.bf16.mxu0 0
      %1816 = vmatpush1.bf16.msra.mxu0 %v1325
      %1817 = vmatprep.subr.bf16.mxu0 0
      %1818 = vmatpush1.bf16.msra.mxu0 %v1324
      %1819 = vmatprep.subr.bf16.mxu0 0
      %1820 = vmatpush1.bf16.msra.mxu0 %v1323
      %1821 = vmatprep.subr.bf16.mxu0 0
      %1822 = vmatpush1.bf16.msra.mxu0 %v1322
      %1823 = vmatprep.subr.bf16.mxu0 0
      %1824 = vmatpush1.bf16.msra.mxu0 %v1321
      %1825 = vmatprep.subr.bf16.mxu0 0
      %1826 = vmatpush2.bf16.msra.mxu0 %v1336
      %1827 = vmatprep.subr.bf16.mxu0 0
      %1828 = vmatpush2.bf16.msra.mxu0 %v1335
      %1829 = vmatprep.subr.bf16.mxu0 0
      %1830 = vmatpush2.bf16.msra.mxu0 %v1334
      %1831 = vmatprep.subr.bf16.mxu0 0
      %1832 = vmatpush2.bf16.msra.mxu0 %v1333
      %1833 = vmatprep.subr.bf16.mxu0 0
      %1834 = vmatpush2.bf16.msra.mxu0 %v1332
      %1835 = vmatprep.subr.bf16.mxu0 0
      %1836 = vmatpush2.bf16.msra.mxu0 %v1331
      %1837 = vmatprep.subr.bf16.mxu0 0
      %1838 = vmatpush2.bf16.msra.mxu0 %v1330
      %1839 = vmatprep.subr.bf16.mxu0 0
      %1840 = vmatpush2.bf16.msra.mxu0 %v1329
      %1841 = vmatprep.mubr.bf16.mxu0 %v598
      %1842 = vmatmul.mubr.bf16.gmra.mxu0 %v597
      %v1843 = vpop.f32.mrf.mxu0
      %v1844 = vadd.f32 %v1803, %v1843
      %v1845 = vpop.f32.mrf.mxu0
      %v1846 = vpop.f32.mrf.mxu0
      %v1847 = vadd.f32 %v1806, %v1846
      %v1848 = vpop.f32.mrf.mxu0
      %1849 = vdwg.mxu0
      %v1850 = vmax.f32 %v1844, 0.0
      %v1851 = vmax.f32 %v1847, 0.0
      %v1852 = vpack.c.bf16 %v1851, %v1850
      %v1854 = vunpack.c.l.b16 %v1852
      %v1855 = vunpack.c.h.b16 %v1852
      %v1856 = vpack.c.b16 %v1854, %v1854
      %v1857 = vpack.c.b16 %v1855, %v1855
      %1860 = vst [vmem:[%s211] sm:$0xf] %v1856
      %1861 = vst [vmem:[%s211 + $0x4] sm:$0xf] %v1857
      %s1862 = smul.u32 2, %s19
      %p1863 = scmp.lt.s32.totalorder %s18, 1
      %s1864 = scalar_select %p1863, %s18, 1
      %p1865 = scmp.lt.s32.totalorder %s1862, 1
      %s1866 = scalar_select %p1865, %s1862, 1
      %s1867 = smul.addr %s1864, 2
      %s1868 = sadd.s32 %s1866, %s1867
      %s1869 = smul.addr %s1868, 4
      %s1870 = scalar_lea.vmem %s3, %s1869
      // Predicated region
      $region33: #{autoencoder_pallas.19} parent=31 // pred_check
        %p1871 = pneg %p116
      $region34: #{autoencoder_pallas.19} parent=31 // pred_check_branch
        %1873 = sbr.rel (%p1871) target = $region36
      $region35: #{autoencoder_pallas.19} parent=31 // pred_region
        %s1874 = smul.u32 2, %s19
      $region36: #{autoencoder_pallas.19} parent=31 // pred_fallthru
        _
    $region32: #{autoencoder_pallas.19} parent=5 // pred_fallthru
      _
    %p1875 = scmp.le.s32.totalorder 2, %s9
    // Predicated region
    $region37: #{autoencoder_pallas.19} parent=5 // pred_check
      %p1876 = pneg %p1875
    $region38: #{autoencoder_pallas.19} parent=5 // pred_check_branch
      %1878 = sbr.rel (%p1876) target = $region40
    $region39: #{autoencoder_pallas.19} parent=5 // pred_region
      %s1879 = ssub.s32 %s9, 2
      // Predicated region
      $region41: #{autoencoder_pallas.19} parent=39 // pred_check
        %p1880 = pneg %p122
      $region42: #{autoencoder_pallas.19} parent=39 // pred_check_branch
        %1882 = sbr.rel (%p1880) target = $region44
      $region43: #{autoencoder_pallas.19} parent=39 // pred_region
        %s1883 = smul.u32 2, %s21
        %p1884 = scmp.lt.s32.totalorder %s20, 1
        %s1885 = scalar_select %p1884, %s20, 1
        %p1886 = scmp.lt.s32.totalorder %s1883, 1
        %s1887 = scalar_select %p1886, %s1883, 1
        %s1888 = smul.addr %s1885, 2
        %s1889 = sadd.s32 %s1887, %s1888
        %s1890 = smul.addr %s1889, 4
        %s1891 = scalar_lea.vmem %s3, %s1890
      $region44: #{autoencoder_pallas.19} parent=39 // pred_fallthru
        _
    $region40: #{autoencoder_pallas.19} parent=5 // pred_fallthru
      _
  $region6: #{autoencoder_pallas.19} parent=0 // loop_footer
    %s13 = sadd.s32 1, %s9
  $region7: #{autoencoder_pallas.19} parent=0 // loop_footer_branch
    %8 = sbr.rel target = $region3
  $region8: #{autoencoder_pallas.19} parent=0 // loop_exit
    _

// kernel: autoencoder_pallas.21
$region0: #{autoencoder_pallas.21}
  #allocation0 [shape = 'u32[]', space=smem, size = 0x4, offset = 0x4, fixed_abs, tag = 'smem constant byte address 0x4 - core index']
  #allocation1 [shape = 'u32[144,128]{1,0:T(1,128)}', space=vmem, size = 0x12000, scoped, tag = 'internal scratch']
  %s0 = inlined_call_operand.vmem [shape: bf16[2,16,1152], index: 0, kind: input, shape index: {}]
  %s1 = inlined_call_operand.vmem [shape: bf16[1152,64], index: 1, kind: input, shape index: {}]
  %s2 = inlined_call_operand.vmem [shape: f32[1,64], index: 2, kind: input, shape index: {}]
  %s3 = inlined_call_operand.vmem [shape: bf16[2,16,64], index: 3, kind: output, shape index: {}]
  %s4 = sld [smem:[#allocation0]]
  $region45: #{autoencoder_pallas.21} parent=0
    _
  %s6 = ssub.s32 1, %s4
  %s7 = scalar_select 0, %s6, %s4
  loop: start=0, step=1, limit=4
  $region2: #{autoencoder_pallas.21} parent=0 // loop_pre_header
    _
  $region3: #{autoencoder_pallas.21} parent=0 // loop_header
    %s9 = sphi 0, %s13
    %p10 = scmp.ge.s32.totalorder %s9, 4
    %s16 = sphi 0, %s28
    %s17 = sphi 0, %s24
    %s18 = sphi 0, %s16
    %s19 = sphi 0, %s17
    %s20 = sphi 0, %s18
    %s21 = sphi 0, %s19
    %s33 = sphi 0, %s35
    %s36 = sphi 0, %s33
    %s37 = sphi 0, %s36
    %s53 = sphi 0, %s37
    %s57 = sphi 0, %s57
    %s59 = sphi 0, %s57
    %s60 = sphi 0, %s59
    %s74 = sphi 0, %s60
    %s78 = sphi 0, %s78
    %s80 = sphi 0, %s78
    %s81 = sphi 0, %s80
    %s95 = sphi 0, %s81
    %s103 = sphi 0, %s105
    %s106 = sphi 0, %s103
    %s107 = sphi 0, %s106
    %s123 = sphi 0, %s107
  $region4: #{autoencoder_pallas.21} parent=0 // loop_header_branch
    %12 = sbr.rel (%p10) target = $region8
  $region5: #{autoencoder_pallas.21} parent=0 // loop_body
    %s14 = ssub.s32 %s9, 1
    %s15 = ssub.s32 %s9, 2
    %s22 = sadd.s32 1, %s17
    %p23 = scmp.ge.s32.totalorder %s22, 1
    %s24 = scalar_select %p23, 0, %s22
    %s25 = sadd.s32 1, %s16
    %s26 = scalar_select %p23, %s25, %s16
    %p27 = scmp.ge.s32.totalorder %s26, 2
    %s28 = scalar_select %p27, 0, %s26
    %s29 = ssub.s32 %s16, %s28
    %s30 = ssub.s32 %s17, %s24
    %s31 = sor.u32 %s29, %s30
    %p32 = scmp.eq.s32.totalorder %s31, 0
    %s34 = sadd.s32 %s33, 1
    %s35 = scalar_select %p32, %s33, %s34
    %p38 = pneg %p32
    %p39 = scmp.eq.s32.totalorder %s9, 1
    %p40 = por %p38, %p39
    %p41 = scmp.ne.s32.totalorder %s33, %s36
    %p42 = scmp.eq.s32.totalorder %s9, 0
    %p43 = por %p41, %p42
    %p44 = scmp.ne.s32.totalorder %s33, %s36
    %p45 = scmp.eq.s32.totalorder %s14, 1
    %p46 = por %p44, %p45
    %p47 = scmp.ne.s32.totalorder %s36, %s37
    %p48 = scmp.eq.s32.totalorder %s14, 0
    %p49 = por %p47, %p48
    %p50 = scmp.ne.s32.totalorder %s36, %s37
    %p51 = scmp.eq.s32.totalorder %s15, 1
    %p52 = por %p50, %p51
    %p54 = scmp.ne.s32.totalorder %s37, %s53
    %p55 = scmp.eq.s32.totalorder %s15, 0
    %p56 = por %p54, %p55
    %s58 = sadd.s32 %s57, 1
    %p61 = scmp.eq.s32.totalorder %s9, 1
    %p62 = scmp.ne.s32.totalorder %s57, %s59
    %p63 = scmp.eq.s32.totalorder %s9, 0
    %p64 = por %p62, %p63
    %p65 = scmp.ne.s32.totalorder %s57, %s59
    %p66 = scmp.eq.s32.totalorder %s14, 1
    %p67 = por %p65, %p66
    %p68 = scmp.ne.s32.totalorder %s59, %s60
    %p69 = scmp.eq.s32.totalorder %s14, 0
    %p70 = por %p68, %p69
    %p71 = scmp.ne.s32.totalorder %s59, %s60
    %p72 = scmp.eq.s32.totalorder %s15, 1
    %p73 = por %p71, %p72
    %p75 = scmp.ne.s32.totalorder %s60, %s74
    %p76 = scmp.eq.s32.totalorder %s15, 0
    %p77 = por %p75, %p76
    %s79 = sadd.s32 %s78, 1
    %p82 = scmp.eq.s32.totalorder %s9, 1
    %p83 = scmp.ne.s32.totalorder %s78, %s80
    %p84 = scmp.eq.s32.totalorder %s9, 0
    %p85 = por %p83, %p84
    %p86 = scmp.ne.s32.totalorder %s78, %s80
    %p87 = scmp.eq.s32.totalorder %s14, 1
    %p88 = por %p86, %p87
    %p89 = scmp.ne.s32.totalorder %s80, %s81
    %p90 = scmp.eq.s32.totalorder %s14, 0
    %p91 = por %p89, %p90
    %p92 = scmp.ne.s32.totalorder %s80, %s81
    %p93 = scmp.eq.s32.totalorder %s15, 1
    %p94 = por %p92, %p93
    %p96 = scmp.ne.s32.totalorder %s81, %s95
    %p97 = scmp.eq.s32.totalorder %s15, 0
    %p98 = por %p96, %p97
    %s99 = ssub.s32 %s16, %s28
    %s100 = ssub.s32 %s17, %s24
    %s101 = sor.u32 %s99, %s100
    %p102 = scmp.eq.s32.totalorder %s101, 0
    %s104 = sadd.s32 %s103, 1
    %s105 = scalar_select %p102, %s103, %s104
    %p108 = pneg %p102
    %p109 = scmp.eq.s32.totalorder %s9, 1
    %p110 = por %p108, %p109
    %p111 = scmp.ne.s32.totalorder %s103, %s106
    %p112 = scmp.eq.s32.totalorder %s9, 0
    %p113 = por %p111, %p112
    %p114 = scmp.ne.s32.totalorder %s103, %s106
    %p115 = scmp.eq.s32.totalorder %s14, 1
    %p116 = por %p114, %p115
    %p117 = scmp.ne.s32.totalorder %s106, %s107
    %p118 = scmp.eq.s32.totalorder %s14, 0
    %p119 = por %p117, %p118
    %p120 = scmp.ne.s32.totalorder %s106, %s107
    %p121 = scmp.eq.s32.totalorder %s15, 1
    %p122 = por %p120, %p121
    %p124 = scmp.ne.s32.totalorder %s107, %s123
    %p125 = scmp.eq.s32.totalorder %s15, 0
    %p126 = por %p124, %p125
    %p127 = scmp.le.s32.totalorder 1, %s9
    %p128 = scmp.lt.s32.totalorder %s9, 3
    %p129 = pnand %p127, %p128
    %p130 = pneg %p129
    // Predicated region
    $region9: #{autoencoder_pallas.21} parent=5 // pred_check
      _
    $region10: #{autoencoder_pallas.21} parent=5 // pred_check_branch
      %132 = sbr.rel (%p129) target = $region12
    $region11: #{autoencoder_pallas.21} parent=5 // pred_region
      %s133 = ssub.s32 %s9, 1
      // Predicated region
      $region13: #{autoencoder_pallas.21} parent=11 // pred_check
        %p134 = pneg %p70
      $region14: #{autoencoder_pallas.21} parent=11 // pred_check_branch
        %136 = sbr.rel (%p134) target = $region16
      $region15: #{autoencoder_pallas.21} parent=11 // pred_region
        _
      $region16: #{autoencoder_pallas.21} parent=11 // pred_fallthru
        _
      // Predicated region
      $region17: #{autoencoder_pallas.21} parent=11 // pred_check
        %p137 = pneg %p91
      $region18: #{autoencoder_pallas.21} parent=11 // pred_check_branch
        %139 = sbr.rel (%p137) target = $region20
      $region19: #{autoencoder_pallas.21} parent=11 // pred_region
        _
      $region20: #{autoencoder_pallas.21} parent=11 // pred_fallthru
        _
    $region12: #{autoencoder_pallas.21} parent=5 // pred_fallthru
      _
    %p140 = scmp.lt.s32.totalorder %s9, 2
    // Predicated region
    $region21: #{autoencoder_pallas.21} parent=5 // pred_check
      %p141 = pneg %p140
    $region22: #{autoencoder_pallas.21} parent=5 // pred_check_branch
      %143 = sbr.rel (%p141) target = $region24
    $region23: #{autoencoder_pallas.21} parent=5 // pred_region
      // Predicated region
      $region25: #{autoencoder_pallas.21} parent=23 // pred_check
        %p144 = pneg %p43
      $region26: #{autoencoder_pallas.21} parent=23 // pred_check_branch
        %146 = sbr.rel (%p144) target = $region28
      $region27: #{autoencoder_pallas.21} parent=23 // pred_region
        %s147 = smul.u32 2, %s17
        %p148 = scmp.lt.s32.totalorder %s16, 1
        %s149 = scalar_select %p148, %s16, 1
        %p150 = scmp.lt.s32.totalorder %s147, 1
        %s151 = scalar_select %p150, %s147, 1
        %s152 = smul.addr %s151, 9
        %s153 = smul.addr %s149, 18
        %s154 = sadd.s32 %s152, %s153
        %s155 = smul.addr %s154, 4
        %s156 = scalar_lea.vmem %s0, %s155
        %s157 = smul.u32 2, %s17
      $region28: #{autoencoder_pallas.21} parent=23 // pred_fallthru
        _
    $region24: #{autoencoder_pallas.21} parent=5 // pred_fallthru
      _
    %p158 = scmp.le.s32.totalorder 1, %s9
    %p159 = scmp.lt.s32.totalorder %s9, 3
    %p160 = pnand %p158, %p159
    %p161 = pneg %p160
    // Predicated region
    $region29: #{autoencoder_pallas.21} parent=5 // pred_check
      _
    $region30: #{autoencoder_pallas.21} parent=5 // pred_check_branch
      %163 = sbr.rel (%p160) target = $region32
    $region31: #{autoencoder_pallas.21} parent=5 // pred_region
      %s164 = ssub.s32 %s9, 1
      %s165 = smul.u32 2, %s19
      %p166 = scmp.lt.s32.totalorder %s18, 1
      %s167 = scalar_select %p166, %s18, 1
      %p168 = scmp.lt.s32.totalorder %s165, 1
      %s169 = scalar_select %p168, %s165, 1
      %s170 = smul.addr %s169, 9
      %s171 = smul.addr %s167, 18
      %s172 = sadd.s32 %s170, %s171
      %s173 = smul.addr %s172, 4
      %s174 = scalar_lea.vmem %s0, %s173
      %p175 = pneg %p49
      %p176 = pneg %p46
      %p177 = pneg %p70
      %p178 = pneg %p67
      %p179 = pneg %p91
      %p180 = pneg %p88
      %p181 = pneg %p119
      %p182 = pneg %p116
      %s183 = smul.u32 2, %s19
      %p184 = scmp.lt.s32.totalorder %s18, 1
      %s185 = scalar_select %p184, %s18, 1
      %p186 = scmp.lt.s32.totalorder %s183, 1
      %s187 = scalar_select %p186, %s183, 1
      %s188 = smul.addr %s185, 2
      %s189 = sadd.s32 %s187, %s188
      %s190 = smul.addr %s189, 4
      %s191 = scalar_lea.vmem %s3, %s190
      %s192 = smul.u32 2, %s19
      %p193 = scmp.lt.s32.totalorder %s18, 1
      %s194 = scalar_select %p193, %s18, 1
      %p195 = scmp.lt.s32.totalorder %s192, 1
      %s196 = scalar_select %p195, %s192, 1
      %s197 = smul.addr %s196, 9
      %s198 = smul.addr %s194, 18
      %s199 = sadd.s32 %s197, %s198
      %s200 = smul.addr %s199, 4
      %s201 = scalar_lea.vmem %s0, %s200
      %s202 = smul.u32 2, %s19
      %s203 = smul.u32 2, %s19
      %p204 = scmp.lt.s32.totalorder %s18, 1
      %s205 = scalar_select %p204, %s18, 1
      %p206 = scmp.lt.s32.totalorder %s203, 1
      %s207 = scalar_select %p206, %s203, 1
      %s208 = smul.addr %s205, 2
      %s209 = sadd.s32 %s207, %s208
      %s210 = smul.addr %s209, 4
      %s211 = scalar_lea.vmem %s3, %s210
      %s212 = smul.u32 2, %s19
      %v214 = vld [vmem:[%s201] sm:$0xff]
      %v215 = vld [vmem:[%s201 + $0x8] sm:$0xff]
      %v216 = vld [vmem:[%s201 + $0x10] sm:$0xff]
      %v217 = vld [vmem:[%s201 + $0x18] sm:$0xff]
      %v218 = vld [vmem:[%s201 + $0x20] sm:$0xf]
      %v219 = vld [vmem:[%s201 + $0x24] sm:$0xff]
      %v220 = vld [vmem:[%s201 + $0x2c] sm:$0xff]
      %v221 = vld [vmem:[%s201 + $0x34] sm:$0xff]
      %v222 = vld [vmem:[%s201 + $0x3c] sm:$0xff]
      %v223 = vld [vmem:[%s201 + $0x44] sm:$0xf]
      %v224 = vld [vmem:[%s1] sm:$0xf]
      %v225 = vld [vmem:[%s1 + $0x4] sm:$0xf]
      %v226 = vld [vmem:[%s1 + $0x8] sm:$0xf]
      %v227 = vld [vmem:[%s1 + $0xc] sm:$0xf]
      %v228 = vld [vmem:[%s1 + $0x10] sm:$0xf]
      %v229 = vld [vmem:[%s1 + $0x14] sm:$0xf]
      %v230 = vld [vmem:[%s1 + $0x18] sm:$0xf]
      %v231 = vld [vmem:[%s1 + $0x1c] sm:$0xf]
      %v232 = vld [vmem:[%s1 + $0x20] sm:$0xf]
      %v233 = vld [vmem:[%s1 + $0x24] sm:$0xf]
      %v234 = vld [vmem:[%s1 + $0x28] sm:$0xf]
      %v235 = vld [vmem:[%s1 + $0x2c] sm:$0xf]
      %v236 = vld [vmem:[%s1 + $0x30] sm:$0xf]
      %v237 = vld [vmem:[%s1 + $0x34] sm:$0xf]
      %v238 = vld [vmem:[%s1 + $0x38] sm:$0xf]
      %v239 = vld [vmem:[%s1 + $0x3c] sm:$0xf]
      %v240 = vld [vmem:[%s1 + $0x40] sm:$0xf]
      %v241 = vld [vmem:[%s1 + $0x44] sm:$0xf]
      %v242 = vld [vmem:[%s1 + $0x48] sm:$0xf]
      %v243 = vld [vmem:[%s1 + $0x4c] sm:$0xf]
      %v244 = vld [vmem:[%s1 + $0x50] sm:$0xf]
      %v245 = vld [vmem:[%s1 + $0x54] sm:$0xf]
      %v246 = vld [vmem:[%s1 + $0x58] sm:$0xf]
      %v247 = vld [vmem:[%s1 + $0x5c] sm:$0xf]
      %v248 = vld [vmem:[%s1 + $0x60] sm:$0xf]
      %v249 = vld [vmem:[%s1 + $0x64] sm:$0xf]
      %v250 = vld [vmem:[%s1 + $0x68] sm:$0xf]
      %v251 = vld [vmem:[%s1 + $0x6c] sm:$0xf]
      %v252 = vld [vmem:[%s1 + $0x70] sm:$0xf]
      %v253 = vld [vmem:[%s1 + $0x74] sm:$0xf]
      %v254 = vld [vmem:[%s1 + $0x78] sm:$0xf]
      %v255 = vld [vmem:[%s1 + $0x7c] sm:$0xf]
      %v256 = vld [vmem:[%s1 + $0x80] sm:$0xf]
      %v257 = vld [vmem:[%s1 + $0x84] sm:$0xf]
      %v258 = vld [vmem:[%s1 + $0x88] sm:$0xf]
      %v259 = vld [vmem:[%s1 + $0x8c] sm:$0xf]
      %v260 = vld [vmem:[%s1 + $0x90] sm:$0xf]
      %v261 = vld [vmem:[%s1 + $0x94] sm:$0xf]
      %v262 = vld [vmem:[%s1 + $0x98] sm:$0xf]
      %v263 = vld [vmem:[%s1 + $0x9c] sm:$0xf]
      %v264 = vld [vmem:[%s1 + $0xa0] sm:$0xf]
      %v265 = vld [vmem:[%s1 + $0xa4] sm:$0xf]
      %v266 = vld [vmem:[%s1 + $0xa8] sm:$0xf]
      %v267 = vld [vmem:[%s1 + $0xac] sm:$0xf]
      %v268 = vld [vmem:[%s1 + $0xb0] sm:$0xf]
      %v269 = vld [vmem:[%s1 + $0xb4] sm:$0xf]
      %v270 = vld [vmem:[%s1 + $0xb8] sm:$0xf]
      %v271 = vld [vmem:[%s1 + $0xbc] sm:$0xf]
      %v272 = vld [vmem:[%s1 + $0xc0] sm:$0xf]
      %v273 = vld [vmem:[%s1 + $0xc4] sm:$0xf]
      %v274 = vld [vmem:[%s1 + $0xc8] sm:$0xf]
      %v275 = vld [vmem:[%s1 + $0xcc] sm:$0xf]
      %v276 = vld [vmem:[%s1 + $0xd0] sm:$0xf]
      %v277 = vld [vmem:[%s1 + $0xd4] sm:$0xf]
      %v278 = vld [vmem:[%s1 + $0xd8] sm:$0xf]
      %v279 = vld [vmem:[%s1 + $0xdc] sm:$0xf]
      %v280 = vld [vmem:[%s1 + $0xe0] sm:$0xf]
      %v281 = vld [vmem:[%s1 + $0xe4] sm:$0xf]
      %v282 = vld [vmem:[%s1 + $0xe8] sm:$0xf]
      %v283 = vld [vmem:[%s1 + $0xec] sm:$0xf]
      %v284 = vld [vmem:[%s1 + $0xf0] sm:$0xf]
      %v285 = vld [vmem:[%s1 + $0xf4] sm:$0xf]
      %v286 = vld [vmem:[%s1 + $0xf8] sm:$0xf]
      %v287 = vld [vmem:[%s1 + $0xfc] sm:$0xf]
      %v288 = vld [vmem:[%s1 + $0x100] sm:$0xf]
      %v289 = vld [vmem:[%s1 + $0x104] sm:$0xf]
      %v290 = vld [vmem:[%s1 + $0x108] sm:$0xf]
      %v291 = vld [vmem:[%s1 + $0x10c] sm:$0xf]
      %v292 = vld [vmem:[%s1 + $0x110] sm:$0xf]
      %v293 = vld [vmem:[%s1 + $0x114] sm:$0xf]
      %v294 = vld [vmem:[%s1 + $0x118] sm:$0xf]
      %v295 = vld [vmem:[%s1 + $0x11c] sm:$0xf]
      %v296 = vld [vmem:[%s1 + $0x120] sm:$0xf]
      %v297 = vld [vmem:[%s1 + $0x124] sm:$0xf]
      %v298 = vld [vmem:[%s1 + $0x128] sm:$0xf]
      %v299 = vld [vmem:[%s1 + $0x12c] sm:$0xf]
      %v300 = vld [vmem:[%s1 + $0x130] sm:$0xf]
      %v301 = vld [vmem:[%s1 + $0x134] sm:$0xf]
      %v302 = vld [vmem:[%s1 + $0x138] sm:$0xf]
      %v303 = vld [vmem:[%s1 + $0x13c] sm:$0xf]
      %v304 = vld [vmem:[%s1 + $0x140] sm:$0xf]
      %v305 = vld [vmem:[%s1 + $0x144] sm:$0xf]
      %v306 = vld [vmem:[%s1 + $0x148] sm:$0xf]
      %v307 = vld [vmem:[%s1 + $0x14c] sm:$0xf]
      %v308 = vld [vmem:[%s1 + $0x150] sm:$0xf]
      %v309 = vld [vmem:[%s1 + $0x154] sm:$0xf]
      %v310 = vld [vmem:[%s1 + $0x158] sm:$0xf]
      %v311 = vld [vmem:[%s1 + $0x15c] sm:$0xf]
      %v312 = vld [vmem:[%s1 + $0x160] sm:$0xf]
      %v313 = vld [vmem:[%s1 + $0x164] sm:$0xf]
      %v314 = vld [vmem:[%s1 + $0x168] sm:$0xf]
      %v315 = vld [vmem:[%s1 + $0x16c] sm:$0xf]
      %v316 = vld [vmem:[%s1 + $0x170] sm:$0xf]
      %v317 = vld [vmem:[%s1 + $0x174] sm:$0xf]
      %v318 = vld [vmem:[%s1 + $0x178] sm:$0xf]
      %v319 = vld [vmem:[%s1 + $0x17c] sm:$0xf]
      %v320 = vld [vmem:[%s1 + $0x180] sm:$0xf]
      %v321 = vld [vmem:[%s1 + $0x184] sm:$0xf]
      %v322 = vld [vmem:[%s1 + $0x188] sm:$0xf]
      %v323 = vld [vmem:[%s1 + $0x18c] sm:$0xf]
      %v324 = vld [vmem:[%s1 + $0x190] sm:$0xf]
      %v325 = vld [vmem:[%s1 + $0x194] sm:$0xf]
      %v326 = vld [vmem:[%s1 + $0x198] sm:$0xf]
      %v327 = vld [vmem:[%s1 + $0x19c] sm:$0xf]
      %v328 = vld [vmem:[%s1 + $0x1a0] sm:$0xf]
      %v329 = vld [vmem:[%s1 + $0x1a4] sm:$0xf]
      %v330 = vld [vmem:[%s1 + $0x1a8] sm:$0xf]
      %v331 = vld [vmem:[%s1 + $0x1ac] sm:$0xf]
      %v332 = vld [vmem:[%s1 + $0x1b0] sm:$0xf]
      %v333 = vld [vmem:[%s1 + $0x1b4] sm:$0xf]
      %v334 = vld [vmem:[%s1 + $0x1b8] sm:$0xf]
      %v335 = vld [vmem:[%s1 + $0x1bc] sm:$0xf]
      %v336 = vld [vmem:[%s1 + $0x1c0] sm:$0xf]
      %v337 = vld [vmem:[%s1 + $0x1c4] sm:$0xf]
      %v338 = vld [vmem:[%s1 + $0x1c8] sm:$0xf]
      %v339 = vld [vmem:[%s1 + $0x1cc] sm:$0xf]
      %v340 = vld [vmem:[%s1 + $0x1d0] sm:$0xf]
      %v341 = vld [vmem:[%s1 + $0x1d4] sm:$0xf]
      %v342 = vld [vmem:[%s1 + $0x1d8] sm:$0xf]
      %v343 = vld [vmem:[%s1 + $0x1dc] sm:$0xf]
      %v344 = vld [vmem:[%s1 + $0x1e0] sm:$0xf]
      %v345 = vld [vmem:[%s1 + $0x1e4] sm:$0xf]
      %v346 = vld [vmem:[%s1 + $0x1e8] sm:$0xf]
      %v347 = vld [vmem:[%s1 + $0x1ec] sm:$0xf]
      %v348 = vld [vmem:[%s1 + $0x1f0] sm:$0xf]
      %v349 = vld [vmem:[%s1 + $0x1f4] sm:$0xf]
      %v350 = vld [vmem:[%s1 + $0x1f8] sm:$0xf]
      %v351 = vld [vmem:[%s1 + $0x1fc] sm:$0xf]
      %v352 = vld [vmem:[%s1 + $0x200] sm:$0xf]
      %v353 = vld [vmem:[%s1 + $0x204] sm:$0xf]
      %v354 = vld [vmem:[%s1 + $0x208] sm:$0xf]
      %v355 = vld [vmem:[%s1 + $0x20c] sm:$0xf]
      %v356 = vld [vmem:[%s1 + $0x210] sm:$0xf]
      %v357 = vld [vmem:[%s1 + $0x214] sm:$0xf]
      %v358 = vld [vmem:[%s1 + $0x218] sm:$0xf]
      %v359 = vld [vmem:[%s1 + $0x21c] sm:$0xf]
      %v360 = vld [vmem:[%s1 + $0x220] sm:$0xf]
      %v361 = vld [vmem:[%s1 + $0x224] sm:$0xf]
      %v362 = vld [vmem:[%s1 + $0x228] sm:$0xf]
      %v363 = vld [vmem:[%s1 + $0x22c] sm:$0xf]
      %v364 = vld [vmem:[%s1 + $0x230] sm:$0xf]
      %v365 = vld [vmem:[%s1 + $0x234] sm:$0xf]
      %v366 = vld [vmem:[%s1 + $0x238] sm:$0xf]
      %v367 = vld [vmem:[%s1 + $0x23c] sm:$0xf]
      %v368 = vld [vmem:[%s2] sm:$0x1]
      %v370 = vlaneseq
      %v371 = vshrl.u32 %v370, 7
      %v372 = vsub.s32 0, %v371
      %v373 = vrot.slane %v368, %v372
      %v385 = vunpack.c.l.b16 %v214
      %v386 = vunpack.c.h.b16 %v214
      %v387 = vunpack.c.l.b16 %v215
      %v388 = vunpack.c.h.b16 %v215
      %v389 = vunpack.c.l.b16 %v216
      %v390 = vunpack.c.h.b16 %v216
      %v391 = vunpack.c.l.b16 %v217
      %v392 = vunpack.c.h.b16 %v217
      %v393 = vunpack.c.l.b16 %v218
      %v394 = vunpack.c.l.b16 %v219
      %v395 = vunpack.c.h.b16 %v219
      %v396 = vunpack.c.l.b16 %v220
      %v397 = vunpack.c.h.b16 %v220
      %v398 = vunpack.c.l.b16 %v221
      %v399 = vunpack.c.h.b16 %v221
      %v400 = vunpack.c.l.b16 %v222
      %v401 = vunpack.c.h.b16 %v222
      %v402 = vunpack.c.l.b16 %v223
      %v403 = vpack.c.b16 %v394, %v385
      %v404 = vpack.c.b16 %v395, %v386
      %v405 = vpack.c.b16 %v396, %v387
      %v406 = vpack.c.b16 %v397, %v388
      %v407 = vpack.c.b16 %v398, %v389
      %v408 = vpack.c.b16 %v399, %v390
      %v409 = vpack.c.b16 %v400, %v391
      %v410 = vpack.c.b16 %v401, %v392
      %v411 = vpack.c.b16 %v402, %v393
      %v565 = vunpack.c.l.b16 %v224
      %v566 = vunpack.c.l.b16 %v225
      %v567 = vunpack.c.l.b16 %v226
      %v568 = vunpack.c.l.b16 %v227
      %v569 = vunpack.c.l.b16 %v228
      %v570 = vunpack.c.l.b16 %v229
      %v571 = vunpack.c.l.b16 %v230
      %v572 = vunpack.c.l.b16 %v231
      %v573 = vunpack.c.l.b16 %v232
      %v574 = vunpack.c.l.b16 %v233
      %v575 = vunpack.c.l.b16 %v234
      %v576 = vunpack.c.l.b16 %v235
      %v577 = vunpack.c.l.b16 %v236
      %v578 = vunpack.c.l.b16 %v237
      %v579 = vunpack.c.l.b16 %v238
      %v580 = vunpack.c.l.b16 %v239
      %v581 = vunpack.c.l.b16 %v240
      %v582 = vunpack.c.l.b16 %v241
      %v583 = vunpack.c.l.b16 %v242
      %v584 = vunpack.c.l.b16 %v243
      %v585 = vunpack.c.l.b16 %v244
      %v586 = vunpack.c.l.b16 %v245
      %v587 = vunpack.c.l.b16 %v246
      %v588 = vunpack.c.l.b16 %v247
      %v589 = vunpack.c.l.b16 %v248
      %v590 = vunpack.c.l.b16 %v249
      %v591 = vunpack.c.l.b16 %v250
      %v592 = vunpack.c.l.b16 %v251
      %v593 = vunpack.c.l.b16 %v252
      %v594 = vunpack.c.l.b16 %v253
      %v595 = vunpack.c.l.b16 %v254
      %v596 = vunpack.c.l.b16 %v255
      %v597 = vunpack.c.l.b16 %v256
      %v598 = vunpack.c.l.b16 %v257
      %v599 = vunpack.c.l.b16 %v258
      %v600 = vunpack.c.l.b16 %v259
      %v601 = vunpack.c.l.b16 %v260
      %v602 = vunpack.c.l.b16 %v261
      %v603 = vunpack.c.l.b16 %v262
      %v604 = vunpack.c.l.b16 %v263
      %v605 = vunpack.c.l.b16 %v264
      %v606 = vunpack.c.l.b16 %v265
      %v607 = vunpack.c.l.b16 %v266
      %v608 = vunpack.c.l.b16 %v267
      %v609 = vunpack.c.l.b16 %v268
      %v610 = vunpack.c.l.b16 %v269
      %v611 = vunpack.c.l.b16 %v270
      %v612 = vunpack.c.l.b16 %v271
      %v613 = vunpack.c.l.b16 %v272
      %v614 = vunpack.c.l.b16 %v273
      %v615 = vunpack.c.l.b16 %v274
      %v616 = vunpack.c.l.b16 %v275
      %v617 = vunpack.c.l.b16 %v276
      %v618 = vunpack.c.l.b16 %v277
      %v619 = vunpack.c.l.b16 %v278
      %v620 = vunpack.c.l.b16 %v279
      %v621 = vunpack.c.l.b16 %v280
      %v622 = vunpack.c.l.b16 %v281
      %v623 = vunpack.c.l.b16 %v282
      %v624 = vunpack.c.l.b16 %v283
      %v625 = vunpack.c.l.b16 %v284
      %v626 = vunpack.c.l.b16 %v285
      %v627 = vunpack.c.l.b16 %v286
      %v628 = vunpack.c.l.b16 %v287
      %v629 = vunpack.c.l.b16 %v288
      %v630 = vunpack.c.l.b16 %v289
      %v631 = vunpack.c.l.b16 %v290
      %v632 = vunpack.c.l.b16 %v291
      %v633 = vunpack.c.l.b16 %v292
      %v634 = vunpack.c.l.b16 %v293
      %v635 = vunpack.c.l.b16 %v294
      %v636 = vunpack.c.l.b16 %v295
      %v637 = vunpack.c.l.b16 %v296
      %v638 = vunpack.c.l.b16 %v297
      %v639 = vunpack.c.l.b16 %v298
      %v640 = vunpack.c.l.b16 %v299
      %v641 = vunpack.c.l.b16 %v300
      %v642 = vunpack.c.l.b16 %v301
      %v643 = vunpack.c.l.b16 %v302
      %v644 = vunpack.c.l.b16 %v303
      %v645 = vunpack.c.l.b16 %v304
      %v646 = vunpack.c.l.b16 %v305
      %v647 = vunpack.c.l.b16 %v306
      %v648 = vunpack.c.l.b16 %v307
      %v649 = vunpack.c.l.b16 %v308
      %v650 = vunpack.c.l.b16 %v309
      %v651 = vunpack.c.l.b16 %v310
      %v652 = vunpack.c.l.b16 %v311
      %v653 = vunpack.c.l.b16 %v312
      %v654 = vunpack.c.l.b16 %v313
      %v655 = vunpack.c.l.b16 %v314
      %v656 = vunpack.c.l.b16 %v315
      %v657 = vunpack.c.l.b16 %v316
      %v658 = vunpack.c.l.b16 %v317
      %v659 = vunpack.c.l.b16 %v318
      %v660 = vunpack.c.l.b16 %v319
      %v661 = vunpack.c.l.b16 %v320
      %v662 = vunpack.c.l.b16 %v321
      %v663 = vunpack.c.l.b16 %v322
      %v664 = vunpack.c.l.b16 %v323
      %v665 = vunpack.c.l.b16 %v324
      %v666 = vunpack.c.l.b16 %v325
      %v667 = vunpack.c.l.b16 %v326
      %v668 = vunpack.c.l.b16 %v327
      %v669 = vunpack.c.l.b16 %v328
      %v670 = vunpack.c.l.b16 %v329
      %v671 = vunpack.c.l.b16 %v330
      %v672 = vunpack.c.l.b16 %v331
      %v673 = vunpack.c.l.b16 %v332
      %v674 = vunpack.c.l.b16 %v333
      %v675 = vunpack.c.l.b16 %v334
      %v676 = vunpack.c.l.b16 %v335
      %v677 = vunpack.c.l.b16 %v336
      %v678 = vunpack.c.l.b16 %v337
      %v679 = vunpack.c.l.b16 %v338
      %v680 = vunpack.c.l.b16 %v339
      %v681 = vunpack.c.l.b16 %v340
      %v682 = vunpack.c.l.b16 %v341
      %v683 = vunpack.c.l.b16 %v342
      %v684 = vunpack.c.l.b16 %v343
      %v685 = vunpack.c.l.b16 %v344
      %v686 = vunpack.c.l.b16 %v345
      %v687 = vunpack.c.l.b16 %v346
      %v688 = vunpack.c.l.b16 %v347
      %v689 = vunpack.c.l.b16 %v348
      %v690 = vunpack.c.l.b16 %v349
      %v691 = vunpack.c.l.b16 %v350
      %v692 = vunpack.c.l.b16 %v351
      %v693 = vunpack.c.l.b16 %v352
      %v694 = vunpack.c.l.b16 %v353
      %v695 = vunpack.c.l.b16 %v354
      %v696 = vunpack.c.l.b16 %v355
      %v697 = vunpack.c.l.b16 %v356
      %v698 = vunpack.c.l.b16 %v357
      %v699 = vunpack.c.l.b16 %v358
      %v700 = vunpack.c.l.b16 %v359
      %v701 = vunpack.c.l.b16 %v360
      %v702 = vunpack.c.l.b16 %v361
      %v703 = vunpack.c.l.b16 %v362
      %v704 = vunpack.c.l.b16 %v363
      %v705 = vunpack.c.l.b16 %v364
      %v706 = vunpack.c.l.b16 %v365
      %v707 = vunpack.c.l.b16 %v366
      %v708 = vunpack.c.l.b16 %v367
      %v709 = vpack.c.b16 %v566, %v565
      %v710 = vpack.c.b16 %v568, %v567
      %v711 = vpack.c.b16 %v570, %v569
      %v712 = vpack.c.b16 %v572, %v571
      %v713 = vpack.c.b16 %v574, %v573
      %v714 = vpack.c.b16 %v576, %v575
      %v715 = vpack.c.b16 %v578, %v577
      %v716 = vpack.c.b16 %v580, %v579
      %v717 = vpack.c.b16 %v582, %v581
      %v718 = vpack.c.b16 %v584, %v583
      %v719 = vpack.c.b16 %v586, %v585
      %v720 = vpack.c.b16 %v588, %v587
      %v721 = vpack.c.b16 %v590, %v589
      %v722 = vpack.c.b16 %v592, %v591
      %v723 = vpack.c.b16 %v594, %v593
      %v724 = vpack.c.b16 %v596, %v595
      %v725 = vpack.c.b16 %v598, %v597
      %v726 = vpack.c.b16 %v600, %v599
      %v727 = vpack.c.b16 %v602, %v601
      %v728 = vpack.c.b16 %v604, %v603
      %v729 = vpack.c.b16 %v606, %v605
      %v730 = vpack.c.b16 %v608, %v607
      %v731 = vpack.c.b16 %v610, %v609
      %v732 = vpack.c.b16 %v612, %v611
      %v733 = vpack.c.b16 %v614, %v613
      %v734 = vpack.c.b16 %v616, %v615
      %v735 = vpack.c.b16 %v618, %v617
      %v736 = vpack.c.b16 %v620, %v619
      %v737 = vpack.c.b16 %v622, %v621
      %v738 = vpack.c.b16 %v624, %v623
      %v739 = vpack.c.b16 %v626, %v625
      %v740 = vpack.c.b16 %v628, %v627
      %v741 = vpack.c.b16 %v630, %v629
      %v742 = vpack.c.b16 %v632, %v631
      %v743 = vpack.c.b16 %v634, %v633
      %v744 = vpack.c.b16 %v636, %v635
      %v745 = vpack.c.b16 %v638, %v637
      %v746 = vpack.c.b16 %v640, %v639
      %v747 = vpack.c.b16 %v642, %v641
      %v748 = vpack.c.b16 %v644, %v643
      %v749 = vpack.c.b16 %v646, %v645
      %v750 = vpack.c.b16 %v648, %v647
      %v751 = vpack.c.b16 %v650, %v649
      %v752 = vpack.c.b16 %v652, %v651
      %v753 = vpack.c.b16 %v654, %v653
      %v754 = vpack.c.b16 %v656, %v655
      %v755 = vpack.c.b16 %v658, %v657
      %v756 = vpack.c.b16 %v660, %v659
      %v757 = vpack.c.b16 %v662, %v661
      %v758 = vpack.c.b16 %v664, %v663
      %v759 = vpack.c.b16 %v666, %v665
      %v760 = vpack.c.b16 %v668, %v667
      %v761 = vpack.c.b16 %v670, %v669
      %v762 = vpack.c.b16 %v672, %v671
      %v763 = vpack.c.b16 %v674, %v673
      %v764 = vpack.c.b16 %v676, %v675
      %v765 = vpack.c.b16 %v678, %v677
      %v766 = vpack.c.b16 %v680, %v679
      %v767 = vpack.c.b16 %v682, %v681
      %v768 = vpack.c.b16 %v684, %v683
      %v769 = vpack.c.b16 %v686, %v685
      %v770 = vpack.c.b16 %v688, %v687
      %v771 = vpack.c.b16 %v690, %v689
      %v772 = vpack.c.b16 %v692, %v691
      %v773 = vpack.c.b16 %v694, %v693
      %v774 = vpack.c.b16 %v696, %v695
      %v775 = vpack.c.b16 %v698, %v697
      %v776 = vpack.c.b16 %v700, %v699
      %v777 = vpack.c.b16 %v702, %v701
      %v778 = vpack.c.b16 %v704, %v703
      %v779 = vpack.c.b16 %v706, %v705
      %v780 = vpack.c.b16 %v708, %v707
      %853 = vmatprep.subr.bf16.mxu0 0
      %854 = vmatpush1.bf16.msra.mxu0 %v716
      %855 = vmatprep.subr.bf16.mxu0 0
      %856 = vmatpush1.bf16.msra.mxu0 %v715
      %857 = vmatprep.subr.bf16.mxu0 0
      %858 = vmatpush1.bf16.msra.mxu0 %v714
      %859 = vmatprep.subr.bf16.mxu0 0
      %860 = vmatpush1.bf16.msra.mxu0 %v713
      %861 = vmatprep.subr.bf16.mxu0 0
      %862 = vmatpush1.bf16.msra.mxu0 %v712
      %863 = vmatprep.subr.bf16.mxu0 0
      %864 = vmatpush1.bf16.msra.mxu0 %v711
      %865 = vmatprep.subr.bf16.mxu0 0
      %866 = vmatpush1.bf16.msra.mxu0 %v710
      %867 = vmatprep.subr.bf16.mxu0 0
      %868 = vmatpush1.bf16.msra.mxu0 %v709
      %869 = vmatprep.subr.bf16.mxu0 0
      %870 = vmatpush2.bf16.msra.mxu0 %v724
      %871 = vmatprep.subr.bf16.mxu0 0
      %872 = vmatpush2.bf16.msra.mxu0 %v723
      %873 = vmatprep.subr.bf16.mxu0 0
      %874 = vmatpush2.bf16.msra.mxu0 %v722
      %875 = vmatprep.subr.bf16.mxu0 0
      %876 = vmatpush2.bf16.msra.mxu0 %v721
      %877 = vmatprep.subr.bf16.mxu0 0
      %878 = vmatpush2.bf16.msra.mxu0 %v720
      %879 = vmatprep.subr.bf16.mxu0 0
      %880 = vmatpush2.bf16.msra.mxu0 %v719
      %881 = vmatprep.subr.bf16.mxu0 0
      %882 = vmatpush2.bf16.msra.mxu0 %v718
      %883 = vmatprep.subr.bf16.mxu0 0
      %884 = vmatpush2.bf16.msra.mxu0 %v717
      %885 = vmatprep.mubr.bf16.mxu0 %v404
      %886 = vmatmul.mubr.bf16.gmra.mxu0 %v403
      %v887 = vpop.f32.mrf.mxu0
      %v888 = vadd.f32 %v373, %v887
      %v889 = vpop.f32.mrf.mxu0
      %v890 = vpop.f32.mrf.mxu0
      %v891 = vadd.f32 %v373, %v890
      %v892 = vpop.f32.mrf.mxu0
      %893 = vdwg.mxu0
      %894 = vmatprep.subr.bf16.mxu0 0
      %895 = vmatpush1.bf16.msra.mxu0 %v732
      %896 = vmatprep.subr.bf16.mxu0 0
      %897 = vmatpush1.bf16.msra.mxu0 %v731
      %898 = vmatprep.subr.bf16.mxu0 0
      %899 = vmatpush1.bf16.msra.mxu0 %v730
      %900 = vmatprep.subr.bf16.mxu0 0
      %901 = vmatpush1.bf16.msra.mxu0 %v729
      %902 = vmatprep.subr.bf16.mxu0 0
      %903 = vmatpush1.bf16.msra.mxu0 %v728
      %904 = vmatprep.subr.bf16.mxu0 0
      %905 = vmatpush1.bf16.msra.mxu0 %v727
      %906 = vmatprep.subr.bf16.mxu0 0
      %907 = vmatpush1.bf16.msra.mxu0 %v726
      %908 = vmatprep.subr.bf16.mxu0 0
      %909 = vmatpush1.bf16.msra.mxu0 %v725
      %910 = vmatprep.subr.bf16.mxu0 0
      %911 = vmatpush2.bf16.msra.mxu0 %v740
      %912 = vmatprep.subr.bf16.mxu0 0
      %913 = vmatpush2.bf16.msra.mxu0 %v739
      %914 = vmatprep.subr.bf16.mxu0 0
      %915 = vmatpush2.bf16.msra.mxu0 %v738
      %916 = vmatprep.subr.bf16.mxu0 0
      %917 = vmatpush2.bf16.msra.mxu0 %v737
      %918 = vmatprep.subr.bf16.mxu0 0
      %919 = vmatpush2.bf16.msra.mxu0 %v736
      %920 = vmatprep.subr.bf16.mxu0 0
      %921 = vmatpush2.bf16.msra.mxu0 %v735
      %922 = vmatprep.subr.bf16.mxu0 0
      %923 = vmatpush2.bf16.msra.mxu0 %v734
      %924 = vmatprep.subr.bf16.mxu0 0
      %925 = vmatpush2.bf16.msra.mxu0 %v733
      %926 = vmatprep.mubr.bf16.mxu0 %v406
      %927 = vmatmul.mubr.bf16.gmra.mxu0 %v405
      %v928 = vpop.f32.mrf.mxu0
      %v929 = vadd.f32 %v888, %v928
      %v930 = vpop.f32.mrf.mxu0
      %v931 = vpop.f32.mrf.mxu0
      %v932 = vadd.f32 %v891, %v931
      %v933 = vpop.f32.mrf.mxu0
      %934 = vdwg.mxu0
      %935 = vmatprep.subr.bf16.mxu0 0
      %936 = vmatpush1.bf16.msra.mxu0 %v748
      %937 = vmatprep.subr.bf16.mxu0 0
      %938 = vmatpush1.bf16.msra.mxu0 %v747
      %939 = vmatprep.subr.bf16.mxu0 0
      %940 = vmatpush1.bf16.msra.mxu0 %v746
      %941 = vmatprep.subr.bf16.mxu0 0
      %942 = vmatpush1.bf16.msra.mxu0 %v745
      %943 = vmatprep.subr.bf16.mxu0 0
      %944 = vmatpush1.bf16.msra.mxu0 %v744
      %945 = vmatprep.subr.bf16.mxu0 0
      %946 = vmatpush1.bf16.msra.mxu0 %v743
      %947 = vmatprep.subr.bf16.mxu0 0
      %948 = vmatpush1.bf16.msra.mxu0 %v742
      %949 = vmatprep.subr.bf16.mxu0 0
      %950 = vmatpush1.bf16.msra.mxu0 %v741
      %951 = vmatprep.subr.bf16.mxu0 0
      %952 = vmatpush2.bf16.msra.mxu0 %v756
      %953 = vmatprep.subr.bf16.mxu0 0
      %954 = vmatpush2.bf16.msra.mxu0 %v755
      %955 = vmatprep.subr.bf16.mxu0 0
      %956 = vmatpush2.bf16.msra.mxu0 %v754
      %957 = vmatprep.subr.bf16.mxu0 0
      %958 = vmatpush2.bf16.msra.mxu0 %v753
      %959 = vmatprep.subr.bf16.mxu0 0
      %960 = vmatpush2.bf16.msra.mxu0 %v752
      %961 = vmatprep.subr.bf16.mxu0 0
      %962 = vmatpush2.bf16.msra.mxu0 %v751
      %963 = vmatprep.subr.bf16.mxu0 0
      %964 = vmatpush2.bf16.msra.mxu0 %v750
      %965 = vmatprep.subr.bf16.mxu0 0
      %966 = vmatpush2.bf16.msra.mxu0 %v749
      %967 = vmatprep.mubr.bf16.mxu0 %v408
      %968 = vmatmul.mubr.bf16.gmra.mxu0 %v407
      %v969 = vpop.f32.mrf.mxu0
      %v970 = vadd.f32 %v929, %v969
      %v971 = vpop.f32.mrf.mxu0
      %v972 = vpop.f32.mrf.mxu0
      %v973 = vadd.f32 %v932, %v972
      %v974 = vpop.f32.mrf.mxu0
      %975 = vdwg.mxu0
      %976 = vmatprep.subr.bf16.mxu0 0
      %977 = vmatpush1.bf16.msra.mxu0 %v764
      %978 = vmatprep.subr.bf16.mxu0 0
      %979 = vmatpush1.bf16.msra.mxu0 %v763
      %980 = vmatprep.subr.bf16.mxu0 0
      %981 = vmatpush1.bf16.msra.mxu0 %v762
      %982 = vmatprep.subr.bf16.mxu0 0
      %983 = vmatpush1.bf16.msra.mxu0 %v761
      %984 = vmatprep.subr.bf16.mxu0 0
      %985 = vmatpush1.bf16.msra.mxu0 %v760
      %986 = vmatprep.subr.bf16.mxu0 0
      %987 = vmatpush1.bf16.msra.mxu0 %v759
      %988 = vmatprep.subr.bf16.mxu0 0
      %989 = vmatpush1.bf16.msra.mxu0 %v758
      %990 = vmatprep.subr.bf16.mxu0 0
      %991 = vmatpush1.bf16.msra.mxu0 %v757
      %992 = vmatprep.subr.bf16.mxu0 0
      %993 = vmatpush2.bf16.msra.mxu0 %v772
      %994 = vmatprep.subr.bf16.mxu0 0
      %995 = vmatpush2.bf16.msra.mxu0 %v771
      %996 = vmatprep.subr.bf16.mxu0 0
      %997 = vmatpush2.bf16.msra.mxu0 %v770
      %998 = vmatprep.subr.bf16.mxu0 0
      %999 = vmatpush2.bf16.msra.mxu0 %v769
      %1000 = vmatprep.subr.bf16.mxu0 0
      %1001 = vmatpush2.bf16.msra.mxu0 %v768
      %1002 = vmatprep.subr.bf16.mxu0 0
      %1003 = vmatpush2.bf16.msra.mxu0 %v767
      %1004 = vmatprep.subr.bf16.mxu0 0
      %1005 = vmatpush2.bf16.msra.mxu0 %v766
      %1006 = vmatprep.subr.bf16.mxu0 0
      %1007 = vmatpush2.bf16.msra.mxu0 %v765
      %1008 = vmatprep.mubr.bf16.mxu0 %v410
      %1009 = vmatmul.mubr.bf16.gmra.mxu0 %v409
      %v1010 = vpop.f32.mrf.mxu0
      %v1011 = vadd.f32 %v970, %v1010
      %v1012 = vpop.f32.mrf.mxu0
      %v1013 = vpop.f32.mrf.mxu0
      %v1014 = vadd.f32 %v973, %v1013
      %v1015 = vpop.f32.mrf.mxu0
      %1016 = vdwg.mxu0
      %1017 = vmatprep.subr.bf16.mxu0 0
      %1018 = vmatpush1.bf16.msra.mxu0 %v780
      %1019 = vmatprep.subr.bf16.mxu0 0
      %1020 = vmatpush1.bf16.msra.mxu0 %v779
      %1021 = vmatprep.subr.bf16.mxu0 0
      %1022 = vmatpush1.bf16.msra.mxu0 %v778
      %1023 = vmatprep.subr.bf16.mxu0 0
      %1024 = vmatpush1.bf16.msra.mxu0 %v777
      %1025 = vmatprep.subr.bf16.mxu0 0
      %1026 = vmatpush1.bf16.msra.mxu0 %v776
      %1027 = vmatprep.subr.bf16.mxu0 0
      %1028 = vmatpush1.bf16.msra.mxu0 %v775
      %1029 = vmatprep.subr.bf16.mxu0 0
      %1030 = vmatpush1.bf16.msra.mxu0 %v774
      %1031 = vmatprep.subr.bf16.mxu0 0
      %1032 = vmatpush1.bf16.msra.mxu0 %v773
      %1033 = vmatprep.subr.bf16.mxu0 0
      %1034 = vmatpush2.bf16.msra.mxu0 0
      %1035 = vmatprep.subr.bf16.mxu0 0
      %1036 = vmatpush2.bf16.msra.mxu0 0
      %1037 = vmatprep.subr.bf16.mxu0 0
      %1038 = vmatpush2.bf16.msra.mxu0 0
      %1039 = vmatprep.subr.bf16.mxu0 0
      %1040 = vmatpush2.bf16.msra.mxu0 0
      %1041 = vmatprep.subr.bf16.mxu0 0
      %1042 = vmatpush2.bf16.msra.mxu0 0
      %1043 = vmatprep.subr.bf16.mxu0 0
      %1044 = vmatpush2.bf16.msra.mxu0 0
      %1045 = vmatprep.subr.bf16.mxu0 0
      %1046 = vmatpush2.bf16.msra.mxu0 0
      %1047 = vmatprep.subr.bf16.mxu0 0
      %1048 = vmatpush2.bf16.msra.mxu0 0
      %1049 = vmatprep.mubr.bf16.mxu0 0
      %1050 = vmatmul.mubr.bf16.gmra.mxu0 %v411
      %v1051 = vpop.f32.mrf.mxu0
      %v1052 = vadd.f32 %v1011, %v1051
      %v1053 = vpop.f32.mrf.mxu0
      %v1054 = vpop.f32.mrf.mxu0
      %v1055 = vadd.f32 %v1014, %v1054
      %v1056 = vpop.f32.mrf.mxu0
      %1057 = vdwg.mxu0
      %v1058 = vmax.f32 %v1052, 0.0
      %v1059 = vmax.f32 %v1055, 0.0
      %v1060 = vpack.c.bf16 %v1059, %v1058
      %v1062 = vunpack.c.l.b16 %v1060
      %v1063 = vunpack.c.h.b16 %v1060
      %v1064 = vpack.c.b16 %v1062, %v1062
      %v1065 = vpack.c.b16 %v1063, %v1063
      %vm1068 = vcmask 519168
      %1069 = vst.msk [vmem:[%s211] sm:$0xf] %vm1068, %v1064
      %1070 = vst.msk [vmem:[%s211 + $0x4] sm:$0xf] %vm1068, %v1065
      %s1071 = smul.u32 2, %s19
      %p1072 = scmp.lt.s32.totalorder %s18, 1
      %s1073 = scalar_select %p1072, %s18, 1
      %p1074 = scmp.lt.s32.totalorder %s1071, 1
      %s1075 = scalar_select %p1074, %s1071, 1
      %s1076 = smul.addr %s1073, 2
      %s1077 = sadd.s32 %s1075, %s1076
      %s1078 = smul.addr %s1077, 4
      %s1079 = scalar_lea.vmem %s3, %s1078
      // Predicated region
      $region33: #{autoencoder_pallas.21} parent=31 // pred_check
        %p1080 = pneg %p116
      $region34: #{autoencoder_pallas.21} parent=31 // pred_check_branch
        %1082 = sbr.rel (%p1080) target = $region36
      $region35: #{autoencoder_pallas.21} parent=31 // pred_region
        %s1083 = smul.u32 2, %s19
      $region36: #{autoencoder_pallas.21} parent=31 // pred_fallthru
        _
    $region32: #{autoencoder_pallas.21} parent=5 // pred_fallthru
      _
    %p1084 = scmp.le.s32.totalorder 2, %s9
    // Predicated region
    $region37: #{autoencoder_pallas.21} parent=5 // pred_check
      %p1085 = pneg %p1084
    $region38: #{autoencoder_pallas.21} parent=5 // pred_check_branch
      %1087 = sbr.rel (%p1085) target = $region40
    $region39: #{autoencoder_pallas.21} parent=5 // pred_region
      %s1088 = ssub.s32 %s9, 2
      // Predicated region
      $region41: #{autoencoder_pallas.21} parent=39 // pred_check
        %p1089 = pneg %p122
      $region42: #{autoencoder_pallas.21} parent=39 // pred_check_branch
        %1091 = sbr.rel (%p1089) target = $region44
      $region43: #{autoencoder_pallas.21} parent=39 // pred_region
        %s1092 = smul.u32 2, %s21
        %p1093 = scmp.lt.s32.totalorder %s20, 1
        %s1094 = scalar_select %p1093, %s20, 1
        %p1095 = scmp.lt.s32.totalorder %s1092, 1
        %s1096 = scalar_select %p1095, %s1092, 1
        %s1097 = smul.addr %s1094, 2
        %s1098 = sadd.s32 %s1096, %s1097
        %s1099 = smul.addr %s1098, 4
        %s1100 = scalar_lea.vmem %s3, %s1099
      $region44: #{autoencoder_pallas.21} parent=39 // pred_fallthru
        _
    $region40: #{autoencoder_pallas.21} parent=5 // pred_fallthru
      _
  $region6: #{autoencoder_pallas.21} parent=0 // loop_footer
    %s13 = sadd.s32 1, %s9
  $region7: #{autoencoder_pallas.21} parent=0 // loop_footer_branch
    %8 = sbr.rel target = $region3
  $region8: #{autoencoder_pallas.21} parent=0 // loop_exit
    _

// kernel: autoencoder_pallas.23
$region0: #{autoencoder_pallas.23}
  #allocation0 [shape = 'u32[]', space=smem, size = 0x4, offset = 0x4, fixed_abs, tag = 'smem constant byte address 0x4 - core index']
  #allocation1 [shape = 'u32[144,128]{1,0:T(1,128)}', space=vmem, size = 0x12000, scoped, tag = 'internal scratch']
  %s0 = inlined_call_operand.vmem [shape: bf16[2,64,576], index: 0, kind: input, shape index: {}]
  %s1 = inlined_call_operand.vmem [shape: bf16[576,32], index: 1, kind: input, shape index: {}]
  %s2 = inlined_call_operand.vmem [shape: f32[1,32], index: 2, kind: input, shape index: {}]
  %s3 = inlined_call_operand.vmem [shape: bf16[2,64,32], index: 3, kind: output, shape index: {}]
  %s4 = sld [smem:[#allocation0]]
  $region45: #{autoencoder_pallas.23} parent=0
    _
  %s6 = ssub.s32 1, %s4
  %s7 = scalar_select 0, %s6, %s4
  loop: start=0, step=1, limit=4
  $region2: #{autoencoder_pallas.23} parent=0 // loop_pre_header
    _
  $region3: #{autoencoder_pallas.23} parent=0 // loop_header
    %s9 = sphi 0, %s13
    %p10 = scmp.ge.s32.totalorder %s9, 4
    %s16 = sphi 0, %s28
    %s17 = sphi 0, %s24
    %s18 = sphi 0, %s16
    %s19 = sphi 0, %s17
    %s20 = sphi 0, %s18
    %s21 = sphi 0, %s19
    %s33 = sphi 0, %s35
    %s36 = sphi 0, %s33
    %s37 = sphi 0, %s36
    %s53 = sphi 0, %s37
    %s57 = sphi 0, %s57
    %s59 = sphi 0, %s57
    %s60 = sphi 0, %s59
    %s74 = sphi 0, %s60
    %s78 = sphi 0, %s78
    %s80 = sphi 0, %s78
    %s81 = sphi 0, %s80
    %s95 = sphi 0, %s81
    %s103 = sphi 0, %s105
    %s106 = sphi 0, %s103
    %s107 = sphi 0, %s106
    %s123 = sphi 0, %s107
  $region4: #{autoencoder_pallas.23} parent=0 // loop_header_branch
    %12 = sbr.rel (%p10) target = $region8
  $region5: #{autoencoder_pallas.23} parent=0 // loop_body
    %s14 = ssub.s32 %s9, 1
    %s15 = ssub.s32 %s9, 2
    %s22 = sadd.s32 1, %s17
    %p23 = scmp.ge.s32.totalorder %s22, 1
    %s24 = scalar_select %p23, 0, %s22
    %s25 = sadd.s32 1, %s16
    %s26 = scalar_select %p23, %s25, %s16
    %p27 = scmp.ge.s32.totalorder %s26, 2
    %s28 = scalar_select %p27, 0, %s26
    %s29 = ssub.s32 %s16, %s28
    %s30 = ssub.s32 %s17, %s24
    %s31 = sor.u32 %s29, %s30
    %p32 = scmp.eq.s32.totalorder %s31, 0
    %s34 = sadd.s32 %s33, 1
    %s35 = scalar_select %p32, %s33, %s34
    %p38 = pneg %p32
    %p39 = scmp.eq.s32.totalorder %s9, 1
    %p40 = por %p38, %p39
    %p41 = scmp.ne.s32.totalorder %s33, %s36
    %p42 = scmp.eq.s32.totalorder %s9, 0
    %p43 = por %p41, %p42
    %p44 = scmp.ne.s32.totalorder %s33, %s36
    %p45 = scmp.eq.s32.totalorder %s14, 1
    %p46 = por %p44, %p45
    %p47 = scmp.ne.s32.totalorder %s36, %s37
    %p48 = scmp.eq.s32.totalorder %s14, 0
    %p49 = por %p47, %p48
    %p50 = scmp.ne.s32.totalorder %s36, %s37
    %p51 = scmp.eq.s32.totalorder %s15, 1
    %p52 = por %p50, %p51
    %p54 = scmp.ne.s32.totalorder %s37, %s53
    %p55 = scmp.eq.s32.totalorder %s15, 0
    %p56 = por %p54, %p55
    %s58 = sadd.s32 %s57, 1
    %p61 = scmp.eq.s32.totalorder %s9, 1
    %p62 = scmp.ne.s32.totalorder %s57, %s59
    %p63 = scmp.eq.s32.totalorder %s9, 0
    %p64 = por %p62, %p63
    %p65 = scmp.ne.s32.totalorder %s57, %s59
    %p66 = scmp.eq.s32.totalorder %s14, 1
    %p67 = por %p65, %p66
    %p68 = scmp.ne.s32.totalorder %s59, %s60
    %p69 = scmp.eq.s32.totalorder %s14, 0
    %p70 = por %p68, %p69
    %p71 = scmp.ne.s32.totalorder %s59, %s60
    %p72 = scmp.eq.s32.totalorder %s15, 1
    %p73 = por %p71, %p72
    %p75 = scmp.ne.s32.totalorder %s60, %s74
    %p76 = scmp.eq.s32.totalorder %s15, 0
    %p77 = por %p75, %p76
    %s79 = sadd.s32 %s78, 1
    %p82 = scmp.eq.s32.totalorder %s9, 1
    %p83 = scmp.ne.s32.totalorder %s78, %s80
    %p84 = scmp.eq.s32.totalorder %s9, 0
    %p85 = por %p83, %p84
    %p86 = scmp.ne.s32.totalorder %s78, %s80
    %p87 = scmp.eq.s32.totalorder %s14, 1
    %p88 = por %p86, %p87
    %p89 = scmp.ne.s32.totalorder %s80, %s81
    %p90 = scmp.eq.s32.totalorder %s14, 0
    %p91 = por %p89, %p90
    %p92 = scmp.ne.s32.totalorder %s80, %s81
    %p93 = scmp.eq.s32.totalorder %s15, 1
    %p94 = por %p92, %p93
    %p96 = scmp.ne.s32.totalorder %s81, %s95
    %p97 = scmp.eq.s32.totalorder %s15, 0
    %p98 = por %p96, %p97
    %s99 = ssub.s32 %s16, %s28
    %s100 = ssub.s32 %s17, %s24
    %s101 = sor.u32 %s99, %s100
    %p102 = scmp.eq.s32.totalorder %s101, 0
    %s104 = sadd.s32 %s103, 1
    %s105 = scalar_select %p102, %s103, %s104
    %p108 = pneg %p102
    %p109 = scmp.eq.s32.totalorder %s9, 1
    %p110 = por %p108, %p109
    %p111 = scmp.ne.s32.totalorder %s103, %s106
    %p112 = scmp.eq.s32.totalorder %s9, 0
    %p113 = por %p111, %p112
    %p114 = scmp.ne.s32.totalorder %s103, %s106
    %p115 = scmp.eq.s32.totalorder %s14, 1
    %p116 = por %p114, %p115
    %p117 = scmp.ne.s32.totalorder %s106, %s107
    %p118 = scmp.eq.s32.totalorder %s14, 0
    %p119 = por %p117, %p118
    %p120 = scmp.ne.s32.totalorder %s106, %s107
    %p121 = scmp.eq.s32.totalorder %s15, 1
    %p122 = por %p120, %p121
    %p124 = scmp.ne.s32.totalorder %s107, %s123
    %p125 = scmp.eq.s32.totalorder %s15, 0
    %p126 = por %p124, %p125
    %p127 = scmp.le.s32.totalorder 1, %s9
    %p128 = scmp.lt.s32.totalorder %s9, 3
    %p129 = pnand %p127, %p128
    %p130 = pneg %p129
    // Predicated region
    $region9: #{autoencoder_pallas.23} parent=5 // pred_check
      _
    $region10: #{autoencoder_pallas.23} parent=5 // pred_check_branch
      %132 = sbr.rel (%p129) target = $region12
    $region11: #{autoencoder_pallas.23} parent=5 // pred_region
      %s133 = ssub.s32 %s9, 1
      // Predicated region
      $region13: #{autoencoder_pallas.23} parent=11 // pred_check
        %p134 = pneg %p70
      $region14: #{autoencoder_pallas.23} parent=11 // pred_check_branch
        %136 = sbr.rel (%p134) target = $region16
      $region15: #{autoencoder_pallas.23} parent=11 // pred_region
        _
      $region16: #{autoencoder_pallas.23} parent=11 // pred_fallthru
        _
      // Predicated region
      $region17: #{autoencoder_pallas.23} parent=11 // pred_check
        %p137 = pneg %p91
      $region18: #{autoencoder_pallas.23} parent=11 // pred_check_branch
        %139 = sbr.rel (%p137) target = $region20
      $region19: #{autoencoder_pallas.23} parent=11 // pred_region
        _
      $region20: #{autoencoder_pallas.23} parent=11 // pred_fallthru
        _
    $region12: #{autoencoder_pallas.23} parent=5 // pred_fallthru
      _
    %p140 = scmp.lt.s32.totalorder %s9, 2
    // Predicated region
    $region21: #{autoencoder_pallas.23} parent=5 // pred_check
      %p141 = pneg %p140
    $region22: #{autoencoder_pallas.23} parent=5 // pred_check_branch
      %143 = sbr.rel (%p141) target = $region24
    $region23: #{autoencoder_pallas.23} parent=5 // pred_region
      // Predicated region
      $region25: #{autoencoder_pallas.23} parent=23 // pred_check
        %p144 = pneg %p43
      $region26: #{autoencoder_pallas.23} parent=23 // pred_check_branch
        %146 = sbr.rel (%p144) target = $region28
      $region27: #{autoencoder_pallas.23} parent=23 // pred_region
        %s147 = smul.u32 8, %s17
        %p148 = scmp.lt.s32.totalorder %s16, 1
        %s149 = scalar_select %p148, %s16, 1
        %p150 = scmp.lt.s32.totalorder %s147, 7
        %s151 = scalar_select %p150, %s147, 7
        %s152 = smul.addr %s151, 5
        %s153 = smul.addr %s149, 40
        %s154 = sadd.s32 %s152, %s153
        %s155 = smul.addr %s154, 4
        %s156 = scalar_lea.vmem %s0, %s155
        %s157 = smul.u32 8, %s17
      $region28: #{autoencoder_pallas.23} parent=23 // pred_fallthru
        _
    $region24: #{autoencoder_pallas.23} parent=5 // pred_fallthru
      _
    %p158 = scmp.le.s32.totalorder 1, %s9
    %p159 = scmp.lt.s32.totalorder %s9, 3
    %p160 = pnand %p158, %p159
    %p161 = pneg %p160
    // Predicated region
    $region29: #{autoencoder_pallas.23} parent=5 // pred_check
      _
    $region30: #{autoencoder_pallas.23} parent=5 // pred_check_branch
      %163 = sbr.rel (%p160) target = $region32
    $region31: #{autoencoder_pallas.23} parent=5 // pred_region
      %s164 = ssub.s32 %s9, 1
      %s165 = smul.u32 8, %s19
      %p166 = scmp.lt.s32.totalorder %s18, 1
      %s167 = scalar_select %p166, %s18, 1
      %p168 = scmp.lt.s32.totalorder %s165, 7
      %s169 = scalar_select %p168, %s165, 7
      %s170 = smul.addr %s169, 5
      %s171 = smul.addr %s167, 40
      %s172 = sadd.s32 %s170, %s171
      %s173 = smul.addr %s172, 4
      %s174 = scalar_lea.vmem %s0, %s173
      %p175 = pneg %p49
      %p176 = pneg %p46
      %p177 = pneg %p70
      %p178 = pneg %p67
      %p179 = pneg %p91
      %p180 = pneg %p88
      %p181 = pneg %p119
      %p182 = pneg %p116
      %s183 = smul.u32 8, %s19
      %p184 = scmp.lt.s32.totalorder %s18, 1
      %s185 = scalar_select %p184, %s18, 1
      %p186 = scmp.lt.s32.totalorder %s183, 7
      %s187 = scalar_select %p186, %s183, 7
      %s188 = smul.addr %s185, 8
      %s189 = sadd.s32 %s187, %s188
      %s190 = smul.addr %s189, 4
      %s191 = scalar_lea.vmem %s3, %s190
      %s192 = smul.u32 8, %s19
      %p193 = scmp.lt.s32.totalorder %s18, 1
      %s194 = scalar_select %p193, %s18, 1
      %p195 = scmp.lt.s32.totalorder %s192, 7
      %s196 = scalar_select %p195, %s192, 7
      %s197 = smul.addr %s196, 5
      %s198 = smul.addr %s194, 40
      %s199 = sadd.s32 %s197, %s198
      %s200 = smul.addr %s199, 4
      %s201 = scalar_lea.vmem %s0, %s200
      %s202 = smul.u32 8, %s19
      %s203 = smul.u32 8, %s19
      %p204 = scmp.lt.s32.totalorder %s18, 1
      %s205 = scalar_select %p204, %s18, 1
      %p206 = scmp.lt.s32.totalorder %s203, 7
      %s207 = scalar_select %p206, %s203, 7
      %s208 = smul.addr %s205, 8
      %s209 = sadd.s32 %s207, %s208
      %s210 = smul.addr %s209, 4
      %s211 = scalar_lea.vmem %s3, %s210
      %s212 = smul.u32 8, %s19
      %v214 = vld [vmem:[%s201] sm:$0xff]
      %v215 = vld [vmem:[%s201 + $0x8] sm:$0xff]
      %v216 = vld [vmem:[%s201 + $0x10] sm:$0xf]
      %v217 = vld [vmem:[%s201 + $0x14] sm:$0xff]
      %v218 = vld [vmem:[%s201 + $0x1c] sm:$0xff]
      %v219 = vld [vmem:[%s201 + $0x24] sm:$0xf]
      %v220 = vld [vmem:[%s201 + $0x28] sm:$0xff]
      %v221 = vld [vmem:[%s201 + $0x30] sm:$0xff]
      %v222 = vld [vmem:[%s201 + $0x38] sm:$0xf]
      %v223 = vld [vmem:[%s201 + $0x3c] sm:$0xff]
      %v224 = vld [vmem:[%s201 + $0x44] sm:$0xff]
      %v225 = vld [vmem:[%s201 + $0x4c] sm:$0xf]
      %v226 = vld [vmem:[%s201 + $0x50] sm:$0xff]
      %v227 = vld [vmem:[%s201 + $0x58] sm:$0xff]
      %v228 = vld [vmem:[%s201 + $0x60] sm:$0xf]
      %v229 = vld [vmem:[%s201 + $0x64] sm:$0xff]
      %v230 = vld [vmem:[%s201 + $0x6c] sm:$0xff]
      %v231 = vld [vmem:[%s201 + $0x74] sm:$0xf]
      %v232 = vld [vmem:[%s201 + $0x78] sm:$0xff]
      %v233 = vld [vmem:[%s201 + $0x80] sm:$0xff]
      %v234 = vld [vmem:[%s201 + $0x88] sm:$0xf]
      %v235 = vld [vmem:[%s201 + $0x8c] sm:$0xff]
      %v236 = vld [vmem:[%s201 + $0x94] sm:$0xff]
      %v237 = vld [vmem:[%s201 + $0x9c] sm:$0xf]
      %v238 = vld [vmem:[%s1] sm:$0xf]
      %v239 = vld [vmem:[%s1 + $0x4] sm:$0xf]
      %v240 = vld [vmem:[%s1 + $0x8] sm:$0xf]
      %v241 = vld [vmem:[%s1 + $0xc] sm:$0xf]
      %v242 = vld [vmem:[%s1 + $0x10] sm:$0xf]
      %v243 = vld [vmem:[%s1 + $0x14] sm:$0xf]
      %v244 = vld [vmem:[%s1 + $0x18] sm:$0xf]
      %v245 = vld [vmem:[%s1 + $0x1c] sm:$0xf]
      %v246 = vld [vmem:[%s1 + $0x20] sm:$0xf]
      %v247 = vld [vmem:[%s1 + $0x24] sm:$0xf]
      %v248 = vld [vmem:[%s1 + $0x28] sm:$0xf]
      %v249 = vld [vmem:[%s1 + $0x2c] sm:$0xf]
      %v250 = vld [vmem:[%s1 + $0x30] sm:$0xf]
      %v251 = vld [vmem:[%s1 + $0x34] sm:$0xf]
      %v252 = vld [vmem:[%s1 + $0x38] sm:$0xf]
      %v253 = vld [vmem:[%s1 + $0x3c] sm:$0xf]
      %v254 = vld [vmem:[%s1 + $0x40] sm:$0xf]
      %v255 = vld [vmem:[%s1 + $0x44] sm:$0xf]
      %v256 = vld [vmem:[%s1 + $0x48] sm:$0xf]
      %v257 = vld [vmem:[%s1 + $0x4c] sm:$0xf]
      %v258 = vld [vmem:[%s1 + $0x50] sm:$0xf]
      %v259 = vld [vmem:[%s1 + $0x54] sm:$0xf]
      %v260 = vld [vmem:[%s1 + $0x58] sm:$0xf]
      %v261 = vld [vmem:[%s1 + $0x5c] sm:$0xf]
      %v262 = vld [vmem:[%s1 + $0x60] sm:$0xf]
      %v263 = vld [vmem:[%s1 + $0x64] sm:$0xf]
      %v264 = vld [vmem:[%s1 + $0x68] sm:$0xf]
      %v265 = vld [vmem:[%s1 + $0x6c] sm:$0xf]
      %v266 = vld [vmem:[%s1 + $0x70] sm:$0xf]
      %v267 = vld [vmem:[%s1 + $0x74] sm:$0xf]
      %v268 = vld [vmem:[%s1 + $0x78] sm:$0xf]
      %v269 = vld [vmem:[%s1 + $0x7c] sm:$0xf]
      %v270 = vld [vmem:[%s1 + $0x80] sm:$0xf]
      %v271 = vld [vmem:[%s1 + $0x84] sm:$0xf]
      %v272 = vld [vmem:[%s1 + $0x88] sm:$0xf]
      %v273 = vld [vmem:[%s1 + $0x8c] sm:$0xf]
      %v274 = vld [vmem:[%s1 + $0x90] sm:$0xf]
      %v275 = vld [vmem:[%s1 + $0x94] sm:$0xf]
      %v276 = vld [vmem:[%s1 + $0x98] sm:$0xf]
      %v277 = vld [vmem:[%s1 + $0x9c] sm:$0xf]
      %v278 = vld [vmem:[%s1 + $0xa0] sm:$0xf]
      %v279 = vld [vmem:[%s1 + $0xa4] sm:$0xf]
      %v280 = vld [vmem:[%s1 + $0xa8] sm:$0xf]
      %v281 = vld [vmem:[%s1 + $0xac] sm:$0xf]
      %v282 = vld [vmem:[%s1 + $0xb0] sm:$0xf]
      %v283 = vld [vmem:[%s1 + $0xb4] sm:$0xf]
      %v284 = vld [vmem:[%s1 + $0xb8] sm:$0xf]
      %v285 = vld [vmem:[%s1 + $0xbc] sm:$0xf]
      %v286 = vld [vmem:[%s1 + $0xc0] sm:$0xf]
      %v287 = vld [vmem:[%s1 + $0xc4] sm:$0xf]
      %v288 = vld [vmem:[%s1 + $0xc8] sm:$0xf]
      %v289 = vld [vmem:[%s1 + $0xcc] sm:$0xf]
      %v290 = vld [vmem:[%s1 + $0xd0] sm:$0xf]
      %v291 = vld [vmem:[%s1 + $0xd4] sm:$0xf]
      %v292 = vld [vmem:[%s1 + $0xd8] sm:$0xf]
      %v293 = vld [vmem:[%s1 + $0xdc] sm:$0xf]
      %v294 = vld [vmem:[%s1 + $0xe0] sm:$0xf]
      %v295 = vld [vmem:[%s1 + $0xe4] sm:$0xf]
      %v296 = vld [vmem:[%s1 + $0xe8] sm:$0xf]
      %v297 = vld [vmem:[%s1 + $0xec] sm:$0xf]
      %v298 = vld [vmem:[%s1 + $0xf0] sm:$0xf]
      %v299 = vld [vmem:[%s1 + $0xf4] sm:$0xf]
      %v300 = vld [vmem:[%s1 + $0xf8] sm:$0xf]
      %v301 = vld [vmem:[%s1 + $0xfc] sm:$0xf]
      %v302 = vld [vmem:[%s1 + $0x100] sm:$0xf]
      %v303 = vld [vmem:[%s1 + $0x104] sm:$0xf]
      %v304 = vld [vmem:[%s1 + $0x108] sm:$0xf]
      %v305 = vld [vmem:[%s1 + $0x10c] sm:$0xf]
      %v306 = vld [vmem:[%s1 + $0x110] sm:$0xf]
      %v307 = vld [vmem:[%s1 + $0x114] sm:$0xf]
      %v308 = vld [vmem:[%s1 + $0x118] sm:$0xf]
      %v309 = vld [vmem:[%s1 + $0x11c] sm:$0xf]
      %v310 = vld [vmem:[%s2] sm:$0x1]
      %v312 = vlaneseq
      %v313 = vshrl.u32 %v312, 7
      %v314 = vsub.s32 0, %v313
      %v315 = vrot.slane %v310, %v314
      %v341 = vunpack.c.l.b16 %v214
      %v342 = vunpack.c.h.b16 %v214
      %v343 = vunpack.c.l.b16 %v215
      %v344 = vunpack.c.h.b16 %v215
      %v345 = vunpack.c.l.b16 %v216
      %v346 = vunpack.c.l.b16 %v217
      %v347 = vunpack.c.h.b16 %v217
      %v348 = vunpack.c.l.b16 %v218
      %v349 = vunpack.c.h.b16 %v218
      %v350 = vunpack.c.l.b16 %v219
      %v351 = vunpack.c.l.b16 %v220
      %v352 = vunpack.c.h.b16 %v220
      %v353 = vunpack.c.l.b16 %v221
      %v354 = vunpack.c.h.b16 %v221
      %v355 = vunpack.c.l.b16 %v222
      %v356 = vunpack.c.l.b16 %v223
      %v357 = vunpack.c.h.b16 %v223
      %v358 = vunpack.c.l.b16 %v224
      %v359 = vunpack.c.h.b16 %v224
      %v360 = vunpack.c.l.b16 %v225
      %v361 = vunpack.c.l.b16 %v226
      %v362 = vunpack.c.h.b16 %v226
      %v363 = vunpack.c.l.b16 %v227
      %v364 = vunpack.c.h.b16 %v227
      %v365 = vunpack.c.l.b16 %v228
      %v366 = vunpack.c.l.b16 %v229
      %v367 = vunpack.c.h.b16 %v229
      %v368 = vunpack.c.l.b16 %v230
      %v369 = vunpack.c.h.b16 %v230
      %v370 = vunpack.c.l.b16 %v231
      %v371 = vunpack.c.l.b16 %v232
      %v372 = vunpack.c.h.b16 %v232
      %v373 = vunpack.c.l.b16 %v233
      %v374 = vunpack.c.h.b16 %v233
      %v375 = vunpack.c.l.b16 %v234
      %v376 = vunpack.c.l.b16 %v235
      %v377 = vunpack.c.h.b16 %v235
      %v378 = vunpack.c.l.b16 %v236
      %v379 = vunpack.c.h.b16 %v236
      %v380 = vunpack.c.l.b16 %v237
      %v381 = vpack.c.b16 %v346, %v341
      %v382 = vpack.c.b16 %v347, %v342
      %v383 = vpack.c.b16 %v348, %v343
      %v384 = vpack.c.b16 %v349, %v344
      %v385 = vpack.c.b16 %v350, %v345
      %v386 = vpack.c.b16 %v356, %v351
      %v387 = vpack.c.b16 %v357, %v352
      %v388 = vpack.c.b16 %v358, %v353
      %v389 = vpack.c.b16 %v359, %v354
      %v390 = vpack.c.b16 %v360, %v355
      %v391 = vpack.c.b16 %v366, %v361
      %v392 = vpack.c.b16 %v367, %v362
      %v393 = vpack.c.b16 %v368, %v363
      %v394 = vpack.c.b16 %v369, %v364
      %v395 = vpack.c.b16 %v370, %v365
      %v396 = vpack.c.b16 %v376, %v371
      %v397 = vpack.c.b16 %v377, %v372
      %v398 = vpack.c.b16 %v378, %v373
      %v399 = vpack.c.b16 %v379, %v374
      %v400 = vpack.c.b16 %v380, %v375
      %v489 = vunpack.c.l.b16 %v238
      %v490 = vunpack.c.l.b16 %v239
      %v491 = vunpack.c.l.b16 %v240
      %v492 = vunpack.c.l.b16 %v241
      %v493 = vunpack.c.l.b16 %v242
      %v494 = vunpack.c.l.b16 %v243
      %v495 = vunpack.c.l.b16 %v244
      %v496 = vunpack.c.l.b16 %v245
      %v497 = vunpack.c.l.b16 %v246
      %v498 = vunpack.c.l.b16 %v247
      %v499 = vunpack.c.l.b16 %v248
      %v500 = vunpack.c.l.b16 %v249
      %v501 = vunpack.c.l.b16 %v250
      %v502 = vunpack.c.l.b16 %v251
      %v503 = vunpack.c.l.b16 %v252
      %v504 = vunpack.c.l.b16 %v253
      %v505 = vunpack.c.l.b16 %v254
      %v506 = vunpack.c.l.b16 %v255
      %v507 = vunpack.c.l.b16 %v256
      %v508 = vunpack.c.l.b16 %v257
      %v509 = vunpack.c.l.b16 %v258
      %v510 = vunpack.c.l.b16 %v259
      %v511 = vunpack.c.l.b16 %v260
      %v512 = vunpack.c.l.b16 %v261
      %v513 = vunpack.c.l.b16 %v262
      %v514 = vunpack.c.l.b16 %v263
      %v515 = vunpack.c.l.b16 %v264
      %v516 = vunpack.c.l.b16 %v265
      %v517 = vunpack.c.l.b16 %v266
      %v518 = vunpack.c.l.b16 %v267
      %v519 = vunpack.c.l.b16 %v268
      %v520 = vunpack.c.l.b16 %v269
      %v521 = vunpack.c.l.b16 %v270
      %v522 = vunpack.c.l.b16 %v271
      %v523 = vunpack.c.l.b16 %v272
      %v524 = vunpack.c.l.b16 %v273
      %v525 = vunpack.c.l.b16 %v274
      %v526 = vunpack.c.l.b16 %v275
      %v527 = vunpack.c.l.b16 %v276
      %v528 = vunpack.c.l.b16 %v277
      %v529 = vunpack.c.l.b16 %v278
      %v530 = vunpack.c.l.b16 %v279
      %v531 = vunpack.c.l.b16 %v280
      %v532 = vunpack.c.l.b16 %v281
      %v533 = vunpack.c.l.b16 %v282
      %v534 = vunpack.c.l.b16 %v283
      %v535 = vunpack.c.l.b16 %v284
      %v536 = vunpack.c.l.b16 %v285
      %v537 = vunpack.c.l.b16 %v286
      %v538 = vunpack.c.l.b16 %v287
      %v539 = vunpack.c.l.b16 %v288
      %v540 = vunpack.c.l.b16 %v289
      %v541 = vunpack.c.l.b16 %v290
      %v542 = vunpack.c.l.b16 %v291
      %v543 = vunpack.c.l.b16 %v292
      %v544 = vunpack.c.l.b16 %v293
      %v545 = vunpack.c.l.b16 %v294
      %v546 = vunpack.c.l.b16 %v295
      %v547 = vunpack.c.l.b16 %v296
      %v548 = vunpack.c.l.b16 %v297
      %v549 = vunpack.c.l.b16 %v298
      %v550 = vunpack.c.l.b16 %v299
      %v551 = vunpack.c.l.b16 %v300
      %v552 = vunpack.c.l.b16 %v301
      %v553 = vunpack.c.l.b16 %v302
      %v554 = vunpack.c.l.b16 %v303
      %v555 = vunpack.c.l.b16 %v304
      %v556 = vunpack.c.l.b16 %v305
      %v557 = vunpack.c.l.b16 %v306
      %v558 = vunpack.c.l.b16 %v307
      %v559 = vunpack.c.l.b16 %v308
      %v560 = vunpack.c.l.b16 %v309
      %v561 = vpack.c.b16 %v490, %v489
      %v562 = vpack.c.b16 %v492, %v491
      %v563 = vpack.c.b16 %v494, %v493
      %v564 = vpack.c.b16 %v496, %v495
      %v565 = vpack.c.b16 %v498, %v497
      %v566 = vpack.c.b16 %v500, %v499
      %v567 = vpack.c.b16 %v502, %v501
      %v568 = vpack.c.b16 %v504, %v503
      %v569 = vpack.c.b16 %v506, %v505
      %v570 = vpack.c.b16 %v508, %v507
      %v571 = vpack.c.b16 %v510, %v509
      %v572 = vpack.c.b16 %v512, %v511
      %v573 = vpack.c.b16 %v514, %v513
      %v574 = vpack.c.b16 %v516, %v515
      %v575 = vpack.c.b16 %v518, %v517
      %v576 = vpack.c.b16 %v520, %v519
      %v577 = vpack.c.b16 %v522, %v521
      %v578 = vpack.c.b16 %v524, %v523
      %v579 = vpack.c.b16 %v526, %v525
      %v580 = vpack.c.b16 %v528, %v527
      %v581 = vpack.c.b16 %v530, %v529
      %v582 = vpack.c.b16 %v532, %v531
      %v583 = vpack.c.b16 %v534, %v533
      %v584 = vpack.c.b16 %v536, %v535
      %v585 = vpack.c.b16 %v538, %v537
      %v586 = vpack.c.b16 %v540, %v539
      %v587 = vpack.c.b16 %v542, %v541
      %v588 = vpack.c.b16 %v544, %v543
      %v589 = vpack.c.b16 %v546, %v545
      %v590 = vpack.c.b16 %v548, %v547
      %v591 = vpack.c.b16 %v550, %v549
      %v592 = vpack.c.b16 %v552, %v551
      %v593 = vpack.c.b16 %v554, %v553
      %v594 = vpack.c.b16 %v556, %v555
      %v595 = vpack.c.b16 %v558, %v557
      %v596 = vpack.c.b16 %v560, %v559
      %vm633 = vcmask 523264
      %v635 = vsel %vm633, %v385, 0
      %v638 = vsel %vm633, %v390, 0
      %v641 = vsel %vm633, %v395, 0
      %v644 = vsel %vm633, %v400, 0
      %646 = vmatprep.subr.bf16.mxu0 0
      %647 = vmatpush1.bf16.msra.mxu0 %v568
      %648 = vmatprep.subr.bf16.mxu0 0
      %649 = vmatpush1.bf16.msra.mxu0 %v567
      %650 = vmatprep.subr.bf16.mxu0 0
      %651 = vmatpush1.bf16.msra.mxu0 %v566
      %652 = vmatprep.subr.bf16.mxu0 0
      %653 = vmatpush1.bf16.msra.mxu0 %v565
      %654 = vmatprep.subr.bf16.mxu0 0
      %655 = vmatpush1.bf16.msra.mxu0 %v564
      %656 = vmatprep.subr.bf16.mxu0 0
      %657 = vmatpush1.bf16.msra.mxu0 %v563
      %658 = vmatprep.subr.bf16.mxu0 0
      %659 = vmatpush1.bf16.msra.mxu0 %v562
      %660 = vmatprep.subr.bf16.mxu0 0
      %661 = vmatpush1.bf16.msra.mxu0 %v561
      %662 = vmatprep.subr.bf16.mxu0 0
      %663 = vmatpush2.bf16.msra.mxu0 %v576
      %664 = vmatprep.subr.bf16.mxu0 0
      %665 = vmatpush2.bf16.msra.mxu0 %v575
      %666 = vmatprep.subr.bf16.mxu0 0
      %667 = vmatpush2.bf16.msra.mxu0 %v574
      %668 = vmatprep.subr.bf16.mxu0 0
      %669 = vmatpush2.bf16.msra.mxu0 %v573
      %670 = vmatprep.subr.bf16.mxu0 0
      %671 = vmatpush2.bf16.msra.mxu0 %v572
      %672 = vmatprep.subr.bf16.mxu0 0
      %673 = vmatpush2.bf16.msra.mxu0 %v571
      %674 = vmatprep.subr.bf16.mxu0 0
      %675 = vmatpush2.bf16.msra.mxu0 %v570
      %676 = vmatprep.subr.bf16.mxu0 0
      %677 = vmatpush2.bf16.msra.mxu0 %v569
      %678 = vmatprep.mubr.bf16.mxu0 %v382
      %679 = vmatmul.mubr.bf16.gmra.mxu0 %v381
      %v680 = vpop.f32.mrf.mxu0
      %v681 = vadd.f32 %v315, %v680
      %v682 = vpop.f32.mrf.mxu0
      %v683 = vpop.f32.mrf.mxu0
      %v684 = vadd.f32 %v315, %v683
      %v685 = vpop.f32.mrf.mxu0
      %686 = vmatprep.mubr.bf16.mxu0 %v387
      %687 = vmatmul.mubr.bf16.gmra.mxu0 %v386
      %v688 = vpop.f32.mrf.mxu0
      %v689 = vadd.f32 %v315, %v688
      %v690 = vpop.f32.mrf.mxu0
      %v691 = vpop.f32.mrf.mxu0
      %v692 = vadd.f32 %v315, %v691
      %v693 = vpop.f32.mrf.mxu0
      %694 = vmatprep.mubr.bf16.mxu0 %v392
      %695 = vmatmul.mubr.bf16.gmra.mxu0 %v391
      %v696 = vpop.f32.mrf.mxu0
      %v697 = vadd.f32 %v315, %v696
      %v698 = vpop.f32.mrf.mxu0
      %v699 = vpop.f32.mrf.mxu0
      %v700 = vadd.f32 %v315, %v699
      %v701 = vpop.f32.mrf.mxu0
      %702 = vmatprep.mubr.bf16.mxu0 %v397
      %703 = vmatmul.mubr.bf16.gmra.mxu0 %v396
      %v704 = vpop.f32.mrf.mxu0
      %v705 = vadd.f32 %v315, %v704
      %v706 = vpop.f32.mrf.mxu0
      %v707 = vpop.f32.mrf.mxu0
      %v708 = vadd.f32 %v315, %v707
      %v709 = vpop.f32.mrf.mxu0
      %710 = vdwg.mxu0
      %711 = vmatprep.subr.bf16.mxu0 0
      %712 = vmatpush1.bf16.msra.mxu0 %v584
      %713 = vmatprep.subr.bf16.mxu0 0
      %714 = vmatpush1.bf16.msra.mxu0 %v583
      %715 = vmatprep.subr.bf16.mxu0 0
      %716 = vmatpush1.bf16.msra.mxu0 %v582
      %717 = vmatprep.subr.bf16.mxu0 0
      %718 = vmatpush1.bf16.msra.mxu0 %v581
      %719 = vmatprep.subr.bf16.mxu0 0
      %720 = vmatpush1.bf16.msra.mxu0 %v580
      %721 = vmatprep.subr.bf16.mxu0 0
      %722 = vmatpush1.bf16.msra.mxu0 %v579
      %723 = vmatprep.subr.bf16.mxu0 0
      %724 = vmatpush1.bf16.msra.mxu0 %v578
      %725 = vmatprep.subr.bf16.mxu0 0
      %726 = vmatpush1.bf16.msra.mxu0 %v577
      %727 = vmatprep.subr.bf16.mxu0 0
      %728 = vmatpush2.bf16.msra.mxu0 %v592
      %729 = vmatprep.subr.bf16.mxu0 0
      %730 = vmatpush2.bf16.msra.mxu0 %v591
      %731 = vmatprep.subr.bf16.mxu0 0
      %732 = vmatpush2.bf16.msra.mxu0 %v590
      %733 = vmatprep.subr.bf16.mxu0 0
      %734 = vmatpush2.bf16.msra.mxu0 %v589
      %735 = vmatprep.subr.bf16.mxu0 0
      %736 = vmatpush2.bf16.msra.mxu0 %v588
      %737 = vmatprep.subr.bf16.mxu0 0
      %738 = vmatpush2.bf16.msra.mxu0 %v587
      %739 = vmatprep.subr.bf16.mxu0 0
      %740 = vmatpush2.bf16.msra.mxu0 %v586
      %741 = vmatprep.subr.bf16.mxu0 0
      %742 = vmatpush2.bf16.msra.mxu0 %v585
      %743 = vmatprep.mubr.bf16.mxu0 %v384
      %744 = vmatmul.mubr.bf16.gmra.mxu0 %v383
      %v745 = vpop.f32.mrf.mxu0
      %v746 = vadd.f32 %v681, %v745
      %v747 = vpop.f32.mrf.mxu0
      %v748 = vpop.f32.mrf.mxu0
      %v749 = vadd.f32 %v684, %v748
      %v750 = vpop.f32.mrf.mxu0
      %751 = vmatprep.mubr.bf16.mxu0 %v389
      %752 = vmatmul.mubr.bf16.gmra.mxu0 %v388
      %v753 = vpop.f32.mrf.mxu0
      %v754 = vadd.f32 %v689, %v753
      %v755 = vpop.f32.mrf.mxu0
      %v756 = vpop.f32.mrf.mxu0
      %v757 = vadd.f32 %v692, %v756
      %v758 = vpop.f32.mrf.mxu0
      %759 = vmatprep.mubr.bf16.mxu0 %v394
      %760 = vmatmul.mubr.bf16.gmra.mxu0 %v393
      %v761 = vpop.f32.mrf.mxu0
      %v762 = vadd.f32 %v697, %v761
      %v763 = vpop.f32.mrf.mxu0
      %v764 = vpop.f32.mrf.mxu0
      %v765 = vadd.f32 %v700, %v764
      %v766 = vpop.f32.mrf.mxu0
      %767 = vmatprep.mubr.bf16.mxu0 %v399
      %768 = vmatmul.mubr.bf16.gmra.mxu0 %v398
      %v769 = vpop.f32.mrf.mxu0
      %v770 = vadd.f32 %v705, %v769
      %v771 = vpop.f32.mrf.mxu0
      %v772 = vpop.f32.mrf.mxu0
      %v773 = vadd.f32 %v708, %v772
      %v774 = vpop.f32.mrf.mxu0
      %775 = vdwg.mxu0
      %776 = vmatprep.subr.bf16.mxu0 0
      %777 = vmatpush1.bf16.msra.mxu0 0
      %778 = vmatprep.subr.bf16.mxu0 0
      %779 = vmatpush1.bf16.msra.mxu0 0
      %780 = vmatprep.subr.bf16.mxu0 0
      %781 = vmatpush1.bf16.msra.mxu0 0
      %782 = vmatprep.subr.bf16.mxu0 0
      %783 = vmatpush1.bf16.msra.mxu0 0
      %784 = vmatprep.subr.bf16.mxu0 0
      %785 = vmatpush1.bf16.msra.mxu0 %v596
      %786 = vmatprep.subr.bf16.mxu0 0
      %787 = vmatpush1.bf16.msra.mxu0 %v595
      %788 = vmatprep.subr.bf16.mxu0 0
      %789 = vmatpush1.bf16.msra.mxu0 %v594
      %790 = vmatprep.subr.bf16.mxu0 0
      %791 = vmatpush1.bf16.msra.mxu0 %v593
      %792 = vmatprep.subr.bf16.mxu0 0
      %793 = vmatpush2.bf16.msra.mxu0 0
      %794 = vmatprep.subr.bf16.mxu0 0
      %795 = vmatpush2.bf16.msra.mxu0 0
      %796 = vmatprep.subr.bf16.mxu0 0
      %797 = vmatpush2.bf16.msra.mxu0 0
      %798 = vmatprep.subr.bf16.mxu0 0
      %799 = vmatpush2.bf16.msra.mxu0 0
      %800 = vmatprep.subr.bf16.mxu0 0
      %801 = vmatpush2.bf16.msra.mxu0 0
      %802 = vmatprep.subr.bf16.mxu0 0
      %803 = vmatpush2.bf16.msra.mxu0 0
      %804 = vmatprep.subr.bf16.mxu0 0
      %805 = vmatpush2.bf16.msra.mxu0 0
      %806 = vmatprep.subr.bf16.mxu0 0
      %807 = vmatpush2.bf16.msra.mxu0 0
      %808 = vmatprep.mubr.bf16.mxu0 0
      %809 = vmatmul.mubr.bf16.gmra.mxu0 %v635
      %v810 = vpop.f32.mrf.mxu0
      %v811 = vadd.f32 %v746, %v810
      %v812 = vpop.f32.mrf.mxu0
      %v813 = vpop.f32.mrf.mxu0
      %v814 = vadd.f32 %v749, %v813
      %v815 = vpop.f32.mrf.mxu0
      %816 = vmatprep.mubr.bf16.mxu0 0
      %817 = vmatmul.mubr.bf16.gmra.mxu0 %v638
      %v818 = vpop.f32.mrf.mxu0
      %v819 = vadd.f32 %v754, %v818
      %v820 = vpop.f32.mrf.mxu0
      %v821 = vpop.f32.mrf.mxu0
      %v822 = vadd.f32 %v757, %v821
      %v823 = vpop.f32.mrf.mxu0
      %824 = vmatprep.mubr.bf16.mxu0 0
      %825 = vmatmul.mubr.bf16.gmra.mxu0 %v641
      %v826 = vpop.f32.mrf.mxu0
      %v827 = vadd.f32 %v762, %v826
      %v828 = vpop.f32.mrf.mxu0
      %v829 = vpop.f32.mrf.mxu0
      %v830 = vadd.f32 %v765, %v829
      %v831 = vpop.f32.mrf.mxu0
      %832 = vmatprep.mubr.bf16.mxu0 0
      %833 = vmatmul.mubr.bf16.gmra.mxu0 %v644
      %v834 = vpop.f32.mrf.mxu0
      %v835 = vadd.f32 %v770, %v834
      %v836 = vpop.f32.mrf.mxu0
      %v837 = vpop.f32.mrf.mxu0
      %v838 = vadd.f32 %v773, %v837
      %v839 = vpop.f32.mrf.mxu0
      %840 = vdwg.mxu0
      %v841 = vmax.f32 %v811, 0.0
      %v842 = vmax.f32 %v814, 0.0
      %v843 = vmax.f32 %v819, 0.0
      %v844 = vmax.f32 %v822, 0.0
      %v845 = vmax.f32 %v827, 0.0
      %v846 = vmax.f32 %v830, 0.0
      %v847 = vmax.f32 %v835, 0.0
      %v848 = vmax.f32 %v838, 0.0
      %v849 = vpack.c.bf16 %v842, %v841
      %v850 = vpack.c.bf16 %v844, %v843
      %v851 = vpack.c.bf16 %v846, %v845
      %v852 = vpack.c.bf16 %v848, %v847
      %v857 = vunpack.c.l.b16 %v849
      %v858 = vunpack.c.h.b16 %v849
      %v859 = vunpack.c.l.b16 %v850
      %v860 = vunpack.c.h.b16 %v850
      %v861 = vunpack.c.l.b16 %v851
      %v862 = vunpack.c.h.b16 %v851
      %v863 = vunpack.c.l.b16 %v852
      %v864 = vunpack.c.h.b16 %v852
      %v865 = vpack.c.b16 %v857, %v857
      %v866 = vpack.c.b16 %v858, %v858
      %v867 = vpack.c.b16 %v859, %v859
      %v868 = vpack.c.b16 %v860, %v860
      %v869 = vpack.c.b16 %v861, %v861
      %v870 = vpack.c.b16 %v862, %v862
      %v871 = vpack.c.b16 %v863, %v863
      %v872 = vpack.c.b16 %v864, %v864
      %vm881 = vcmask 257024
      %882 = vst.msk [vmem:[%s211] sm:$0xf] %vm881, %v865
      %883 = vst.msk [vmem:[%s211 + $0x4] sm:$0xf] %vm881, %v866
      %884 = vst.msk [vmem:[%s211 + $0x8] sm:$0xf] %vm881, %v867
      %885 = vst.msk [vmem:[%s211 + $0xc] sm:$0xf] %vm881, %v868
      %886 = vst.msk [vmem:[%s211 + $0x10] sm:$0xf] %vm881, %v869
      %887 = vst.msk [vmem:[%s211 + $0x14] sm:$0xf] %vm881, %v870
      %888 = vst.msk [vmem:[%s211 + $0x18] sm:$0xf] %vm881, %v871
      %889 = vst.msk [vmem:[%s211 + $0x1c] sm:$0xf] %vm881, %v872
      %s890 = smul.u32 8, %s19
      %p891 = scmp.lt.s32.totalorder %s18, 1
      %s892 = scalar_select %p891, %s18, 1
      %p893 = scmp.lt.s32.totalorder %s890, 7
      %s894 = scalar_select %p893, %s890, 7
      %s895 = smul.addr %s892, 8
      %s896 = sadd.s32 %s894, %s895
      %s897 = smul.addr %s896, 4
      %s898 = scalar_lea.vmem %s3, %s897
      // Predicated region
      $region33: #{autoencoder_pallas.23} parent=31 // pred_check
        %p899 = pneg %p116
      $region34: #{autoencoder_pallas.23} parent=31 // pred_check_branch
        %901 = sbr.rel (%p899) target = $region36
      $region35: #{autoencoder_pallas.23} parent=31 // pred_region
        %s902 = smul.u32 8, %s19
      $region36: #{autoencoder_pallas.23} parent=31 // pred_fallthru
        _
    $region32: #{autoencoder_pallas.23} parent=5 // pred_fallthru
      _
    %p903 = scmp.le.s32.totalorder 2, %s9
    // Predicated region
    $region37: #{autoencoder_pallas.23} parent=5 // pred_check
      %p904 = pneg %p903
    $region38: #{autoencoder_pallas.23} parent=5 // pred_check_branch
      %906 = sbr.rel (%p904) target = $region40
    $region39: #{autoencoder_pallas.23} parent=5 // pred_region
      %s907 = ssub.s32 %s9, 2
      // Predicated region
      $region41: #{autoencoder_pallas.23} parent=39 // pred_check
        %p908 = pneg %p122
      $region42: #{autoencoder_pallas.23} parent=39 // pred_check_branch
        %910 = sbr.rel (%p908) target = $region44
      $region43: #{autoencoder_pallas.23} parent=39 // pred_region
        %s911 = smul.u32 8, %s21
        %p912 = scmp.lt.s32.totalorder %s20, 1
        %s913 = scalar_select %p912, %s20, 1
        %p914 = scmp.lt.s32.totalorder %s911, 7
        %s915 = scalar_select %p914, %s911, 7
        %s916 = smul.addr %s913, 8
        %s917 = sadd.s32 %s915, %s916
        %s918 = smul.addr %s917, 4
        %s919 = scalar_lea.vmem %s3, %s918
      $region44: #{autoencoder_pallas.23} parent=39 // pred_fallthru
        _
    $region40: #{autoencoder_pallas.23} parent=5 // pred_fallthru
      _
  $region6: #{autoencoder_pallas.23} parent=0 // loop_footer
    %s13 = sadd.s32 1, %s9
  $region7: #{autoencoder_pallas.23} parent=0 // loop_footer_branch
    %8 = sbr.rel target = $region3
  $region8: #{autoencoder_pallas.23} parent=0 // loop_exit
    _

// kernel: autoencoder_pallas.25
$region0: #{autoencoder_pallas.25}
  #allocation0 [shape = 'u32[]', space=smem, size = 0x4, offset = 0x4, fixed_abs, tag = 'smem constant byte address 0x4 - core index']
  #allocation1 [shape = 'u32[144,128]{1,0:T(1,128)}', space=vmem, size = 0x12000, scoped, tag = 'internal scratch']
  %s0 = inlined_call_operand.vmem [shape: bf16[2,256,288], index: 0, kind: input, shape index: {}]
  %s1 = inlined_call_operand.vmem [shape: bf16[288,32], index: 1, kind: input, shape index: {}]
  %s2 = inlined_call_operand.vmem [shape: f32[1,32], index: 2, kind: input, shape index: {}]
  %s3 = inlined_call_operand.vmem [shape: bf16[2,256,32], index: 3, kind: output, shape index: {}]
  %s4 = sld [smem:[#allocation0]]
  $region45: #{autoencoder_pallas.25} parent=0
    _
  %s6 = ssub.s32 1, %s4
  %s7 = scalar_select 0, %s6, %s4
  loop: start=0, step=1, limit=4
  $region2: #{autoencoder_pallas.25} parent=0 // loop_pre_header
    _
  $region3: #{autoencoder_pallas.25} parent=0 // loop_header
    %s9 = sphi 0, %s13
    %p10 = scmp.ge.s32.totalorder %s9, 4
    %s16 = sphi 0, %s28
    %s17 = sphi 0, %s24
    %s18 = sphi 0, %s16
    %s19 = sphi 0, %s17
    %s20 = sphi 0, %s18
    %s21 = sphi 0, %s19
    %s33 = sphi 0, %s35
    %s36 = sphi 0, %s33
    %s37 = sphi 0, %s36
    %s53 = sphi 0, %s37
    %s57 = sphi 0, %s57
    %s59 = sphi 0, %s57
    %s60 = sphi 0, %s59
    %s74 = sphi 0, %s60
    %s78 = sphi 0, %s78
    %s80 = sphi 0, %s78
    %s81 = sphi 0, %s80
    %s95 = sphi 0, %s81
    %s103 = sphi 0, %s105
    %s106 = sphi 0, %s103
    %s107 = sphi 0, %s106
    %s123 = sphi 0, %s107
  $region4: #{autoencoder_pallas.25} parent=0 // loop_header_branch
    %12 = sbr.rel (%p10) target = $region8
  $region5: #{autoencoder_pallas.25} parent=0 // loop_body
    %s14 = ssub.s32 %s9, 1
    %s15 = ssub.s32 %s9, 2
    %s22 = sadd.s32 1, %s17
    %p23 = scmp.ge.s32.totalorder %s22, 1
    %s24 = scalar_select %p23, 0, %s22
    %s25 = sadd.s32 1, %s16
    %s26 = scalar_select %p23, %s25, %s16
    %p27 = scmp.ge.s32.totalorder %s26, 2
    %s28 = scalar_select %p27, 0, %s26
    %s29 = ssub.s32 %s16, %s28
    %s30 = ssub.s32 %s17, %s24
    %s31 = sor.u32 %s29, %s30
    %p32 = scmp.eq.s32.totalorder %s31, 0
    %s34 = sadd.s32 %s33, 1
    %s35 = scalar_select %p32, %s33, %s34
    %p38 = pneg %p32
    %p39 = scmp.eq.s32.totalorder %s9, 1
    %p40 = por %p38, %p39
    %p41 = scmp.ne.s32.totalorder %s33, %s36
    %p42 = scmp.eq.s32.totalorder %s9, 0
    %p43 = por %p41, %p42
    %p44 = scmp.ne.s32.totalorder %s33, %s36
    %p45 = scmp.eq.s32.totalorder %s14, 1
    %p46 = por %p44, %p45
    %p47 = scmp.ne.s32.totalorder %s36, %s37
    %p48 = scmp.eq.s32.totalorder %s14, 0
    %p49 = por %p47, %p48
    %p50 = scmp.ne.s32.totalorder %s36, %s37
    %p51 = scmp.eq.s32.totalorder %s15, 1
    %p52 = por %p50, %p51
    %p54 = scmp.ne.s32.totalorder %s37, %s53
    %p55 = scmp.eq.s32.totalorder %s15, 0
    %p56 = por %p54, %p55
    %s58 = sadd.s32 %s57, 1
    %p61 = scmp.eq.s32.totalorder %s9, 1
    %p62 = scmp.ne.s32.totalorder %s57, %s59
    %p63 = scmp.eq.s32.totalorder %s9, 0
    %p64 = por %p62, %p63
    %p65 = scmp.ne.s32.totalorder %s57, %s59
    %p66 = scmp.eq.s32.totalorder %s14, 1
    %p67 = por %p65, %p66
    %p68 = scmp.ne.s32.totalorder %s59, %s60
    %p69 = scmp.eq.s32.totalorder %s14, 0
    %p70 = por %p68, %p69
    %p71 = scmp.ne.s32.totalorder %s59, %s60
    %p72 = scmp.eq.s32.totalorder %s15, 1
    %p73 = por %p71, %p72
    %p75 = scmp.ne.s32.totalorder %s60, %s74
    %p76 = scmp.eq.s32.totalorder %s15, 0
    %p77 = por %p75, %p76
    %s79 = sadd.s32 %s78, 1
    %p82 = scmp.eq.s32.totalorder %s9, 1
    %p83 = scmp.ne.s32.totalorder %s78, %s80
    %p84 = scmp.eq.s32.totalorder %s9, 0
    %p85 = por %p83, %p84
    %p86 = scmp.ne.s32.totalorder %s78, %s80
    %p87 = scmp.eq.s32.totalorder %s14, 1
    %p88 = por %p86, %p87
    %p89 = scmp.ne.s32.totalorder %s80, %s81
    %p90 = scmp.eq.s32.totalorder %s14, 0
    %p91 = por %p89, %p90
    %p92 = scmp.ne.s32.totalorder %s80, %s81
    %p93 = scmp.eq.s32.totalorder %s15, 1
    %p94 = por %p92, %p93
    %p96 = scmp.ne.s32.totalorder %s81, %s95
    %p97 = scmp.eq.s32.totalorder %s15, 0
    %p98 = por %p96, %p97
    %s99 = ssub.s32 %s16, %s28
    %s100 = ssub.s32 %s17, %s24
    %s101 = sor.u32 %s99, %s100
    %p102 = scmp.eq.s32.totalorder %s101, 0
    %s104 = sadd.s32 %s103, 1
    %s105 = scalar_select %p102, %s103, %s104
    %p108 = pneg %p102
    %p109 = scmp.eq.s32.totalorder %s9, 1
    %p110 = por %p108, %p109
    %p111 = scmp.ne.s32.totalorder %s103, %s106
    %p112 = scmp.eq.s32.totalorder %s9, 0
    %p113 = por %p111, %p112
    %p114 = scmp.ne.s32.totalorder %s103, %s106
    %p115 = scmp.eq.s32.totalorder %s14, 1
    %p116 = por %p114, %p115
    %p117 = scmp.ne.s32.totalorder %s106, %s107
    %p118 = scmp.eq.s32.totalorder %s14, 0
    %p119 = por %p117, %p118
    %p120 = scmp.ne.s32.totalorder %s106, %s107
    %p121 = scmp.eq.s32.totalorder %s15, 1
    %p122 = por %p120, %p121
    %p124 = scmp.ne.s32.totalorder %s107, %s123
    %p125 = scmp.eq.s32.totalorder %s15, 0
    %p126 = por %p124, %p125
    %p127 = scmp.le.s32.totalorder 1, %s9
    %p128 = scmp.lt.s32.totalorder %s9, 3
    %p129 = pnand %p127, %p128
    %p130 = pneg %p129
    // Predicated region
    $region9: #{autoencoder_pallas.25} parent=5 // pred_check
      _
    $region10: #{autoencoder_pallas.25} parent=5 // pred_check_branch
      %132 = sbr.rel (%p129) target = $region12
    $region11: #{autoencoder_pallas.25} parent=5 // pred_region
      %s133 = ssub.s32 %s9, 1
      // Predicated region
      $region13: #{autoencoder_pallas.25} parent=11 // pred_check
        %p134 = pneg %p70
      $region14: #{autoencoder_pallas.25} parent=11 // pred_check_branch
        %136 = sbr.rel (%p134) target = $region16
      $region15: #{autoencoder_pallas.25} parent=11 // pred_region
        _
      $region16: #{autoencoder_pallas.25} parent=11 // pred_fallthru
        _
      // Predicated region
      $region17: #{autoencoder_pallas.25} parent=11 // pred_check
        %p137 = pneg %p91
      $region18: #{autoencoder_pallas.25} parent=11 // pred_check_branch
        %139 = sbr.rel (%p137) target = $region20
      $region19: #{autoencoder_pallas.25} parent=11 // pred_region
        _
      $region20: #{autoencoder_pallas.25} parent=11 // pred_fallthru
        _
    $region12: #{autoencoder_pallas.25} parent=5 // pred_fallthru
      _
    %p140 = scmp.lt.s32.totalorder %s9, 2
    // Predicated region
    $region21: #{autoencoder_pallas.25} parent=5 // pred_check
      %p141 = pneg %p140
    $region22: #{autoencoder_pallas.25} parent=5 // pred_check_branch
      %143 = sbr.rel (%p141) target = $region24
    $region23: #{autoencoder_pallas.25} parent=5 // pred_region
      // Predicated region
      $region25: #{autoencoder_pallas.25} parent=23 // pred_check
        %p144 = pneg %p43
      $region26: #{autoencoder_pallas.25} parent=23 // pred_check_branch
        %146 = sbr.rel (%p144) target = $region28
      $region27: #{autoencoder_pallas.25} parent=23 // pred_region
        %s147 = smul.u32 32, %s17
        %p148 = scmp.lt.s32.totalorder %s16, 1
        %s149 = scalar_select %p148, %s16, 1
        %p150 = scmp.lt.s32.totalorder %s147, 31
        %s151 = scalar_select %p150, %s147, 31
        %s152 = smul.addr %s151, 3
        %s153 = smul.addr %s149, 96
        %s154 = sadd.s32 %s152, %s153
        %s155 = smul.addr %s154, 4
        %s156 = scalar_lea.vmem %s0, %s155
        %s157 = smul.u32 32, %s17
      $region28: #{autoencoder_pallas.25} parent=23 // pred_fallthru
        _
    $region24: #{autoencoder_pallas.25} parent=5 // pred_fallthru
      _
    %p158 = scmp.le.s32.totalorder 1, %s9
    %p159 = scmp.lt.s32.totalorder %s9, 3
    %p160 = pnand %p158, %p159
    %p161 = pneg %p160
    // Predicated region
    $region29: #{autoencoder_pallas.25} parent=5 // pred_check
      _
    $region30: #{autoencoder_pallas.25} parent=5 // pred_check_branch
      %163 = sbr.rel (%p160) target = $region32
    $region31: #{autoencoder_pallas.25} parent=5 // pred_region
      %s164 = ssub.s32 %s9, 1
      %s165 = smul.u32 32, %s19
      %p166 = scmp.lt.s32.totalorder %s18, 1
      %s167 = scalar_select %p166, %s18, 1
      %p168 = scmp.lt.s32.totalorder %s165, 31
      %s169 = scalar_select %p168, %s165, 31
      %s170 = smul.addr %s169, 3
      %s171 = smul.addr %s167, 96
      %s172 = sadd.s32 %s170, %s171
      %s173 = smul.addr %s172, 4
      %s174 = scalar_lea.vmem %s0, %s173
      %p175 = pneg %p49
      %p176 = pneg %p46
      %p177 = pneg %p70
      %p178 = pneg %p67
      %p179 = pneg %p91
      %p180 = pneg %p88
      %p181 = pneg %p119
      %p182 = pneg %p116
      %s183 = smul.u32 32, %s19
      %p184 = scmp.lt.s32.totalorder %s18, 1
      %s185 = scalar_select %p184, %s18, 1
      %p186 = scmp.lt.s32.totalorder %s183, 31
      %s187 = scalar_select %p186, %s183, 31
      %s188 = smul.addr %s185, 32
      %s189 = sadd.s32 %s187, %s188
      %s190 = smul.addr %s189, 4
      %s191 = scalar_lea.vmem %s3, %s190
      %s192 = smul.u32 32, %s19
      %p193 = scmp.lt.s32.totalorder %s18, 1
      %s194 = scalar_select %p193, %s18, 1
      %p195 = scmp.lt.s32.totalorder %s192, 31
      %s196 = scalar_select %p195, %s192, 31
      %s197 = smul.addr %s196, 3
      %s198 = smul.addr %s194, 96
      %s199 = sadd.s32 %s197, %s198
      %s200 = smul.addr %s199, 4
      %s201 = scalar_lea.vmem %s0, %s200
      %s202 = smul.u32 32, %s19
      %s203 = smul.u32 32, %s19
      %p204 = scmp.lt.s32.totalorder %s18, 1
      %s205 = scalar_select %p204, %s18, 1
      %p206 = scmp.lt.s32.totalorder %s203, 31
      %s207 = scalar_select %p206, %s203, 31
      %s208 = smul.addr %s205, 32
      %s209 = sadd.s32 %s207, %s208
      %s210 = smul.addr %s209, 4
      %s211 = scalar_lea.vmem %s3, %s210
      %s212 = smul.u32 32, %s19
      %v214 = vld [vmem:[%s201] sm:$0xff]
      %v215 = vld [vmem:[%s201 + $0x8] sm:$0xf]
      %v216 = vld [vmem:[%s201 + $0xc] sm:$0xff]
      %v217 = vld [vmem:[%s201 + $0x14] sm:$0xf]
      %v218 = vld [vmem:[%s201 + $0x18] sm:$0xff]
      %v219 = vld [vmem:[%s201 + $0x20] sm:$0xf]
      %v220 = vld [vmem:[%s201 + $0x24] sm:$0xff]
      %v221 = vld [vmem:[%s201 + $0x2c] sm:$0xf]
      %v222 = vld [vmem:[%s201 + $0x30] sm:$0xff]
      %v223 = vld [vmem:[%s201 + $0x38] sm:$0xf]
      %v224 = vld [vmem:[%s201 + $0x3c] sm:$0xff]
      %v225 = vld [vmem:[%s201 + $0x44] sm:$0xf]
      %v226 = vld [vmem:[%s201 + $0x48] sm:$0xff]
      %v227 = vld [vmem:[%s201 + $0x50] sm:$0xf]
      %v228 = vld [vmem:[%s201 + $0x54] sm:$0xff]
      %v229 = vld [vmem:[%s201 + $0x5c] sm:$0xf]
      %v230 = vld [vmem:[%s201 + $0x60] sm:$0xff]
      %v231 = vld [vmem:[%s201 + $0x68] sm:$0xf]
      %v232 = vld [vmem:[%s201 + $0x6c] sm:$0xff]
      %v233 = vld [vmem:[%s201 + $0x74] sm:$0xf]
      %v234 = vld [vmem:[%s201 + $0x78] sm:$0xff]
      %v235 = vld [vmem:[%s201 + $0x80] sm:$0xf]
      %v236 = vld [vmem:[%s201 + $0x84] sm:$0xff]
      %v237 = vld [vmem:[%s201 + $0x8c] sm:$0xf]
      %v238 = vld [vmem:[%s201 + $0x90] sm:$0xff]
      %v239 = vld [vmem:[%s201 + $0x98] sm:$0xf]
      %v240 = vld [vmem:[%s201 + $0x9c] sm:$0xff]
      %v241 = vld [vmem:[%s201 + $0xa4] sm:$0xf]
      %v242 = vld [vmem:[%s201 + $0xa8] sm:$0xff]
      %v243 = vld [vmem:[%s201 + $0xb0] sm:$0xf]
      %v244 = vld [vmem:[%s201 + $0xb4] sm:$0xff]
      %v245 = vld [vmem:[%s201 + $0xbc] sm:$0xf]
      %v246 = vld [vmem:[%s201 + $0xc0] sm:$0xff]
      %v247 = vld [vmem:[%s201 + $0xc8] sm:$0xf]
      %v248 = vld [vmem:[%s201 + $0xcc] sm:$0xff]
      %v249 = vld [vmem:[%s201 + $0xd4] sm:$0xf]
      %v250 = vld [vmem:[%s201 + $0xd8] sm:$0xff]
      %v251 = vld [vmem:[%s201 + $0xe0] sm:$0xf]
      %v252 = vld [vmem:[%s201 + $0xe4] sm:$0xff]
      %v253 = vld [vmem:[%s201 + $0xec] sm:$0xf]
      %v254 = vld [vmem:[%s201 + $0xf0] sm:$0xff]
      %v255 = vld [vmem:[%s201 + $0xf8] sm:$0xf]
      %v256 = vld [vmem:[%s201 + $0xfc] sm:$0xff]
      %v257 = vld [vmem:[%s201 + $0x104] sm:$0xf]
      %v258 = vld [vmem:[%s201 + $0x108] sm:$0xff]
      %v259 = vld [vmem:[%s201 + $0x110] sm:$0xf]
      %v260 = vld [vmem:[%s201 + $0x114] sm:$0xff]
      %v261 = vld [vmem:[%s201 + $0x11c] sm:$0xf]
      %v262 = vld [vmem:[%s201 + $0x120] sm:$0xff]
      %v263 = vld [vmem:[%s201 + $0x128] sm:$0xf]
      %v264 = vld [vmem:[%s201 + $0x12c] sm:$0xff]
      %v265 = vld [vmem:[%s201 + $0x134] sm:$0xf]
      %v266 = vld [vmem:[%s201 + $0x138] sm:$0xff]
      %v267 = vld [vmem:[%s201 + $0x140] sm:$0xf]
      %v268 = vld [vmem:[%s201 + $0x144] sm:$0xff]
      %v269 = vld [vmem:[%s201 + $0x14c] sm:$0xf]
      %v270 = vld [vmem:[%s201 + $0x150] sm:$0xff]
      %v271 = vld [vmem:[%s201 + $0x158] sm:$0xf]
      %v272 = vld [vmem:[%s201 + $0x15c] sm:$0xff]
      %v273 = vld [vmem:[%s201 + $0x164] sm:$0xf]
      %v274 = vld [vmem:[%s201 + $0x168] sm:$0xff]
      %v275 = vld [vmem:[%s201 + $0x170] sm:$0xf]
      %v276 = vld [vmem:[%s201 + $0x174] sm:$0xff]
      %v277 = vld [vmem:[%s201 + $0x17c] sm:$0xf]
      %v278 = vld [vmem:[%s1] sm:$0xf]
      %v279 = vld [vmem:[%s1 + $0x4] sm:$0xf]
      %v280 = vld [vmem:[%s1 + $0x8] sm:$0xf]
      %v281 = vld [vmem:[%s1 + $0xc] sm:$0xf]
      %v282 = vld [vmem:[%s1 + $0x10] sm:$0xf]
      %v283 = vld [vmem:[%s1 + $0x14] sm:$0xf]
      %v284 = vld [vmem:[%s1 + $0x18] sm:$0xf]
      %v285 = vld [vmem:[%s1 + $0x1c] sm:$0xf]
      %v286 = vld [vmem:[%s1 + $0x20] sm:$0xf]
      %v287 = vld [vmem:[%s1 + $0x24] sm:$0xf]
      %v288 = vld [vmem:[%s1 + $0x28] sm:$0xf]
      %v289 = vld [vmem:[%s1 + $0x2c] sm:$0xf]
      %v290 = vld [vmem:[%s1 + $0x30] sm:$0xf]
      %v291 = vld [vmem:[%s1 + $0x34] sm:$0xf]
      %v292 = vld [vmem:[%s1 + $0x38] sm:$0xf]
      %v293 = vld [vmem:[%s1 + $0x3c] sm:$0xf]
      %v294 = vld [vmem:[%s1 + $0x40] sm:$0xf]
      %v295 = vld [vmem:[%s1 + $0x44] sm:$0xf]
      %v296 = vld [vmem:[%s1 + $0x48] sm:$0xf]
      %v297 = vld [vmem:[%s1 + $0x4c] sm:$0xf]
      %v298 = vld [vmem:[%s1 + $0x50] sm:$0xf]
      %v299 = vld [vmem:[%s1 + $0x54] sm:$0xf]
      %v300 = vld [vmem:[%s1 + $0x58] sm:$0xf]
      %v301 = vld [vmem:[%s1 + $0x5c] sm:$0xf]
      %v302 = vld [vmem:[%s1 + $0x60] sm:$0xf]
      %v303 = vld [vmem:[%s1 + $0x64] sm:$0xf]
      %v304 = vld [vmem:[%s1 + $0x68] sm:$0xf]
      %v305 = vld [vmem:[%s1 + $0x6c] sm:$0xf]
      %v306 = vld [vmem:[%s1 + $0x70] sm:$0xf]
      %v307 = vld [vmem:[%s1 + $0x74] sm:$0xf]
      %v308 = vld [vmem:[%s1 + $0x78] sm:$0xf]
      %v309 = vld [vmem:[%s1 + $0x7c] sm:$0xf]
      %v310 = vld [vmem:[%s1 + $0x80] sm:$0xf]
      %v311 = vld [vmem:[%s1 + $0x84] sm:$0xf]
      %v312 = vld [vmem:[%s1 + $0x88] sm:$0xf]
      %v313 = vld [vmem:[%s1 + $0x8c] sm:$0xf]
      %v314 = vld [vmem:[%s2] sm:$0x1]
      %v316 = vlaneseq
      %v317 = vshrl.u32 %v316, 7
      %v318 = vsub.s32 0, %v317
      %v319 = vrot.slane %v314, %v318
      %v385 = vunpack.c.l.b16 %v214
      %v386 = vunpack.c.h.b16 %v214
      %v387 = vunpack.c.l.b16 %v215
      %v388 = vunpack.c.l.b16 %v216
      %v389 = vunpack.c.h.b16 %v216
      %v390 = vunpack.c.l.b16 %v217
      %v391 = vunpack.c.l.b16 %v218
      %v392 = vunpack.c.h.b16 %v218
      %v393 = vunpack.c.l.b16 %v219
      %v394 = vunpack.c.l.b16 %v220
      %v395 = vunpack.c.h.b16 %v220
      %v396 = vunpack.c.l.b16 %v221
      %v397 = vunpack.c.l.b16 %v222
      %v398 = vunpack.c.h.b16 %v222
      %v399 = vunpack.c.l.b16 %v223
      %v400 = vunpack.c.l.b16 %v224
      %v401 = vunpack.c.h.b16 %v224
      %v402 = vunpack.c.l.b16 %v225
      %v403 = vunpack.c.l.b16 %v226
      %v404 = vunpack.c.h.b16 %v226
      %v405 = vunpack.c.l.b16 %v227
      %v406 = vunpack.c.l.b16 %v228
      %v407 = vunpack.c.h.b16 %v228
      %v408 = vunpack.c.l.b16 %v229
      %v409 = vunpack.c.l.b16 %v230
      %v410 = vunpack.c.h.b16 %v230
      %v411 = vunpack.c.l.b16 %v231
      %v412 = vunpack.c.l.b16 %v232
      %v413 = vunpack.c.h.b16 %v232
      %v414 = vunpack.c.l.b16 %v233
      %v415 = vunpack.c.l.b16 %v234
      %v416 = vunpack.c.h.b16 %v234
      %v417 = vunpack.c.l.b16 %v235
      %v418 = vunpack.c.l.b16 %v236
      %v419 = vunpack.c.h.b16 %v236
      %v420 = vunpack.c.l.b16 %v237
      %v421 = vunpack.c.l.b16 %v238
      %v422 = vunpack.c.h.b16 %v238
      %v423 = vunpack.c.l.b16 %v239
      %v424 = vunpack.c.l.b16 %v240
      %v425 = vunpack.c.h.b16 %v240
      %v426 = vunpack.c.l.b16 %v241
      %v427 = vunpack.c.l.b16 %v242
      %v428 = vunpack.c.h.b16 %v242
      %v429 = vunpack.c.l.b16 %v243
      %v430 = vunpack.c.l.b16 %v244
      %v431 = vunpack.c.h.b16 %v244
      %v432 = vunpack.c.l.b16 %v245
      %v433 = vunpack.c.l.b16 %v246
      %v434 = vunpack.c.h.b16 %v246
      %v435 = vunpack.c.l.b16 %v247
      %v436 = vunpack.c.l.b16 %v248
      %v437 = vunpack.c.h.b16 %v248
      %v438 = vunpack.c.l.b16 %v249
      %v439 = vunpack.c.l.b16 %v250
      %v440 = vunpack.c.h.b16 %v250
      %v441 = vunpack.c.l.b16 %v251
      %v442 = vunpack.c.l.b16 %v252
      %v443 = vunpack.c.h.b16 %v252
      %v444 = vunpack.c.l.b16 %v253
      %v445 = vunpack.c.l.b16 %v254
      %v446 = vunpack.c.h.b16 %v254
      %v447 = vunpack.c.l.b16 %v255
      %v448 = vunpack.c.l.b16 %v256
      %v449 = vunpack.c.h.b16 %v256
      %v450 = vunpack.c.l.b16 %v257
      %v451 = vunpack.c.l.b16 %v258
      %v452 = vunpack.c.h.b16 %v258
      %v453 = vunpack.c.l.b16 %v259
      %v454 = vunpack.c.l.b16 %v260
      %v455 = vunpack.c.h.b16 %v260
      %v456 = vunpack.c.l.b16 %v261
      %v457 = vunpack.c.l.b16 %v262
      %v458 = vunpack.c.h.b16 %v262
      %v459 = vunpack.c.l.b16 %v263
      %v460 = vunpack.c.l.b16 %v264
      %v461 = vunpack.c.h.b16 %v264
      %v462 = vunpack.c.l.b16 %v265
      %v463 = vunpack.c.l.b16 %v266
      %v464 = vunpack.c.h.b16 %v266
      %v465 = vunpack.c.l.b16 %v267
      %v466 = vunpack.c.l.b16 %v268
      %v467 = vunpack.c.h.b16 %v268
      %v468 = vunpack.c.l.b16 %v269
      %v469 = vunpack.c.l.b16 %v270
      %v470 = vunpack.c.h.b16 %v270
      %v471 = vunpack.c.l.b16 %v271
      %v472 = vunpack.c.l.b16 %v272
      %v473 = vunpack.c.h.b16 %v272
      %v474 = vunpack.c.l.b16 %v273
      %v475 = vunpack.c.l.b16 %v274
      %v476 = vunpack.c.h.b16 %v274
      %v477 = vunpack.c.l.b16 %v275
      %v478 = vunpack.c.l.b16 %v276
      %v479 = vunpack.c.h.b16 %v276
      %v480 = vunpack.c.l.b16 %v277
      %v481 = vpack.c.b16 %v388, %v385
      %v482 = vpack.c.b16 %v389, %v386
      %v483 = vpack.c.b16 %v390, %v387
      %v484 = vpack.c.b16 %v394, %v391
      %v485 = vpack.c.b16 %v395, %v392
      %v486 = vpack.c.b16 %v396, %v393
      %v487 = vpack.c.b16 %v400, %v397
      %v488 = vpack.c.b16 %v401, %v398
      %v489 = vpack.c.b16 %v402, %v399
      %v490 = vpack.c.b16 %v406, %v403
      %v491 = vpack.c.b16 %v407, %v404
      %v492 = vpack.c.b16 %v408, %v405
      %v493 = vpack.c.b16 %v412, %v409
      %v494 = vpack.c.b16 %v413, %v410
      %v495 = vpack.c.b16 %v414, %v411
      %v496 = vpack.c.b16 %v418, %v415
      %v497 = vpack.c.b16 %v419, %v416
      %v498 = vpack.c.b16 %v420, %v417
      %v499 = vpack.c.b16 %v424, %v421
      %v500 = vpack.c.b16 %v425, %v422
      %v501 = vpack.c.b16 %v426, %v423
      %v502 = vpack.c.b16 %v430, %v427
      %v503 = vpack.c.b16 %v431, %v428
      %v504 = vpack.c.b16 %v432, %v429
      %v505 = vpack.c.b16 %v436, %v433
      %v506 = vpack.c.b16 %v437, %v434
      %v507 = vpack.c.b16 %v438, %v435
      %v508 = vpack.c.b16 %v442, %v439
      %v509 = vpack.c.b16 %v443, %v440
      %v510 = vpack.c.b16 %v444, %v441
      %v511 = vpack.c.b16 %v448, %v445
      %v512 = vpack.c.b16 %v449, %v446
      %v513 = vpack.c.b16 %v450, %v447
      %v514 = vpack.c.b16 %v454, %v451
      %v515 = vpack.c.b16 %v455, %v452
      %v516 = vpack.c.b16 %v456, %v453
      %v517 = vpack.c.b16 %v460, %v457
      %v518 = vpack.c.b16 %v461, %v458
      %v519 = vpack.c.b16 %v462, %v459
      %v520 = vpack.c.b16 %v466, %v463
      %v521 = vpack.c.b16 %v467, %v464
      %v522 = vpack.c.b16 %v468, %v465
      %v523 = vpack.c.b16 %v472, %v469
      %v524 = vpack.c.b16 %v473, %v470
      %v525 = vpack.c.b16 %v474, %v471
      %v526 = vpack.c.b16 %v478, %v475
      %v527 = vpack.c.b16 %v479, %v476
      %v528 = vpack.c.b16 %v480, %v477
      %v597 = vunpack.c.l.b16 %v278
      %v598 = vunpack.c.l.b16 %v279
      %v599 = vunpack.c.l.b16 %v280
      %v600 = vunpack.c.l.b16 %v281
      %v601 = vunpack.c.l.b16 %v282
      %v602 = vunpack.c.l.b16 %v283
      %v603 = vunpack.c.l.b16 %v284
      %v604 = vunpack.c.l.b16 %v285
      %v605 = vunpack.c.l.b16 %v286
      %v606 = vunpack.c.l.b16 %v287
      %v607 = vunpack.c.l.b16 %v288
      %v608 = vunpack.c.l.b16 %v289
      %v609 = vunpack.c.l.b16 %v290
      %v610 = vunpack.c.l.b16 %v291
      %v611 = vunpack.c.l.b16 %v292
      %v612 = vunpack.c.l.b16 %v293
      %v613 = vunpack.c.l.b16 %v294
      %v614 = vunpack.c.l.b16 %v295
      %v615 = vunpack.c.l.b16 %v296
      %v616 = vunpack.c.l.b16 %v297
      %v617 = vunpack.c.l.b16 %v298
      %v618 = vunpack.c.l.b16 %v299
      %v619 = vunpack.c.l.b16 %v300
      %v620 = vunpack.c.l.b16 %v301
      %v621 = vunpack.c.l.b16 %v302
      %v622 = vunpack.c.l.b16 %v303
      %v623 = vunpack.c.l.b16 %v304
      %v624 = vunpack.c.l.b16 %v305
      %v625 = vunpack.c.l.b16 %v306
      %v626 = vunpack.c.l.b16 %v307
      %v627 = vunpack.c.l.b16 %v308
      %v628 = vunpack.c.l.b16 %v309
      %v629 = vunpack.c.l.b16 %v310
      %v630 = vunpack.c.l.b16 %v311
      %v631 = vunpack.c.l.b16 %v312
      %v632 = vunpack.c.l.b16 %v313
      %v633 = vpack.c.b16 %v598, %v597
      %v634 = vpack.c.b16 %v600, %v599
      %v635 = vpack.c.b16 %v602, %v601
      %v636 = vpack.c.b16 %v604, %v603
      %v637 = vpack.c.b16 %v606, %v605
      %v638 = vpack.c.b16 %v608, %v607
      %v639 = vpack.c.b16 %v610, %v609
      %v640 = vpack.c.b16 %v612, %v611
      %v641 = vpack.c.b16 %v614, %v613
      %v642 = vpack.c.b16 %v616, %v615
      %v643 = vpack.c.b16 %v618, %v617
      %v644 = vpack.c.b16 %v620, %v619
      %v645 = vpack.c.b16 %v622, %v621
      %v646 = vpack.c.b16 %v624, %v623
      %v647 = vpack.c.b16 %v626, %v625
      %v648 = vpack.c.b16 %v628, %v627
      %v649 = vpack.c.b16 %v630, %v629
      %v650 = vpack.c.b16 %v632, %v631
      %vm669 = vcmask 261120
      %v671 = vsel %vm669, %v483, 0
      %v674 = vsel %vm669, %v486, 0
      %v677 = vsel %vm669, %v489, 0
      %v680 = vsel %vm669, %v492, 0
      %v683 = vsel %vm669, %v495, 0
      %v686 = vsel %vm669, %v498, 0
      %v689 = vsel %vm669, %v501, 0
      %v692 = vsel %vm669, %v504, 0
      %v695 = vsel %vm669, %v507, 0
      %v698 = vsel %vm669, %v510, 0
      %v701 = vsel %vm669, %v513, 0
      %v704 = vsel %vm669, %v516, 0
      %v707 = vsel %vm669, %v519, 0
      %v710 = vsel %vm669, %v522, 0
      %v713 = vsel %vm669, %v525, 0
      %v716 = vsel %vm669, %v528, 0
      %718 = vmatprep.subr.bf16.mxu0 0
      %719 = vmatpush1.bf16.msra.mxu0 %v640
      %720 = vmatprep.subr.bf16.mxu0 0
      %721 = vmatpush1.bf16.msra.mxu0 %v639
      %722 = vmatprep.subr.bf16.mxu0 0
      %723 = vmatpush1.bf16.msra.mxu0 %v638
      %724 = vmatprep.subr.bf16.mxu0 0
      %725 = vmatpush1.bf16.msra.mxu0 %v637
      %726 = vmatprep.subr.bf16.mxu0 0
      %727 = vmatpush1.bf16.msra.mxu0 %v636
      %728 = vmatprep.subr.bf16.mxu0 0
      %729 = vmatpush1.bf16.msra.mxu0 %v635
      %730 = vmatprep.subr.bf16.mxu0 0
      %731 = vmatpush1.bf16.msra.mxu0 %v634
      %732 = vmatprep.subr.bf16.mxu0 0
      %733 = vmatpush1.bf16.msra.mxu0 %v633
      %734 = vmatprep.subr.bf16.mxu0 0
      %735 = vmatpush2.bf16.msra.mxu0 %v648
      %736 = vmatprep.subr.bf16.mxu0 0
      %737 = vmatpush2.bf16.msra.mxu0 %v647
      %738 = vmatprep.subr.bf16.mxu0 0
      %739 = vmatpush2.bf16.msra.mxu0 %v646
      %740 = vmatprep.subr.bf16.mxu0 0
      %741 = vmatpush2.bf16.msra.mxu0 %v645
      %742 = vmatprep.subr.bf16.mxu0 0
      %743 = vmatpush2.bf16.msra.mxu0 %v644
      %744 = vmatprep.subr.bf16.mxu0 0
      %745 = vmatpush2.bf16.msra.mxu0 %v643
      %746 = vmatprep.subr.bf16.mxu0 0
      %747 = vmatpush2.bf16.msra.mxu0 %v642
      %748 = vmatprep.subr.bf16.mxu0 0
      %749 = vmatpush2.bf16.msra.mxu0 %v641
      %750 = vmatprep.mubr.bf16.mxu0 %v482
      %751 = vmatmul.mubr.bf16.gmra.mxu0 %v481
      %v752 = vpop.f32.mrf.mxu0
      %v753 = vadd.f32 %v319, %v752
      %v754 = vpop.f32.mrf.mxu0
      %v755 = vpop.f32.mrf.mxu0
      %v756 = vadd.f32 %v319, %v755
      %v757 = vpop.f32.mrf.mxu0
      %758 = vmatprep.mubr.bf16.mxu0 %v485
      %759 = vmatmul.mubr.bf16.gmra.mxu0 %v484
      %v760 = vpop.f32.mrf.mxu0
      %v761 = vadd.f32 %v319, %v760
      %v762 = vpop.f32.mrf.mxu0
      %v763 = vpop.f32.mrf.mxu0
      %v764 = vadd.f32 %v319, %v763
      %v765 = vpop.f32.mrf.mxu0
      %766 = vmatprep.mubr.bf16.mxu0 %v488
      %767 = vmatmul.mubr.bf16.gmra.mxu0 %v487
      %v768 = vpop.f32.mrf.mxu0
      %v769 = vadd.f32 %v319, %v768
      %v770 = vpop.f32.mrf.mxu0
      %v771 = vpop.f32.mrf.mxu0
      %v772 = vadd.f32 %v319, %v771
      %v773 = vpop.f32.mrf.mxu0
      %774 = vmatprep.mubr.bf16.mxu0 %v491
      %775 = vmatmul.mubr.bf16.gmra.mxu0 %v490
      %v776 = vpop.f32.mrf.mxu0
      %v777 = vadd.f32 %v319, %v776
      %v778 = vpop.f32.mrf.mxu0
      %v779 = vpop.f32.mrf.mxu0
      %v780 = vadd.f32 %v319, %v779
      %v781 = vpop.f32.mrf.mxu0
      %782 = vmatprep.mubr.bf16.mxu0 %v494
      %783 = vmatmul.mubr.bf16.gmra.mxu0 %v493
      %v784 = vpop.f32.mrf.mxu0
      %v785 = vadd.f32 %v319, %v784
      %v786 = vpop.f32.mrf.mxu0
      %v787 = vpop.f32.mrf.mxu0
      %v788 = vadd.f32 %v319, %v787
      %v789 = vpop.f32.mrf.mxu0
      %790 = vmatprep.mubr.bf16.mxu0 %v497
      %791 = vmatmul.mubr.bf16.gmra.mxu0 %v496
      %v792 = vpop.f32.mrf.mxu0
      %v793 = vadd.f32 %v319, %v792
      %v794 = vpop.f32.mrf.mxu0
      %v795 = vpop.f32.mrf.mxu0
      %v796 = vadd.f32 %v319, %v795
      %v797 = vpop.f32.mrf.mxu0
      %798 = vmatprep.mubr.bf16.mxu0 %v500
      %799 = vmatmul.mubr.bf16.gmra.mxu0 %v499
      %v800 = vpop.f32.mrf.mxu0
      %v801 = vadd.f32 %v319, %v800
      %v802 = vpop.f32.mrf.mxu0
      %v803 = vpop.f32.mrf.mxu0
      %v804 = vadd.f32 %v319, %v803
      %v805 = vpop.f32.mrf.mxu0
      %806 = vmatprep.mubr.bf16.mxu0 %v503
      %807 = vmatmul.mubr.bf16.gmra.mxu0 %v502
      %v808 = vpop.f32.mrf.mxu0
      %v809 = vadd.f32 %v319, %v808
      %v810 = vpop.f32.mrf.mxu0
      %v811 = vpop.f32.mrf.mxu0
      %v812 = vadd.f32 %v319, %v811
      %v813 = vpop.f32.mrf.mxu0
      %814 = vmatprep.mubr.bf16.mxu0 %v506
      %815 = vmatmul.mubr.bf16.gmra.mxu0 %v505
      %v816 = vpop.f32.mrf.mxu0
      %v817 = vadd.f32 %v319, %v816
      %v818 = vpop.f32.mrf.mxu0
      %v819 = vpop.f32.mrf.mxu0
      %v820 = vadd.f32 %v319, %v819
      %v821 = vpop.f32.mrf.mxu0
      %822 = vmatprep.mubr.bf16.mxu0 %v509
      %823 = vmatmul.mubr.bf16.gmra.mxu0 %v508
      %v824 = vpop.f32.mrf.mxu0
      %v825 = vadd.f32 %v319, %v824
      %v826 = vpop.f32.mrf.mxu0
      %v827 = vpop.f32.mrf.mxu0
      %v828 = vadd.f32 %v319, %v827
      %v829 = vpop.f32.mrf.mxu0
      %830 = vmatprep.mubr.bf16.mxu0 %v512
      %831 = vmatmul.mubr.bf16.gmra.mxu0 %v511
      %v832 = vpop.f32.mrf.mxu0
      %v833 = vadd.f32 %v319, %v832
      %v834 = vpop.f32.mrf.mxu0
      %v835 = vpop.f32.mrf.mxu0
      %v836 = vadd.f32 %v319, %v835
      %v837 = vpop.f32.mrf.mxu0
      %838 = vmatprep.mubr.bf16.mxu0 %v515
      %839 = vmatmul.mubr.bf16.gmra.mxu0 %v514
      %v840 = vpop.f32.mrf.mxu0
      %v841 = vadd.f32 %v319, %v840
      %v842 = vpop.f32.mrf.mxu0
      %v843 = vpop.f32.mrf.mxu0
      %v844 = vadd.f32 %v319, %v843
      %v845 = vpop.f32.mrf.mxu0
      %846 = vmatprep.mubr.bf16.mxu0 %v518
      %847 = vmatmul.mubr.bf16.gmra.mxu0 %v517
      %v848 = vpop.f32.mrf.mxu0
      %v849 = vadd.f32 %v319, %v848
      %v850 = vpop.f32.mrf.mxu0
      %v851 = vpop.f32.mrf.mxu0
      %v852 = vadd.f32 %v319, %v851
      %v853 = vpop.f32.mrf.mxu0
      %854 = vmatprep.mubr.bf16.mxu0 %v521
      %855 = vmatmul.mubr.bf16.gmra.mxu0 %v520
      %v856 = vpop.f32.mrf.mxu0
      %v857 = vadd.f32 %v319, %v856
      %v858 = vpop.f32.mrf.mxu0
      %v859 = vpop.f32.mrf.mxu0
      %v860 = vadd.f32 %v319, %v859
      %v861 = vpop.f32.mrf.mxu0
      %862 = vmatprep.mubr.bf16.mxu0 %v524
      %863 = vmatmul.mubr.bf16.gmra.mxu0 %v523
      %v864 = vpop.f32.mrf.mxu0
      %v865 = vadd.f32 %v319, %v864
      %v866 = vpop.f32.mrf.mxu0
      %v867 = vpop.f32.mrf.mxu0
      %v868 = vadd.f32 %v319, %v867
      %v869 = vpop.f32.mrf.mxu0
      %870 = vmatprep.mubr.bf16.mxu0 %v527
      %871 = vmatmul.mubr.bf16.gmra.mxu0 %v526
      %v872 = vpop.f32.mrf.mxu0
      %v873 = vadd.f32 %v319, %v872
      %v874 = vpop.f32.mrf.mxu0
      %v875 = vpop.f32.mrf.mxu0
      %v876 = vadd.f32 %v319, %v875
      %v877 = vpop.f32.mrf.mxu0
      %878 = vdwg.mxu0
      %879 = vmatprep.subr.bf16.mxu0 0
      %880 = vmatpush1.bf16.msra.mxu0 0
      %881 = vmatprep.subr.bf16.mxu0 0
      %882 = vmatpush1.bf16.msra.mxu0 0
      %883 = vmatprep.subr.bf16.mxu0 0
      %884 = vmatpush1.bf16.msra.mxu0 0
      %885 = vmatprep.subr.bf16.mxu0 0
      %886 = vmatpush1.bf16.msra.mxu0 0
      %887 = vmatprep.subr.bf16.mxu0 0
      %888 = vmatpush1.bf16.msra.mxu0 0
      %889 = vmatprep.subr.bf16.mxu0 0
      %890 = vmatpush1.bf16.msra.mxu0 0
      %891 = vmatprep.subr.bf16.mxu0 0
      %892 = vmatpush1.bf16.msra.mxu0 %v650
      %893 = vmatprep.subr.bf16.mxu0 0
      %894 = vmatpush1.bf16.msra.mxu0 %v649
      %895 = vmatprep.subr.bf16.mxu0 0
      %896 = vmatpush2.bf16.msra.mxu0 0
      %897 = vmatprep.subr.bf16.mxu0 0
      %898 = vmatpush2.bf16.msra.mxu0 0
      %899 = vmatprep.subr.bf16.mxu0 0
      %900 = vmatpush2.bf16.msra.mxu0 0
      %901 = vmatprep.subr.bf16.mxu0 0
      %902 = vmatpush2.bf16.msra.mxu0 0
      %903 = vmatprep.subr.bf16.mxu0 0
      %904 = vmatpush2.bf16.msra.mxu0 0
      %905 = vmatprep.subr.bf16.mxu0 0
      %906 = vmatpush2.bf16.msra.mxu0 0
      %907 = vmatprep.subr.bf16.mxu0 0
      %908 = vmatpush2.bf16.msra.mxu0 0
      %909 = vmatprep.subr.bf16.mxu0 0
      %910 = vmatpush2.bf16.msra.mxu0 0
      %911 = vmatprep.mubr.bf16.mxu0 0
      %912 = vmatmul.mubr.bf16.gmra.mxu0 %v671
      %v913 = vpop.f32.mrf.mxu0
      %v914 = vadd.f32 %v753, %v913
      %v915 = vpop.f32.mrf.mxu0
      %v916 = vpop.f32.mrf.mxu0
      %v917 = vadd.f32 %v756, %v916
      %v918 = vpop.f32.mrf.mxu0
      %919 = vmatprep.mubr.bf16.mxu0 0
      %920 = vmatmul.mubr.bf16.gmra.mxu0 %v674
      %v921 = vpop.f32.mrf.mxu0
      %v922 = vadd.f32 %v761, %v921
      %v923 = vpop.f32.mrf.mxu0
      %v924 = vpop.f32.mrf.mxu0
      %v925 = vadd.f32 %v764, %v924
      %v926 = vpop.f32.mrf.mxu0
      %927 = vmatprep.mubr.bf16.mxu0 0
      %928 = vmatmul.mubr.bf16.gmra.mxu0 %v677
      %v929 = vpop.f32.mrf.mxu0
      %v930 = vadd.f32 %v769, %v929
      %v931 = vpop.f32.mrf.mxu0
      %v932 = vpop.f32.mrf.mxu0
      %v933 = vadd.f32 %v772, %v932
      %v934 = vpop.f32.mrf.mxu0
      %935 = vmatprep.mubr.bf16.mxu0 0
      %936 = vmatmul.mubr.bf16.gmra.mxu0 %v680
      %v937 = vpop.f32.mrf.mxu0
      %v938 = vadd.f32 %v777, %v937
      %v939 = vpop.f32.mrf.mxu0
      %v940 = vpop.f32.mrf.mxu0
      %v941 = vadd.f32 %v780, %v940
      %v942 = vpop.f32.mrf.mxu0
      %943 = vmatprep.mubr.bf16.mxu0 0
      %944 = vmatmul.mubr.bf16.gmra.mxu0 %v683
      %v945 = vpop.f32.mrf.mxu0
      %v946 = vadd.f32 %v785, %v945
      %v947 = vpop.f32.mrf.mxu0
      %v948 = vpop.f32.mrf.mxu0
      %v949 = vadd.f32 %v788, %v948
      %v950 = vpop.f32.mrf.mxu0
      %951 = vmatprep.mubr.bf16.mxu0 0
      %952 = vmatmul.mubr.bf16.gmra.mxu0 %v686
      %v953 = vpop.f32.mrf.mxu0
      %v954 = vadd.f32 %v793, %v953
      %v955 = vpop.f32.mrf.mxu0
      %v956 = vpop.f32.mrf.mxu0
      %v957 = vadd.f32 %v796, %v956
      %v958 = vpop.f32.mrf.mxu0
      %959 = vmatprep.mubr.bf16.mxu0 0
      %960 = vmatmul.mubr.bf16.gmra.mxu0 %v689
      %v961 = vpop.f32.mrf.mxu0
      %v962 = vadd.f32 %v801, %v961
      %v963 = vpop.f32.mrf.mxu0
      %v964 = vpop.f32.mrf.mxu0
      %v965 = vadd.f32 %v804, %v964
      %v966 = vpop.f32.mrf.mxu0
      %967 = vmatprep.mubr.bf16.mxu0 0
      %968 = vmatmul.mubr.bf16.gmra.mxu0 %v692
      %v969 = vpop.f32.mrf.mxu0
      %v970 = vadd.f32 %v809, %v969
      %v971 = vpop.f32.mrf.mxu0
      %v972 = vpop.f32.mrf.mxu0
      %v973 = vadd.f32 %v812, %v972
      %v974 = vpop.f32.mrf.mxu0
      %975 = vmatprep.mubr.bf16.mxu0 0
      %976 = vmatmul.mubr.bf16.gmra.mxu0 %v695
      %v977 = vpop.f32.mrf.mxu0
      %v978 = vadd.f32 %v817, %v977
      %v979 = vpop.f32.mrf.mxu0
      %v980 = vpop.f32.mrf.mxu0
      %v981 = vadd.f32 %v820, %v980
      %v982 = vpop.f32.mrf.mxu0
      %983 = vmatprep.mubr.bf16.mxu0 0
      %984 = vmatmul.mubr.bf16.gmra.mxu0 %v698
      %v985 = vpop.f32.mrf.mxu0
      %v986 = vadd.f32 %v825, %v985
      %v987 = vpop.f32.mrf.mxu0
      %v988 = vpop.f32.mrf.mxu0
      %v989 = vadd.f32 %v828, %v988
      %v990 = vpop.f32.mrf.mxu0
      %991 = vmatprep.mubr.bf16.mxu0 0
      %992 = vmatmul.mubr.bf16.gmra.mxu0 %v701
      %v993 = vpop.f32.mrf.mxu0
      %v994 = vadd.f32 %v833, %v993
      %v995 = vpop.f32.mrf.mxu0
      %v996 = vpop.f32.mrf.mxu0
      %v997 = vadd.f32 %v836, %v996
      %v998 = vpop.f32.mrf.mxu0
      %999 = vmatprep.mubr.bf16.mxu0 0
      %1000 = vmatmul.mubr.bf16.gmra.mxu0 %v704
      %v1001 = vpop.f32.mrf.mxu0
      %v1002 = vadd.f32 %v841, %v1001
      %v1003 = vpop.f32.mrf.mxu0
      %v1004 = vpop.f32.mrf.mxu0
      %v1005 = vadd.f32 %v844, %v1004
      %v1006 = vpop.f32.mrf.mxu0
      %1007 = vmatprep.mubr.bf16.mxu0 0
      %1008 = vmatmul.mubr.bf16.gmra.mxu0 %v707
      %v1009 = vpop.f32.mrf.mxu0
      %v1010 = vadd.f32 %v849, %v1009
      %v1011 = vpop.f32.mrf.mxu0
      %v1012 = vpop.f32.mrf.mxu0
      %v1013 = vadd.f32 %v852, %v1012
      %v1014 = vpop.f32.mrf.mxu0
      %1015 = vmatprep.mubr.bf16.mxu0 0
      %1016 = vmatmul.mubr.bf16.gmra.mxu0 %v710
      %v1017 = vpop.f32.mrf.mxu0
      %v1018 = vadd.f32 %v857, %v1017
      %v1019 = vpop.f32.mrf.mxu0
      %v1020 = vpop.f32.mrf.mxu0
      %v1021 = vadd.f32 %v860, %v1020
      %v1022 = vpop.f32.mrf.mxu0
      %1023 = vmatprep.mubr.bf16.mxu0 0
      %1024 = vmatmul.mubr.bf16.gmra.mxu0 %v713
      %v1025 = vpop.f32.mrf.mxu0
      %v1026 = vadd.f32 %v865, %v1025
      %v1027 = vpop.f32.mrf.mxu0
      %v1028 = vpop.f32.mrf.mxu0
      %v1029 = vadd.f32 %v868, %v1028
      %v1030 = vpop.f32.mrf.mxu0
      %1031 = vmatprep.mubr.bf16.mxu0 0
      %1032 = vmatmul.mubr.bf16.gmra.mxu0 %v716
      %v1033 = vpop.f32.mrf.mxu0
      %v1034 = vadd.f32 %v873, %v1033
      %v1035 = vpop.f32.mrf.mxu0
      %v1036 = vpop.f32.mrf.mxu0
      %v1037 = vadd.f32 %v876, %v1036
      %v1038 = vpop.f32.mrf.mxu0
      %1039 = vdwg.mxu0
      %v1040 = vmax.f32 %v914, 0.0
      %v1041 = vmax.f32 %v917, 0.0
      %v1042 = vmax.f32 %v922, 0.0
      %v1043 = vmax.f32 %v925, 0.0
      %v1044 = vmax.f32 %v930, 0.0
      %v1045 = vmax.f32 %v933, 0.0
      %v1046 = vmax.f32 %v938, 0.0
      %v1047 = vmax.f32 %v941, 0.0
      %v1048 = vmax.f32 %v946, 0.0
      %v1049 = vmax.f32 %v949, 0.0
      %v1050 = vmax.f32 %v954, 0.0
      %v1051 = vmax.f32 %v957, 0.0
      %v1052 = vmax.f32 %v962, 0.0
      %v1053 = vmax.f32 %v965, 0.0
      %v1054 = vmax.f32 %v970, 0.0
      %v1055 = vmax.f32 %v973, 0.0
      %v1056 = vmax.f32 %v978, 0.0
      %v1057 = vmax.f32 %v981, 0.0
      %v1058 = vmax.f32 %v986, 0.0
      %v1059 = vmax.f32 %v989, 0.0
      %v1060 = vmax.f32 %v994, 0.0
      %v1061 = vmax.f32 %v997, 0.0
      %v1062 = vmax.f32 %v1002, 0.0
      %v1063 = vmax.f32 %v1005, 0.0
      %v1064 = vmax.f32 %v1010, 0.0
      %v1065 = vmax.f32 %v1013, 0.0
      %v1066 = vmax.f32 %v1018, 0.0
      %v1067 = vmax.f32 %v1021, 0.0
      %v1068 = vmax.f32 %v1026, 0.0
      %v1069 = vmax.f32 %v1029, 0.0
      %v1070 = vmax.f32 %v1034, 0.0
      %v1071 = vmax.f32 %v1037, 0.0
      %v1072 = vpack.c.bf16 %v1041, %v1040
      %v1073 = vpack.c.bf16 %v1043, %v1042
      %v1074 = vpack.c.bf16 %v1045, %v1044
      %v1075 = vpack.c.bf16 %v1047, %v1046
      %v1076 = vpack.c.bf16 %v1049, %v1048
      %v1077 = vpack.c.bf16 %v1051, %v1050
      %v1078 = vpack.c.bf16 %v1053, %v1052
      %v1079 = vpack.c.bf16 %v1055, %v1054
      %v1080 = vpack.c.bf16 %v1057, %v1056
      %v1081 = vpack.c.bf16 %v1059, %v1058
      %v1082 = vpack.c.bf16 %v1061, %v1060
      %v1083 = vpack.c.bf16 %v1063, %v1062
      %v1084 = vpack.c.bf16 %v1065, %v1064
      %v1085 = vpack.c.bf16 %v1067, %v1066
      %v1086 = vpack.c.bf16 %v1069, %v1068
      %v1087 = vpack.c.bf16 %v1071, %v1070
      %v1104 = vunpack.c.l.b16 %v1072
      %v1105 = vunpack.c.h.b16 %v1072
      %v1106 = vunpack.c.l.b16 %v1073
      %v1107 = vunpack.c.h.b16 %v1073
      %v1108 = vunpack.c.l.b16 %v1074
      %v1109 = vunpack.c.h.b16 %v1074
      %v1110 = vunpack.c.l.b16 %v1075
      %v1111 = vunpack.c.h.b16 %v1075
      %v1112 = vunpack.c.l.b16 %v1076
      %v1113 = vunpack.c.h.b16 %v1076
      %v1114 = vunpack.c.l.b16 %v1077
      %v1115 = vunpack.c.h.b16 %v1077
      %v1116 = vunpack.c.l.b16 %v1078
      %v1117 = vunpack.c.h.b16 %v1078
      %v1118 = vunpack.c.l.b16 %v1079
      %v1119 = vunpack.c.h.b16 %v1079
      %v1120 = vunpack.c.l.b16 %v1080
      %v1121 = vunpack.c.h.b16 %v1080
      %v1122 = vunpack.c.l.b16 %v1081
      %v1123 = vunpack.c.h.b16 %v1081
      %v1124 = vunpack.c.l.b16 %v1082
      %v1125 = vunpack.c.h.b16 %v1082
      %v1126 = vunpack.c.l.b16 %v1083
      %v1127 = vunpack.c.h.b16 %v1083
      %v1128 = vunpack.c.l.b16 %v1084
      %v1129 = vunpack.c.h.b16 %v1084
      %v1130 = vunpack.c.l.b16 %v1085
      %v1131 = vunpack.c.h.b16 %v1085
      %v1132 = vunpack.c.l.b16 %v1086
      %v1133 = vunpack.c.h.b16 %v1086
      %v1134 = vunpack.c.l.b16 %v1087
      %v1135 = vunpack.c.h.b16 %v1087
      %v1136 = vpack.c.b16 %v1104, %v1104
      %v1137 = vpack.c.b16 %v1105, %v1105
      %v1138 = vpack.c.b16 %v1106, %v1106
      %v1139 = vpack.c.b16 %v1107, %v1107
      %v1140 = vpack.c.b16 %v1108, %v1108
      %v1141 = vpack.c.b16 %v1109, %v1109
      %v1142 = vpack.c.b16 %v1110, %v1110
      %v1143 = vpack.c.b16 %v1111, %v1111
      %v1144 = vpack.c.b16 %v1112, %v1112
      %v1145 = vpack.c.b16 %v1113, %v1113
      %v1146 = vpack.c.b16 %v1114, %v1114
      %v1147 = vpack.c.b16 %v1115, %v1115
      %v1148 = vpack.c.b16 %v1116, %v1116
      %v1149 = vpack.c.b16 %v1117, %v1117
      %v1150 = vpack.c.b16 %v1118, %v1118
      %v1151 = vpack.c.b16 %v1119, %v1119
      %v1152 = vpack.c.b16 %v1120, %v1120
      %v1153 = vpack.c.b16 %v1121, %v1121
      %v1154 = vpack.c.b16 %v1122, %v1122
      %v1155 = vpack.c.b16 %v1123, %v1123
      %v1156 = vpack.c.b16 %v1124, %v1124
      %v1157 = vpack.c.b16 %v1125, %v1125
      %v1158 = vpack.c.b16 %v1126, %v1126
      %v1159 = vpack.c.b16 %v1127, %v1127
      %v1160 = vpack.c.b16 %v1128, %v1128
      %v1161 = vpack.c.b16 %v1129, %v1129
      %v1162 = vpack.c.b16 %v1130, %v1130
      %v1163 = vpack.c.b16 %v1131, %v1131
      %v1164 = vpack.c.b16 %v1132, %v1132
      %v1165 = vpack.c.b16 %v1133, %v1133
      %v1166 = vpack.c.b16 %v1134, %v1134
      %v1167 = vpack.c.b16 %v1135, %v1135
      %vm1200 = vcmask 257024
      %1201 = vst.msk [vmem:[%s211] sm:$0xf] %vm1200, %v1136
      %1202 = vst.msk [vmem:[%s211 + $0x4] sm:$0xf] %vm1200, %v1137
      %1203 = vst.msk [vmem:[%s211 + $0x8] sm:$0xf] %vm1200, %v1138
      %1204 = vst.msk [vmem:[%s211 + $0xc] sm:$0xf] %vm1200, %v1139
      %1205 = vst.msk [vmem:[%s211 + $0x10] sm:$0xf] %vm1200, %v1140
      %1206 = vst.msk [vmem:[%s211 + $0x14] sm:$0xf] %vm1200, %v1141
      %1207 = vst.msk [vmem:[%s211 + $0x18] sm:$0xf] %vm1200, %v1142
      %1208 = vst.msk [vmem:[%s211 + $0x1c] sm:$0xf] %vm1200, %v1143
      %1209 = vst.msk [vmem:[%s211 + $0x20] sm:$0xf] %vm1200, %v1144
      %1210 = vst.msk [vmem:[%s211 + $0x24] sm:$0xf] %vm1200, %v1145
      %1211 = vst.msk [vmem:[%s211 + $0x28] sm:$0xf] %vm1200, %v1146
      %1212 = vst.msk [vmem:[%s211 + $0x2c] sm:$0xf] %vm1200, %v1147
      %1213 = vst.msk [vmem:[%s211 + $0x30] sm:$0xf] %vm1200, %v1148
      %1214 = vst.msk [vmem:[%s211 + $0x34] sm:$0xf] %vm1200, %v1149
      %1215 = vst.msk [vmem:[%s211 + $0x38] sm:$0xf] %vm1200, %v1150
      %1216 = vst.msk [vmem:[%s211 + $0x3c] sm:$0xf] %vm1200, %v1151
      %1217 = vst.msk [vmem:[%s211 + $0x40] sm:$0xf] %vm1200, %v1152
      %1218 = vst.msk [vmem:[%s211 + $0x44] sm:$0xf] %vm1200, %v1153
      %1219 = vst.msk [vmem:[%s211 + $0x48] sm:$0xf] %vm1200, %v1154
      %1220 = vst.msk [vmem:[%s211 + $0x4c] sm:$0xf] %vm1200, %v1155
      %1221 = vst.msk [vmem:[%s211 + $0x50] sm:$0xf] %vm1200, %v1156
      %1222 = vst.msk [vmem:[%s211 + $0x54] sm:$0xf] %vm1200, %v1157
      %1223 = vst.msk [vmem:[%s211 + $0x58] sm:$0xf] %vm1200, %v1158
      %1224 = vst.msk [vmem:[%s211 + $0x5c] sm:$0xf] %vm1200, %v1159
      %1225 = vst.msk [vmem:[%s211 + $0x60] sm:$0xf] %vm1200, %v1160
      %1226 = vst.msk [vmem:[%s211 + $0x64] sm:$0xf] %vm1200, %v1161
      %1227 = vst.msk [vmem:[%s211 + $0x68] sm:$0xf] %vm1200, %v1162
      %1228 = vst.msk [vmem:[%s211 + $0x6c] sm:$0xf] %vm1200, %v1163
      %1229 = vst.msk [vmem:[%s211 + $0x70] sm:$0xf] %vm1200, %v1164
      %1230 = vst.msk [vmem:[%s211 + $0x74] sm:$0xf] %vm1200, %v1165
      %1231 = vst.msk [vmem:[%s211 + $0x78] sm:$0xf] %vm1200, %v1166
      %1232 = vst.msk [vmem:[%s211 + $0x7c] sm:$0xf] %vm1200, %v1167
      %s1233 = smul.u32 32, %s19
      %p1234 = scmp.lt.s32.totalorder %s18, 1
      %s1235 = scalar_select %p1234, %s18, 1
      %p1236 = scmp.lt.s32.totalorder %s1233, 31
      %s1237 = scalar_select %p1236, %s1233, 31
      %s1238 = smul.addr %s1235, 32
      %s1239 = sadd.s32 %s1237, %s1238
      %s1240 = smul.addr %s1239, 4
      %s1241 = scalar_lea.vmem %s3, %s1240
      // Predicated region
      $region33: #{autoencoder_pallas.25} parent=31 // pred_check
        %p1242 = pneg %p116
      $region34: #{autoencoder_pallas.25} parent=31 // pred_check_branch
        %1244 = sbr.rel (%p1242) target = $region36
      $region35: #{autoencoder_pallas.25} parent=31 // pred_region
        %s1245 = smul.u32 32, %s19
      $region36: #{autoencoder_pallas.25} parent=31 // pred_fallthru
        _
    $region32: #{autoencoder_pallas.25} parent=5 // pred_fallthru
      _
    %p1246 = scmp.le.s32.totalorder 2, %s9
    // Predicated region
    $region37: #{autoencoder_pallas.25} parent=5 // pred_check
      %p1247 = pneg %p1246
    $region38: #{autoencoder_pallas.25} parent=5 // pred_check_branch
      %1249 = sbr.rel (%p1247) target = $region40
    $region39: #{autoencoder_pallas.25} parent=5 // pred_region
      %s1250 = ssub.s32 %s9, 2
      // Predicated region
      $region41: #{autoencoder_pallas.25} parent=39 // pred_check
        %p1251 = pneg %p122
      $region42: #{autoencoder_pallas.25} parent=39 // pred_check_branch
        %1253 = sbr.rel (%p1251) target = $region44
      $region43: #{autoencoder_pallas.25} parent=39 // pred_region
        %s1254 = smul.u32 32, %s21
        %p1255 = scmp.lt.s32.totalorder %s20, 1
        %s1256 = scalar_select %p1255, %s20, 1
        %p1257 = scmp.lt.s32.totalorder %s1254, 31
        %s1258 = scalar_select %p1257, %s1254, 31
        %s1259 = smul.addr %s1256, 32
        %s1260 = sadd.s32 %s1258, %s1259
        %s1261 = smul.addr %s1260, 4
        %s1262 = scalar_lea.vmem %s3, %s1261
      $region44: #{autoencoder_pallas.25} parent=39 // pred_fallthru
        _
    $region40: #{autoencoder_pallas.25} parent=5 // pred_fallthru
      _
  $region6: #{autoencoder_pallas.25} parent=0 // loop_footer
    %s13 = sadd.s32 1, %s9
  $region7: #{autoencoder_pallas.25} parent=0 // loop_footer_branch
    %8 = sbr.rel target = $region3
  $region8: #{autoencoder_pallas.25} parent=0 // loop_exit
    _

// kernel: autoencoder_pallas.27
$region0: #{autoencoder_pallas.27}
  #allocation0 [shape = 'u32[]', space=smem, size = 0x4, offset = 0x4, fixed_abs, tag = 'smem constant byte address 0x4 - core index']
  #allocation1 [shape = 'u32[144,128]{1,0:T(1,128)}', space=vmem, size = 0x12000, scoped, tag = 'internal scratch']
  %s0 = inlined_call_operand.vmem [shape: bf16[2,256,32], index: 0, kind: input, shape index: {}]
  %s1 = inlined_call_operand.vmem [shape: bf16[32,3], index: 1, kind: input, shape index: {}]
  %s2 = inlined_call_operand.vmem [shape: f32[1,3], index: 2, kind: input, shape index: {}]
  %s3 = inlined_call_operand.vmem [shape: f32[2,256,3], index: 3, kind: output, shape index: {}]
  %s4 = sld [smem:[#allocation0]]
  $region45: #{autoencoder_pallas.27} parent=0
    _
  %s6 = ssub.s32 1, %s4
  %s7 = scalar_select 0, %s6, %s4
  loop: start=0, step=1, limit=4
  $region2: #{autoencoder_pallas.27} parent=0 // loop_pre_header
    _
  $region3: #{autoencoder_pallas.27} parent=0 // loop_header
    %s9 = sphi 0, %s13
    %p10 = scmp.ge.s32.totalorder %s9, 4
    %s16 = sphi 0, %s28
    %s17 = sphi 0, %s24
    %s18 = sphi 0, %s16
    %s19 = sphi 0, %s17
    %s20 = sphi 0, %s18
    %s21 = sphi 0, %s19
    %s33 = sphi 0, %s35
    %s36 = sphi 0, %s33
    %s37 = sphi 0, %s36
    %s53 = sphi 0, %s37
    %s57 = sphi 0, %s57
    %s59 = sphi 0, %s57
    %s60 = sphi 0, %s59
    %s74 = sphi 0, %s60
    %s78 = sphi 0, %s78
    %s80 = sphi 0, %s78
    %s81 = sphi 0, %s80
    %s95 = sphi 0, %s81
    %s103 = sphi 0, %s105
    %s106 = sphi 0, %s103
    %s107 = sphi 0, %s106
    %s123 = sphi 0, %s107
  $region4: #{autoencoder_pallas.27} parent=0 // loop_header_branch
    %12 = sbr.rel (%p10) target = $region8
  $region5: #{autoencoder_pallas.27} parent=0 // loop_body
    %s14 = ssub.s32 %s9, 1
    %s15 = ssub.s32 %s9, 2
    %s22 = sadd.s32 1, %s17
    %p23 = scmp.ge.s32.totalorder %s22, 1
    %s24 = scalar_select %p23, 0, %s22
    %s25 = sadd.s32 1, %s16
    %s26 = scalar_select %p23, %s25, %s16
    %p27 = scmp.ge.s32.totalorder %s26, 2
    %s28 = scalar_select %p27, 0, %s26
    %s29 = ssub.s32 %s16, %s28
    %s30 = ssub.s32 %s17, %s24
    %s31 = sor.u32 %s29, %s30
    %p32 = scmp.eq.s32.totalorder %s31, 0
    %s34 = sadd.s32 %s33, 1
    %s35 = scalar_select %p32, %s33, %s34
    %p38 = pneg %p32
    %p39 = scmp.eq.s32.totalorder %s9, 1
    %p40 = por %p38, %p39
    %p41 = scmp.ne.s32.totalorder %s33, %s36
    %p42 = scmp.eq.s32.totalorder %s9, 0
    %p43 = por %p41, %p42
    %p44 = scmp.ne.s32.totalorder %s33, %s36
    %p45 = scmp.eq.s32.totalorder %s14, 1
    %p46 = por %p44, %p45
    %p47 = scmp.ne.s32.totalorder %s36, %s37
    %p48 = scmp.eq.s32.totalorder %s14, 0
    %p49 = por %p47, %p48
    %p50 = scmp.ne.s32.totalorder %s36, %s37
    %p51 = scmp.eq.s32.totalorder %s15, 1
    %p52 = por %p50, %p51
    %p54 = scmp.ne.s32.totalorder %s37, %s53
    %p55 = scmp.eq.s32.totalorder %s15, 0
    %p56 = por %p54, %p55
    %s58 = sadd.s32 %s57, 1
    %p61 = scmp.eq.s32.totalorder %s9, 1
    %p62 = scmp.ne.s32.totalorder %s57, %s59
    %p63 = scmp.eq.s32.totalorder %s9, 0
    %p64 = por %p62, %p63
    %p65 = scmp.ne.s32.totalorder %s57, %s59
    %p66 = scmp.eq.s32.totalorder %s14, 1
    %p67 = por %p65, %p66
    %p68 = scmp.ne.s32.totalorder %s59, %s60
    %p69 = scmp.eq.s32.totalorder %s14, 0
    %p70 = por %p68, %p69
    %p71 = scmp.ne.s32.totalorder %s59, %s60
    %p72 = scmp.eq.s32.totalorder %s15, 1
    %p73 = por %p71, %p72
    %p75 = scmp.ne.s32.totalorder %s60, %s74
    %p76 = scmp.eq.s32.totalorder %s15, 0
    %p77 = por %p75, %p76
    %s79 = sadd.s32 %s78, 1
    %p82 = scmp.eq.s32.totalorder %s9, 1
    %p83 = scmp.ne.s32.totalorder %s78, %s80
    %p84 = scmp.eq.s32.totalorder %s9, 0
    %p85 = por %p83, %p84
    %p86 = scmp.ne.s32.totalorder %s78, %s80
    %p87 = scmp.eq.s32.totalorder %s14, 1
    %p88 = por %p86, %p87
    %p89 = scmp.ne.s32.totalorder %s80, %s81
    %p90 = scmp.eq.s32.totalorder %s14, 0
    %p91 = por %p89, %p90
    %p92 = scmp.ne.s32.totalorder %s80, %s81
    %p93 = scmp.eq.s32.totalorder %s15, 1
    %p94 = por %p92, %p93
    %p96 = scmp.ne.s32.totalorder %s81, %s95
    %p97 = scmp.eq.s32.totalorder %s15, 0
    %p98 = por %p96, %p97
    %s99 = ssub.s32 %s16, %s28
    %s100 = ssub.s32 %s17, %s24
    %s101 = sor.u32 %s99, %s100
    %p102 = scmp.eq.s32.totalorder %s101, 0
    %s104 = sadd.s32 %s103, 1
    %s105 = scalar_select %p102, %s103, %s104
    %p108 = pneg %p102
    %p109 = scmp.eq.s32.totalorder %s9, 1
    %p110 = por %p108, %p109
    %p111 = scmp.ne.s32.totalorder %s103, %s106
    %p112 = scmp.eq.s32.totalorder %s9, 0
    %p113 = por %p111, %p112
    %p114 = scmp.ne.s32.totalorder %s103, %s106
    %p115 = scmp.eq.s32.totalorder %s14, 1
    %p116 = por %p114, %p115
    %p117 = scmp.ne.s32.totalorder %s106, %s107
    %p118 = scmp.eq.s32.totalorder %s14, 0
    %p119 = por %p117, %p118
    %p120 = scmp.ne.s32.totalorder %s106, %s107
    %p121 = scmp.eq.s32.totalorder %s15, 1
    %p122 = por %p120, %p121
    %p124 = scmp.ne.s32.totalorder %s107, %s123
    %p125 = scmp.eq.s32.totalorder %s15, 0
    %p126 = por %p124, %p125
    %p127 = scmp.le.s32.totalorder 1, %s9
    %p128 = scmp.lt.s32.totalorder %s9, 3
    %p129 = pnand %p127, %p128
    %p130 = pneg %p129
    // Predicated region
    $region9: #{autoencoder_pallas.27} parent=5 // pred_check
      _
    $region10: #{autoencoder_pallas.27} parent=5 // pred_check_branch
      %132 = sbr.rel (%p129) target = $region12
    $region11: #{autoencoder_pallas.27} parent=5 // pred_region
      %s133 = ssub.s32 %s9, 1
      // Predicated region
      $region13: #{autoencoder_pallas.27} parent=11 // pred_check
        %p134 = pneg %p70
      $region14: #{autoencoder_pallas.27} parent=11 // pred_check_branch
        %136 = sbr.rel (%p134) target = $region16
      $region15: #{autoencoder_pallas.27} parent=11 // pred_region
        _
      $region16: #{autoencoder_pallas.27} parent=11 // pred_fallthru
        _
      // Predicated region
      $region17: #{autoencoder_pallas.27} parent=11 // pred_check
        %p137 = pneg %p91
      $region18: #{autoencoder_pallas.27} parent=11 // pred_check_branch
        %139 = sbr.rel (%p137) target = $region20
      $region19: #{autoencoder_pallas.27} parent=11 // pred_region
        _
      $region20: #{autoencoder_pallas.27} parent=11 // pred_fallthru
        _
    $region12: #{autoencoder_pallas.27} parent=5 // pred_fallthru
      _
    %p140 = scmp.lt.s32.totalorder %s9, 2
    // Predicated region
    $region21: #{autoencoder_pallas.27} parent=5 // pred_check
      %p141 = pneg %p140
    $region22: #{autoencoder_pallas.27} parent=5 // pred_check_branch
      %143 = sbr.rel (%p141) target = $region24
    $region23: #{autoencoder_pallas.27} parent=5 // pred_region
      // Predicated region
      $region25: #{autoencoder_pallas.27} parent=23 // pred_check
        %p144 = pneg %p43
      $region26: #{autoencoder_pallas.27} parent=23 // pred_check_branch
        %146 = sbr.rel (%p144) target = $region28
      $region27: #{autoencoder_pallas.27} parent=23 // pred_region
        %s147 = smul.u32 32, %s17
        %p148 = scmp.lt.s32.totalorder %s16, 1
        %s149 = scalar_select %p148, %s16, 1
        %p150 = scmp.lt.s32.totalorder %s147, 31
        %s151 = scalar_select %p150, %s147, 31
        %s152 = smul.addr %s149, 32
        %s153 = sadd.s32 %s151, %s152
        %s154 = smul.addr %s153, 4
        %s155 = scalar_lea.vmem %s0, %s154
        %s156 = smul.u32 32, %s17
      $region28: #{autoencoder_pallas.27} parent=23 // pred_fallthru
        _
    $region24: #{autoencoder_pallas.27} parent=5 // pred_fallthru
      _
    %p157 = scmp.le.s32.totalorder 1, %s9
    %p158 = scmp.lt.s32.totalorder %s9, 3
    %p159 = pnand %p157, %p158
    %p160 = pneg %p159
    // Predicated region
    $region29: #{autoencoder_pallas.27} parent=5 // pred_check
      _
    $region30: #{autoencoder_pallas.27} parent=5 // pred_check_branch
      %162 = sbr.rel (%p159) target = $region32
    $region31: #{autoencoder_pallas.27} parent=5 // pred_region
      %s163 = ssub.s32 %s9, 1
      %s164 = smul.u32 32, %s19
      %p165 = scmp.lt.s32.totalorder %s18, 1
      %s166 = scalar_select %p165, %s18, 1
      %p167 = scmp.lt.s32.totalorder %s164, 31
      %s168 = scalar_select %p167, %s164, 31
      %s169 = smul.addr %s166, 32
      %s170 = sadd.s32 %s168, %s169
      %s171 = smul.addr %s170, 4
      %s172 = scalar_lea.vmem %s0, %s171
      %p173 = pneg %p49
      %p174 = pneg %p46
      %p175 = pneg %p70
      %p176 = pneg %p67
      %p177 = pneg %p91
      %p178 = pneg %p88
      %p179 = pneg %p119
      %p180 = pneg %p116
      %s181 = smul.u32 32, %s19
      %p182 = scmp.lt.s32.totalorder %s18, 1
      %s183 = scalar_select %p182, %s18, 1
      %p184 = scmp.lt.s32.totalorder %s181, 31
      %s185 = scalar_select %p184, %s181, 31
      %s186 = smul.addr %s183, 32
      %s187 = sadd.s32 %s185, %s186
      %s188 = smul.addr %s187, 8
      %s189 = scalar_lea.vmem %s3, %s188
      %s190 = smul.u32 32, %s19
      %p191 = scmp.lt.s32.totalorder %s18, 1
      %s192 = scalar_select %p191, %s18, 1
      %p193 = scmp.lt.s32.totalorder %s190, 31
      %s194 = scalar_select %p193, %s190, 31
      %s195 = smul.addr %s192, 32
      %s196 = sadd.s32 %s194, %s195
      %s197 = smul.addr %s196, 4
      %s198 = scalar_lea.vmem %s0, %s197
      %s199 = smul.u32 32, %s19
      %s200 = smul.u32 32, %s19
      %p201 = scmp.lt.s32.totalorder %s18, 1
      %s202 = scalar_select %p201, %s18, 1
      %p203 = scmp.lt.s32.totalorder %s200, 31
      %s204 = scalar_select %p203, %s200, 31
      %s205 = smul.addr %s202, 32
      %s206 = sadd.s32 %s204, %s205
      %s207 = smul.addr %s206, 8
      %s208 = scalar_lea.vmem %s3, %s207
      %s209 = smul.u32 32, %s19
      %v211 = vld [vmem:[%s198] sm:$0xf]
      %v212 = vld [vmem:[%s198 + $0x4] sm:$0xf]
      %v213 = vld [vmem:[%s198 + $0x8] sm:$0xf]
      %v214 = vld [vmem:[%s198 + $0xc] sm:$0xf]
      %v215 = vld [vmem:[%s198 + $0x10] sm:$0xf]
      %v216 = vld [vmem:[%s198 + $0x14] sm:$0xf]
      %v217 = vld [vmem:[%s198 + $0x18] sm:$0xf]
      %v218 = vld [vmem:[%s198 + $0x1c] sm:$0xf]
      %v219 = vld [vmem:[%s198 + $0x20] sm:$0xf]
      %v220 = vld [vmem:[%s198 + $0x24] sm:$0xf]
      %v221 = vld [vmem:[%s198 + $0x28] sm:$0xf]
      %v222 = vld [vmem:[%s198 + $0x2c] sm:$0xf]
      %v223 = vld [vmem:[%s198 + $0x30] sm:$0xf]
      %v224 = vld [vmem:[%s198 + $0x34] sm:$0xf]
      %v225 = vld [vmem:[%s198 + $0x38] sm:$0xf]
      %v226 = vld [vmem:[%s198 + $0x3c] sm:$0xf]
      %v227 = vld [vmem:[%s198 + $0x40] sm:$0xf]
      %v228 = vld [vmem:[%s198 + $0x44] sm:$0xf]
      %v229 = vld [vmem:[%s198 + $0x48] sm:$0xf]
      %v230 = vld [vmem:[%s198 + $0x4c] sm:$0xf]
      %v231 = vld [vmem:[%s198 + $0x50] sm:$0xf]
      %v232 = vld [vmem:[%s198 + $0x54] sm:$0xf]
      %v233 = vld [vmem:[%s198 + $0x58] sm:$0xf]
      %v234 = vld [vmem:[%s198 + $0x5c] sm:$0xf]
      %v235 = vld [vmem:[%s198 + $0x60] sm:$0xf]
      %v236 = vld [vmem:[%s198 + $0x64] sm:$0xf]
      %v237 = vld [vmem:[%s198 + $0x68] sm:$0xf]
      %v238 = vld [vmem:[%s198 + $0x6c] sm:$0xf]
      %v239 = vld [vmem:[%s198 + $0x70] sm:$0xf]
      %v240 = vld [vmem:[%s198 + $0x74] sm:$0xf]
      %v241 = vld [vmem:[%s198 + $0x78] sm:$0xf]
      %v242 = vld [vmem:[%s198 + $0x7c] sm:$0xf]
      %v243 = vld [vmem:[%s1] sm:$0xf]
      %v244 = vld [vmem:[%s1 + $0x4] sm:$0xf]
      %v245 = vld [vmem:[%s1 + $0x8] sm:$0xf]
      %v246 = vld [vmem:[%s1 + $0xc] sm:$0xf]
      %v247 = vld [vmem:[%s2] sm:$0x1]
      %v249 = vlaneseq
      %v250 = vshrl.u32 %v249, 7
      %v251 = vsub.s32 0, %v250
      %v252 = vrot.slane %v247, %v251
      %v286 = vunpack.c.l.b16 %v211
      %v287 = vunpack.c.l.b16 %v212
      %v288 = vunpack.c.l.b16 %v213
      %v289 = vunpack.c.l.b16 %v214
      %v290 = vunpack.c.l.b16 %v215
      %v291 = vunpack.c.l.b16 %v216
      %v292 = vunpack.c.l.b16 %v217
      %v293 = vunpack.c.l.b16 %v218
      %v294 = vunpack.c.l.b16 %v219
      %v295 = vunpack.c.l.b16 %v220
      %v296 = vunpack.c.l.b16 %v221
      %v297 = vunpack.c.l.b16 %v222
      %v298 = vunpack.c.l.b16 %v223
      %v299 = vunpack.c.l.b16 %v224
      %v300 = vunpack.c.l.b16 %v225
      %v301 = vunpack.c.l.b16 %v226
      %v302 = vunpack.c.l.b16 %v227
      %v303 = vunpack.c.l.b16 %v228
      %v304 = vunpack.c.l.b16 %v229
      %v305 = vunpack.c.l.b16 %v230
      %v306 = vunpack.c.l.b16 %v231
      %v307 = vunpack.c.l.b16 %v232
      %v308 = vunpack.c.l.b16 %v233
      %v309 = vunpack.c.l.b16 %v234
      %v310 = vunpack.c.l.b16 %v235
      %v311 = vunpack.c.l.b16 %v236
      %v312 = vunpack.c.l.b16 %v237
      %v313 = vunpack.c.l.b16 %v238
      %v314 = vunpack.c.l.b16 %v239
      %v315 = vunpack.c.l.b16 %v240
      %v316 = vunpack.c.l.b16 %v241
      %v317 = vunpack.c.l.b16 %v242
      %v318 = vpack.c.b16 %v287, %v286
      %v319 = vpack.c.b16 %v289, %v288
      %v320 = vpack.c.b16 %v291, %v290
      %v321 = vpack.c.b16 %v293, %v292
      %v322 = vpack.c.b16 %v295, %v294
      %v323 = vpack.c.b16 %v297, %v296
      %v324 = vpack.c.b16 %v299, %v298
      %v325 = vpack.c.b16 %v301, %v300
      %v326 = vpack.c.b16 %v303, %v302
      %v327 = vpack.c.b16 %v305, %v304
      %v328 = vpack.c.b16 %v307, %v306
      %v329 = vpack.c.b16 %v309, %v308
      %v330 = vpack.c.b16 %v311, %v310
      %v331 = vpack.c.b16 %v313, %v312
      %v332 = vpack.c.b16 %v315, %v314
      %v333 = vpack.c.b16 %v317, %v316
      %v338 = vunpack.c.l.b16 %v243
      %v339 = vunpack.c.l.b16 %v244
      %v340 = vunpack.c.l.b16 %v245
      %v341 = vunpack.c.l.b16 %v246
      %v342 = vpack.c.b16 %v339, %v338
      %v343 = vpack.c.b16 %v341, %v340
      %vm346 = vcmask 261120
      %v348 = vsel %vm346, %v318, 0
      %v351 = vsel %vm346, %v319, 0
      %v354 = vsel %vm346, %v320, 0
      %v357 = vsel %vm346, %v321, 0
      %v360 = vsel %vm346, %v322, 0
      %v363 = vsel %vm346, %v323, 0
      %v366 = vsel %vm346, %v324, 0
      %v369 = vsel %vm346, %v325, 0
      %v372 = vsel %vm346, %v326, 0
      %v375 = vsel %vm346, %v327, 0
      %v378 = vsel %vm346, %v328, 0
      %v381 = vsel %vm346, %v329, 0
      %v384 = vsel %vm346, %v330, 0
      %v387 = vsel %vm346, %v331, 0
      %v390 = vsel %vm346, %v332, 0
      %v393 = vsel %vm346, %v333, 0
      %395 = vmatprep.subr.bf16.mxu0 0
      %396 = vmatpush1.bf16.msra.mxu0 0
      %397 = vmatprep.subr.bf16.mxu0 0
      %398 = vmatpush1.bf16.msra.mxu0 0
      %399 = vmatprep.subr.bf16.mxu0 0
      %400 = vmatpush1.bf16.msra.mxu0 0
      %401 = vmatprep.subr.bf16.mxu0 0
      %402 = vmatpush1.bf16.msra.mxu0 0
      %403 = vmatprep.subr.bf16.mxu0 0
      %404 = vmatpush1.bf16.msra.mxu0 0
      %405 = vmatprep.subr.bf16.mxu0 0
      %406 = vmatpush1.bf16.msra.mxu0 0
      %407 = vmatprep.subr.bf16.mxu0 0
      %408 = vmatpush1.bf16.msra.mxu0 %v343
      %409 = vmatprep.subr.bf16.mxu0 0
      %410 = vmatpush1.bf16.msra.mxu0 %v342
      %411 = vmatprep.subr.bf16.mxu0 0
      %412 = vmatpush2.bf16.msra.mxu0 0
      %413 = vmatprep.subr.bf16.mxu0 0
      %414 = vmatpush2.bf16.msra.mxu0 0
      %415 = vmatprep.subr.bf16.mxu0 0
      %416 = vmatpush2.bf16.msra.mxu0 0
      %417 = vmatprep.subr.bf16.mxu0 0
      %418 = vmatpush2.bf16.msra.mxu0 0
      %419 = vmatprep.subr.bf16.mxu0 0
      %420 = vmatpush2.bf16.msra.mxu0 0
      %421 = vmatprep.subr.bf16.mxu0 0
      %422 = vmatpush2.bf16.msra.mxu0 0
      %423 = vmatprep.subr.bf16.mxu0 0
      %424 = vmatpush2.bf16.msra.mxu0 0
      %425 = vmatprep.subr.bf16.mxu0 0
      %426 = vmatpush2.bf16.msra.mxu0 0
      %427 = vmatprep.mubr.bf16.mxu0 0
      %428 = vmatmul.mubr.bf16.gmra.mxu0 %v348
      %v429 = vpop.f32.mrf.mxu0
      %v430 = vadd.f32 %v252, %v429
      %v431 = vpop.f32.mrf.mxu0
      %v432 = vpop.f32.mrf.mxu0
      %v433 = vadd.f32 %v252, %v432
      %v434 = vpop.f32.mrf.mxu0
      %435 = vmatprep.mubr.bf16.mxu0 0
      %436 = vmatmul.mubr.bf16.gmra.mxu0 %v351
      %v437 = vpop.f32.mrf.mxu0
      %v438 = vadd.f32 %v252, %v437
      %v439 = vpop.f32.mrf.mxu0
      %v440 = vpop.f32.mrf.mxu0
      %v441 = vadd.f32 %v252, %v440
      %v442 = vpop.f32.mrf.mxu0
      %443 = vmatprep.mubr.bf16.mxu0 0
      %444 = vmatmul.mubr.bf16.gmra.mxu0 %v354
      %v445 = vpop.f32.mrf.mxu0
      %v446 = vadd.f32 %v252, %v445
      %v447 = vpop.f32.mrf.mxu0
      %v448 = vpop.f32.mrf.mxu0
      %v449 = vadd.f32 %v252, %v448
      %v450 = vpop.f32.mrf.mxu0
      %451 = vmatprep.mubr.bf16.mxu0 0
      %452 = vmatmul.mubr.bf16.gmra.mxu0 %v357
      %v453 = vpop.f32.mrf.mxu0
      %v454 = vadd.f32 %v252, %v453
      %v455 = vpop.f32.mrf.mxu0
      %v456 = vpop.f32.mrf.mxu0
      %v457 = vadd.f32 %v252, %v456
      %v458 = vpop.f32.mrf.mxu0
      %459 = vmatprep.mubr.bf16.mxu0 0
      %460 = vmatmul.mubr.bf16.gmra.mxu0 %v360
      %v461 = vpop.f32.mrf.mxu0
      %v462 = vadd.f32 %v252, %v461
      %v463 = vpop.f32.mrf.mxu0
      %v464 = vpop.f32.mrf.mxu0
      %v465 = vadd.f32 %v252, %v464
      %v466 = vpop.f32.mrf.mxu0
      %467 = vmatprep.mubr.bf16.mxu0 0
      %468 = vmatmul.mubr.bf16.gmra.mxu0 %v363
      %v469 = vpop.f32.mrf.mxu0
      %v470 = vadd.f32 %v252, %v469
      %v471 = vpop.f32.mrf.mxu0
      %v472 = vpop.f32.mrf.mxu0
      %v473 = vadd.f32 %v252, %v472
      %v474 = vpop.f32.mrf.mxu0
      %475 = vmatprep.mubr.bf16.mxu0 0
      %476 = vmatmul.mubr.bf16.gmra.mxu0 %v366
      %v477 = vpop.f32.mrf.mxu0
      %v478 = vadd.f32 %v252, %v477
      %v479 = vpop.f32.mrf.mxu0
      %v480 = vpop.f32.mrf.mxu0
      %v481 = vadd.f32 %v252, %v480
      %v482 = vpop.f32.mrf.mxu0
      %483 = vmatprep.mubr.bf16.mxu0 0
      %484 = vmatmul.mubr.bf16.gmra.mxu0 %v369
      %v485 = vpop.f32.mrf.mxu0
      %v486 = vadd.f32 %v252, %v485
      %v487 = vpop.f32.mrf.mxu0
      %v488 = vpop.f32.mrf.mxu0
      %v489 = vadd.f32 %v252, %v488
      %v490 = vpop.f32.mrf.mxu0
      %491 = vmatprep.mubr.bf16.mxu0 0
      %492 = vmatmul.mubr.bf16.gmra.mxu0 %v372
      %v493 = vpop.f32.mrf.mxu0
      %v494 = vadd.f32 %v252, %v493
      %v495 = vpop.f32.mrf.mxu0
      %v496 = vpop.f32.mrf.mxu0
      %v497 = vadd.f32 %v252, %v496
      %v498 = vpop.f32.mrf.mxu0
      %499 = vmatprep.mubr.bf16.mxu0 0
      %500 = vmatmul.mubr.bf16.gmra.mxu0 %v375
      %v501 = vpop.f32.mrf.mxu0
      %v502 = vadd.f32 %v252, %v501
      %v503 = vpop.f32.mrf.mxu0
      %v504 = vpop.f32.mrf.mxu0
      %v505 = vadd.f32 %v252, %v504
      %v506 = vpop.f32.mrf.mxu0
      %507 = vmatprep.mubr.bf16.mxu0 0
      %508 = vmatmul.mubr.bf16.gmra.mxu0 %v378
      %v509 = vpop.f32.mrf.mxu0
      %v510 = vadd.f32 %v252, %v509
      %v511 = vpop.f32.mrf.mxu0
      %v512 = vpop.f32.mrf.mxu0
      %v513 = vadd.f32 %v252, %v512
      %v514 = vpop.f32.mrf.mxu0
      %515 = vmatprep.mubr.bf16.mxu0 0
      %516 = vmatmul.mubr.bf16.gmra.mxu0 %v381
      %v517 = vpop.f32.mrf.mxu0
      %v518 = vadd.f32 %v252, %v517
      %v519 = vpop.f32.mrf.mxu0
      %v520 = vpop.f32.mrf.mxu0
      %v521 = vadd.f32 %v252, %v520
      %v522 = vpop.f32.mrf.mxu0
      %523 = vmatprep.mubr.bf16.mxu0 0
      %524 = vmatmul.mubr.bf16.gmra.mxu0 %v384
      %v525 = vpop.f32.mrf.mxu0
      %v526 = vadd.f32 %v252, %v525
      %v527 = vpop.f32.mrf.mxu0
      %v528 = vpop.f32.mrf.mxu0
      %v529 = vadd.f32 %v252, %v528
      %v530 = vpop.f32.mrf.mxu0
      %531 = vmatprep.mubr.bf16.mxu0 0
      %532 = vmatmul.mubr.bf16.gmra.mxu0 %v387
      %v533 = vpop.f32.mrf.mxu0
      %v534 = vadd.f32 %v252, %v533
      %v535 = vpop.f32.mrf.mxu0
      %v536 = vpop.f32.mrf.mxu0
      %v537 = vadd.f32 %v252, %v536
      %v538 = vpop.f32.mrf.mxu0
      %539 = vmatprep.mubr.bf16.mxu0 0
      %540 = vmatmul.mubr.bf16.gmra.mxu0 %v390
      %v541 = vpop.f32.mrf.mxu0
      %v542 = vadd.f32 %v252, %v541
      %v543 = vpop.f32.mrf.mxu0
      %v544 = vpop.f32.mrf.mxu0
      %v545 = vadd.f32 %v252, %v544
      %v546 = vpop.f32.mrf.mxu0
      %547 = vmatprep.mubr.bf16.mxu0 0
      %548 = vmatmul.mubr.bf16.gmra.mxu0 %v393
      %v549 = vpop.f32.mrf.mxu0
      %v550 = vadd.f32 %v252, %v549
      %v551 = vpop.f32.mrf.mxu0
      %v552 = vpop.f32.mrf.mxu0
      %v553 = vadd.f32 %v252, %v552
      %v554 = vpop.f32.mrf.mxu0
      %555 = vdwg.mxu0
      %v556 = vtanh.pop %v430
      %v557 = vtanh.pop %v433
      %v558 = vtanh.pop %v438
      %v559 = vtanh.pop %v441
      %v560 = vtanh.pop %v446
      %v561 = vtanh.pop %v449
      %v562 = vtanh.pop %v454
      %v563 = vtanh.pop %v457
      %v564 = vtanh.pop %v462
      %v565 = vtanh.pop %v465
      %v566 = vtanh.pop %v470
      %v567 = vtanh.pop %v473
      %v568 = vtanh.pop %v478
      %v569 = vtanh.pop %v481
      %v570 = vtanh.pop %v486
      %v571 = vtanh.pop %v489
      %v572 = vtanh.pop %v494
      %v573 = vtanh.pop %v497
      %v574 = vtanh.pop %v502
      %v575 = vtanh.pop %v505
      %v576 = vtanh.pop %v510
      %v577 = vtanh.pop %v513
      %v578 = vtanh.pop %v518
      %v579 = vtanh.pop %v521
      %v580 = vtanh.pop %v526
      %v581 = vtanh.pop %v529
      %v582 = vtanh.pop %v534
      %v583 = vtanh.pop %v537
      %v584 = vtanh.pop %v542
      %v585 = vtanh.pop %v545
      %v586 = vtanh.pop %v550
      %v587 = vtanh.pop %v553
      %v588 = vadd.f32 %v556, 1.0
      %v589 = vadd.f32 %v557, 1.0
      %v590 = vadd.f32 %v558, 1.0
      %v591 = vadd.f32 %v559, 1.0
      %v592 = vadd.f32 %v560, 1.0
      %v593 = vadd.f32 %v561, 1.0
      %v594 = vadd.f32 %v562, 1.0
      %v595 = vadd.f32 %v563, 1.0
      %v596 = vadd.f32 %v564, 1.0
      %v597 = vadd.f32 %v565, 1.0
      %v598 = vadd.f32 %v566, 1.0
      %v599 = vadd.f32 %v567, 1.0
      %v600 = vadd.f32 %v568, 1.0
      %v601 = vadd.f32 %v569, 1.0
      %v602 = vadd.f32 %v570, 1.0
      %v603 = vadd.f32 %v571, 1.0
      %v604 = vadd.f32 %v572, 1.0
      %v605 = vadd.f32 %v573, 1.0
      %v606 = vadd.f32 %v574, 1.0
      %v607 = vadd.f32 %v575, 1.0
      %v608 = vadd.f32 %v576, 1.0
      %v609 = vadd.f32 %v577, 1.0
      %v610 = vadd.f32 %v578, 1.0
      %v611 = vadd.f32 %v579, 1.0
      %v612 = vadd.f32 %v580, 1.0
      %v613 = vadd.f32 %v581, 1.0
      %v614 = vadd.f32 %v582, 1.0
      %v615 = vadd.f32 %v583, 1.0
      %v616 = vadd.f32 %v584, 1.0
      %v617 = vadd.f32 %v585, 1.0
      %v618 = vadd.f32 %v586, 1.0
      %v619 = vadd.f32 %v587, 1.0
      %v620 = vmul.f32 %v588, 0.5
      %v621 = vmul.f32 %v589, 0.5
      %v622 = vmul.f32 %v590, 0.5
      %v623 = vmul.f32 %v591, 0.5
      %v624 = vmul.f32 %v592, 0.5
      %v625 = vmul.f32 %v593, 0.5
      %v626 = vmul.f32 %v594, 0.5
      %v627 = vmul.f32 %v595, 0.5
      %v628 = vmul.f32 %v596, 0.5
      %v629 = vmul.f32 %v597, 0.5
      %v630 = vmul.f32 %v598, 0.5
      %v631 = vmul.f32 %v599, 0.5
      %v632 = vmul.f32 %v600, 0.5
      %v633 = vmul.f32 %v601, 0.5
      %v634 = vmul.f32 %v602, 0.5
      %v635 = vmul.f32 %v603, 0.5
      %v636 = vmul.f32 %v604, 0.5
      %v637 = vmul.f32 %v605, 0.5
      %v638 = vmul.f32 %v606, 0.5
      %v639 = vmul.f32 %v607, 0.5
      %v640 = vmul.f32 %v608, 0.5
      %v641 = vmul.f32 %v609, 0.5
      %v642 = vmul.f32 %v610, 0.5
      %v643 = vmul.f32 %v611, 0.5
      %v644 = vmul.f32 %v612, 0.5
      %v645 = vmul.f32 %v613, 0.5
      %v646 = vmul.f32 %v614, 0.5
      %v647 = vmul.f32 %v615, 0.5
      %v648 = vmul.f32 %v616, 0.5
      %v649 = vmul.f32 %v617, 0.5
      %v650 = vmul.f32 %v618, 0.5
      %v651 = vmul.f32 %v619, 0.5
      %vm652 = vcmask 23552
      %653 = vst.msk [vmem:[%s208] sm:$0xff] %vm652, %v620
      %654 = vst.msk [vmem:[%s208 + $0x8] sm:$0xff] %vm652, %v621
      %655 = vst.msk [vmem:[%s208 + $0x10] sm:$0xff] %vm652, %v622
      %656 = vst.msk [vmem:[%s208 + $0x18] sm:$0xff] %vm652, %v623
      %657 = vst.msk [vmem:[%s208 + $0x20] sm:$0xff] %vm652, %v624
      %658 = vst.msk [vmem:[%s208 + $0x28] sm:$0xff] %vm652, %v625
      %659 = vst.msk [vmem:[%s208 + $0x30] sm:$0xff] %vm652, %v626
      %660 = vst.msk [vmem:[%s208 + $0x38] sm:$0xff] %vm652, %v627
      %661 = vst.msk [vmem:[%s208 + $0x40] sm:$0xff] %vm652, %v628
      %662 = vst.msk [vmem:[%s208 + $0x48] sm:$0xff] %vm652, %v629
      %663 = vst.msk [vmem:[%s208 + $0x50] sm:$0xff] %vm652, %v630
      %664 = vst.msk [vmem:[%s208 + $0x58] sm:$0xff] %vm652, %v631
      %665 = vst.msk [vmem:[%s208 + $0x60] sm:$0xff] %vm652, %v632
      %666 = vst.msk [vmem:[%s208 + $0x68] sm:$0xff] %vm652, %v633
      %667 = vst.msk [vmem:[%s208 + $0x70] sm:$0xff] %vm652, %v634
      %668 = vst.msk [vmem:[%s208 + $0x78] sm:$0xff] %vm652, %v635
      %669 = vst.msk [vmem:[%s208 + $0x80] sm:$0xff] %vm652, %v636
      %670 = vst.msk [vmem:[%s208 + $0x88] sm:$0xff] %vm652, %v637
      %671 = vst.msk [vmem:[%s208 + $0x90] sm:$0xff] %vm652, %v638
      %672 = vst.msk [vmem:[%s208 + $0x98] sm:$0xff] %vm652, %v639
      %673 = vst.msk [vmem:[%s208 + $0xa0] sm:$0xff] %vm652, %v640
      %674 = vst.msk [vmem:[%s208 + $0xa8] sm:$0xff] %vm652, %v641
      %675 = vst.msk [vmem:[%s208 + $0xb0] sm:$0xff] %vm652, %v642
      %676 = vst.msk [vmem:[%s208 + $0xb8] sm:$0xff] %vm652, %v643
      %677 = vst.msk [vmem:[%s208 + $0xc0] sm:$0xff] %vm652, %v644
      %678 = vst.msk [vmem:[%s208 + $0xc8] sm:$0xff] %vm652, %v645
      %679 = vst.msk [vmem:[%s208 + $0xd0] sm:$0xff] %vm652, %v646
      %680 = vst.msk [vmem:[%s208 + $0xd8] sm:$0xff] %vm652, %v647
      %681 = vst.msk [vmem:[%s208 + $0xe0] sm:$0xff] %vm652, %v648
      %682 = vst.msk [vmem:[%s208 + $0xe8] sm:$0xff] %vm652, %v649
      %683 = vst.msk [vmem:[%s208 + $0xf0] sm:$0xff] %vm652, %v650
      %684 = vst.msk [vmem:[%s208 + $0xf8] sm:$0xff] %vm652, %v651
      %s685 = smul.u32 32, %s19
      %p686 = scmp.lt.s32.totalorder %s18, 1
      %s687 = scalar_select %p686, %s18, 1
      %p688 = scmp.lt.s32.totalorder %s685, 31
      %s689 = scalar_select %p688, %s685, 31
      %s690 = smul.addr %s687, 32
      %s691 = sadd.s32 %s689, %s690
      %s692 = smul.addr %s691, 8
      %s693 = scalar_lea.vmem %s3, %s692
      // Predicated region
      $region33: #{autoencoder_pallas.27} parent=31 // pred_check
        %p694 = pneg %p116
      $region34: #{autoencoder_pallas.27} parent=31 // pred_check_branch
        %696 = sbr.rel (%p694) target = $region36
      $region35: #{autoencoder_pallas.27} parent=31 // pred_region
        %s697 = smul.u32 32, %s19
      $region36: #{autoencoder_pallas.27} parent=31 // pred_fallthru
        _
    $region32: #{autoencoder_pallas.27} parent=5 // pred_fallthru
      _
    %p698 = scmp.le.s32.totalorder 2, %s9
    // Predicated region
    $region37: #{autoencoder_pallas.27} parent=5 // pred_check
      %p699 = pneg %p698
    $region38: #{autoencoder_pallas.27} parent=5 // pred_check_branch
      %701 = sbr.rel (%p699) target = $region40
    $region39: #{autoencoder_pallas.27} parent=5 // pred_region
      %s702 = ssub.s32 %s9, 2
      // Predicated region
      $region41: #{autoencoder_pallas.27} parent=39 // pred_check
        %p703 = pneg %p122
      $region42: #{autoencoder_pallas.27} parent=39 // pred_check_branch
        %705 = sbr.rel (%p703) target = $region44
      $region43: #{autoencoder_pallas.27} parent=39 // pred_region
        %s706 = smul.u32 32, %s21
        %p707 = scmp.lt.s32.totalorder %s20, 1
        %s708 = scalar_select %p707, %s20, 1
        %p709 = scmp.lt.s32.totalorder %s706, 31
        %s710 = scalar_select %p709, %s706, 31
        %s711 = smul.addr %s708, 32
        %s712 = sadd.s32 %s710, %s711
        %s713 = smul.addr %s712, 8
        %s714 = scalar_lea.vmem %s3, %s713
      $region44: #{autoencoder_pallas.27} parent=39 // pred_fallthru
        _
    $region40: #{autoencoder_pallas.27} parent=5 // pred_fallthru
      _
  $region6: #{autoencoder_pallas.27} parent=0 // loop_footer
    %s13 = sadd.s32 1, %s9
  $region7: #{autoencoder_pallas.27} parent=0 // loop_footer_branch
    %8 = sbr.rel target = $region3
  $region8: #{autoencoder_pallas.27} parent=0 // loop_exit
    _

// kernel: autoencoder_pallas.26
$region0: #{autoencoder_pallas.26}
  #allocation0 [shape = 'u32[]', space=smem, size = 0x4, offset = 0x4, fixed_abs, tag = 'smem constant byte address 0x4 - core index']
  #allocation1 [shape = 'u32[144,128]{1,0:T(1,128)}', space=vmem, size = 0x12000, scoped, tag = 'internal scratch']
  %s0 = inlined_call_operand.vmem [shape: bf16[2,256,603], index: 0, kind: input, shape index: {}]
  %s1 = inlined_call_operand.vmem [shape: bf16[603,32], index: 1, kind: input, shape index: {}]
  %s2 = inlined_call_operand.vmem [shape: f32[1,32], index: 2, kind: input, shape index: {}]
  %s3 = inlined_call_operand.vmem [shape: bf16[2,256,32], index: 3, kind: output, shape index: {}]
  %s4 = sld [smem:[#allocation0]]
  $region45: #{autoencoder_pallas.26} parent=0
    _
  %s6 = ssub.s32 1, %s4
  %s7 = scalar_select 0, %s6, %s4
  loop: start=0, step=1, limit=4
  $region2: #{autoencoder_pallas.26} parent=0 // loop_pre_header
    _
  $region3: #{autoencoder_pallas.26} parent=0 // loop_header
    %s9 = sphi 0, %s13
    %p10 = scmp.ge.s32.totalorder %s9, 4
    %s16 = sphi 0, %s28
    %s17 = sphi 0, %s24
    %s18 = sphi 0, %s16
    %s19 = sphi 0, %s17
    %s20 = sphi 0, %s18
    %s21 = sphi 0, %s19
    %s33 = sphi 0, %s35
    %s36 = sphi 0, %s33
    %s37 = sphi 0, %s36
    %s53 = sphi 0, %s37
    %s57 = sphi 0, %s57
    %s59 = sphi 0, %s57
    %s60 = sphi 0, %s59
    %s74 = sphi 0, %s60
    %s78 = sphi 0, %s78
    %s80 = sphi 0, %s78
    %s81 = sphi 0, %s80
    %s95 = sphi 0, %s81
    %s103 = sphi 0, %s105
    %s106 = sphi 0, %s103
    %s107 = sphi 0, %s106
    %s123 = sphi 0, %s107
  $region4: #{autoencoder_pallas.26} parent=0 // loop_header_branch
    %12 = sbr.rel (%p10) target = $region8
  $region5: #{autoencoder_pallas.26} parent=0 // loop_body
    %s14 = ssub.s32 %s9, 1
    %s15 = ssub.s32 %s9, 2
    %s22 = sadd.s32 1, %s17
    %p23 = scmp.ge.s32.totalorder %s22, 1
    %s24 = scalar_select %p23, 0, %s22
    %s25 = sadd.s32 1, %s16
    %s26 = scalar_select %p23, %s25, %s16
    %p27 = scmp.ge.s32.totalorder %s26, 2
    %s28 = scalar_select %p27, 0, %s26
    %s29 = ssub.s32 %s16, %s28
    %s30 = ssub.s32 %s17, %s24
    %s31 = sor.u32 %s29, %s30
    %p32 = scmp.eq.s32.totalorder %s31, 0
    %s34 = sadd.s32 %s33, 1
    %s35 = scalar_select %p32, %s33, %s34
    %p38 = pneg %p32
    %p39 = scmp.eq.s32.totalorder %s9, 1
    %p40 = por %p38, %p39
    %p41 = scmp.ne.s32.totalorder %s33, %s36
    %p42 = scmp.eq.s32.totalorder %s9, 0
    %p43 = por %p41, %p42
    %p44 = scmp.ne.s32.totalorder %s33, %s36
    %p45 = scmp.eq.s32.totalorder %s14, 1
    %p46 = por %p44, %p45
    %p47 = scmp.ne.s32.totalorder %s36, %s37
    %p48 = scmp.eq.s32.totalorder %s14, 0
    %p49 = por %p47, %p48
    %p50 = scmp.ne.s32.totalorder %s36, %s37
    %p51 = scmp.eq.s32.totalorder %s15, 1
    %p52 = por %p50, %p51
    %p54 = scmp.ne.s32.totalorder %s37, %s53
    %p55 = scmp.eq.s32.totalorder %s15, 0
    %p56 = por %p54, %p55
    %s58 = sadd.s32 %s57, 1
    %p61 = scmp.eq.s32.totalorder %s9, 1
    %p62 = scmp.ne.s32.totalorder %s57, %s59
    %p63 = scmp.eq.s32.totalorder %s9, 0
    %p64 = por %p62, %p63
    %p65 = scmp.ne.s32.totalorder %s57, %s59
    %p66 = scmp.eq.s32.totalorder %s14, 1
    %p67 = por %p65, %p66
    %p68 = scmp.ne.s32.totalorder %s59, %s60
    %p69 = scmp.eq.s32.totalorder %s14, 0
    %p70 = por %p68, %p69
    %p71 = scmp.ne.s32.totalorder %s59, %s60
    %p72 = scmp.eq.s32.totalorder %s15, 1
    %p73 = por %p71, %p72
    %p75 = scmp.ne.s32.totalorder %s60, %s74
    %p76 = scmp.eq.s32.totalorder %s15, 0
    %p77 = por %p75, %p76
    %s79 = sadd.s32 %s78, 1
    %p82 = scmp.eq.s32.totalorder %s9, 1
    %p83 = scmp.ne.s32.totalorder %s78, %s80
    %p84 = scmp.eq.s32.totalorder %s9, 0
    %p85 = por %p83, %p84
    %p86 = scmp.ne.s32.totalorder %s78, %s80
    %p87 = scmp.eq.s32.totalorder %s14, 1
    %p88 = por %p86, %p87
    %p89 = scmp.ne.s32.totalorder %s80, %s81
    %p90 = scmp.eq.s32.totalorder %s14, 0
    %p91 = por %p89, %p90
    %p92 = scmp.ne.s32.totalorder %s80, %s81
    %p93 = scmp.eq.s32.totalorder %s15, 1
    %p94 = por %p92, %p93
    %p96 = scmp.ne.s32.totalorder %s81, %s95
    %p97 = scmp.eq.s32.totalorder %s15, 0
    %p98 = por %p96, %p97
    %s99 = ssub.s32 %s16, %s28
    %s100 = ssub.s32 %s17, %s24
    %s101 = sor.u32 %s99, %s100
    %p102 = scmp.eq.s32.totalorder %s101, 0
    %s104 = sadd.s32 %s103, 1
    %s105 = scalar_select %p102, %s103, %s104
    %p108 = pneg %p102
    %p109 = scmp.eq.s32.totalorder %s9, 1
    %p110 = por %p108, %p109
    %p111 = scmp.ne.s32.totalorder %s103, %s106
    %p112 = scmp.eq.s32.totalorder %s9, 0
    %p113 = por %p111, %p112
    %p114 = scmp.ne.s32.totalorder %s103, %s106
    %p115 = scmp.eq.s32.totalorder %s14, 1
    %p116 = por %p114, %p115
    %p117 = scmp.ne.s32.totalorder %s106, %s107
    %p118 = scmp.eq.s32.totalorder %s14, 0
    %p119 = por %p117, %p118
    %p120 = scmp.ne.s32.totalorder %s106, %s107
    %p121 = scmp.eq.s32.totalorder %s15, 1
    %p122 = por %p120, %p121
    %p124 = scmp.ne.s32.totalorder %s107, %s123
    %p125 = scmp.eq.s32.totalorder %s15, 0
    %p126 = por %p124, %p125
    %p127 = scmp.le.s32.totalorder 1, %s9
    %p128 = scmp.lt.s32.totalorder %s9, 3
    %p129 = pnand %p127, %p128
    %p130 = pneg %p129
    // Predicated region
    $region9: #{autoencoder_pallas.26} parent=5 // pred_check
      _
    $region10: #{autoencoder_pallas.26} parent=5 // pred_check_branch
      %132 = sbr.rel (%p129) target = $region12
    $region11: #{autoencoder_pallas.26} parent=5 // pred_region
      %s133 = ssub.s32 %s9, 1
      // Predicated region
      $region13: #{autoencoder_pallas.26} parent=11 // pred_check
        %p134 = pneg %p70
      $region14: #{autoencoder_pallas.26} parent=11 // pred_check_branch
        %136 = sbr.rel (%p134) target = $region16
      $region15: #{autoencoder_pallas.26} parent=11 // pred_region
        _
      $region16: #{autoencoder_pallas.26} parent=11 // pred_fallthru
        _
      // Predicated region
      $region17: #{autoencoder_pallas.26} parent=11 // pred_check
        %p137 = pneg %p91
      $region18: #{autoencoder_pallas.26} parent=11 // pred_check_branch
        %139 = sbr.rel (%p137) target = $region20
      $region19: #{autoencoder_pallas.26} parent=11 // pred_region
        _
      $region20: #{autoencoder_pallas.26} parent=11 // pred_fallthru
        _
    $region12: #{autoencoder_pallas.26} parent=5 // pred_fallthru
      _
    %p140 = scmp.lt.s32.totalorder %s9, 2
    // Predicated region
    $region21: #{autoencoder_pallas.26} parent=5 // pred_check
      %p141 = pneg %p140
    $region22: #{autoencoder_pallas.26} parent=5 // pred_check_branch
      %143 = sbr.rel (%p141) target = $region24
    $region23: #{autoencoder_pallas.26} parent=5 // pred_region
      // Predicated region
      $region25: #{autoencoder_pallas.26} parent=23 // pred_check
        %p144 = pneg %p43
      $region26: #{autoencoder_pallas.26} parent=23 // pred_check_branch
        %146 = sbr.rel (%p144) target = $region28
      $region27: #{autoencoder_pallas.26} parent=23 // pred_region
        %s147 = smul.u32 32, %s17
        %p148 = scmp.lt.s32.totalorder %s16, 1
        %s149 = scalar_select %p148, %s16, 1
        %p150 = scmp.lt.s32.totalorder %s147, 31
        %s151 = scalar_select %p150, %s147, 31
        %s152 = smul.addr %s151, 5
        %s153 = smul.addr %s149, 160
        %s154 = sadd.s32 %s152, %s153
        %s155 = smul.addr %s154, 4
        %s156 = scalar_lea.vmem %s0, %s155
        %s157 = smul.u32 32, %s17
      $region28: #{autoencoder_pallas.26} parent=23 // pred_fallthru
        _
    $region24: #{autoencoder_pallas.26} parent=5 // pred_fallthru
      _
    %p158 = scmp.le.s32.totalorder 1, %s9
    %p159 = scmp.lt.s32.totalorder %s9, 3
    %p160 = pnand %p158, %p159
    %p161 = pneg %p160
    // Predicated region
    $region29: #{autoencoder_pallas.26} parent=5 // pred_check
      _
    $region30: #{autoencoder_pallas.26} parent=5 // pred_check_branch
      %163 = sbr.rel (%p160) target = $region32
    $region31: #{autoencoder_pallas.26} parent=5 // pred_region
      %s164 = ssub.s32 %s9, 1
      %s165 = smul.u32 32, %s19
      %p166 = scmp.lt.s32.totalorder %s18, 1
      %s167 = scalar_select %p166, %s18, 1
      %p168 = scmp.lt.s32.totalorder %s165, 31
      %s169 = scalar_select %p168, %s165, 31
      %s170 = smul.addr %s169, 5
      %s171 = smul.addr %s167, 160
      %s172 = sadd.s32 %s170, %s171
      %s173 = smul.addr %s172, 4
      %s174 = scalar_lea.vmem %s0, %s173
      %p175 = pneg %p49
      %p176 = pneg %p46
      %p177 = pneg %p70
      %p178 = pneg %p67
      %p179 = pneg %p91
      %p180 = pneg %p88
      %p181 = pneg %p119
      %p182 = pneg %p116
      %s183 = smul.u32 32, %s19
      %p184 = scmp.lt.s32.totalorder %s18, 1
      %s185 = scalar_select %p184, %s18, 1
      %p186 = scmp.lt.s32.totalorder %s183, 31
      %s187 = scalar_select %p186, %s183, 31
      %s188 = smul.addr %s185, 32
      %s189 = sadd.s32 %s187, %s188
      %s190 = smul.addr %s189, 4
      %s191 = scalar_lea.vmem %s3, %s190
      %s192 = smul.u32 32, %s19
      %p193 = scmp.lt.s32.totalorder %s18, 1
      %s194 = scalar_select %p193, %s18, 1
      %p195 = scmp.lt.s32.totalorder %s192, 31
      %s196 = scalar_select %p195, %s192, 31
      %s197 = smul.addr %s196, 5
      %s198 = smul.addr %s194, 160
      %s199 = sadd.s32 %s197, %s198
      %s200 = smul.addr %s199, 4
      %s201 = scalar_lea.vmem %s0, %s200
      %s202 = smul.u32 32, %s19
      %s203 = smul.u32 32, %s19
      %p204 = scmp.lt.s32.totalorder %s18, 1
      %s205 = scalar_select %p204, %s18, 1
      %p206 = scmp.lt.s32.totalorder %s203, 31
      %s207 = scalar_select %p206, %s203, 31
      %s208 = smul.addr %s205, 32
      %s209 = sadd.s32 %s207, %s208
      %s210 = smul.addr %s209, 4
      %s211 = scalar_lea.vmem %s3, %s210
      %s212 = smul.u32 32, %s19
      %v214 = vld [vmem:[%s201] sm:$0xff]
      %v215 = vld [vmem:[%s201 + $0x8] sm:$0xff]
      %v216 = vld [vmem:[%s201 + $0x10] sm:$0xf]
      %v217 = vld [vmem:[%s201 + $0x14] sm:$0xff]
      %v218 = vld [vmem:[%s201 + $0x1c] sm:$0xff]
      %v219 = vld [vmem:[%s201 + $0x24] sm:$0xf]
      %v220 = vld [vmem:[%s201 + $0x28] sm:$0xff]
      %v221 = vld [vmem:[%s201 + $0x30] sm:$0xff]
      %v222 = vld [vmem:[%s201 + $0x38] sm:$0xf]
      %v223 = vld [vmem:[%s201 + $0x3c] sm:$0xff]
      %v224 = vld [vmem:[%s201 + $0x44] sm:$0xff]
      %v225 = vld [vmem:[%s201 + $0x4c] sm:$0xf]
      %v226 = vld [vmem:[%s201 + $0x50] sm:$0xff]
      %v227 = vld [vmem:[%s201 + $0x58] sm:$0xff]
      %v228 = vld [vmem:[%s201 + $0x60] sm:$0xf]
      %v229 = vld [vmem:[%s201 + $0x64] sm:$0xff]
      %v230 = vld [vmem:[%s201 + $0x6c] sm:$0xff]
      %v231 = vld [vmem:[%s201 + $0x74] sm:$0xf]
      %v232 = vld [vmem:[%s201 + $0x78] sm:$0xff]
      %v233 = vld [vmem:[%s201 + $0x80] sm:$0xff]
      %v234 = vld [vmem:[%s201 + $0x88] sm:$0xf]
      %v235 = vld [vmem:[%s201 + $0x8c] sm:$0xff]
      %v236 = vld [vmem:[%s201 + $0x94] sm:$0xff]
      %v237 = vld [vmem:[%s201 + $0x9c] sm:$0xf]
      %v238 = vld [vmem:[%s201 + $0xa0] sm:$0xff]
      %v239 = vld [vmem:[%s201 + $0xa8] sm:$0xff]
      %v240 = vld [vmem:[%s201 + $0xb0] sm:$0xf]
      %v241 = vld [vmem:[%s201 + $0xb4] sm:$0xff]
      %v242 = vld [vmem:[%s201 + $0xbc] sm:$0xff]
      %v243 = vld [vmem:[%s201 + $0xc4] sm:$0xf]
      %v244 = vld [vmem:[%s201 + $0xc8] sm:$0xff]
      %v245 = vld [vmem:[%s201 + $0xd0] sm:$0xff]
      %v246 = vld [vmem:[%s201 + $0xd8] sm:$0xf]
      %v247 = vld [vmem:[%s201 + $0xdc] sm:$0xff]
      %v248 = vld [vmem:[%s201 + $0xe4] sm:$0xff]
      %v249 = vld [vmem:[%s201 + $0xec] sm:$0xf]
      %v250 = vld [vmem:[%s201 + $0xf0] sm:$0xff]
      %v251 = vld [vmem:[%s201 + $0xf8] sm:$0xff]
      %v252 = vld [vmem:[%s201 + $0x100] sm:$0xf]
      %v253 = vld [vmem:[%s201 + $0x104] sm:$0xff]
      %v254 = vld [vmem:[%s201 + $0x10c] sm:$0xff]
      %v255 = vld [vmem:[%s201 + $0x114] sm:$0xf]
      %v256 = vld [vmem:[%s201 + $0x118] sm:$0xff]
      %v257 = vld [vmem:[%s201 + $0x120] sm:$0xff]
      %v258 = vld [vmem:[%s201 + $0x128] sm:$0xf]
      %v259 = vld [vmem:[%s201 + $0x12c] sm:$0xff]
      %v260 = vld [vmem:[%s201 + $0x134] sm:$0xff]
      %v261 = vld [vmem:[%s201 + $0x13c] sm:$0xf]
      %v262 = vld [vmem:[%s201 + $0x140] sm:$0xff]
      %v263 = vld [vmem:[%s201 + $0x148] sm:$0xff]
      %v264 = vld [vmem:[%s201 + $0x150] sm:$0xf]
      %v265 = vld [vmem:[%s201 + $0x154] sm:$0xff]
      %v266 = vld [vmem:[%s201 + $0x15c] sm:$0xff]
      %v267 = vld [vmem:[%s201 + $0x164] sm:$0xf]
      %v268 = vld [vmem:[%s201 + $0x168] sm:$0xff]
      %v269 = vld [vmem:[%s201 + $0x170] sm:$0xff]
      %v270 = vld [vmem:[%s201 + $0x178] sm:$0xf]
      %v271 = vld [vmem:[%s201 + $0x17c] sm:$0xff]
      %v272 = vld [vmem:[%s201 + $0x184] sm:$0xff]
      %v273 = vld [vmem:[%s201 + $0x18c] sm:$0xf]
      %v274 = vld [vmem:[%s201 + $0x190] sm:$0xff]
      %v275 = vld [vmem:[%s201 + $0x198] sm:$0xff]
      %v276 = vld [vmem:[%s201 + $0x1a0] sm:$0xf]
      %v277 = vld [vmem:[%s201 + $0x1a4] sm:$0xff]
      %v278 = vld [vmem:[%s201 + $0x1ac] sm:$0xff]
      %v279 = vld [vmem:[%s201 + $0x1b4] sm:$0xf]
      %v280 = vld [vmem:[%s201 + $0x1b8] sm:$0xff]
      %v281 = vld [vmem:[%s201 + $0x1c0] sm:$0xff]
      %v282 = vld [vmem:[%s201 + $0x1c8] sm:$0xf]
      %v283 = vld [vmem:[%s201 + $0x1cc] sm:$0xff]
      %v284 = vld [vmem:[%s201 + $0x1d4] sm:$0xff]
      %v285 = vld [vmem:[%s201 + $0x1dc] sm:$0xf]
      %v286 = vld [vmem:[%s201 + $0x1e0] sm:$0xff]
      %v287 = vld [vmem:[%s201 + $0x1e8] sm:$0xff]
      %v288 = vld [vmem:[%s201 + $0x1f0] sm:$0xf]
      %v289 = vld [vmem:[%s201 + $0x1f4] sm:$0xff]
      %v290 = vld [vmem:[%s201 + $0x1fc] sm:$0xff]
      %v291 = vld [vmem:[%s201 + $0x204] sm:$0xf]
      %v292 = vld [vmem:[%s201 + $0x208] sm:$0xff]
      %v293 = vld [vmem:[%s201 + $0x210] sm:$0xff]
      %v294 = vld [vmem:[%s201 + $0x218] sm:$0xf]
      %v295 = vld [vmem:[%s201 + $0x21c] sm:$0xff]
      %v296 = vld [vmem:[%s201 + $0x224] sm:$0xff]
      %v297 = vld [vmem:[%s201 + $0x22c] sm:$0xf]
      %v298 = vld [vmem:[%s201 + $0x230] sm:$0xff]
      %v299 = vld [vmem:[%s201 + $0x238] sm:$0xff]
      %v300 = vld [vmem:[%s201 + $0x240] sm:$0xf]
      %v301 = vld [vmem:[%s201 + $0x244] sm:$0xff]
      %v302 = vld [vmem:[%s201 + $0x24c] sm:$0xff]
      %v303 = vld [vmem:[%s201 + $0x254] sm:$0xf]
      %v304 = vld [vmem:[%s201 + $0x258] sm:$0xff]
      %v305 = vld [vmem:[%s201 + $0x260] sm:$0xff]
      %v306 = vld [vmem:[%s201 + $0x268] sm:$0xf]
      %v307 = vld [vmem:[%s201 + $0x26c] sm:$0xff]
      %v308 = vld [vmem:[%s201 + $0x274] sm:$0xff]
      %v309 = vld [vmem:[%s201 + $0x27c] sm:$0xf]
      %v310 = vld [vmem:[%s1] sm:$0xf]
      %v311 = vld [vmem:[%s1 + $0x4] sm:$0xf]
      %v312 = vld [vmem:[%s1 + $0x8] sm:$0xf]
      %v313 = vld [vmem:[%s1 + $0xc] sm:$0xf]
      %v314 = vld [vmem:[%s1 + $0x10] sm:$0xf]
      %v315 = vld [vmem:[%s1 + $0x14] sm:$0xf]
      %v316 = vld [vmem:[%s1 + $0x18] sm:$0xf]
      %v317 = vld [vmem:[%s1 + $0x1c] sm:$0xf]
      %v318 = vld [vmem:[%s1 + $0x20] sm:$0xf]
      %v319 = vld [vmem:[%s1 + $0x24] sm:$0xf]
      %v320 = vld [vmem:[%s1 + $0x28] sm:$0xf]
      %v321 = vld [vmem:[%s1 + $0x2c] sm:$0xf]
      %v322 = vld [vmem:[%s1 + $0x30] sm:$0xf]
      %v323 = vld [vmem:[%s1 + $0x34] sm:$0xf]
      %v324 = vld [vmem:[%s1 + $0x38] sm:$0xf]
      %v325 = vld [vmem:[%s1 + $0x3c] sm:$0xf]
      %v326 = vld [vmem:[%s1 + $0x40] sm:$0xf]
      %v327 = vld [vmem:[%s1 + $0x44] sm:$0xf]
      %v328 = vld [vmem:[%s1 + $0x48] sm:$0xf]
      %v329 = vld [vmem:[%s1 + $0x4c] sm:$0xf]
      %v330 = vld [vmem:[%s1 + $0x50] sm:$0xf]
      %v331 = vld [vmem:[%s1 + $0x54] sm:$0xf]
      %v332 = vld [vmem:[%s1 + $0x58] sm:$0xf]
      %v333 = vld [vmem:[%s1 + $0x5c] sm:$0xf]
      %v334 = vld [vmem:[%s1 + $0x60] sm:$0xf]
      %v335 = vld [vmem:[%s1 + $0x64] sm:$0xf]
      %v336 = vld [vmem:[%s1 + $0x68] sm:$0xf]
      %v337 = vld [vmem:[%s1 + $0x6c] sm:$0xf]
      %v338 = vld [vmem:[%s1 + $0x70] sm:$0xf]
      %v339 = vld [vmem:[%s1 + $0x74] sm:$0xf]
      %v340 = vld [vmem:[%s1 + $0x78] sm:$0xf]
      %v341 = vld [vmem:[%s1 + $0x7c] sm:$0xf]
      %v342 = vld [vmem:[%s1 + $0x80] sm:$0xf]
      %v343 = vld [vmem:[%s1 + $0x84] sm:$0xf]
      %v344 = vld [vmem:[%s1 + $0x88] sm:$0xf]
      %v345 = vld [vmem:[%s1 + $0x8c] sm:$0xf]
      %v346 = vld [vmem:[%s1 + $0x90] sm:$0xf]
      %v347 = vld [vmem:[%s1 + $0x94] sm:$0xf]
      %v348 = vld [vmem:[%s1 + $0x98] sm:$0xf]
      %v349 = vld [vmem:[%s1 + $0x9c] sm:$0xf]
      %v350 = vld [vmem:[%s1 + $0xa0] sm:$0xf]
      %v351 = vld [vmem:[%s1 + $0xa4] sm:$0xf]
      %v352 = vld [vmem:[%s1 + $0xa8] sm:$0xf]
      %v353 = vld [vmem:[%s1 + $0xac] sm:$0xf]
      %v354 = vld [vmem:[%s1 + $0xb0] sm:$0xf]
      %v355 = vld [vmem:[%s1 + $0xb4] sm:$0xf]
      %v356 = vld [vmem:[%s1 + $0xb8] sm:$0xf]
      %v357 = vld [vmem:[%s1 + $0xbc] sm:$0xf]
      %v358 = vld [vmem:[%s1 + $0xc0] sm:$0xf]
      %v359 = vld [vmem:[%s1 + $0xc4] sm:$0xf]
      %v360 = vld [vmem:[%s1 + $0xc8] sm:$0xf]
      %v361 = vld [vmem:[%s1 + $0xcc] sm:$0xf]
      %v362 = vld [vmem:[%s1 + $0xd0] sm:$0xf]
      %v363 = vld [vmem:[%s1 + $0xd4] sm:$0xf]
      %v364 = vld [vmem:[%s1 + $0xd8] sm:$0xf]
      %v365 = vld [vmem:[%s1 + $0xdc] sm:$0xf]
      %v366 = vld [vmem:[%s1 + $0xe0] sm:$0xf]
      %v367 = vld [vmem:[%s1 + $0xe4] sm:$0xf]
      %v368 = vld [vmem:[%s1 + $0xe8] sm:$0xf]
      %v369 = vld [vmem:[%s1 + $0xec] sm:$0xf]
      %v370 = vld [vmem:[%s1 + $0xf0] sm:$0xf]
      %v371 = vld [vmem:[%s1 + $0xf4] sm:$0xf]
      %v372 = vld [vmem:[%s1 + $0xf8] sm:$0xf]
      %v373 = vld [vmem:[%s1 + $0xfc] sm:$0xf]
      %v374 = vld [vmem:[%s1 + $0x100] sm:$0xf]
      %v375 = vld [vmem:[%s1 + $0x104] sm:$0xf]
      %v376 = vld [vmem:[%s1 + $0x108] sm:$0xf]
      %v377 = vld [vmem:[%s1 + $0x10c] sm:$0xf]
      %v378 = vld [vmem:[%s1 + $0x110] sm:$0xf]
      %v379 = vld [vmem:[%s1 + $0x114] sm:$0xf]
      %v380 = vld [vmem:[%s1 + $0x118] sm:$0xf]
      %v381 = vld [vmem:[%s1 + $0x11c] sm:$0xf]
      %v382 = vld [vmem:[%s1 + $0x120] sm:$0xf]
      %v383 = vld [vmem:[%s1 + $0x124] sm:$0xf]
      %v384 = vld [vmem:[%s1 + $0x128] sm:$0xf]
      %v385 = vld [vmem:[%s1 + $0x12c] sm:$0x3]
      %v386 = vld [vmem:[%s2] sm:$0x1]
      %v388 = vlaneseq
      %v389 = vshrl.u32 %v388, 7
      %v390 = vsub.s32 0, %v389
      %v391 = vrot.slane %v386, %v390
      %v489 = vunpack.c.l.b16 %v214
      %v490 = vunpack.c.h.b16 %v214
      %v491 = vunpack.c.l.b16 %v215
      %v492 = vunpack.c.h.b16 %v215
      %v493 = vunpack.c.l.b16 %v216
      %v494 = vunpack.c.l.b16 %v217
      %v495 = vunpack.c.h.b16 %v217
      %v496 = vunpack.c.l.b16 %v218
      %v497 = vunpack.c.h.b16 %v218
      %v498 = vunpack.c.l.b16 %v219
      %v499 = vunpack.c.l.b16 %v220
      %v500 = vunpack.c.h.b16 %v220
      %v501 = vunpack.c.l.b16 %v221
      %v502 = vunpack.c.h.b16 %v221
      %v503 = vunpack.c.l.b16 %v222
      %v504 = vunpack.c.l.b16 %v223
      %v505 = vunpack.c.h.b16 %v223
      %v506 = vunpack.c.l.b16 %v224
      %v507 = vunpack.c.h.b16 %v224
      %v508 = vunpack.c.l.b16 %v225
      %v509 = vunpack.c.l.b16 %v226
      %v510 = vunpack.c.h.b16 %v226
      %v511 = vunpack.c.l.b16 %v227
      %v512 = vunpack.c.h.b16 %v227
      %v513 = vunpack.c.l.b16 %v228
      %v514 = vunpack.c.l.b16 %v229
      %v515 = vunpack.c.h.b16 %v229
      %v516 = vunpack.c.l.b16 %v230
      %v517 = vunpack.c.h.b16 %v230
      %v518 = vunpack.c.l.b16 %v231
      %v519 = vunpack.c.l.b16 %v232
      %v520 = vunpack.c.h.b16 %v232
      %v521 = vunpack.c.l.b16 %v233
      %v522 = vunpack.c.h.b16 %v233
      %v523 = vunpack.c.l.b16 %v234
      %v524 = vunpack.c.l.b16 %v235
      %v525 = vunpack.c.h.b16 %v235
      %v526 = vunpack.c.l.b16 %v236
      %v527 = vunpack.c.h.b16 %v236
      %v528 = vunpack.c.l.b16 %v237
      %v529 = vunpack.c.l.b16 %v238
      %v530 = vunpack.c.h.b16 %v238
      %v531 = vunpack.c.l.b16 %v239
      %v532 = vunpack.c.h.b16 %v239
      %v533 = vunpack.c.l.b16 %v240
      %v534 = vunpack.c.l.b16 %v241
      %v535 = vunpack.c.h.b16 %v241
      %v536 = vunpack.c.l.b16 %v242
      %v537 = vunpack.c.h.b16 %v242
      %v538 = vunpack.c.l.b16 %v243
      %v539 = vunpack.c.l.b16 %v244
      %v540 = vunpack.c.h.b16 %v244
      %v541 = vunpack.c.l.b16 %v245
      %v542 = vunpack.c.h.b16 %v245
      %v543 = vunpack.c.l.b16 %v246
      %v544 = vunpack.c.l.b16 %v247
      %v545 = vunpack.c.h.b16 %v247
      %v546 = vunpack.c.l.b16 %v248
      %v547 = vunpack.c.h.b16 %v248
      %v548 = vunpack.c.l.b16 %v249
      %v549 = vunpack.c.l.b16 %v250
      %v550 = vunpack.c.h.b16 %v250
      %v551 = vunpack.c.l.b16 %v251
      %v552 = vunpack.c.h.b16 %v251
      %v553 = vunpack.c.l.b16 %v252
      %v554 = vunpack.c.l.b16 %v253
      %v555 = vunpack.c.h.b16 %v253
      %v556 = vunpack.c.l.b16 %v254
      %v557 = vunpack.c.h.b16 %v254
      %v558 = vunpack.c.l.b16 %v255
      %v559 = vunpack.c.l.b16 %v256
      %v560 = vunpack.c.h.b16 %v256
      %v561 = vunpack.c.l.b16 %v257
      %v562 = vunpack.c.h.b16 %v257
      %v563 = vunpack.c.l.b16 %v258
      %v564 = vunpack.c.l.b16 %v259
      %v565 = vunpack.c.h.b16 %v259
      %v566 = vunpack.c.l.b16 %v260
      %v567 = vunpack.c.h.b16 %v260
      %v568 = vunpack.c.l.b16 %v261
      %v569 = vunpack.c.l.b16 %v262
      %v570 = vunpack.c.h.b16 %v262
      %v571 = vunpack.c.l.b16 %v263
      %v572 = vunpack.c.h.b16 %v263
      %v573 = vunpack.c.l.b16 %v264
      %v574 = vunpack.c.l.b16 %v265
      %v575 = vunpack.c.h.b16 %v265
      %v576 = vunpack.c.l.b16 %v266
      %v577 = vunpack.c.h.b16 %v266
      %v578 = vunpack.c.l.b16 %v267
      %v579 = vunpack.c.l.b16 %v268
      %v580 = vunpack.c.h.b16 %v268
      %v581 = vunpack.c.l.b16 %v269
      %v582 = vunpack.c.h.b16 %v269
      %v583 = vunpack.c.l.b16 %v270
      %v584 = vunpack.c.l.b16 %v271
      %v585 = vunpack.c.h.b16 %v271
      %v586 = vunpack.c.l.b16 %v272
      %v587 = vunpack.c.h.b16 %v272
      %v588 = vunpack.c.l.b16 %v273
      %v589 = vunpack.c.l.b16 %v274
      %v590 = vunpack.c.h.b16 %v274
      %v591 = vunpack.c.l.b16 %v275
      %v592 = vunpack.c.h.b16 %v275
      %v593 = vunpack.c.l.b16 %v276
      %v594 = vunpack.c.l.b16 %v277
      %v595 = vunpack.c.h.b16 %v277
      %v596 = vunpack.c.l.b16 %v278
      %v597 = vunpack.c.h.b16 %v278
      %v598 = vunpack.c.l.b16 %v279
      %v599 = vunpack.c.l.b16 %v280
      %v600 = vunpack.c.h.b16 %v280
      %v601 = vunpack.c.l.b16 %v281
      %v602 = vunpack.c.h.b16 %v281
      %v603 = vunpack.c.l.b16 %v282
      %v604 = vunpack.c.l.b16 %v283
      %v605 = vunpack.c.h.b16 %v283
      %v606 = vunpack.c.l.b16 %v284
      %v607 = vunpack.c.h.b16 %v284
      %v608 = vunpack.c.l.b16 %v285
      %v609 = vunpack.c.l.b16 %v286
      %v610 = vunpack.c.h.b16 %v286
      %v611 = vunpack.c.l.b16 %v287
      %v612 = vunpack.c.h.b16 %v287
      %v613 = vunpack.c.l.b16 %v288
      %v614 = vunpack.c.l.b16 %v289
      %v615 = vunpack.c.h.b16 %v289
      %v616 = vunpack.c.l.b16 %v290
      %v617 = vunpack.c.h.b16 %v290
      %v618 = vunpack.c.l.b16 %v291
      %v619 = vunpack.c.l.b16 %v292
      %v620 = vunpack.c.h.b16 %v292
      %v621 = vunpack.c.l.b16 %v293
      %v622 = vunpack.c.h.b16 %v293
      %v623 = vunpack.c.l.b16 %v294
      %v624 = vunpack.c.l.b16 %v295
      %v625 = vunpack.c.h.b16 %v295
      %v626 = vunpack.c.l.b16 %v296
      %v627 = vunpack.c.h.b16 %v296
      %v628 = vunpack.c.l.b16 %v297
      %v629 = vunpack.c.l.b16 %v298
      %v630 = vunpack.c.h.b16 %v298
      %v631 = vunpack.c.l.b16 %v299
      %v632 = vunpack.c.h.b16 %v299
      %v633 = vunpack.c.l.b16 %v300
      %v634 = vunpack.c.l.b16 %v301
      %v635 = vunpack.c.h.b16 %v301
      %v636 = vunpack.c.l.b16 %v302
      %v637 = vunpack.c.h.b16 %v302
      %v638 = vunpack.c.l.b16 %v303
      %v639 = vunpack.c.l.b16 %v304
      %v640 = vunpack.c.h.b16 %v304
      %v641 = vunpack.c.l.b16 %v305
      %v642 = vunpack.c.h.b16 %v305
      %v643 = vunpack.c.l.b16 %v306
      %v644 = vunpack.c.l.b16 %v307
      %v645 = vunpack.c.h.b16 %v307
      %v646 = vunpack.c.l.b16 %v308
      %v647 = vunpack.c.h.b16 %v308
      %v648 = vunpack.c.l.b16 %v309
      %v649 = vpack.c.b16 %v494, %v489
      %v650 = vpack.c.b16 %v495, %v490
      %v651 = vpack.c.b16 %v496, %v491
      %v652 = vpack.c.b16 %v497, %v492
      %v653 = vpack.c.b16 %v498, %v493
      %v654 = vpack.c.b16 %v504, %v499
      %v655 = vpack.c.b16 %v505, %v500
      %v656 = vpack.c.b16 %v506, %v501
      %v657 = vpack.c.b16 %v507, %v502
      %v658 = vpack.c.b16 %v508, %v503
      %v659 = vpack.c.b16 %v514, %v509
      %v660 = vpack.c.b16 %v515, %v510
      %v661 = vpack.c.b16 %v516, %v511
      %v662 = vpack.c.b16 %v517, %v512
      %v663 = vpack.c.b16 %v518, %v513
      %v664 = vpack.c.b16 %v524, %v519
      %v665 = vpack.c.b16 %v525, %v520
      %v666 = vpack.c.b16 %v526, %v521
      %v667 = vpack.c.b16 %v527, %v522
      %v668 = vpack.c.b16 %v528, %v523
      %v669 = vpack.c.b16 %v534, %v529
      %v670 = vpack.c.b16 %v535, %v530
      %v671 = vpack.c.b16 %v536, %v531
      %v672 = vpack.c.b16 %v537, %v532
      %v673 = vpack.c.b16 %v538, %v533
      %v674 = vpack.c.b16 %v544, %v539
      %v675 = vpack.c.b16 %v545, %v540
      %v676 = vpack.c.b16 %v546, %v541
      %v677 = vpack.c.b16 %v547, %v542
      %v678 = vpack.c.b16 %v548, %v543
      %v679 = vpack.c.b16 %v554, %v549
      %v680 = vpack.c.b16 %v555, %v550
      %v681 = vpack.c.b16 %v556, %v551
      %v682 = vpack.c.b16 %v557, %v552
      %v683 = vpack.c.b16 %v558, %v553
      %v684 = vpack.c.b16 %v564, %v559
      %v685 = vpack.c.b16 %v565, %v560
      %v686 = vpack.c.b16 %v566, %v561
      %v687 = vpack.c.b16 %v567, %v562
      %v688 = vpack.c.b16 %v568, %v563
      %v689 = vpack.c.b16 %v574, %v569
      %v690 = vpack.c.b16 %v575, %v570
      %v691 = vpack.c.b16 %v576, %v571
      %v692 = vpack.c.b16 %v577, %v572
      %v693 = vpack.c.b16 %v578, %v573
      %v694 = vpack.c.b16 %v584, %v579
      %v695 = vpack.c.b16 %v585, %v580
      %v696 = vpack.c.b16 %v586, %v581
      %v697 = vpack.c.b16 %v587, %v582
      %v698 = vpack.c.b16 %v588, %v583
      %v699 = vpack.c.b16 %v594, %v589
      %v700 = vpack.c.b16 %v595, %v590
      %v701 = vpack.c.b16 %v596, %v591
      %v702 = vpack.c.b16 %v597, %v592
      %v703 = vpack.c.b16 %v598, %v593
      %v704 = vpack.c.b16 %v604, %v599
      %v705 = vpack.c.b16 %v605, %v600
      %v706 = vpack.c.b16 %v606, %v601
      %v707 = vpack.c.b16 %v607, %v602
      %v708 = vpack.c.b16 %v608, %v603
      %v709 = vpack.c.b16 %v614, %v609
      %v710 = vpack.c.b16 %v615, %v610
      %v711 = vpack.c.b16 %v616, %v611
      %v712 = vpack.c.b16 %v617, %v612
      %v713 = vpack.c.b16 %v618, %v613
      %v714 = vpack.c.b16 %v624, %v619
      %v715 = vpack.c.b16 %v625, %v620
      %v716 = vpack.c.b16 %v626, %v621
      %v717 = vpack.c.b16 %v627, %v622
      %v718 = vpack.c.b16 %v628, %v623
      %v719 = vpack.c.b16 %v634, %v629
      %v720 = vpack.c.b16 %v635, %v630
      %v721 = vpack.c.b16 %v636, %v631
      %v722 = vpack.c.b16 %v637, %v632
      %v723 = vpack.c.b16 %v638, %v633
      %v724 = vpack.c.b16 %v644, %v639
      %v725 = vpack.c.b16 %v645, %v640
      %v726 = vpack.c.b16 %v646, %v641
      %v727 = vpack.c.b16 %v647, %v642
      %v728 = vpack.c.b16 %v648, %v643
      %v869 = vunpack.c.l.b16 %v310
      %v870 = vunpack.c.l.b16 %v311
      %v871 = vunpack.c.l.b16 %v312
      %v872 = vunpack.c.l.b16 %v313
      %v873 = vunpack.c.l.b16 %v314
      %v874 = vunpack.c.l.b16 %v315
      %v875 = vunpack.c.l.b16 %v316
      %v876 = vunpack.c.l.b16 %v317
      %v877 = vunpack.c.l.b16 %v318
      %v878 = vunpack.c.l.b16 %v319
      %v879 = vunpack.c.l.b16 %v320
      %v880 = vunpack.c.l.b16 %v321
      %v881 = vunpack.c.l.b16 %v322
      %v882 = vunpack.c.l.b16 %v323
      %v883 = vunpack.c.l.b16 %v324
      %v884 = vunpack.c.l.b16 %v325
      %v885 = vunpack.c.l.b16 %v326
      %v886 = vunpack.c.l.b16 %v327
      %v887 = vunpack.c.l.b16 %v328
      %v888 = vunpack.c.l.b16 %v329
      %v889 = vunpack.c.l.b16 %v330
      %v890 = vunpack.c.l.b16 %v331
      %v891 = vunpack.c.l.b16 %v332
      %v892 = vunpack.c.l.b16 %v333
      %v893 = vunpack.c.l.b16 %v334
      %v894 = vunpack.c.l.b16 %v335
      %v895 = vunpack.c.l.b16 %v336
      %v896 = vunpack.c.l.b16 %v337
      %v897 = vunpack.c.l.b16 %v338
      %v898 = vunpack.c.l.b16 %v339
      %v899 = vunpack.c.l.b16 %v340
      %v900 = vunpack.c.l.b16 %v341
      %v901 = vunpack.c.l.b16 %v342
      %v902 = vunpack.c.l.b16 %v343
      %v903 = vunpack.c.l.b16 %v344
      %v904 = vunpack.c.l.b16 %v345
      %v905 = vunpack.c.l.b16 %v346
      %v906 = vunpack.c.l.b16 %v347
      %v907 = vunpack.c.l.b16 %v348
      %v908 = vunpack.c.l.b16 %v349
      %v909 = vunpack.c.l.b16 %v350
      %v910 = vunpack.c.l.b16 %v351
      %v911 = vunpack.c.l.b16 %v352
      %v912 = vunpack.c.l.b16 %v353
      %v913 = vunpack.c.l.b16 %v354
      %v914 = vunpack.c.l.b16 %v355
      %v915 = vunpack.c.l.b16 %v356
      %v916 = vunpack.c.l.b16 %v357
      %v917 = vunpack.c.l.b16 %v358
      %v918 = vunpack.c.l.b16 %v359
      %v919 = vunpack.c.l.b16 %v360
      %v920 = vunpack.c.l.b16 %v361
      %v921 = vunpack.c.l.b16 %v362
      %v922 = vunpack.c.l.b16 %v363
      %v923 = vunpack.c.l.b16 %v364
      %v924 = vunpack.c.l.b16 %v365
      %v925 = vunpack.c.l.b16 %v366
      %v926 = vunpack.c.l.b16 %v367
      %v927 = vunpack.c.l.b16 %v368
      %v928 = vunpack.c.l.b16 %v369
      %v929 = vunpack.c.l.b16 %v370
      %v930 = vunpack.c.l.b16 %v371
      %v931 = vunpack.c.l.b16 %v372
      %v932 = vunpack.c.l.b16 %v373
      %v933 = vunpack.c.l.b16 %v374
      %v934 = vunpack.c.l.b16 %v375
      %v935 = vunpack.c.l.b16 %v376
      %v936 = vunpack.c.l.b16 %v377
      %v937 = vunpack.c.l.b16 %v378
      %v938 = vunpack.c.l.b16 %v379
      %v939 = vunpack.c.l.b16 %v380
      %v940 = vunpack.c.l.b16 %v381
      %v941 = vunpack.c.l.b16 %v382
      %v942 = vunpack.c.l.b16 %v383
      %v943 = vunpack.c.l.b16 %v384
      %v944 = vunpack.c.l.b16 %v385
      %v945 = vpack.c.b16 %v870, %v869
      %v946 = vpack.c.b16 %v872, %v871
      %v947 = vpack.c.b16 %v874, %v873
      %v948 = vpack.c.b16 %v876, %v875
      %v949 = vpack.c.b16 %v878, %v877
      %v950 = vpack.c.b16 %v880, %v879
      %v951 = vpack.c.b16 %v882, %v881
      %v952 = vpack.c.b16 %v884, %v883
      %v953 = vpack.c.b16 %v886, %v885
      %v954 = vpack.c.b16 %v888, %v887
      %v955 = vpack.c.b16 %v890, %v889
      %v956 = vpack.c.b16 %v892, %v891
      %v957 = vpack.c.b16 %v894, %v893
      %v958 = vpack.c.b16 %v896, %v895
      %v959 = vpack.c.b16 %v898, %v897
      %v960 = vpack.c.b16 %v900, %v899
      %v961 = vpack.c.b16 %v902, %v901
      %v962 = vpack.c.b16 %v904, %v903
      %v963 = vpack.c.b16 %v906, %v905
      %v964 = vpack.c.b16 %v908, %v907
      %v965 = vpack.c.b16 %v910, %v909
      %v966 = vpack.c.b16 %v912, %v911
      %v967 = vpack.c.b16 %v914, %v913
      %v968 = vpack.c.b16 %v916, %v915
      %v969 = vpack.c.b16 %v918, %v917
      %v970 = vpack.c.b16 %v920, %v919
      %v971 = vpack.c.b16 %v922, %v921
      %v972 = vpack.c.b16 %v924, %v923
      %v973 = vpack.c.b16 %v926, %v925
      %v974 = vpack.c.b16 %v928, %v927
      %v975 = vpack.c.b16 %v930, %v929
      %v976 = vpack.c.b16 %v932, %v931
      %v977 = vpack.c.b16 %v934, %v933
      %v978 = vpack.c.b16 %v936, %v935
      %v979 = vpack.c.b16 %v938, %v937
      %v980 = vpack.c.b16 %v940, %v939
      %v981 = vpack.c.b16 %v942, %v941
      %v982 = vpack.c.b16 %v944, %v943
      %vm1020 = vcmask 744448
      %v1022 = vsel %vm1020, %v653, 0
      %v1025 = vsel %vm1020, %v658, 0
      %v1028 = vsel %vm1020, %v663, 0
      %v1031 = vsel %vm1020, %v668, 0
      %v1034 = vsel %vm1020, %v673, 0
      %v1037 = vsel %vm1020, %v678, 0
      %v1040 = vsel %vm1020, %v683, 0
      %v1043 = vsel %vm1020, %v688, 0
      %v1046 = vsel %vm1020, %v693, 0
      %v1049 = vsel %vm1020, %v698, 0
      %v1052 = vsel %vm1020, %v703, 0
      %v1055 = vsel %vm1020, %v708, 0
      %v1058 = vsel %vm1020, %v713, 0
      %v1061 = vsel %vm1020, %v718, 0
      %v1064 = vsel %vm1020, %v723, 0
      %v1067 = vsel %vm1020, %v728, 0
      %vm1069 = vcmask 1044480
      %vm1070 = vcmask 1045504
      %v1071 = vsel %vm1069, 4294967295, 65535
      %v1072 = vsel %vm1070, %v1071, 0
      %v1074 = vand.u32 %v982, %v1072
      %1076 = vmatprep.subr.bf16.mxu0 0
      %1077 = vmatpush1.bf16.msra.mxu0 %v952
      %1078 = vmatprep.subr.bf16.mxu0 0
      %1079 = vmatpush1.bf16.msra.mxu0 %v951
      %1080 = vmatprep.subr.bf16.mxu0 0
      %1081 = vmatpush1.bf16.msra.mxu0 %v950
      %1082 = vmatprep.subr.bf16.mxu0 0
      %1083 = vmatpush1.bf16.msra.mxu0 %v949
      %1084 = vmatprep.subr.bf16.mxu0 0
      %1085 = vmatpush1.bf16.msra.mxu0 %v948
      %1086 = vmatprep.subr.bf16.mxu0 0
      %1087 = vmatpush1.bf16.msra.mxu0 %v947
      %1088 = vmatprep.subr.bf16.mxu0 0
      %1089 = vmatpush1.bf16.msra.mxu0 %v946
      %1090 = vmatprep.subr.bf16.mxu0 0
      %1091 = vmatpush1.bf16.msra.mxu0 %v945
      %1092 = vmatprep.subr.bf16.mxu0 0
      %1093 = vmatpush2.bf16.msra.mxu0 %v960
      %1094 = vmatprep.subr.bf16.mxu0 0
      %1095 = vmatpush2.bf16.msra.mxu0 %v959
      %1096 = vmatprep.subr.bf16.mxu0 0
      %1097 = vmatpush2.bf16.msra.mxu0 %v958
      %1098 = vmatprep.subr.bf16.mxu0 0
      %1099 = vmatpush2.bf16.msra.mxu0 %v957
      %1100 = vmatprep.subr.bf16.mxu0 0
      %1101 = vmatpush2.bf16.msra.mxu0 %v956
      %1102 = vmatprep.subr.bf16.mxu0 0
      %1103 = vmatpush2.bf16.msra.mxu0 %v955
      %1104 = vmatprep.subr.bf16.mxu0 0
      %1105 = vmatpush2.bf16.msra.mxu0 %v954
      %1106 = vmatprep.subr.bf16.mxu0 0
      %1107 = vmatpush2.bf16.msra.mxu0 %v953
      %1108 = vmatprep.mubr.bf16.mxu0 %v650
      %1109 = vmatmul.mubr.bf16.gmra.mxu0 %v649
      %v1110 = vpop.f32.mrf.mxu0
      %v1111 = vadd.f32 %v391, %v1110
      %v1112 = vpop.f32.mrf.mxu0
      %v1113 = vpop.f32.mrf.mxu0
      %v1114 = vadd.f32 %v391, %v1113
      %v1115 = vpop.f32.mrf.mxu0
      %1116 = vmatprep.mubr.bf16.mxu0 %v655
      %1117 = vmatmul.mubr.bf16.gmra.mxu0 %v654
      %v1118 = vpop.f32.mrf.mxu0
      %v1119 = vadd.f32 %v391, %v1118
      %v1120 = vpop.f32.mrf.mxu0
      %v1121 = vpop.f32.mrf.mxu0
      %v1122 = vadd.f32 %v391, %v1121
      %v1123 = vpop.f32.mrf.mxu0
      %1124 = vmatprep.mubr.bf16.mxu0 %v660
      %1125 = vmatmul.mubr.bf16.gmra.mxu0 %v659
      %v1126 = vpop.f32.mrf.mxu0
      %v1127 = vadd.f32 %v391, %v1126
      %v1128 = vpop.f32.mrf.mxu0
      %v1129 = vpop.f32.mrf.mxu0
      %v1130 = vadd.f32 %v391, %v1129
      %v1131 = vpop.f32.mrf.mxu0
      %1132 = vmatprep.mubr.bf16.mxu0 %v665
      %1133 = vmatmul.mubr.bf16.gmra.mxu0 %v664
      %v1134 = vpop.f32.mrf.mxu0
      %v1135 = vadd.f32 %v391, %v1134
      %v1136 = vpop.f32.mrf.mxu0
      %v1137 = vpop.f32.mrf.mxu0
      %v1138 = vadd.f32 %v391, %v1137
      %v1139 = vpop.f32.mrf.mxu0
      %1140 = vmatprep.mubr.bf16.mxu0 %v670
      %1141 = vmatmul.mubr.bf16.gmra.mxu0 %v669
      %v1142 = vpop.f32.mrf.mxu0
      %v1143 = vadd.f32 %v391, %v1142
      %v1144 = vpop.f32.mrf.mxu0
      %v1145 = vpop.f32.mrf.mxu0
      %v1146 = vadd.f32 %v391, %v1145
      %v1147 = vpop.f32.mrf.mxu0
      %1148 = vmatprep.mubr.bf16.mxu0 %v675
      %1149 = vmatmul.mubr.bf16.gmra.mxu0 %v674
      %v1150 = vpop.f32.mrf.mxu0
      %v1151 = vadd.f32 %v391, %v1150
      %v1152 = vpop.f32.mrf.mxu0
      %v1153 = vpop.f32.mrf.mxu0
      %v1154 = vadd.f32 %v391, %v1153
      %v1155 = vpop.f32.mrf.mxu0
      %1156 = vmatprep.mubr.bf16.mxu0 %v680
      %1157 = vmatmul.mubr.bf16.gmra.mxu0 %v679
      %v1158 = vpop.f32.mrf.mxu0
      %v1159 = vadd.f32 %v391, %v1158
      %v1160 = vpop.f32.mrf.mxu0
      %v1161 = vpop.f32.mrf.mxu0
      %v1162 = vadd.f32 %v391, %v1161
      %v1163 = vpop.f32.mrf.mxu0
      %1164 = vmatprep.mubr.bf16.mxu0 %v685
      %1165 = vmatmul.mubr.bf16.gmra.mxu0 %v684
      %v1166 = vpop.f32.mrf.mxu0
      %v1167 = vadd.f32 %v391, %v1166
      %v1168 = vpop.f32.mrf.mxu0
      %v1169 = vpop.f32.mrf.mxu0
      %v1170 = vadd.f32 %v391, %v1169
      %v1171 = vpop.f32.mrf.mxu0
      %1172 = vmatprep.mubr.bf16.mxu0 %v690
      %1173 = vmatmul.mubr.bf16.gmra.mxu0 %v689
      %v1174 = vpop.f32.mrf.mxu0
      %v1175 = vadd.f32 %v391, %v1174
      %v1176 = vpop.f32.mrf.mxu0
      %v1177 = vpop.f32.mrf.mxu0
      %v1178 = vadd.f32 %v391, %v1177
      %v1179 = vpop.f32.mrf.mxu0
      %1180 = vmatprep.mubr.bf16.mxu0 %v695
      %1181 = vmatmul.mubr.bf16.gmra.mxu0 %v694
      %v1182 = vpop.f32.mrf.mxu0
      %v1183 = vadd.f32 %v391, %v1182
      %v1184 = vpop.f32.mrf.mxu0
      %v1185 = vpop.f32.mrf.mxu0
      %v1186 = vadd.f32 %v391, %v1185
      %v1187 = vpop.f32.mrf.mxu0
      %1188 = vmatprep.mubr.bf16.mxu0 %v700
      %1189 = vmatmul.mubr.bf16.gmra.mxu0 %v699
      %v1190 = vpop.f32.mrf.mxu0
      %v1191 = vadd.f32 %v391, %v1190
      %v1192 = vpop.f32.mrf.mxu0
      %v1193 = vpop.f32.mrf.mxu0
      %v1194 = vadd.f32 %v391, %v1193
      %v1195 = vpop.f32.mrf.mxu0
      %1196 = vmatprep.mubr.bf16.mxu0 %v705
      %1197 = vmatmul.mubr.bf16.gmra.mxu0 %v704
      %v1198 = vpop.f32.mrf.mxu0
      %v1199 = vadd.f32 %v391, %v1198
      %v1200 = vpop.f32.mrf.mxu0
      %v1201 = vpop.f32.mrf.mxu0
      %v1202 = vadd.f32 %v391, %v1201
      %v1203 = vpop.f32.mrf.mxu0
      %1204 = vmatprep.mubr.bf16.mxu0 %v710
      %1205 = vmatmul.mubr.bf16.gmra.mxu0 %v709
      %v1206 = vpop.f32.mrf.mxu0
      %v1207 = vadd.f32 %v391, %v1206
      %v1208 = vpop.f32.mrf.mxu0
      %v1209 = vpop.f32.mrf.mxu0
      %v1210 = vadd.f32 %v391, %v1209
      %v1211 = vpop.f32.mrf.mxu0
      %1212 = vmatprep.mubr.bf16.mxu0 %v715
      %1213 = vmatmul.mubr.bf16.gmra.mxu0 %v714
      %v1214 = vpop.f32.mrf.mxu0
      %v1215 = vadd.f32 %v391, %v1214
      %v1216 = vpop.f32.mrf.mxu0
      %v1217 = vpop.f32.mrf.mxu0
      %v1218 = vadd.f32 %v391, %v1217
      %v1219 = vpop.f32.mrf.mxu0
      %1220 = vmatprep.mubr.bf16.mxu0 %v720
      %1221 = vmatmul.mubr.bf16.gmra.mxu0 %v719
      %v1222 = vpop.f32.mrf.mxu0
      %v1223 = vadd.f32 %v391, %v1222
      %v1224 = vpop.f32.mrf.mxu0
      %v1225 = vpop.f32.mrf.mxu0
      %v1226 = vadd.f32 %v391, %v1225
      %v1227 = vpop.f32.mrf.mxu0
      %1228 = vmatprep.mubr.bf16.mxu0 %v725
      %1229 = vmatmul.mubr.bf16.gmra.mxu0 %v724
      %v1230 = vpop.f32.mrf.mxu0
      %v1231 = vadd.f32 %v391, %v1230
      %v1232 = vpop.f32.mrf.mxu0
      %v1233 = vpop.f32.mrf.mxu0
      %v1234 = vadd.f32 %v391, %v1233
      %v1235 = vpop.f32.mrf.mxu0
      %1236 = vdwg.mxu0
      %1237 = vmatprep.subr.bf16.mxu0 0
      %1238 = vmatpush1.bf16.msra.mxu0 %v968
      %1239 = vmatprep.subr.bf16.mxu0 0
      %1240 = vmatpush1.bf16.msra.mxu0 %v967
      %1241 = vmatprep.subr.bf16.mxu0 0
      %1242 = vmatpush1.bf16.msra.mxu0 %v966
      %1243 = vmatprep.subr.bf16.mxu0 0
      %1244 = vmatpush1.bf16.msra.mxu0 %v965
      %1245 = vmatprep.subr.bf16.mxu0 0
      %1246 = vmatpush1.bf16.msra.mxu0 %v964
      %1247 = vmatprep.subr.bf16.mxu0 0
      %1248 = vmatpush1.bf16.msra.mxu0 %v963
      %1249 = vmatprep.subr.bf16.mxu0 0
      %1250 = vmatpush1.bf16.msra.mxu0 %v962
      %1251 = vmatprep.subr.bf16.mxu0 0
      %1252 = vmatpush1.bf16.msra.mxu0 %v961
      %1253 = vmatprep.subr.bf16.mxu0 0
      %1254 = vmatpush2.bf16.msra.mxu0 %v976
      %1255 = vmatprep.subr.bf16.mxu0 0
      %1256 = vmatpush2.bf16.msra.mxu0 %v975
      %1257 = vmatprep.subr.bf16.mxu0 0
      %1258 = vmatpush2.bf16.msra.mxu0 %v974
      %1259 = vmatprep.subr.bf16.mxu0 0
      %1260 = vmatpush2.bf16.msra.mxu0 %v973
      %1261 = vmatprep.subr.bf16.mxu0 0
      %1262 = vmatpush2.bf16.msra.mxu0 %v972
      %1263 = vmatprep.subr.bf16.mxu0 0
      %1264 = vmatpush2.bf16.msra.mxu0 %v971
      %1265 = vmatprep.subr.bf16.mxu0 0
      %1266 = vmatpush2.bf16.msra.mxu0 %v970
      %1267 = vmatprep.subr.bf16.mxu0 0
      %1268 = vmatpush2.bf16.msra.mxu0 %v969
      %1269 = vmatprep.mubr.bf16.mxu0 %v652
      %1270 = vmatmul.mubr.bf16.gmra.mxu0 %v651
      %v1271 = vpop.f32.mrf.mxu0
      %v1272 = vadd.f32 %v1111, %v1271
      %v1273 = vpop.f32.mrf.mxu0
      %v1274 = vpop.f32.mrf.mxu0
      %v1275 = vadd.f32 %v1114, %v1274
      %v1276 = vpop.f32.mrf.mxu0
      %1277 = vmatprep.mubr.bf16.mxu0 %v657
      %1278 = vmatmul.mubr.bf16.gmra.mxu0 %v656
      %v1279 = vpop.f32.mrf.mxu0
      %v1280 = vadd.f32 %v1119, %v1279
      %v1281 = vpop.f32.mrf.mxu0
      %v1282 = vpop.f32.mrf.mxu0
      %v1283 = vadd.f32 %v1122, %v1282
      %v1284 = vpop.f32.mrf.mxu0
      %1285 = vmatprep.mubr.bf16.mxu0 %v662
      %1286 = vmatmul.mubr.bf16.gmra.mxu0 %v661
      %v1287 = vpop.f32.mrf.mxu0
      %v1288 = vadd.f32 %v1127, %v1287
      %v1289 = vpop.f32.mrf.mxu0
      %v1290 = vpop.f32.mrf.mxu0
      %v1291 = vadd.f32 %v1130, %v1290
      %v1292 = vpop.f32.mrf.mxu0
      %1293 = vmatprep.mubr.bf16.mxu0 %v667
      %1294 = vmatmul.mubr.bf16.gmra.mxu0 %v666
      %v1295 = vpop.f32.mrf.mxu0
      %v1296 = vadd.f32 %v1135, %v1295
      %v1297 = vpop.f32.mrf.mxu0
      %v1298 = vpop.f32.mrf.mxu0
      %v1299 = vadd.f32 %v1138, %v1298
      %v1300 = vpop.f32.mrf.mxu0
      %1301 = vmatprep.mubr.bf16.mxu0 %v672
      %1302 = vmatmul.mubr.bf16.gmra.mxu0 %v671
      %v1303 = vpop.f32.mrf.mxu0
      %v1304 = vadd.f32 %v1143, %v1303
      %v1305 = vpop.f32.mrf.mxu0
      %v1306 = vpop.f32.mrf.mxu0
      %v1307 = vadd.f32 %v1146, %v1306
      %v1308 = vpop.f32.mrf.mxu0
      %1309 = vmatprep.mubr.bf16.mxu0 %v677
      %1310 = vmatmul.mubr.bf16.gmra.mxu0 %v676
      %v1311 = vpop.f32.mrf.mxu0
      %v1312 = vadd.f32 %v1151, %v1311
      %v1313 = vpop.f32.mrf.mxu0
      %v1314 = vpop.f32.mrf.mxu0
      %v1315 = vadd.f32 %v1154, %v1314
      %v1316 = vpop.f32.mrf.mxu0
      %1317 = vmatprep.mubr.bf16.mxu0 %v682
      %1318 = vmatmul.mubr.bf16.gmra.mxu0 %v681
      %v1319 = vpop.f32.mrf.mxu0
      %v1320 = vadd.f32 %v1159, %v1319
      %v1321 = vpop.f32.mrf.mxu0
      %v1322 = vpop.f32.mrf.mxu0
      %v1323 = vadd.f32 %v1162, %v1322
      %v1324 = vpop.f32.mrf.mxu0
      %1325 = vmatprep.mubr.bf16.mxu0 %v687
      %1326 = vmatmul.mubr.bf16.gmra.mxu0 %v686
      %v1327 = vpop.f32.mrf.mxu0
      %v1328 = vadd.f32 %v1167, %v1327
      %v1329 = vpop.f32.mrf.mxu0
      %v1330 = vpop.f32.mrf.mxu0
      %v1331 = vadd.f32 %v1170, %v1330
      %v1332 = vpop.f32.mrf.mxu0
      %1333 = vmatprep.mubr.bf16.mxu0 %v692
      %1334 = vmatmul.mubr.bf16.gmra.mxu0 %v691
      %v1335 = vpop.f32.mrf.mxu0
      %v1336 = vadd.f32 %v1175, %v1335
      %v1337 = vpop.f32.mrf.mxu0
      %v1338 = vpop.f32.mrf.mxu0
      %v1339 = vadd.f32 %v1178, %v1338
      %v1340 = vpop.f32.mrf.mxu0
      %1341 = vmatprep.mubr.bf16.mxu0 %v697
      %1342 = vmatmul.mubr.bf16.gmra.mxu0 %v696
      %v1343 = vpop.f32.mrf.mxu0
      %v1344 = vadd.f32 %v1183, %v1343
      %v1345 = vpop.f32.mrf.mxu0
      %v1346 = vpop.f32.mrf.mxu0
      %v1347 = vadd.f32 %v1186, %v1346
      %v1348 = vpop.f32.mrf.mxu0
      %1349 = vmatprep.mubr.bf16.mxu0 %v702
      %1350 = vmatmul.mubr.bf16.gmra.mxu0 %v701
      %v1351 = vpop.f32.mrf.mxu0
      %v1352 = vadd.f32 %v1191, %v1351
      %v1353 = vpop.f32.mrf.mxu0
      %v1354 = vpop.f32.mrf.mxu0
      %v1355 = vadd.f32 %v1194, %v1354
      %v1356 = vpop.f32.mrf.mxu0
      %1357 = vmatprep.mubr.bf16.mxu0 %v707
      %1358 = vmatmul.mubr.bf16.gmra.mxu0 %v706
      %v1359 = vpop.f32.mrf.mxu0
      %v1360 = vadd.f32 %v1199, %v1359
      %v1361 = vpop.f32.mrf.mxu0
      %v1362 = vpop.f32.mrf.mxu0
      %v1363 = vadd.f32 %v1202, %v1362
      %v1364 = vpop.f32.mrf.mxu0
      %1365 = vmatprep.mubr.bf16.mxu0 %v712
      %1366 = vmatmul.mubr.bf16.gmra.mxu0 %v711
      %v1367 = vpop.f32.mrf.mxu0
      %v1368 = vadd.f32 %v1207, %v1367
      %v1369 = vpop.f32.mrf.mxu0
      %v1370 = vpop.f32.mrf.mxu0
      %v1371 = vadd.f32 %v1210, %v1370
      %v1372 = vpop.f32.mrf.mxu0
      %1373 = vmatprep.mubr.bf16.mxu0 %v717
      %1374 = vmatmul.mubr.bf16.gmra.mxu0 %v716
      %v1375 = vpop.f32.mrf.mxu0
      %v1376 = vadd.f32 %v1215, %v1375
      %v1377 = vpop.f32.mrf.mxu0
      %v1378 = vpop.f32.mrf.mxu0
      %v1379 = vadd.f32 %v1218, %v1378
      %v1380 = vpop.f32.mrf.mxu0
      %1381 = vmatprep.mubr.bf16.mxu0 %v722
      %1382 = vmatmul.mubr.bf16.gmra.mxu0 %v721
      %v1383 = vpop.f32.mrf.mxu0
      %v1384 = vadd.f32 %v1223, %v1383
      %v1385 = vpop.f32.mrf.mxu0
      %v1386 = vpop.f32.mrf.mxu0
      %v1387 = vadd.f32 %v1226, %v1386
      %v1388 = vpop.f32.mrf.mxu0
      %1389 = vmatprep.mubr.bf16.mxu0 %v727
      %1390 = vmatmul.mubr.bf16.gmra.mxu0 %v726
      %v1391 = vpop.f32.mrf.mxu0
      %v1392 = vadd.f32 %v1231, %v1391
      %v1393 = vpop.f32.mrf.mxu0
      %v1394 = vpop.f32.mrf.mxu0
      %v1395 = vadd.f32 %v1234, %v1394
      %v1396 = vpop.f32.mrf.mxu0
      %1397 = vdwg.mxu0
      %1398 = vmatprep.subr.bf16.mxu0 0
      %1399 = vmatpush1.bf16.msra.mxu0 0
      %1400 = vmatprep.subr.bf16.mxu0 0
      %1401 = vmatpush1.bf16.msra.mxu0 0
      %1402 = vmatprep.subr.bf16.mxu0 0
      %1403 = vmatpush1.bf16.msra.mxu0 %v1074
      %1404 = vmatprep.subr.bf16.mxu0 0
      %1405 = vmatpush1.bf16.msra.mxu0 %v981
      %1406 = vmatprep.subr.bf16.mxu0 0
      %1407 = vmatpush1.bf16.msra.mxu0 %v980
      %1408 = vmatprep.subr.bf16.mxu0 0
      %1409 = vmatpush1.bf16.msra.mxu0 %v979
      %1410 = vmatprep.subr.bf16.mxu0 0
      %1411 = vmatpush1.bf16.msra.mxu0 %v978
      %1412 = vmatprep.subr.bf16.mxu0 0
      %1413 = vmatpush1.bf16.msra.mxu0 %v977
      %1414 = vmatprep.subr.bf16.mxu0 0
      %1415 = vmatpush2.bf16.msra.mxu0 0
      %1416 = vmatprep.subr.bf16.mxu0 0
      %1417 = vmatpush2.bf16.msra.mxu0 0
      %1418 = vmatprep.subr.bf16.mxu0 0
      %1419 = vmatpush2.bf16.msra.mxu0 0
      %1420 = vmatprep.subr.bf16.mxu0 0
      %1421 = vmatpush2.bf16.msra.mxu0 0
      %1422 = vmatprep.subr.bf16.mxu0 0
      %1423 = vmatpush2.bf16.msra.mxu0 0
      %1424 = vmatprep.subr.bf16.mxu0 0
      %1425 = vmatpush2.bf16.msra.mxu0 0
      %1426 = vmatprep.subr.bf16.mxu0 0
      %1427 = vmatpush2.bf16.msra.mxu0 0
      %1428 = vmatprep.subr.bf16.mxu0 0
      %1429 = vmatpush2.bf16.msra.mxu0 0
      %1430 = vmatprep.mubr.bf16.mxu0 0
      %1431 = vmatmul.mubr.bf16.gmra.mxu0 %v1022
      %v1432 = vpop.f32.mrf.mxu0
      %v1433 = vadd.f32 %v1272, %v1432
      %v1434 = vpop.f32.mrf.mxu0
      %v1435 = vpop.f32.mrf.mxu0
      %v1436 = vadd.f32 %v1275, %v1435
      %v1437 = vpop.f32.mrf.mxu0
      %1438 = vmatprep.mubr.bf16.mxu0 0
      %1439 = vmatmul.mubr.bf16.gmra.mxu0 %v1025
      %v1440 = vpop.f32.mrf.mxu0
      %v1441 = vadd.f32 %v1280, %v1440
      %v1442 = vpop.f32.mrf.mxu0
      %v1443 = vpop.f32.mrf.mxu0
      %v1444 = vadd.f32 %v1283, %v1443
      %v1445 = vpop.f32.mrf.mxu0
      %1446 = vmatprep.mubr.bf16.mxu0 0
      %1447 = vmatmul.mubr.bf16.gmra.mxu0 %v1028
      %v1448 = vpop.f32.mrf.mxu0
      %v1449 = vadd.f32 %v1288, %v1448
      %v1450 = vpop.f32.mrf.mxu0
      %v1451 = vpop.f32.mrf.mxu0
      %v1452 = vadd.f32 %v1291, %v1451
      %v1453 = vpop.f32.mrf.mxu0
      %1454 = vmatprep.mubr.bf16.mxu0 0
      %1455 = vmatmul.mubr.bf16.gmra.mxu0 %v1031
      %v1456 = vpop.f32.mrf.mxu0
      %v1457 = vadd.f32 %v1296, %v1456
      %v1458 = vpop.f32.mrf.mxu0
      %v1459 = vpop.f32.mrf.mxu0
      %v1460 = vadd.f32 %v1299, %v1459
      %v1461 = vpop.f32.mrf.mxu0
      %1462 = vmatprep.mubr.bf16.mxu0 0
      %1463 = vmatmul.mubr.bf16.gmra.mxu0 %v1034
      %v1464 = vpop.f32.mrf.mxu0
      %v1465 = vadd.f32 %v1304, %v1464
      %v1466 = vpop.f32.mrf.mxu0
      %v1467 = vpop.f32.mrf.mxu0
      %v1468 = vadd.f32 %v1307, %v1467
      %v1469 = vpop.f32.mrf.mxu0
      %1470 = vmatprep.mubr.bf16.mxu0 0
      %1471 = vmatmul.mubr.bf16.gmra.mxu0 %v1037
      %v1472 = vpop.f32.mrf.mxu0
      %v1473 = vadd.f32 %v1312, %v1472
      %v1474 = vpop.f32.mrf.mxu0
      %v1475 = vpop.f32.mrf.mxu0
      %v1476 = vadd.f32 %v1315, %v1475
      %v1477 = vpop.f32.mrf.mxu0
      %1478 = vmatprep.mubr.bf16.mxu0 0
      %1479 = vmatmul.mubr.bf16.gmra.mxu0 %v1040
      %v1480 = vpop.f32.mrf.mxu0
      %v1481 = vadd.f32 %v1320, %v1480
      %v1482 = vpop.f32.mrf.mxu0
      %v1483 = vpop.f32.mrf.mxu0
      %v1484 = vadd.f32 %v1323, %v1483
      %v1485 = vpop.f32.mrf.mxu0
      %1486 = vmatprep.mubr.bf16.mxu0 0
      %1487 = vmatmul.mubr.bf16.gmra.mxu0 %v1043
      %v1488 = vpop.f32.mrf.mxu0
      %v1489 = vadd.f32 %v1328, %v1488
      %v1490 = vpop.f32.mrf.mxu0
      %v1491 = vpop.f32.mrf.mxu0
      %v1492 = vadd.f32 %v1331, %v1491
      %v1493 = vpop.f32.mrf.mxu0
      %1494 = vmatprep.mubr.bf16.mxu0 0
      %1495 = vmatmul.mubr.bf16.gmra.mxu0 %v1046
      %v1496 = vpop.f32.mrf.mxu0
      %v1497 = vadd.f32 %v1336, %v1496
      %v1498 = vpop.f32.mrf.mxu0
      %v1499 = vpop.f32.mrf.mxu0
      %v1500 = vadd.f32 %v1339, %v1499
      %v1501 = vpop.f32.mrf.mxu0
      %1502 = vmatprep.mubr.bf16.mxu0 0
      %1503 = vmatmul.mubr.bf16.gmra.mxu0 %v1049
      %v1504 = vpop.f32.mrf.mxu0
      %v1505 = vadd.f32 %v1344, %v1504
      %v1506 = vpop.f32.mrf.mxu0
      %v1507 = vpop.f32.mrf.mxu0
      %v1508 = vadd.f32 %v1347, %v1507
      %v1509 = vpop.f32.mrf.mxu0
      %1510 = vmatprep.mubr.bf16.mxu0 0
      %1511 = vmatmul.mubr.bf16.gmra.mxu0 %v1052
      %v1512 = vpop.f32.mrf.mxu0
      %v1513 = vadd.f32 %v1352, %v1512
      %v1514 = vpop.f32.mrf.mxu0
      %v1515 = vpop.f32.mrf.mxu0
      %v1516 = vadd.f32 %v1355, %v1515
      %v1517 = vpop.f32.mrf.mxu0
      %1518 = vmatprep.mubr.bf16.mxu0 0
      %1519 = vmatmul.mubr.bf16.gmra.mxu0 %v1055
      %v1520 = vpop.f32.mrf.mxu0
      %v1521 = vadd.f32 %v1360, %v1520
      %v1522 = vpop.f32.mrf.mxu0
      %v1523 = vpop.f32.mrf.mxu0
      %v1524 = vadd.f32 %v1363, %v1523
      %v1525 = vpop.f32.mrf.mxu0
      %1526 = vmatprep.mubr.bf16.mxu0 0
      %1527 = vmatmul.mubr.bf16.gmra.mxu0 %v1058
      %v1528 = vpop.f32.mrf.mxu0
      %v1529 = vadd.f32 %v1368, %v1528
      %v1530 = vpop.f32.mrf.mxu0
      %v1531 = vpop.f32.mrf.mxu0
      %v1532 = vadd.f32 %v1371, %v1531
      %v1533 = vpop.f32.mrf.mxu0
      %1534 = vmatprep.mubr.bf16.mxu0 0
      %1535 = vmatmul.mubr.bf16.gmra.mxu0 %v1061
      %v1536 = vpop.f32.mrf.mxu0
      %v1537 = vadd.f32 %v1376, %v1536
      %v1538 = vpop.f32.mrf.mxu0
      %v1539 = vpop.f32.mrf.mxu0
      %v1540 = vadd.f32 %v1379, %v1539
      %v1541 = vpop.f32.mrf.mxu0
      %1542 = vmatprep.mubr.bf16.mxu0 0
      %1543 = vmatmul.mubr.bf16.gmra.mxu0 %v1064
      %v1544 = vpop.f32.mrf.mxu0
      %v1545 = vadd.f32 %v1384, %v1544
      %v1546 = vpop.f32.mrf.mxu0
      %v1547 = vpop.f32.mrf.mxu0
      %v1548 = vadd.f32 %v1387, %v1547
      %v1549 = vpop.f32.mrf.mxu0
      %1550 = vmatprep.mubr.bf16.mxu0 0
      %1551 = vmatmul.mubr.bf16.gmra.mxu0 %v1067
      %v1552 = vpop.f32.mrf.mxu0
      %v1553 = vadd.f32 %v1392, %v1552
      %v1554 = vpop.f32.mrf.mxu0
      %v1555 = vpop.f32.mrf.mxu0
      %v1556 = vadd.f32 %v1395, %v1555
      %v1557 = vpop.f32.mrf.mxu0
      %1558 = vdwg.mxu0
      %v1559 = vmax.f32 %v1433, 0.0
      %v1560 = vmax.f32 %v1436, 0.0
      %v1561 = vmax.f32 %v1441, 0.0
      %v1562 = vmax.f32 %v1444, 0.0
      %v1563 = vmax.f32 %v1449, 0.0
      %v1564 = vmax.f32 %v1452, 0.0
      %v1565 = vmax.f32 %v1457, 0.0
      %v1566 = vmax.f32 %v1460, 0.0
      %v1567 = vmax.f32 %v1465, 0.0
      %v1568 = vmax.f32 %v1468, 0.0
      %v1569 = vmax.f32 %v1473, 0.0
      %v1570 = vmax.f32 %v1476, 0.0
      %v1571 = vmax.f32 %v1481, 0.0
      %v1572 = vmax.f32 %v1484, 0.0
      %v1573 = vmax.f32 %v1489, 0.0
      %v1574 = vmax.f32 %v1492, 0.0
      %v1575 = vmax.f32 %v1497, 0.0
      %v1576 = vmax.f32 %v1500, 0.0
      %v1577 = vmax.f32 %v1505, 0.0
      %v1578 = vmax.f32 %v1508, 0.0
      %v1579 = vmax.f32 %v1513, 0.0
      %v1580 = vmax.f32 %v1516, 0.0
      %v1581 = vmax.f32 %v1521, 0.0
      %v1582 = vmax.f32 %v1524, 0.0
      %v1583 = vmax.f32 %v1529, 0.0
      %v1584 = vmax.f32 %v1532, 0.0
      %v1585 = vmax.f32 %v1537, 0.0
      %v1586 = vmax.f32 %v1540, 0.0
      %v1587 = vmax.f32 %v1545, 0.0
      %v1588 = vmax.f32 %v1548, 0.0
      %v1589 = vmax.f32 %v1553, 0.0
      %v1590 = vmax.f32 %v1556, 0.0
      %v1591 = vpack.c.bf16 %v1560, %v1559
      %v1592 = vpack.c.bf16 %v1562, %v1561
      %v1593 = vpack.c.bf16 %v1564, %v1563
      %v1594 = vpack.c.bf16 %v1566, %v1565
      %v1595 = vpack.c.bf16 %v1568, %v1567
      %v1596 = vpack.c.bf16 %v1570, %v1569
      %v1597 = vpack.c.bf16 %v1572, %v1571
      %v1598 = vpack.c.bf16 %v1574, %v1573
      %v1599 = vpack.c.bf16 %v1576, %v1575
      %v1600 = vpack.c.bf16 %v1578, %v1577
      %v1601 = vpack.c.bf16 %v1580, %v1579
      %v1602 = vpack.c.bf16 %v1582, %v1581
      %v1603 = vpack.c.bf16 %v1584, %v1583
      %v1604 = vpack.c.bf16 %v1586, %v1585
      %v1605 = vpack.c.bf16 %v1588, %v1587
      %v1606 = vpack.c.bf16 %v1590, %v1589
      %v1623 = vunpack.c.l.b16 %v1591
      %v1624 = vunpack.c.h.b16 %v1591
      %v1625 = vunpack.c.l.b16 %v1592
      %v1626 = vunpack.c.h.b16 %v1592
      %v1627 = vunpack.c.l.b16 %v1593
      %v1628 = vunpack.c.h.b16 %v1593
      %v1629 = vunpack.c.l.b16 %v1594
      %v1630 = vunpack.c.h.b16 %v1594
      %v1631 = vunpack.c.l.b16 %v1595
      %v1632 = vunpack.c.h.b16 %v1595
      %v1633 = vunpack.c.l.b16 %v1596
      %v1634 = vunpack.c.h.b16 %v1596
      %v1635 = vunpack.c.l.b16 %v1597
      %v1636 = vunpack.c.h.b16 %v1597
      %v1637 = vunpack.c.l.b16 %v1598
      %v1638 = vunpack.c.h.b16 %v1598
      %v1639 = vunpack.c.l.b16 %v1599
      %v1640 = vunpack.c.h.b16 %v1599
      %v1641 = vunpack.c.l.b16 %v1600
      %v1642 = vunpack.c.h.b16 %v1600
      %v1643 = vunpack.c.l.b16 %v1601
      %v1644 = vunpack.c.h.b16 %v1601
      %v1645 = vunpack.c.l.b16 %v1602
      %v1646 = vunpack.c.h.b16 %v1602
      %v1647 = vunpack.c.l.b16 %v1603
      %v1648 = vunpack.c.h.b16 %v1603
      %v1649 = vunpack.c.l.b16 %v1604
      %v1650 = vunpack.c.h.b16 %v1604
      %v1651 = vunpack.c.l.b16 %v1605
      %v1652 = vunpack.c.h.b16 %v1605
      %v1653 = vunpack.c.l.b16 %v1606
      %v1654 = vunpack.c.h.b16 %v1606
      %v1655 = vpack.c.b16 %v1623, %v1623
      %v1656 = vpack.c.b16 %v1624, %v1624
      %v1657 = vpack.c.b16 %v1625, %v1625
      %v1658 = vpack.c.b16 %v1626, %v1626
      %v1659 = vpack.c.b16 %v1627, %v1627
      %v1660 = vpack.c.b16 %v1628, %v1628
      %v1661 = vpack.c.b16 %v1629, %v1629
      %v1662 = vpack.c.b16 %v1630, %v1630
      %v1663 = vpack.c.b16 %v1631, %v1631
      %v1664 = vpack.c.b16 %v1632, %v1632
      %v1665 = vpack.c.b16 %v1633, %v1633
      %v1666 = vpack.c.b16 %v1634, %v1634
      %v1667 = vpack.c.b16 %v1635, %v1635
      %v1668 = vpack.c.b16 %v1636, %v1636
      %v1669 = vpack.c.b16 %v1637, %v1637
      %v1670 = vpack.c.b16 %v1638, %v1638
      %v1671 = vpack.c.b16 %v1639, %v1639
      %v1672 = vpack.c.b16 %v1640, %v1640
      %v1673 = vpack.c.b16 %v1641, %v1641
      %v1674 = vpack.c.b16 %v1642, %v1642
      %v1675 = vpack.c.b16 %v1643, %v1643
      %v1676 = vpack.c.b16 %v1644, %v1644
      %v1677 = vpack.c.b16 %v1645, %v1645
      %v1678 = vpack.c.b16 %v1646, %v1646
      %v1679 = vpack.c.b16 %v1647, %v1647
      %v1680 = vpack.c.b16 %v1648, %v1648
      %v1681 = vpack.c.b16 %v1649, %v1649
      %v1682 = vpack.c.b16 %v1650, %v1650
      %v1683 = vpack.c.b16 %v1651, %v1651
      %v1684 = vpack.c.b16 %v1652, %v1652
      %v1685 = vpack.c.b16 %v1653, %v1653
      %v1686 = vpack.c.b16 %v1654, %v1654
      %vm1719 = vcmask 257024
      %1720 = vst.msk [vmem:[%s211] sm:$0xf] %vm1719, %v1655
      %1721 = vst.msk [vmem:[%s211 + $0x4] sm:$0xf] %vm1719, %v1656
      %1722 = vst.msk [vmem:[%s211 + $0x8] sm:$0xf] %vm1719, %v1657
      %1723 = vst.msk [vmem:[%s211 + $0xc] sm:$0xf] %vm1719, %v1658
      %1724 = vst.msk [vmem:[%s211 + $0x10] sm:$0xf] %vm1719, %v1659
      %1725 = vst.msk [vmem:[%s211 + $0x14] sm:$0xf] %vm1719, %v1660
      %1726 = vst.msk [vmem:[%s211 + $0x18] sm:$0xf] %vm1719, %v1661
      %1727 = vst.msk [vmem:[%s211 + $0x1c] sm:$0xf] %vm1719, %v1662
      %1728 = vst.msk [vmem:[%s211 + $0x20] sm:$0xf] %vm1719, %v1663
      %1729 = vst.msk [vmem:[%s211 + $0x24] sm:$0xf] %vm1719, %v1664
      %1730 = vst.msk [vmem:[%s211 + $0x28] sm:$0xf] %vm1719, %v1665
      %1731 = vst.msk [vmem:[%s211 + $0x2c] sm:$0xf] %vm1719, %v1666
      %1732 = vst.msk [vmem:[%s211 + $0x30] sm:$0xf] %vm1719, %v1667
      %1733 = vst.msk [vmem:[%s211 + $0x34] sm:$0xf] %vm1719, %v1668
      %1734 = vst.msk [vmem:[%s211 + $0x38] sm:$0xf] %vm1719, %v1669
      %1735 = vst.msk [vmem:[%s211 + $0x3c] sm:$0xf] %vm1719, %v1670
      %1736 = vst.msk [vmem:[%s211 + $0x40] sm:$0xf] %vm1719, %v1671
      %1737 = vst.msk [vmem:[%s211 + $0x44] sm:$0xf] %vm1719, %v1672
      %1738 = vst.msk [vmem:[%s211 + $0x48] sm:$0xf] %vm1719, %v1673
      %1739 = vst.msk [vmem:[%s211 + $0x4c] sm:$0xf] %vm1719, %v1674
      %1740 = vst.msk [vmem:[%s211 + $0x50] sm:$0xf] %vm1719, %v1675
      %1741 = vst.msk [vmem:[%s211 + $0x54] sm:$0xf] %vm1719, %v1676
      %1742 = vst.msk [vmem:[%s211 + $0x58] sm:$0xf] %vm1719, %v1677
      %1743 = vst.msk [vmem:[%s211 + $0x5c] sm:$0xf] %vm1719, %v1678
      %1744 = vst.msk [vmem:[%s211 + $0x60] sm:$0xf] %vm1719, %v1679
      %1745 = vst.msk [vmem:[%s211 + $0x64] sm:$0xf] %vm1719, %v1680
      %1746 = vst.msk [vmem:[%s211 + $0x68] sm:$0xf] %vm1719, %v1681
      %1747 = vst.msk [vmem:[%s211 + $0x6c] sm:$0xf] %vm1719, %v1682
      %1748 = vst.msk [vmem:[%s211 + $0x70] sm:$0xf] %vm1719, %v1683
      %1749 = vst.msk [vmem:[%s211 + $0x74] sm:$0xf] %vm1719, %v1684
      %1750 = vst.msk [vmem:[%s211 + $0x78] sm:$0xf] %vm1719, %v1685
      %1751 = vst.msk [vmem:[%s211 + $0x7c] sm:$0xf] %vm1719, %v1686
      %s1752 = smul.u32 32, %s19
      %p1753 = scmp.lt.s32.totalorder %s18, 1
      %s1754 = scalar_select %p1753, %s18, 1
      %p1755 = scmp.lt.s32.totalorder %s1752, 31
      %s1756 = scalar_select %p1755, %s1752, 31
      %s1757 = smul.addr %s1754, 32
      %s1758 = sadd.s32 %s1756, %s1757
      %s1759 = smul.addr %s1758, 4
      %s1760 = scalar_lea.vmem %s3, %s1759
      // Predicated region
      $region33: #{autoencoder_pallas.26} parent=31 // pred_check
        %p1761 = pneg %p116
      $region34: #{autoencoder_pallas.26} parent=31 // pred_check_branch
        %1763 = sbr.rel (%p1761) target = $region36
      $region35: #{autoencoder_pallas.26} parent=31 // pred_region
        %s1764 = smul.u32 32, %s19
      $region36: #{autoencoder_pallas.26} parent=31 // pred_fallthru
        _
    $region32: #{autoencoder_pallas.26} parent=5 // pred_fallthru
      _
    %p1765 = scmp.le.s32.totalorder 2, %s9
    // Predicated region
    $region37: #{autoencoder_pallas.26} parent=5 // pred_check
      %p1766 = pneg %p1765
    $region38: #{autoencoder_pallas.26} parent=5 // pred_check_branch
      %1768 = sbr.rel (%p1766) target = $region40
    $region39: #{autoencoder_pallas.26} parent=5 // pred_region
      %s1769 = ssub.s32 %s9, 2
      // Predicated region
      $region41: #{autoencoder_pallas.26} parent=39 // pred_check
        %p1770 = pneg %p122
      $region42: #{autoencoder_pallas.26} parent=39 // pred_check_branch
        %1772 = sbr.rel (%p1770) target = $region44
      $region43: #{autoencoder_pallas.26} parent=39 // pred_region
        %s1773 = smul.u32 32, %s21
        %p1774 = scmp.lt.s32.totalorder %s20, 1
        %s1775 = scalar_select %p1774, %s20, 1
        %p1776 = scmp.lt.s32.totalorder %s1773, 31
        %s1777 = scalar_select %p1776, %s1773, 31
        %s1778 = smul.addr %s1775, 32
        %s1779 = sadd.s32 %s1777, %s1778
        %s1780 = smul.addr %s1779, 4
        %s1781 = scalar_lea.vmem %s3, %s1780
      $region44: #{autoencoder_pallas.26} parent=39 // pred_fallthru
        _
    $region40: #{autoencoder_pallas.26} parent=5 // pred_fallthru
      _
  $region6: #{autoencoder_pallas.26} parent=0 // loop_footer
    %s13 = sadd.s32 1, %s9
  $region7: #{autoencoder_pallas.26} parent=0 // loop_footer_branch
    %8 = sbr.rel target = $region3
  $region8: #{autoencoder_pallas.26} parent=0 // loop_exit
    _

</llo_original>
